<compile_context>
chip_gen: v6e
topology: v6e:2x2x1
jax: 0.10.0
libtpu: 0.0.40
codegen_flags: <defaults>
</compile_context>

<pallas_src>
import functools
import math

import jax
import jax.numpy as jnp
from jax.experimental import pallas as pl
from jax.experimental.pallas import tpu as pltpu


# ----------------------------------------------------------------------------
# In-kernel helpers (operate on traced VMEM values)
# ----------------------------------------------------------------------------

def _dot(a, b):
    """[M, K] @ [K, N] -> [M, N]."""
    return jax.lax.dot_general(a, b, (((1,), (0,)), ((), ())),
                               preferred_element_type=jnp.float32)


def _dot_tb(a, b):
    """[M, K] x [N, K] -> [M, N]  (contract last dims; no explicit transpose)."""
    return jax.lax.dot_general(a, b, (((1,), (1,)), ((), ())),
                               preferred_element_type=jnp.float32)


def _layer_norm(x, g, b, eps):
    mean = jnp.mean(x, axis=-1, keepdims=True)
    var = jnp.mean(jnp.square(x - mean), axis=-1, keepdims=True)
    return (x - mean) * jax.lax.rsqrt(var + eps) * g + b


def _mha_block(q_proj, k_proj, v_proj, key_bias, w_out, probs_ref, *, H, dh, scale):
    """Multi-head attention for one batch element, heads statically unrolled.

    q_proj [Nq, D], k_proj/v_proj [Nk, D], key_bias [1, Nk] additive, w_out [D, D].
    Writes per-head probs to probs_ref[0, h] and returns:
      out       [Nq, D]  = (merged attention output) @ w_out, accumulated per head
      key_sum   [Nq, 1]  = probs.sum(keys).sum(heads)
      qry_sum   [Nk, 1]  = probs.sum(queries).sum(heads)
      head_mean [Nq, Nk] = probs.mean(heads)
    """
    Nq, D = q_proj.shape
    Nk = k_proj.shape[0]
    out = jnp.zeros((Nq, D), jnp.float32)
    p_sum = jnp.zeros((Nq, Nk), jnp.float32)
    for h in range(H):                                    # static unroll, H is small
        sl = slice(h * dh, (h + 1) * dh)
        s = _dot_tb(q_proj[:, sl], k_proj[:, sl]) * scale + key_bias
        s = s - jnp.max(s, axis=-1, keepdims=True)
        e = jnp.exp(s)
        p = e / jnp.sum(e, axis=-1, keepdims=True)        # [Nq, Nk]
        probs_ref[0, h] = p
        p_sum = p_sum + p
        # merged-heads @ Wo  ==  sum_h (att_h @ Wo[h*dh:(h+1)*dh, :])
        out = out + _dot(_dot(p, v_proj[:, sl]), w_out[sl, :])
    key_sum = jnp.sum(p_sum, axis=-1, keepdims=True)      # [Nq, 1]
    qry_sum = jnp.sum(p_sum.T, axis=-1, keepdims=True)    # [Nk, 1] (one tiny transpose)
    return out, key_sum, qry_sum, p_sum * (1.0 / H)


# ----------------------------------------------------------------------------
# The fused kernel: one batch element per grid step
# ----------------------------------------------------------------------------

def _fused_kernel(v_ref, q_ref, vmask_ref, qmask_ref, vimp_ref, qimp_ref,
                  co_v_qkv_ref, co_q_qkv_ref, co_wo_v_ref, co_wo_q_ref,
                  sv_qkv_ref, sv_wo_ref, sq_qkv_ref, sq_wo_ref,
                  al_wv_ref, al_wq_ref,
                  ln_v_g_ref, ln_v_b_ref, ln_q_g_ref, ln_q_b_ref,
                  vo_ref, qo_ref, v2q_ref, q2v_ref, v2v_ref, q2q_ref,
                  vimp_out_ref, qimp_out_ref,
                  *, H, dh, alpha, beta, eps):
    D = H * dh
    scale = 1.0 / math.sqrt(dh)

    v = v_ref[0]                                   # [N1, D]
    q = q_ref[0]                                   # [N2, D]
    v_keybias = (1.0 - vmask_ref[0]) * (-1e9)      # [1, N1]  additive mask bias
    q_keybias = (1.0 - qmask_ref[0]) * (-1e9)      # [1, N2]
    v_imp = vimp_ref[0]                            # [N1, 1]
    q_imp = qimp_ref[0]                            # [N2, 1]

    # ---------------- CoAttention (packed QKV, fused bidirectional MHA) ----
    v_qkv = _dot(v, co_v_qkv_ref[...])             # [N1, 3D]
    q_qkv = _dot(q, co_q_qkv_ref[...])             # [N2, 3D]
    vq, vk, vv_ = v_qkv[:, 0:D], v_qkv[:, D:2 * D], v_qkv[:, 2 * D:3 * D]
    qq_, qk, qv = q_qkv[:, 0:D], q_qkv[:, D:2 * D], q_qkv[:, 2 * D:3 * D]

    # v queries attend over q keys -> probs q2v [H, N1, N2]
    att_v, q2v_ksum, _, a_q2v = _mha_block(vq, qk, qv, q_keybias, co_wo_v_ref[...],
                                           q2v_ref, H=H, dh=dh, scale=scale)
    # q queries attend over v keys -> probs v2q [H, N2, N1]
    att_q, v2q_ksum, _, a_v2q = _mha_block(qq_, vk, vv_, v_keybias, co_wo_q_ref[...],
                                           v2q_ref, H=H, dh=dh, scale=scale)
    v_emb1c = v + att_v
    q_emb1c = q + att_q

    # importance gating (alpha step): probs.sum(-1).sum(heads) computed in-kernel
    v_imp = jax.nn.sigmoid((1.0 - alpha) * v_imp + alpha * q2v_ksum)
    q_imp = jax.nn.sigmoid((1.0 - alpha) * q_imp + alpha * v2q_ksum)
    v_emb1c = v_emb1c * v_imp
    q_emb1c = q_emb1c * q_imp

    # ---------------- SelfAttention per modality ---------------------------
    sv = _dot(v_emb1c, sv_qkv_ref[...])            # [N1, 3D]
    sq = _dot(q_emb1c, sq_qkv_ref[...])            # [N2, 3D]
    svq, svk, svv = sv[:, 0:D], sv[:, D:2 * D], sv[:, 2 * D:3 * D]
    sqq, sqk, sqv = sq[:, 0:D], sq[:, D:2 * D], sq[:, 2 * D:3 * D]

    att_vv, _, v2v_qsum, _ = _mha_block(svq, svk, svv, v_keybias, sv_wo_ref[...],
                                        v2v_ref, H=H, dh=dh, scale=scale)
    att_qq, _, q2q_qsum, _ = _mha_block(sqq, sqk, sqv, q_keybias, sq_wo_ref[...],
                                        q2q_ref, H=H, dh=dh, scale=scale)
    v_emb1s = v_emb1c + att_vv
    q_emb1s = q_emb1c + att_qq

    # importance gating (beta step): probs.sum(-2).sum(heads) computed in-kernel
    # (original code uses undefined `vv`/`qq`; interpreted as v2v/q2q)
    v_imp = jax.nn.sigmoid((1.0 - beta) * v_imp + beta * v2v_qsum)
    q_imp = jax.nn.sigmoid((1.0 - beta) * q_imp + beta * q2q_qsum)
    v_emb1s = v_emb1s * v_imp
    q_emb1s = q_emb1s * q_imp

    # ---------------- PathAttention (head-averaged 2-hop paths) ------------
    l1 = _dot(a_q2v, a_v2q)                        # [N1, N1]
    l2 = _dot(a_v2q, a_q2v)                        # [N2, N2]
    v_emb1a = v_emb1s + _dot(l1, _dot(v_emb1s, al_wv_ref[...]))
    q_emb1a = q_emb1s + _dot(l2, _dot(q_emb1s, al_wq_ref[...]))

    # ---------------- SublayerConnection (LayerNorm; dropout = identity) ---
    vo_ref[0] = _layer_norm(v_emb1a, ln_v_g_ref[...], ln_v_b_ref[...], eps)
    qo_ref[0] = _layer_norm(q_emb1a, ln_q_g_ref[...], ln_q_b_ref[...], eps)
    vimp_out_ref[0] = v_imp
    qimp_out_ref[0] = q_imp


# ----------------------------------------------------------------------------
# Wrapper: one pallas_call, grid over batch, all weights resident in VMEM
# ----------------------------------------------------------------------------

def self_cross_graph_layer(p, v_emb, q_emb, v_mask, q_mask, v_imp, q_imp,
                           num_heads, alpha=0.95, beta=0.95, eps=1e-5):
    B, N1, D = v_emb.shape
    N2 = q_emb.shape[1]
    H = num_heads
    dh = D // H

    # small reshapes so every kernel operand has >=2 trailing dims that equal
    # the full array extents (satisfies the (8,128)/full-extent block rule)
    vmask3 = v_mask.reshape(B, 1, N1)
    qmask3 = q_mask.reshape(B, 1, N2)
    vimp3 = v_imp.reshape(B, N1, 1)
    qimp3 = q_imp.reshape(B, N2, 1)

    def batched(shape):
        return pl.BlockSpec((1,) + tuple(shape),
                            lambda b, _s=len(shape): (b,) + (0,) * _s)

    def full(shape):
        return pl.BlockSpec(tuple(shape), lambda b, _s=len(shape): (0,) * _s)

    in_specs = [
        batched((N1, D)), batched((N2, D)),            # v_emb, q_emb
        batched((1, N1)), batched((1, N2)),            # masks (bias built in-kernel)
        batched((N1, 1)), batched((N2, 1)),            # importance (column form)
        full((D, 3 * D)), full((D, 3 * D)),            # packed co QKV weights
        full((D, D)), full((D, D)),                    # co output projections
        full((D, 3 * D)), full((D, D)),                # packed self-attn (v)
        full((D, 3 * D)), full((D, D)),                # packed self-attn (q)
        full((D, D)), full((D, D)),                    # path-attention projections
        full((1, D)), full((1, D)), full((1, D)), full((1, D)),  # LN gamma/beta
    ]
    out_shape = (
        jax.ShapeDtypeStruct((B, N1, D), jnp.float32),     # vo
        jax.ShapeDtypeStruct((B, N2, D), jnp.float32),     # qo
        jax.ShapeDtypeStruct((B, H, N2, N1), jnp.float32),  # v2q
        jax.ShapeDtypeStruct((B, H, N1, N2), jnp.float32),  # q2v
        jax.ShapeDtypeStruct((B, H, N1, N1), jnp.float32),  # v2v
        jax.ShapeDtypeStruct((B, H, N2, N2), jnp.float32),  # q2q
        jax.ShapeDtypeStruct((B, N1, 1), jnp.float32),      # v_imp
        jax.ShapeDtypeStruct((B, N2, 1), jnp.float32),      # q_imp
    )
    out_specs = (
        batched((N1, D)), batched((N2, D)),
        batched((H, N2, N1)), batched((H, N1, N2)),
        batched((H, N1, N1)), batched((H, N2, N2)),
        batched((N1, 1)), batched((N2, 1)),
    )

    kernel = functools.partial(_fused_kernel, H=H, dh=dh,
                               alpha=alpha, beta=beta, eps=eps)

    outs = pl.pallas_call(
        kernel,
        out_shape=out_shape,
        grid=(B,),
        in_specs=in_specs,
        out_specs=out_specs,
        compiler_params=pltpu.CompilerParams(
            dimension_semantics=("parallel",)),   # shards batch across v7x's 2 TCs
    )(v_emb, q_emb, vmask3, qmask3, vimp3, qimp3,
      p["co_v_qkv"], p["co_q_qkv"], p["co_wo_v"], p["co_wo_q"],
      p["sv_qkv"], p["sv_wo"], p["sq_qkv"], p["sq_wo"],
      p["al_wv"], p["al_wq"],
      p["ln_v_g"], p["ln_v_b"], p["ln_q_g"], p["ln_q_b"])

    vo, qo, v2q, q2v, v2v, q2q, vimp_o, qimp_o = outs
    return (vo, qo, v2q, q2v, v2v, q2q,
            vimp_o.reshape(B, N1), qimp_o.reshape(B, N2))


# ----------------------------------------------------------------------------
# Pure-JAX reference (same reconstructed semantics) for validation
# ----------------------------------------------------------------------------

def reference_forward(p, v_emb, q_emb, v_mask, q_mask, v_imp, q_imp,
                      H, alpha=0.95, beta=0.95, eps=1e-5):
    B, N1, D = v_emb.shape
    N2 = q_emb.shape[1]
    dh = D // H
    scale = 1.0 / math.sqrt(dh)

    def split(x):
        return jnp.transpose(x.reshape(B, -1, H, dh), (0, 2, 1, 3))

    def merge(x):
        return jnp.transpose(x, (0, 2, 1, 3)).reshape(B, -1, D)

    def attn(qx, kx, vx, key_mask):
        s = jnp.einsum("bhqd,bhkd->bhqk", qx, kx) * scale
        s = s + (1.0 - key_mask)[:, None, None, :] * (-1e9)
        pr = jax.nn.softmax(s, axis=-1)
        return jnp.einsum("bhqk,bhkd->bhqd", pr, vx), pr

    v_qkv = v_emb @ p["co_v_qkv"]
    q_qkv = q_emb @ p["co_q_qkv"]
    vq, vk, vv_ = jnp.split(v_qkv, 3, axis=-1)
    qq_, qk, qv = jnp.split(q_qkv, 3, axis=-1)
    att_v, q2v = attn(split(vq), split(qk), split(qv), q_mask)
    att_q, v2q = attn(split(qq_), split(vk), split(vv_), v_mask)
    v_emb1c = v_emb + merge(att_v) @ p["co_wo_v"]
    q_emb1c = q_emb + merge(att_q) @ p["co_wo_q"]

    v_imp = jax.nn.sigmoid((1 - alpha) * v_imp + alpha * q2v.sum(-1).sum(1))
    q_imp = jax.nn.sigmoid((1 - alpha) * q_imp + alpha * v2q.sum(-1).sum(1))
    v_emb1c = v_emb1c * v_imp[..., None]
    q_emb1c = q_emb1c * q_imp[..., None]

    sv = v_emb1c @ p["sv_qkv"]
    sq = q_emb1c @ p["sq_qkv"]
    svq, svk, svv = jnp.split(sv, 3, axis=-1)
    sqq, sqk, sqv = jnp.split(sq, 3, axis=-1)
    att_vv, v2v = attn(split(svq), split(svk), split(svv), v_mask)
    att_qq, q2q = attn(split(sqq), split(sqk), split(sqv), q_mask)
    v_emb1s = v_emb1c + merge(att_vv) @ p["sv_wo"]
    q_emb1s = q_emb1c + merge(att_qq) @ p["sq_wo"]

    v_imp = jax.nn.sigmoid((1 - beta) * v_imp + beta * v2v.sum(-2).sum(1))
    q_imp = jax.nn.sigmoid((1 - beta) * q_imp + beta * q2q.sum(-2).sum(1))
    v_emb1s = v_emb1s * v_imp[..., None]
    q_emb1s = q_emb1s * q_imp[..., None]

    a_q2v = q2v.mean(1)
    a_v2q = v2q.mean(1)
    l1 = jnp.einsum("bij,bjk->bik", a_q2v, a_v2q)
    l2 = jnp.einsum("bij,bjk->bik", a_v2q, a_q2v)
    v_emb1a = v_emb1s + jnp.einsum("bij,bjd->bid", l1, v_emb1s @ p["al_wv"])
    q_emb1a = q_emb1s + jnp.einsum("bij,bjd->bid", l2, q_emb1s @ p["al_wq"])

    def ln(x, g, b):
        m = x.mean(-1, keepdims=True)
        var = ((x - m) ** 2).mean(-1, keepdims=True)
        return (x - m) * jax.lax.rsqrt(var + eps) * g + b

    vo = ln(v_emb1a, p["ln_v_g"], p["ln_v_b"])
    qo = ln(q_emb1a, p["ln_q_g"], p["ln_q_b"])
    return vo, qo, v2q, q2v, v2v, q2q, v_imp, q_imp


# ----------------------------------------------------------------------------
# Deterministic parameter init (QKV weights pre-packed as [D, 3D])
# ----------------------------------------------------------------------------

def init_params(key, D):
    names3 = ["co_v_qkv", "co_q_qkv", "sv_qkv", "sq_qkv"]                       # [D, 3D]
    names1 = ["co_wo_v", "co_wo_q", "sv_wo", "sq_wo", "al_wv", "al_wq"]         # [D, D]
    keys = jax.random.split(key, len(names3) + len(names1))
    p = {}
    for n, k in zip(names3, keys[:len(names3)]):
        p[n] = jax.random.normal(k, (D, 3 * D), jnp.float32) / jnp.sqrt(float(D))
    for n, k in zip(names1, keys[len(names3):]):
        p[n] = jax.random.normal(k, (D, D), jnp.float32) / jnp.sqrt(float(D))
    p["ln_v_g"] = jnp.ones((1, D), jnp.float32)
    p["ln_v_b"] = jnp.zeros((1, D), jnp.float32)
    p["ln_q_g"] = jnp.ones((1, D), jnp.float32)
    p["ln_q_b"] = jnp.zeros((1, D), jnp.float32)
    return p


# ----------------------------------------------------------------------------
# Main
# ----------------------------------------------------------------------------

if __name__ == "__main__":
    B, N1, N2, D, H = 2, 8, 8, 32, 4   # small shapes; v_dim == q_dim == 32, 4 heads

    key = jax.random.PRNGKey(0)
    k1, k2, k3, k4, kp = jax.random.split(key, 5)
    v_emb = jax.random.normal(k1, (B, N1, D), jnp.float32)
    q_emb = jax.random.normal(k2, (B, N2, D), jnp.float32)
    v_mask = jnp.ones((B, N1), jnp.float32).at[:, -1].set(0.0)
    q_mask = jnp.ones((B, N2), jnp.float32).at[:, -2:].set(0.0)
    v_imp = jax.random.normal(k3, (B, N1), jnp.float32)
    q_imp = jax.random.normal(k4, (B, N2), jnp.float32)

    params = init_params(kp, D)

    fwd = jax.jit(functools.partial(self_cross_graph_layer, num_heads=H))
    outs = fwd(params, v_emb, q_emb, v_mask, q_mask, v_imp, q_imp)
    outs = jax.block_until_ready(outs)

    vo, qo, v2q, q2v, v2v, q2q, v_imp_o, q_imp_o = outs
    assert vo.shape == (B, N1, D) and qo.shape == (B, N2, D)
    assert v2q.shape == (B, H, N2, N1) and q2v.shape == (B, H, N1, N2)
    assert v2v.shape == (B, H, N1, N1) and q2q.shape == (B, H, N2, N2)
    assert v_imp_o.shape == (B, N1) and q_imp_o.shape == (B, N2)

    # numerical check against a pure-JAX reference with identical semantics
    refs = reference_forward(params, v_emb, q_emb, v_mask, q_mask, v_imp, q_imp, H)
    names = ["vo", "qo", "v2q", "q2v", "v2v", "q2q", "v_imp", "q_imp"]
    for name, got, want in zip(names, outs, refs):
        assert got.shape == want.shape, (name, got.shape, want.shape)
        assert bool(jnp.all(jnp.isfinite(got))), name
        err = float(jnp.max(jnp.abs(got - want)))
        assert err < 2e-3, (name, err)

    print("KERNEL_OK")
</pallas_src>

<mosaic_0001>
module attributes {stable_mosaic.version = 11 : i64} {
  func.func @_fused_kernel(%arg0: i32, %arg1: memref<1x8x32xf32, #tpu.memory_space<vmem>>, %arg2: memref<1x8x32xf32, #tpu.memory_space<vmem>>, %arg3: memref<1x1x8xf32, #tpu.memory_space<vmem>>, %arg4: memref<1x1x8xf32, #tpu.memory_space<vmem>>, %arg5: memref<1x8x1xf32, #tpu.memory_space<vmem>>, %arg6: memref<1x8x1xf32, #tpu.memory_space<vmem>>, %arg7: memref<32x96xf32, #tpu.memory_space<vmem>>, %arg8: memref<32x96xf32, #tpu.memory_space<vmem>>, %arg9: memref<32x32xf32, #tpu.memory_space<vmem>>, %arg10: memref<32x32xf32, #tpu.memory_space<vmem>>, %arg11: memref<32x96xf32, #tpu.memory_space<vmem>>, %arg12: memref<32x32xf32, #tpu.memory_space<vmem>>, %arg13: memref<32x96xf32, #tpu.memory_space<vmem>>, %arg14: memref<32x32xf32, #tpu.memory_space<vmem>>, %arg15: memref<32x32xf32, #tpu.memory_space<vmem>>, %arg16: memref<32x32xf32, #tpu.memory_space<vmem>>, %arg17: memref<1x32xf32, #tpu.memory_space<vmem>>, %arg18: memref<1x32xf32, #tpu.memory_space<vmem>>, %arg19: memref<1x32xf32, #tpu.memory_space<vmem>>, %arg20: memref<1x32xf32, #tpu.memory_space<vmem>>, %arg21: memref<1x8x32xf32, #tpu.memory_space<vmem>>, %arg22: memref<1x8x32xf32, #tpu.memory_space<vmem>>, %arg23: memref<1x4x8x8xf32, #tpu.memory_space<vmem>>, %arg24: memref<1x4x8x8xf32, #tpu.memory_space<vmem>>, %arg25: memref<1x4x8x8xf32, #tpu.memory_space<vmem>>, %arg26: memref<1x4x8x8xf32, #tpu.memory_space<vmem>>, %arg27: memref<1x8x1xf32, #tpu.memory_space<vmem>>, %arg28: memref<1x8x1xf32, #tpu.memory_space<vmem>>) attributes {dimension_semantics = [#tpu.dimension_semantics<parallel>], iteration_bounds = array<i64: 2>, scalar_prefetch = 0 : i64, scratch_operands = 0 : i64, tpu.core_type = #tpu.core_type<tc>, window_params = [{transform_indices = @transform_0, window_bounds = array<i64: 1, 8, 32>}, {transform_indices = @transform_1, window_bounds = array<i64: 1, 8, 32>}, {transform_indices = @transform_2, window_bounds = array<i64: 1, 1, 8>}, {transform_indices = @transform_3, window_bounds = array<i64: 1, 1, 8>}, {transform_indices = @transform_4, window_bounds = array<i64: 1, 8, 1>}, {transform_indices = @transform_5, window_bounds = array<i64: 1, 8, 1>}, {pipeline_mode = #tpu.pipeline_mode<synchronous>, transform_indices = @transform_6, window_bounds = array<i64: 32, 96>}, {pipeline_mode = #tpu.pipeline_mode<synchronous>, transform_indices = @transform_7, window_bounds = array<i64: 32, 96>}, {pipeline_mode = #tpu.pipeline_mode<synchronous>, transform_indices = @transform_8, window_bounds = array<i64: 32, 32>}, {pipeline_mode = #tpu.pipeline_mode<synchronous>, transform_indices = @transform_9, window_bounds = array<i64: 32, 32>}, {pipeline_mode = #tpu.pipeline_mode<synchronous>, transform_indices = @transform_10, window_bounds = array<i64: 32, 96>}, {pipeline_mode = #tpu.pipeline_mode<synchronous>, transform_indices = @transform_11, window_bounds = array<i64: 32, 32>}, {pipeline_mode = #tpu.pipeline_mode<synchronous>, transform_indices = @transform_12, window_bounds = array<i64: 32, 96>}, {pipeline_mode = #tpu.pipeline_mode<synchronous>, transform_indices = @transform_13, window_bounds = array<i64: 32, 32>}, {pipeline_mode = #tpu.pipeline_mode<synchronous>, transform_indices = @transform_14, window_bounds = array<i64: 32, 32>}, {pipeline_mode = #tpu.pipeline_mode<synchronous>, transform_indices = @transform_15, window_bounds = array<i64: 32, 32>}, {pipeline_mode = #tpu.pipeline_mode<synchronous>, transform_indices = @transform_16, window_bounds = array<i64: 1, 32>}, {pipeline_mode = #tpu.pipeline_mode<synchronous>, transform_indices = @transform_17, window_bounds = array<i64: 1, 32>}, {pipeline_mode = #tpu.pipeline_mode<synchronous>, transform_indices = @transform_18, window_bounds = array<i64: 1, 32>}, {pipeline_mode = #tpu.pipeline_mode<synchronous>, transform_indices = @transform_19, window_bounds = array<i64: 1, 32>}, {transform_indices = @transform_20, window_bounds = array<i64: 1, 8, 32>}, {transform_indices = @transform_21, window_bounds = array<i64: 1, 8, 32>}, {transform_indices = @transform_22, window_bounds = array<i64: 1, 4, 8, 8>}, {transform_indices = @transform_23, window_bounds = array<i64: 1, 4, 8, 8>}, {transform_indices = @transform_24, window_bounds = array<i64: 1, 4, 8, 8>}, {transform_indices = @transform_25, window_bounds = array<i64: 1, 4, 8, 8>}, {transform_indices = @transform_26, window_bounds = array<i64: 1, 8, 1>}, {transform_indices = @transform_27, window_bounds = array<i64: 1, 8, 1>}]} {
    %c0 = arith.constant 0 : index
    %c0_0 = arith.constant 0 : index
    %c0_1 = arith.constant 0 : index
    %0 = vector.load %arg1[%c0, %c0_0, %c0_1] : memref<1x8x32xf32, #tpu.memory_space<vmem>>, vector<1x8x32xf32>
    %1 = vector.shape_cast %0 : vector<1x8x32xf32> to vector<8x32xf32>
    %c0_2 = arith.constant 0 : index
    %c0_3 = arith.constant 0 : index
    %c0_4 = arith.constant 0 : index
    %2 = vector.load %arg2[%c0_2, %c0_3, %c0_4] : memref<1x8x32xf32, #tpu.memory_space<vmem>>, vector<1x8x32xf32>
    %3 = vector.shape_cast %2 : vector<1x8x32xf32> to vector<8x32xf32>
    %c0_5 = arith.constant 0 : index
    %c0_6 = arith.constant 0 : index
    %c0_7 = arith.constant 0 : index
    %4 = vector.load %arg3[%c0_5, %c0_6, %c0_7] : memref<1x1x8xf32, #tpu.memory_space<vmem>>, vector<1x1x8xf32>
    %5 = vector.shape_cast %4 : vector<1x1x8xf32> to vector<1x8xf32>
    %cst = arith.constant 1.000000e+00 : f32
    %6 = vector.broadcast %cst : f32 to vector<1x8xf32>
    %7 = arith.subf %6, %5 : vector<1x8xf32>
    %cst_8 = arith.constant -1.000000e+09 : f32
    %8 = vector.broadcast %cst_8 : f32 to vector<1x8xf32>
    %9 = arith.mulf %7, %8 : vector<1x8xf32>
    %c0_9 = arith.constant 0 : index
    %c0_10 = arith.constant 0 : index
    %c0_11 = arith.constant 0 : index
    %10 = vector.load %arg4[%c0_9, %c0_10, %c0_11] : memref<1x1x8xf32, #tpu.memory_space<vmem>>, vector<1x1x8xf32>
    %11 = vector.shape_cast %10 : vector<1x1x8xf32> to vector<1x8xf32>
    %cst_12 = arith.constant 1.000000e+00 : f32
    %12 = vector.broadcast %cst_12 : f32 to vector<1x8xf32>
    %13 = arith.subf %12, %11 : vector<1x8xf32>
    %cst_13 = arith.constant -1.000000e+09 : f32
    %14 = vector.broadcast %cst_13 : f32 to vector<1x8xf32>
    %15 = arith.mulf %13, %14 : vector<1x8xf32>
    %c0_14 = arith.constant 0 : index
    %c0_15 = arith.constant 0 : index
    %c0_16 = arith.constant 0 : index
    %16 = vector.load %arg5[%c0_14, %c0_15, %c0_16] : memref<1x8x1xf32, #tpu.memory_space<vmem>>, vector<1x8x1xf32>
    %17 = vector.shape_cast %16 : vector<1x8x1xf32> to vector<8x1xf32>
    %c0_17 = arith.constant 0 : index
    %c0_18 = arith.constant 0 : index
    %c0_19 = arith.constant 0 : index
    %18 = vector.load %arg6[%c0_17, %c0_18, %c0_19] : memref<1x8x1xf32, #tpu.memory_space<vmem>>, vector<1x8x1xf32>
    %19 = vector.shape_cast %18 : vector<1x8x1xf32> to vector<8x1xf32>
    %c0_20 = arith.constant 0 : index
    %c0_21 = arith.constant 0 : index
    %20 = vector.load %arg7[%c0_20, %c0_21] : memref<32x96xf32, #tpu.memory_space<vmem>>, vector<32x96xf32>
    %cst_22 = arith.constant dense<0.000000e+00> : vector<8x96xf32>
    %21 = tpu.matmul %1, %20, %cst_22 {dimension_numbers = #tpu.dot_dimension_numbers<[1], [0], [0], [1], [0, 0, 1, 1], [], []>} : vector<8x32xf32>, vector<32x96xf32>, vector<8x96xf32> -> vector<8x96xf32>
    %c0_23 = arith.constant 0 : index
    %c0_24 = arith.constant 0 : index
    %22 = vector.load %arg8[%c0_23, %c0_24] : memref<32x96xf32, #tpu.memory_space<vmem>>, vector<32x96xf32>
    %cst_25 = arith.constant dense<0.000000e+00> : vector<8x96xf32>
    %23 = tpu.matmul %3, %22, %cst_25 {dimension_numbers = #tpu.dot_dimension_numbers<[1], [0], [0], [1], [0, 0, 1, 1], [], []>} : vector<8x32xf32>, vector<32x96xf32>, vector<8x96xf32> -> vector<8x96xf32>
    %24 = vector.extract_strided_slice %21 {offsets = [0, 0], sizes = [8, 32], strides = [1, 1]} : vector<8x96xf32> to vector<8x32xf32>
    %25 = vector.extract_strided_slice %21 {offsets = [0, 32], sizes = [8, 32], strides = [1, 1]} : vector<8x96xf32> to vector<8x32xf32>
    %26 = vector.extract_strided_slice %21 {offsets = [0, 64], sizes = [8, 32], strides = [1, 1]} : vector<8x96xf32> to vector<8x32xf32>
    %27 = vector.extract_strided_slice %23 {offsets = [0, 0], sizes = [8, 32], strides = [1, 1]} : vector<8x96xf32> to vector<8x32xf32>
    %28 = vector.extract_strided_slice %23 {offsets = [0, 32], sizes = [8, 32], strides = [1, 1]} : vector<8x96xf32> to vector<8x32xf32>
    %29 = vector.extract_strided_slice %23 {offsets = [0, 64], sizes = [8, 32], strides = [1, 1]} : vector<8x96xf32> to vector<8x32xf32>
    %c0_26 = arith.constant 0 : index
    %c0_27 = arith.constant 0 : index
    %30 = vector.load %arg9[%c0_26, %c0_27] : memref<32x32xf32, #tpu.memory_space<vmem>>, vector<32x32xf32>
    %cst_28 = arith.constant 0.000000e+00 : f32
    %31 = vector.broadcast %cst_28 : f32 to vector<8x32xf32>
    %cst_29 = arith.constant 0.000000e+00 : f32
    %32 = vector.broadcast %cst_29 : f32 to vector<8x8xf32>
    %33 = vector.extract_strided_slice %24 {offsets = [0, 0], sizes = [8, 8], strides = [1, 1]} : vector<8x32xf32> to vector<8x8xf32>
    %34 = vector.extract_strided_slice %28 {offsets = [0, 0], sizes = [8, 8], strides = [1, 1]} : vector<8x32xf32> to vector<8x8xf32>
    %cst_30 = arith.constant dense<0.000000e+00> : vector<8x8xf32>
    %35 = tpu.matmul %33, %34, %cst_30 {dimension_numbers = #tpu.dot_dimension_numbers<[1], [1], [0], [0], [0, 0, 1, 0], [], []>} : vector<8x8xf32>, vector<8x8xf32>, vector<8x8xf32> -> vector<8x8xf32>
    %cst_31 = arith.constant 0.353553385 : f32
    %36 = vector.broadcast %cst_31 : f32 to vector<8x8xf32>
    %37 = arith.mulf %35, %36 : vector<8x8xf32>
    %38 = vector.broadcast %15 : vector<1x8xf32> to vector<8x8xf32>
    %39 = arith.addf %37, %38 : vector<8x8xf32>
    %cst_32 = arith.constant dense<0xFF800000> : vector<8xf32>
    %40 = vector.multi_reduction <maximumf>, %39, %cst_32 [1] : vector<8x8xf32> to vector<8xf32>
    %41 = vector.shape_cast %40 : vector<8xf32> to vector<8x1xf32>
    %42 = vector.broadcast %41 : vector<8x1xf32> to vector<8x8xf32>
    %43 = arith.subf %39, %42 : vector<8x8xf32>
    %44 = math.exp %43 : vector<8x8xf32>
    %cst_33 = arith.constant dense<0.000000e+00> : vector<8xf32>
    %45 = vector.multi_reduction <add>, %44, %cst_33 [1] : vector<8x8xf32> to vector<8xf32>
    %46 = vector.shape_cast %45 : vector<8xf32> to vector<8x1xf32>
    %47 = vector.broadcast %46 : vector<8x1xf32> to vector<8x8xf32>
    %48 = arith.divf %44, %47 : vector<8x8xf32>
    %c0_34 = arith.constant 0 : index
    %c0_35 = arith.constant 0 : index
    %c0_36 = arith.constant 0 : index
    %c0_37 = arith.constant 0 : index
    %49 = vector.load %arg24[%c0_34, %c0_35, %c0_36, %c0_37] : memref<1x4x8x8xf32, #tpu.memory_space<vmem>>, vector<1x1x8x8xf32>
    %50 = vector.shape_cast %49 : vector<1x1x8x8xf32> to vector<8x8xf32>
    %51 = vector.shape_cast %48 : vector<8x8xf32> to vector<1x1x8x8xf32>
    tpu.vector_store %arg24[%c0_34, %c0_35, %c0_36, %c0_37], %51 {strides = array<i32>} : memref<1x4x8x8xf32, #tpu.memory_space<vmem>>, vector<1x1x8x8xf32>,
    %52 = arith.addf %32, %48 : vector<8x8xf32>
    %53 = vector.extract_strided_slice %29 {offsets = [0, 0], sizes = [8, 8], strides = [1, 1]} : vector<8x32xf32> to vector<8x8xf32>
    %cst_38 = arith.constant dense<0.000000e+00> : vector<8x8xf32>
    %54 = tpu.matmul %48, %53, %cst_38 {dimension_numbers = #tpu.dot_dimension_numbers<[1], [0], [0], [1], [0, 0, 1, 1], [], []>} : vector<8x8xf32>, vector<8x8xf32>, vector<8x8xf32> -> vector<8x8xf32>
    %55 = vector.extract_strided_slice %30 {offsets = [0, 0], sizes = [8, 32], strides = [1, 1]} : vector<32x32xf32> to vector<8x32xf32>
    %cst_39 = arith.constant dense<0.000000e+00> : vector<8x32xf32>
    %56 = tpu.matmul %54, %55, %cst_39 {dimension_numbers = #tpu.dot_dimension_numbers<[1], [0], [0], [1], [0, 0, 1, 1], [], []>} : vector<8x8xf32>, vector<8x32xf32>, vector<8x32xf32> -> vector<8x32xf32>
    %57 = arith.addf %31, %56 : vector<8x32xf32>
    %58 = vector.extract_strided_slice %24 {offsets = [0, 8], sizes = [8, 8], strides = [1, 1]} : vector<8x32xf32> to vector<8x8xf32>
    %59 = vector.extract_strided_slice %28 {offsets = [0, 8], sizes = [8, 8], strides = [1, 1]} : vector<8x32xf32> to vector<8x8xf32>
    %cst_40 = arith.constant dense<0.000000e+00> : vector<8x8xf32>
    %60 = tpu.matmul %58, %59, %cst_40 {dimension_numbers = #tpu.dot_dimension_numbers<[1], [1], [0], [0], [0, 0, 1, 0], [], []>} : vector<8x8xf32>, vector<8x8xf32>, vector<8x8xf32> -> vector<8x8xf32>
    %cst_41 = arith.constant 0.353553385 : f32
    %61 = vector.broadcast %cst_41 : f32 to vector<8x8xf32>
    %62 = arith.mulf %60, %61 : vector<8x8xf32>
    %63 = vector.broadcast %15 : vector<1x8xf32> to vector<8x8xf32>
    %64 = arith.addf %62, %63 : vector<8x8xf32>
    %cst_42 = arith.constant dense<0xFF800000> : vector<8xf32>
    %65 = vector.multi_reduction <maximumf>, %64, %cst_42 [1] : vector<8x8xf32> to vector<8xf32>
    %66 = vector.shape_cast %65 : vector<8xf32> to vector<8x1xf32>
    %67 = vector.broadcast %66 : vector<8x1xf32> to vector<8x8xf32>
    %68 = arith.subf %64, %67 : vector<8x8xf32>
    %69 = math.exp %68 : vector<8x8xf32>
    %cst_43 = arith.constant dense<0.000000e+00> : vector<8xf32>
    %70 = vector.multi_reduction <add>, %69, %cst_43 [1] : vector<8x8xf32> to vector<8xf32>
    %71 = vector.shape_cast %70 : vector<8xf32> to vector<8x1xf32>
    %72 = vector.broadcast %71 : vector<8x1xf32> to vector<8x8xf32>
    %73 = arith.divf %69, %72 : vector<8x8xf32>
    %c0_44 = arith.constant 0 : index
    %c1 = arith.constant 1 : index
    %c0_45 = arith.constant 0 : index
    %c0_46 = arith.constant 0 : index
    %74 = vector.load %arg24[%c0_44, %c1, %c0_45, %c0_46] : memref<1x4x8x8xf32, #tpu.memory_space<vmem>>, vector<1x1x8x8xf32>
    %75 = vector.shape_cast %74 : vector<1x1x8x8xf32> to vector<8x8xf32>
    %76 = vector.shape_cast %73 : vector<8x8xf32> to vector<1x1x8x8xf32>
    tpu.vector_store %arg24[%c0_44, %c1, %c0_45, %c0_46], %76 {strides = array<i32>} : memref<1x4x8x8xf32, #tpu.memory_space<vmem>>, vector<1x1x8x8xf32>,
    %77 = arith.addf %52, %73 : vector<8x8xf32>
    %78 = vector.extract_strided_slice %29 {offsets = [0, 8], sizes = [8, 8], strides = [1, 1]} : vector<8x32xf32> to vector<8x8xf32>
    %cst_47 = arith.constant dense<0.000000e+00> : vector<8x8xf32>
    %79 = tpu.matmul %73, %78, %cst_47 {dimension_numbers = #tpu.dot_dimension_numbers<[1], [0], [0], [1], [0, 0, 1, 1], [], []>} : vector<8x8xf32>, vector<8x8xf32>, vector<8x8xf32> -> vector<8x8xf32>
    %80 = vector.extract_strided_slice %30 {offsets = [8, 0], sizes = [8, 32], strides = [1, 1]} : vector<32x32xf32> to vector<8x32xf32>
    %cst_48 = arith.constant dense<0.000000e+00> : vector<8x32xf32>
    %81 = tpu.matmul %79, %80, %cst_48 {dimension_numbers = #tpu.dot_dimension_numbers<[1], [0], [0], [1], [0, 0, 1, 1], [], []>} : vector<8x8xf32>, vector<8x32xf32>, vector<8x32xf32> -> vector<8x32xf32>
    %82 = arith.addf %57, %81 : vector<8x32xf32>
    %83 = vector.extract_strided_slice %24 {offsets = [0, 16], sizes = [8, 8], strides = [1, 1]} : vector<8x32xf32> to vector<8x8xf32>
    %84 = vector.extract_strided_slice %28 {offsets = [0, 16], sizes = [8, 8], strides = [1, 1]} : vector<8x32xf32> to vector<8x8xf32>
    %cst_49 = arith.constant dense<0.000000e+00> : vector<8x8xf32>
    %85 = tpu.matmul %83, %84, %cst_49 {dimension_numbers = #tpu.dot_dimension_numbers<[1], [1], [0], [0], [0, 0, 1, 0], [], []>} : vector<8x8xf32>, vector<8x8xf32>, vector<8x8xf32> -> vector<8x8xf32>
    %cst_50 = arith.constant 0.353553385 : f32
    %86 = vector.broadcast %cst_50 : f32 to vector<8x8xf32>
    %87 = arith.mulf %85, %86 : vector<8x8xf32>
    %88 = vector.broadcast %15 : vector<1x8xf32> to vector<8x8xf32>
    %89 = arith.addf %87, %88 : vector<8x8xf32>
    %cst_51 = arith.constant dense<0xFF800000> : vector<8xf32>
    %90 = vector.multi_reduction <maximumf>, %89, %cst_51 [1] : vector<8x8xf32> to vector<8xf32>
    %91 = vector.shape_cast %90 : vector<8xf32> to vector<8x1xf32>
    %92 = vector.broadcast %91 : vector<8x1xf32> to vector<8x8xf32>
    %93 = arith.subf %89, %92 : vector<8x8xf32>
    %94 = math.exp %93 : vector<8x8xf32>
    %cst_52 = arith.constant dense<0.000000e+00> : vector<8xf32>
    %95 = vector.multi_reduction <add>, %94, %cst_52 [1] : vector<8x8xf32> to vector<8xf32>
    %96 = vector.shape_cast %95 : vector<8xf32> to vector<8x1xf32>
    %97 = vector.broadcast %96 : vector<8x1xf32> to vector<8x8xf32>
    %98 = arith.divf %94, %97 : vector<8x8xf32>
    %c0_53 = arith.constant 0 : index
    %c2 = arith.constant 2 : index
    %c0_54 = arith.constant 0 : index
    %c0_55 = arith.constant 0 : index
    %99 = vector.load %arg24[%c0_53, %c2, %c0_54, %c0_55] : memref<1x4x8x8xf32, #tpu.memory_space<vmem>>, vector<1x1x8x8xf32>
    %100 = vector.shape_cast %99 : vector<1x1x8x8xf32> to vector<8x8xf32>
    %101 = vector.shape_cast %98 : vector<8x8xf32> to vector<1x1x8x8xf32>
    tpu.vector_store %arg24[%c0_53, %c2, %c0_54, %c0_55], %101 {strides = array<i32>} : memref<1x4x8x8xf32, #tpu.memory_space<vmem>>, vector<1x1x8x8xf32>,
    %102 = arith.addf %77, %98 : vector<8x8xf32>
    %103 = vector.extract_strided_slice %29 {offsets = [0, 16], sizes = [8, 8], strides = [1, 1]} : vector<8x32xf32> to vector<8x8xf32>
    %cst_56 = arith.constant dense<0.000000e+00> : vector<8x8xf32>
    %104 = tpu.matmul %98, %103, %cst_56 {dimension_numbers = #tpu.dot_dimension_numbers<[1], [0], [0], [1], [0, 0, 1, 1], [], []>} : vector<8x8xf32>, vector<8x8xf32>, vector<8x8xf32> -> vector<8x8xf32>
    %105 = vector.extract_strided_slice %30 {offsets = [16, 0], sizes = [8, 32], strides = [1, 1]} : vector<32x32xf32> to vector<8x32xf32>
    %cst_57 = arith.constant dense<0.000000e+00> : vector<8x32xf32>
    %106 = tpu.matmul %104, %105, %cst_57 {dimension_numbers = #tpu.dot_dimension_numbers<[1], [0], [0], [1], [0, 0, 1, 1], [], []>} : vector<8x8xf32>, vector<8x32xf32>, vector<8x32xf32> -> vector<8x32xf32>
    %107 = arith.addf %82, %106 : vector<8x32xf32>
    %108 = vector.extract_strided_slice %24 {offsets = [0, 24], sizes = [8, 8], strides = [1, 1]} : vector<8x32xf32> to vector<8x8xf32>
    %109 = vector.extract_strided_slice %28 {offsets = [0, 24], sizes = [8, 8], strides = [1, 1]} : vector<8x32xf32> to vector<8x8xf32>
    %cst_58 = arith.constant dense<0.000000e+00> : vector<8x8xf32>
    %110 = tpu.matmul %108, %109, %cst_58 {dimension_numbers = #tpu.dot_dimension_numbers<[1], [1], [0], [0], [0, 0, 1, 0], [], []>} : vector<8x8xf32>, vector<8x8xf32>, vector<8x8xf32> -> vector<8x8xf32>
    %cst_59 = arith.constant 0.353553385 : f32
    %111 = vector.broadcast %cst_59 : f32 to vector<8x8xf32>
    %112 = arith.mulf %110, %111 : vector<8x8xf32>
    %113 = vector.broadcast %15 : vector<1x8xf32> to vector<8x8xf32>
    %114 = arith.addf %112, %113 : vector<8x8xf32>
    %cst_60 = arith.constant dense<0xFF800000> : vector<8xf32>
    %115 = vector.multi_reduction <maximumf>, %114, %cst_60 [1] : vector<8x8xf32> to vector<8xf32>
    %116 = vector.shape_cast %115 : vector<8xf32> to vector<8x1xf32>
    %117 = vector.broadcast %116 : vector<8x1xf32> to vector<8x8xf32>
    %118 = arith.subf %114, %117 : vector<8x8xf32>
    %119 = math.exp %118 : vector<8x8xf32>
    %cst_61 = arith.constant dense<0.000000e+00> : vector<8xf32>
    %120 = vector.multi_reduction <add>, %119, %cst_61 [1] : vector<8x8xf32> to vector<8xf32>
    %121 = vector.shape_cast %120 : vector<8xf32> to vector<8x1xf32>
    %122 = vector.broadcast %121 : vector<8x1xf32> to vector<8x8xf32>
    %123 = arith.divf %119, %122 : vector<8x8xf32>
    %c0_62 = arith.constant 0 : index
    %c3 = arith.constant 3 : index
    %c0_63 = arith.constant 0 : index
    %c0_64 = arith.constant 0 : index
    %124 = vector.load %arg24[%c0_62, %c3, %c0_63, %c0_64] : memref<1x4x8x8xf32, #tpu.memory_space<vmem>>, vector<1x1x8x8xf32>
    %125 = vector.shape_cast %124 : vector<1x1x8x8xf32> to vector<8x8xf32>
    %126 = vector.shape_cast %123 : vector<8x8xf32> to vector<1x1x8x8xf32>
    tpu.vector_store %arg24[%c0_62, %c3, %c0_63, %c0_64], %126 {strides = array<i32>} : memref<1x4x8x8xf32, #tpu.memory_space<vmem>>, vector<1x1x8x8xf32>,
    %127 = arith.addf %102, %123 : vector<8x8xf32>
    %128 = vector.extract_strided_slice %29 {offsets = [0, 24], sizes = [8, 8], strides = [1, 1]} : vector<8x32xf32> to vector<8x8xf32>
    %cst_65 = arith.constant dense<0.000000e+00> : vector<8x8xf32>
    %129 = tpu.matmul %123, %128, %cst_65 {dimension_numbers = #tpu.dot_dimension_numbers<[1], [0], [0], [1], [0, 0, 1, 1], [], []>} : vector<8x8xf32>, vector<8x8xf32>, vector<8x8xf32> -> vector<8x8xf32>
    %130 = vector.extract_strided_slice %30 {offsets = [24, 0], sizes = [8, 32], strides = [1, 1]} : vector<32x32xf32> to vector<8x32xf32>
    %cst_66 = arith.constant dense<0.000000e+00> : vector<8x32xf32>
    %131 = tpu.matmul %129, %130, %cst_66 {dimension_numbers = #tpu.dot_dimension_numbers<[1], [0], [0], [1], [0, 0, 1, 1], [], []>} : vector<8x8xf32>, vector<8x32xf32>, vector<8x32xf32> -> vector<8x32xf32>
    %132 = arith.addf %107, %131 : vector<8x32xf32>
    %cst_67 = arith.constant dense<0.000000e+00> : vector<8xf32>
    %133 = vector.multi_reduction <add>, %127, %cst_67 [1] : vector<8x8xf32> to vector<8xf32>
    %134 = vector.shape_cast %133 : vector<8xf32> to vector<8x1xf32>
    %cst_68 = arith.constant 2.500000e-01 : f32
    %135 = vector.broadcast %cst_68 : f32 to vector<8x8xf32>
    %136 = arith.mulf %127, %135 : vector<8x8xf32>
    %c0_69 = arith.constant 0 : index
    %c0_70 = arith.constant 0 : index
    %137 = vector.load %arg10[%c0_69, %c0_70] : memref<32x32xf32, #tpu.memory_space<vmem>>, vector<32x32xf32>
    %cst_71 = arith.constant 0.000000e+00 : f32
    %138 = vector.broadcast %cst_71 : f32 to vector<8x32xf32>
    %cst_72 = arith.constant 0.000000e+00 : f32
    %139 = vector.broadcast %cst_72 : f32 to vector<8x8xf32>
    %140 = vector.extract_strided_slice %27 {offsets = [0, 0], sizes = [8, 8], strides = [1, 1]} : vector<8x32xf32> to vector<8x8xf32>
    %141 = vector.extract_strided_slice %25 {offsets = [0, 0], sizes = [8, 8], strides = [1, 1]} : vector<8x32xf32> to vector<8x8xf32>
    %cst_73 = arith.constant dense<0.000000e+00> : vector<8x8xf32>
    %142 = tpu.matmul %140, %141, %cst_73 {dimension_numbers = #tpu.dot_dimension_numbers<[1], [1], [0], [0], [0, 0, 1, 0], [], []>} : vector<8x8xf32>, vector<8x8xf32>, vector<8x8xf32> -> vector<8x8xf32>
    %cst_74 = arith.constant 0.353553385 : f32
    %143 = vector.broadcast %cst_74 : f32 to vector<8x8xf32>
    %144 = arith.mulf %142, %143 : vector<8x8xf32>
    %145 = vector.broadcast %9 : vector<1x8xf32> to vector<8x8xf32>
    %146 = arith.addf %144, %145 : vector<8x8xf32>
    %cst_75 = arith.constant dense<0xFF800000> : vector<8xf32>
    %147 = vector.multi_reduction <maximumf>, %146, %cst_75 [1] : vector<8x8xf32> to vector<8xf32>
    %148 = vector.shape_cast %147 : vector<8xf32> to vector<8x1xf32>
    %149 = vector.broadcast %148 : vector<8x1xf32> to vector<8x8xf32>
    %150 = arith.subf %146, %149 : vector<8x8xf32>
    %151 = math.exp %150 : vector<8x8xf32>
    %cst_76 = arith.constant dense<0.000000e+00> : vector<8xf32>
    %152 = vector.multi_reduction <add>, %151, %cst_76 [1] : vector<8x8xf32> to vector<8xf32>
    %153 = vector.shape_cast %152 : vector<8xf32> to vector<8x1xf32>
    %154 = vector.broadcast %153 : vector<8x1xf32> to vector<8x8xf32>
    %155 = arith.divf %151, %154 : vector<8x8xf32>
    %c0_77 = arith.constant 0 : index
    %c0_78 = arith.constant 0 : index
    %c0_79 = arith.constant 0 : index
    %c0_80 = arith.constant 0 : index
    %156 = vector.load %arg23[%c0_77, %c0_78, %c0_79, %c0_80] : memref<1x4x8x8xf32, #tpu.memory_space<vmem>>, vector<1x1x8x8xf32>
    %157 = vector.shape_cast %156 : vector<1x1x8x8xf32> to vector<8x8xf32>
    %158 = vector.shape_cast %155 : vector<8x8xf32> to vector<1x1x8x8xf32>
    tpu.vector_store %arg23[%c0_77, %c0_78, %c0_79, %c0_80], %158 {strides = array<i32>} : memref<1x4x8x8xf32, #tpu.memory_space<vmem>>, vector<1x1x8x8xf32>,
    %159 = arith.addf %139, %155 : vector<8x8xf32>
    %160 = vector.extract_strided_slice %26 {offsets = [0, 0], sizes = [8, 8], strides = [1, 1]} : vector<8x32xf32> to vector<8x8xf32>
    %cst_81 = arith.constant dense<0.000000e+00> : vector<8x8xf32>
    %161 = tpu.matmul %155, %160, %cst_81 {dimension_numbers = #tpu.dot_dimension_numbers<[1], [0], [0], [1], [0, 0, 1, 1], [], []>} : vector<8x8xf32>, vector<8x8xf32>, vector<8x8xf32> -> vector<8x8xf32>
    %162 = vector.extract_strided_slice %137 {offsets = [0, 0], sizes = [8, 32], strides = [1, 1]} : vector<32x32xf32> to vector<8x32xf32>
    %cst_82 = arith.constant dense<0.000000e+00> : vector<8x32xf32>
    %163 = tpu.matmul %161, %162, %cst_82 {dimension_numbers = #tpu.dot_dimension_numbers<[1], [0], [0], [1], [0, 0, 1, 1], [], []>} : vector<8x8xf32>, vector<8x32xf32>, vector<8x32xf32> -> vector<8x32xf32>
    %164 = arith.addf %138, %163 : vector<8x32xf32>
    %165 = vector.extract_strided_slice %27 {offsets = [0, 8], sizes = [8, 8], strides = [1, 1]} : vector<8x32xf32> to vector<8x8xf32>
    %166 = vector.extract_strided_slice %25 {offsets = [0, 8], sizes = [8, 8], strides = [1, 1]} : vector<8x32xf32> to vector<8x8xf32>
    %cst_83 = arith.constant dense<0.000000e+00> : vector<8x8xf32>
    %167 = tpu.matmul %165, %166, %cst_83 {dimension_numbers = #tpu.dot_dimension_numbers<[1], [1], [0], [0], [0, 0, 1, 0], [], []>} : vector<8x8xf32>, vector<8x8xf32>, vector<8x8xf32> -> vector<8x8xf32>
    %cst_84 = arith.constant 0.353553385 : f32
    %168 = vector.broadcast %cst_84 : f32 to vector<8x8xf32>
    %169 = arith.mulf %167, %168 : vector<8x8xf32>
    %170 = vector.broadcast %9 : vector<1x8xf32> to vector<8x8xf32>
    %171 = arith.addf %169, %170 : vector<8x8xf32>
    %cst_85 = arith.constant dense<0xFF800000> : vector<8xf32>
    %172 = vector.multi_reduction <maximumf>, %171, %cst_85 [1] : vector<8x8xf32> to vector<8xf32>
    %173 = vector.shape_cast %172 : vector<8xf32> to vector<8x1xf32>
    %174 = vector.broadcast %173 : vector<8x1xf32> to vector<8x8xf32>
    %175 = arith.subf %171, %174 : vector<8x8xf32>
    %176 = math.exp %175 : vector<8x8xf32>
    %cst_86 = arith.constant dense<0.000000e+00> : vector<8xf32>
    %177 = vector.multi_reduction <add>, %176, %cst_86 [1] : vector<8x8xf32> to vector<8xf32>
    %178 = vector.shape_cast %177 : vector<8xf32> to vector<8x1xf32>
    %179 = vector.broadcast %178 : vector<8x1xf32> to vector<8x8xf32>
    %180 = arith.divf %176, %179 : vector<8x8xf32>
    %c0_87 = arith.constant 0 : index
    %c1_88 = arith.constant 1 : index
    %c0_89 = arith.constant 0 : index
    %c0_90 = arith.constant 0 : index
    %181 = vector.load %arg23[%c0_87, %c1_88, %c0_89, %c0_90] : memref<1x4x8x8xf32, #tpu.memory_space<vmem>>, vector<1x1x8x8xf32>
    %182 = vector.shape_cast %181 : vector<1x1x8x8xf32> to vector<8x8xf32>
    %183 = vector.shape_cast %180 : vector<8x8xf32> to vector<1x1x8x8xf32>
    tpu.vector_store %arg23[%c0_87, %c1_88, %c0_89, %c0_90], %183 {strides = array<i32>} : memref<1x4x8x8xf32, #tpu.memory_space<vmem>>, vector<1x1x8x8xf32>,
    %184 = arith.addf %159, %180 : vector<8x8xf32>
    %185 = vector.extract_strided_slice %26 {offsets = [0, 8], sizes = [8, 8], strides = [1, 1]} : vector<8x32xf32> to vector<8x8xf32>
    %cst_91 = arith.constant dense<0.000000e+00> : vector<8x8xf32>
    %186 = tpu.matmul %180, %185, %cst_91 {dimension_numbers = #tpu.dot_dimension_numbers<[1], [0], [0], [1], [0, 0, 1, 1], [], []>} : vector<8x8xf32>, vector<8x8xf32>, vector<8x8xf32> -> vector<8x8xf32>
    %187 = vector.extract_strided_slice %137 {offsets = [8, 0], sizes = [8, 32], strides = [1, 1]} : vector<32x32xf32> to vector<8x32xf32>
    %cst_92 = arith.constant dense<0.000000e+00> : vector<8x32xf32>
    %188 = tpu.matmul %186, %187, %cst_92 {dimension_numbers = #tpu.dot_dimension_numbers<[1], [0], [0], [1], [0, 0, 1, 1], [], []>} : vector<8x8xf32>, vector<8x32xf32>, vector<8x32xf32> -> vector<8x32xf32>
    %189 = arith.addf %164, %188 : vector<8x32xf32>
    %190 = vector.extract_strided_slice %27 {offsets = [0, 16], sizes = [8, 8], strides = [1, 1]} : vector<8x32xf32> to vector<8x8xf32>
    %191 = vector.extract_strided_slice %25 {offsets = [0, 16], sizes = [8, 8], strides = [1, 1]} : vector<8x32xf32> to vector<8x8xf32>
    %cst_93 = arith.constant dense<0.000000e+00> : vector<8x8xf32>
    %192 = tpu.matmul %190, %191, %cst_93 {dimension_numbers = #tpu.dot_dimension_numbers<[1], [1], [0], [0], [0, 0, 1, 0], [], []>} : vector<8x8xf32>, vector<8x8xf32>, vector<8x8xf32> -> vector<8x8xf32>
    %cst_94 = arith.constant 0.353553385 : f32
    %193 = vector.broadcast %cst_94 : f32 to vector<8x8xf32>
    %194 = arith.mulf %192, %193 : vector<8x8xf32>
    %195 = vector.broadcast %9 : vector<1x8xf32> to vector<8x8xf32>
    %196 = arith.addf %194, %195 : vector<8x8xf32>
    %cst_95 = arith.constant dense<0xFF800000> : vector<8xf32>
    %197 = vector.multi_reduction <maximumf>, %196, %cst_95 [1] : vector<8x8xf32> to vector<8xf32>
    %198 = vector.shape_cast %197 : vector<8xf32> to vector<8x1xf32>
    %199 = vector.broadcast %198 : vector<8x1xf32> to vector<8x8xf32>
    %200 = arith.subf %196, %199 : vector<8x8xf32>
    %201 = math.exp %200 : vector<8x8xf32>
    %cst_96 = arith.constant dense<0.000000e+00> : vector<8xf32>
    %202 = vector.multi_reduction <add>, %201, %cst_96 [1] : vector<8x8xf32> to vector<8xf32>
    %203 = vector.shape_cast %202 : vector<8xf32> to vector<8x1xf32>
    %204 = vector.broadcast %203 : vector<8x1xf32> to vector<8x8xf32>
    %205 = arith.divf %201, %204 : vector<8x8xf32>
    %c0_97 = arith.constant 0 : index
    %c2_98 = arith.constant 2 : index
    %c0_99 = arith.constant 0 : index
    %c0_100 = arith.constant 0 : index
    %206 = vector.load %arg23[%c0_97, %c2_98, %c0_99, %c0_100] : memref<1x4x8x8xf32, #tpu.memory_space<vmem>>, vector<1x1x8x8xf32>
    %207 = vector.shape_cast %206 : vector<1x1x8x8xf32> to vector<8x8xf32>
    %208 = vector.shape_cast %205 : vector<8x8xf32> to vector<1x1x8x8xf32>
    tpu.vector_store %arg23[%c0_97, %c2_98, %c0_99, %c0_100], %208 {strides = array<i32>} : memref<1x4x8x8xf32, #tpu.memory_space<vmem>>, vector<1x1x8x8xf32>,
    %209 = arith.addf %184, %205 : vector<8x8xf32>
    %210 = vector.extract_strided_slice %26 {offsets = [0, 16], sizes = [8, 8], strides = [1, 1]} : vector<8x32xf32> to vector<8x8xf32>
    %cst_101 = arith.constant dense<0.000000e+00> : vector<8x8xf32>
    %211 = tpu.matmul %205, %210, %cst_101 {dimension_numbers = #tpu.dot_dimension_numbers<[1], [0], [0], [1], [0, 0, 1, 1], [], []>} : vector<8x8xf32>, vector<8x8xf32>, vector<8x8xf32> -> vector<8x8xf32>
    %212 = vector.extract_strided_slice %137 {offsets = [16, 0], sizes = [8, 32], strides = [1, 1]} : vector<32x32xf32> to vector<8x32xf32>
    %cst_102 = arith.constant dense<0.000000e+00> : vector<8x32xf32>
    %213 = tpu.matmul %211, %212, %cst_102 {dimension_numbers = #tpu.dot_dimension_numbers<[1], [0], [0], [1], [0, 0, 1, 1], [], []>} : vector<8x8xf32>, vector<8x32xf32>, vector<8x32xf32> -> vector<8x32xf32>
    %214 = arith.addf %189, %213 : vector<8x32xf32>
    %215 = vector.extract_strided_slice %27 {offsets = [0, 24], sizes = [8, 8], strides = [1, 1]} : vector<8x32xf32> to vector<8x8xf32>
    %216 = vector.extract_strided_slice %25 {offsets = [0, 24], sizes = [8, 8], strides = [1, 1]} : vector<8x32xf32> to vector<8x8xf32>
    %cst_103 = arith.constant dense<0.000000e+00> : vector<8x8xf32>
    %217 = tpu.matmul %215, %216, %cst_103 {dimension_numbers = #tpu.dot_dimension_numbers<[1], [1], [0], [0], [0, 0, 1, 0], [], []>} : vector<8x8xf32>, vector<8x8xf32>, vector<8x8xf32> -> vector<8x8xf32>
    %cst_104 = arith.constant 0.353553385 : f32
    %218 = vector.broadcast %cst_104 : f32 to vector<8x8xf32>
    %219 = arith.mulf %217, %218 : vector<8x8xf32>
    %220 = vector.broadcast %9 : vector<1x8xf32> to vector<8x8xf32>
    %221 = arith.addf %219, %220 : vector<8x8xf32>
    %cst_105 = arith.constant dense<0xFF800000> : vector<8xf32>
    %222 = vector.multi_reduction <maximumf>, %221, %cst_105 [1] : vector<8x8xf32> to vector<8xf32>
    %223 = vector.shape_cast %222 : vector<8xf32> to vector<8x1xf32>
    %224 = vector.broadcast %223 : vector<8x1xf32> to vector<8x8xf32>
    %225 = arith.subf %221, %224 : vector<8x8xf32>
    %226 = math.exp %225 : vector<8x8xf32>
    %cst_106 = arith.constant dense<0.000000e+00> : vector<8xf32>
    %227 = vector.multi_reduction <add>, %226, %cst_106 [1] : vector<8x8xf32> to vector<8xf32>
    %228 = vector.shape_cast %227 : vector<8xf32> to vector<8x1xf32>
    %229 = vector.broadcast %228 : vector<8x1xf32> to vector<8x8xf32>
    %230 = arith.divf %226, %229 : vector<8x8xf32>
    %c0_107 = arith.constant 0 : index
    %c3_108 = arith.constant 3 : index
    %c0_109 = arith.constant 0 : index
    %c0_110 = arith.constant 0 : index
    %231 = vector.load %arg23[%c0_107, %c3_108, %c0_109, %c0_110] : memref<1x4x8x8xf32, #tpu.memory_space<vmem>>, vector<1x1x8x8xf32>
    %232 = vector.shape_cast %231 : vector<1x1x8x8xf32> to vector<8x8xf32>
    %233 = vector.shape_cast %230 : vector<8x8xf32> to vector<1x1x8x8xf32>
    tpu.vector_store %arg23[%c0_107, %c3_108, %c0_109, %c0_110], %233 {strides = array<i32>} : memref<1x4x8x8xf32, #tpu.memory_space<vmem>>, vector<1x1x8x8xf32>,
    %234 = arith.addf %209, %230 : vector<8x8xf32>
    %235 = vector.extract_strided_slice %26 {offsets = [0, 24], sizes = [8, 8], strides = [1, 1]} : vector<8x32xf32> to vector<8x8xf32>
    %cst_111 = arith.constant dense<0.000000e+00> : vector<8x8xf32>
    %236 = tpu.matmul %230, %235, %cst_111 {dimension_numbers = #tpu.dot_dimension_numbers<[1], [0], [0], [1], [0, 0, 1, 1], [], []>} : vector<8x8xf32>, vector<8x8xf32>, vector<8x8xf32> -> vector<8x8xf32>
    %237 = vector.extract_strided_slice %137 {offsets = [24, 0], sizes = [8, 32], strides = [1, 1]} : vector<32x32xf32> to vector<8x32xf32>
    %cst_112 = arith.constant dense<0.000000e+00> : vector<8x32xf32>
    %238 = tpu.matmul %236, %237, %cst_112 {dimension_numbers = #tpu.dot_dimension_numbers<[1], [0], [0], [1], [0, 0, 1, 1], [], []>} : vector<8x8xf32>, vector<8x32xf32>, vector<8x32xf32> -> vector<8x32xf32>
    %239 = arith.addf %214, %238 : vector<8x32xf32>
    %cst_113 = arith.constant dense<0.000000e+00> : vector<8xf32>
    %240 = vector.multi_reduction <add>, %234, %cst_113 [1] : vector<8x8xf32> to vector<8xf32>
    %241 = vector.shape_cast %240 : vector<8xf32> to vector<8x1xf32>
    %cst_114 = arith.constant 2.500000e-01 : f32
    %242 = vector.broadcast %cst_114 : f32 to vector<8x8xf32>
    %243 = arith.mulf %234, %242 : vector<8x8xf32>
    %244 = arith.addf %1, %132 : vector<8x32xf32>
    %245 = arith.addf %3, %239 : vector<8x32xf32>
    %cst_115 = arith.constant 5.000000e-02 : f32
    %246 = vector.broadcast %cst_115 : f32 to vector<8x1xf32>
    %247 = arith.mulf %246, %17 : vector<8x1xf32>
    %cst_116 = arith.constant 0.949999988 : f32
    %248 = vector.broadcast %cst_116 : f32 to vector<8x1xf32>
    %249 = arith.mulf %248, %134 : vector<8x1xf32>
    %250 = arith.addf %247, %249 : vector<8x1xf32>
    %251 = arith.negf %250 : vector<8x1xf32>
    %252 = math.exp %251 : vector<8x1xf32>
    %cst_117 = arith.constant 1.000000e+00 : f32
    %253 = vector.broadcast %cst_117 : f32 to vector<8x1xf32>
    %254 = arith.addf %253, %252 : vector<8x1xf32>
    %255 = arith.divf %253, %254 : vector<8x1xf32>
    %cst_118 = arith.constant 5.000000e-02 : f32
    %256 = vector.broadcast %cst_118 : f32 to vector<8x1xf32>
    %257 = arith.mulf %256, %19 : vector<8x1xf32>
    %cst_119 = arith.constant 0.949999988 : f32
    %258 = vector.broadcast %cst_119 : f32 to vector<8x1xf32>
    %259 = arith.mulf %258, %241 : vector<8x1xf32>
    %260 = arith.addf %257, %259 : vector<8x1xf32>
    %261 = arith.negf %260 : vector<8x1xf32>
    %262 = math.exp %261 : vector<8x1xf32>
    %cst_120 = arith.constant 1.000000e+00 : f32
    %263 = vector.broadcast %cst_120 : f32 to vector<8x1xf32>
    %264 = arith.addf %263, %262 : vector<8x1xf32>
    %265 = arith.divf %263, %264 : vector<8x1xf32>
    %266 = vector.broadcast %255 : vector<8x1xf32> to vector<8x32xf32>
    %267 = arith.mulf %244, %266 : vector<8x32xf32>
    %268 = vector.broadcast %265 : vector<8x1xf32> to vector<8x32xf32>
    %269 = arith.mulf %245, %268 : vector<8x32xf32>
    %c0_121 = arith.constant 0 : index
    %c0_122 = arith.constant 0 : index
    %270 = vector.load %arg11[%c0_121, %c0_122] : memref<32x96xf32, #tpu.memory_space<vmem>>, vector<32x96xf32>
    %cst_123 = arith.constant dense<0.000000e+00> : vector<8x96xf32>
    %271 = tpu.matmul %267, %270, %cst_123 {dimension_numbers = #tpu.dot_dimension_numbers<[1], [0], [0], [1], [0, 0, 1, 1], [], []>} : vector<8x32xf32>, vector<32x96xf32>, vector<8x96xf32> -> vector<8x96xf32>
    %c0_124 = arith.constant 0 : index
    %c0_125 = arith.constant 0 : index
    %272 = vector.load %arg13[%c0_124, %c0_125] : memref<32x96xf32, #tpu.memory_space<vmem>>, vector<32x96xf32>
    %cst_126 = arith.constant dense<0.000000e+00> : vector<8x96xf32>
    %273 = tpu.matmul %269, %272, %cst_126 {dimension_numbers = #tpu.dot_dimension_numbers<[1], [0], [0], [1], [0, 0, 1, 1], [], []>} : vector<8x32xf32>, vector<32x96xf32>, vector<8x96xf32> -> vector<8x96xf32>
    %274 = vector.extract_strided_slice %271 {offsets = [0, 0], sizes = [8, 32], strides = [1, 1]} : vector<8x96xf32> to vector<8x32xf32>
    %275 = vector.extract_strided_slice %271 {offsets = [0, 32], sizes = [8, 32], strides = [1, 1]} : vector<8x96xf32> to vector<8x32xf32>
    %276 = vector.extract_strided_slice %271 {offsets = [0, 64], sizes = [8, 32], strides = [1, 1]} : vector<8x96xf32> to vector<8x32xf32>
    %277 = vector.extract_strided_slice %273 {offsets = [0, 0], sizes = [8, 32], strides = [1, 1]} : vector<8x96xf32> to vector<8x32xf32>
    %278 = vector.extract_strided_slice %273 {offsets = [0, 32], sizes = [8, 32], strides = [1, 1]} : vector<8x96xf32> to vector<8x32xf32>
    %279 = vector.extract_strided_slice %273 {offsets = [0, 64], sizes = [8, 32], strides = [1, 1]} : vector<8x96xf32> to vector<8x32xf32>
    %c0_127 = arith.constant 0 : index
    %c0_128 = arith.constant 0 : index
    %280 = vector.load %arg12[%c0_127, %c0_128] : memref<32x32xf32, #tpu.memory_space<vmem>>, vector<32x32xf32>
    %cst_129 = arith.constant 0.000000e+00 : f32
    %281 = vector.broadcast %cst_129 : f32 to vector<8x32xf32>
    %cst_130 = arith.constant 0.000000e+00 : f32
    %282 = vector.broadcast %cst_130 : f32 to vector<8x8xf32>
    %283 = vector.extract_strided_slice %274 {offsets = [0, 0], sizes = [8, 8], strides = [1, 1]} : vector<8x32xf32> to vector<8x8xf32>
    %284 = vector.extract_strided_slice %275 {offsets = [0, 0], sizes = [8, 8], strides = [1, 1]} : vector<8x32xf32> to vector<8x8xf32>
    %cst_131 = arith.constant dense<0.000000e+00> : vector<8x8xf32>
    %285 = tpu.matmul %283, %284, %cst_131 {dimension_numbers = #tpu.dot_dimension_numbers<[1], [1], [0], [0], [0, 0, 1, 0], [], []>} : vector<8x8xf32>, vector<8x8xf32>, vector<8x8xf32> -> vector<8x8xf32>
    %cst_132 = arith.constant 0.353553385 : f32
    %286 = vector.broadcast %cst_132 : f32 to vector<8x8xf32>
    %287 = arith.mulf %285, %286 : vector<8x8xf32>
    %288 = vector.broadcast %9 : vector<1x8xf32> to vector<8x8xf32>
    %289 = arith.addf %287, %288 : vector<8x8xf32>
    %cst_133 = arith.constant dense<0xFF800000> : vector<8xf32>
    %290 = vector.multi_reduction <maximumf>, %289, %cst_133 [1] : vector<8x8xf32> to vector<8xf32>
    %291 = vector.shape_cast %290 : vector<8xf32> to vector<8x1xf32>
    %292 = vector.broadcast %291 : vector<8x1xf32> to vector<8x8xf32>
    %293 = arith.subf %289, %292 : vector<8x8xf32>
    %294 = math.exp %293 : vector<8x8xf32>
    %cst_134 = arith.constant dense<0.000000e+00> : vector<8xf32>
    %295 = vector.multi_reduction <add>, %294, %cst_134 [1] : vector<8x8xf32> to vector<8xf32>
    %296 = vector.shape_cast %295 : vector<8xf32> to vector<8x1xf32>
    %297 = vector.broadcast %296 : vector<8x1xf32> to vector<8x8xf32>
    %298 = arith.divf %294, %297 : vector<8x8xf32>
    %c0_135 = arith.constant 0 : index
    %c0_136 = arith.constant 0 : index
    %c0_137 = arith.constant 0 : index
    %c0_138 = arith.constant 0 : index
    %299 = vector.load %arg25[%c0_135, %c0_136, %c0_137, %c0_138] : memref<1x4x8x8xf32, #tpu.memory_space<vmem>>, vector<1x1x8x8xf32>
    %300 = vector.shape_cast %299 : vector<1x1x8x8xf32> to vector<8x8xf32>
    %301 = vector.shape_cast %298 : vector<8x8xf32> to vector<1x1x8x8xf32>
    tpu.vector_store %arg25[%c0_135, %c0_136, %c0_137, %c0_138], %301 {strides = array<i32>} : memref<1x4x8x8xf32, #tpu.memory_space<vmem>>, vector<1x1x8x8xf32>,
    %302 = arith.addf %282, %298 : vector<8x8xf32>
    %303 = vector.extract_strided_slice %276 {offsets = [0, 0], sizes = [8, 8], strides = [1, 1]} : vector<8x32xf32> to vector<8x8xf32>
    %cst_139 = arith.constant dense<0.000000e+00> : vector<8x8xf32>
    %304 = tpu.matmul %298, %303, %cst_139 {dimension_numbers = #tpu.dot_dimension_numbers<[1], [0], [0], [1], [0, 0, 1, 1], [], []>} : vector<8x8xf32>, vector<8x8xf32>, vector<8x8xf32> -> vector<8x8xf32>
    %305 = vector.extract_strided_slice %280 {offsets = [0, 0], sizes = [8, 32], strides = [1, 1]} : vector<32x32xf32> to vector<8x32xf32>
    %cst_140 = arith.constant dense<0.000000e+00> : vector<8x32xf32>
    %306 = tpu.matmul %304, %305, %cst_140 {dimension_numbers = #tpu.dot_dimension_numbers<[1], [0], [0], [1], [0, 0, 1, 1], [], []>} : vector<8x8xf32>, vector<8x32xf32>, vector<8x32xf32> -> vector<8x32xf32>
    %307 = arith.addf %281, %306 : vector<8x32xf32>
    %308 = vector.extract_strided_slice %274 {offsets = [0, 8], sizes = [8, 8], strides = [1, 1]} : vector<8x32xf32> to vector<8x8xf32>
    %309 = vector.extract_strided_slice %275 {offsets = [0, 8], sizes = [8, 8], strides = [1, 1]} : vector<8x32xf32> to vector<8x8xf32>
    %cst_141 = arith.constant dense<0.000000e+00> : vector<8x8xf32>
    %310 = tpu.matmul %308, %309, %cst_141 {dimension_numbers = #tpu.dot_dimension_numbers<[1], [1], [0], [0], [0, 0, 1, 0], [], []>} : vector<8x8xf32>, vector<8x8xf32>, vector<8x8xf32> -> vector<8x8xf32>
    %cst_142 = arith.constant 0.353553385 : f32
    %311 = vector.broadcast %cst_142 : f32 to vector<8x8xf32>
    %312 = arith.mulf %310, %311 : vector<8x8xf32>
    %313 = vector.broadcast %9 : vector<1x8xf32> to vector<8x8xf32>
    %314 = arith.addf %312, %313 : vector<8x8xf32>
    %cst_143 = arith.constant dense<0xFF800000> : vector<8xf32>
    %315 = vector.multi_reduction <maximumf>, %314, %cst_143 [1] : vector<8x8xf32> to vector<8xf32>
    %316 = vector.shape_cast %315 : vector<8xf32> to vector<8x1xf32>
    %317 = vector.broadcast %316 : vector<8x1xf32> to vector<8x8xf32>
    %318 = arith.subf %314, %317 : vector<8x8xf32>
    %319 = math.exp %318 : vector<8x8xf32>
    %cst_144 = arith.constant dense<0.000000e+00> : vector<8xf32>
    %320 = vector.multi_reduction <add>, %319, %cst_144 [1] : vector<8x8xf32> to vector<8xf32>
    %321 = vector.shape_cast %320 : vector<8xf32> to vector<8x1xf32>
    %322 = vector.broadcast %321 : vector<8x1xf32> to vector<8x8xf32>
    %323 = arith.divf %319, %322 : vector<8x8xf32>
    %c0_145 = arith.constant 0 : index
    %c1_146 = arith.constant 1 : index
    %c0_147 = arith.constant 0 : index
    %c0_148 = arith.constant 0 : index
    %324 = vector.load %arg25[%c0_145, %c1_146, %c0_147, %c0_148] : memref<1x4x8x8xf32, #tpu.memory_space<vmem>>, vector<1x1x8x8xf32>
    %325 = vector.shape_cast %324 : vector<1x1x8x8xf32> to vector<8x8xf32>
    %326 = vector.shape_cast %323 : vector<8x8xf32> to vector<1x1x8x8xf32>
    tpu.vector_store %arg25[%c0_145, %c1_146, %c0_147, %c0_148], %326 {strides = array<i32>} : memref<1x4x8x8xf32, #tpu.memory_space<vmem>>, vector<1x1x8x8xf32>,
    %327 = arith.addf %302, %323 : vector<8x8xf32>
    %328 = vector.extract_strided_slice %276 {offsets = [0, 8], sizes = [8, 8], strides = [1, 1]} : vector<8x32xf32> to vector<8x8xf32>
    %cst_149 = arith.constant dense<0.000000e+00> : vector<8x8xf32>
    %329 = tpu.matmul %323, %328, %cst_149 {dimension_numbers = #tpu.dot_dimension_numbers<[1], [0], [0], [1], [0, 0, 1, 1], [], []>} : vector<8x8xf32>, vector<8x8xf32>, vector<8x8xf32> -> vector<8x8xf32>
    %330 = vector.extract_strided_slice %280 {offsets = [8, 0], sizes = [8, 32], strides = [1, 1]} : vector<32x32xf32> to vector<8x32xf32>
    %cst_150 = arith.constant dense<0.000000e+00> : vector<8x32xf32>
    %331 = tpu.matmul %329, %330, %cst_150 {dimension_numbers = #tpu.dot_dimension_numbers<[1], [0], [0], [1], [0, 0, 1, 1], [], []>} : vector<8x8xf32>, vector<8x32xf32>, vector<8x32xf32> -> vector<8x32xf32>
    %332 = arith.addf %307, %331 : vector<8x32xf32>
    %333 = vector.extract_strided_slice %274 {offsets = [0, 16], sizes = [8, 8], strides = [1, 1]} : vector<8x32xf32> to vector<8x8xf32>
    %334 = vector.extract_strided_slice %275 {offsets = [0, 16], sizes = [8, 8], strides = [1, 1]} : vector<8x32xf32> to vector<8x8xf32>
    %cst_151 = arith.constant dense<0.000000e+00> : vector<8x8xf32>
    %335 = tpu.matmul %333, %334, %cst_151 {dimension_numbers = #tpu.dot_dimension_numbers<[1], [1], [0], [0], [0, 0, 1, 0], [], []>} : vector<8x8xf32>, vector<8x8xf32>, vector<8x8xf32> -> vector<8x8xf32>
    %cst_152 = arith.constant 0.353553385 : f32
    %336 = vector.broadcast %cst_152 : f32 to vector<8x8xf32>
    %337 = arith.mulf %335, %336 : vector<8x8xf32>
    %338 = vector.broadcast %9 : vector<1x8xf32> to vector<8x8xf32>
    %339 = arith.addf %337, %338 : vector<8x8xf32>
    %cst_153 = arith.constant dense<0xFF800000> : vector<8xf32>
    %340 = vector.multi_reduction <maximumf>, %339, %cst_153 [1] : vector<8x8xf32> to vector<8xf32>
    %341 = vector.shape_cast %340 : vector<8xf32> to vector<8x1xf32>
    %342 = vector.broadcast %341 : vector<8x1xf32> to vector<8x8xf32>
    %343 = arith.subf %339, %342 : vector<8x8xf32>
    %344 = math.exp %343 : vector<8x8xf32>
    %cst_154 = arith.constant dense<0.000000e+00> : vector<8xf32>
    %345 = vector.multi_reduction <add>, %344, %cst_154 [1] : vector<8x8xf32> to vector<8xf32>
    %346 = vector.shape_cast %345 : vector<8xf32> to vector<8x1xf32>
    %347 = vector.broadcast %346 : vector<8x1xf32> to vector<8x8xf32>
    %348 = arith.divf %344, %347 : vector<8x8xf32>
    %c0_155 = arith.constant 0 : index
    %c2_156 = arith.constant 2 : index
    %c0_157 = arith.constant 0 : index
    %c0_158 = arith.constant 0 : index
    %349 = vector.load %arg25[%c0_155, %c2_156, %c0_157, %c0_158] : memref<1x4x8x8xf32, #tpu.memory_space<vmem>>, vector<1x1x8x8xf32>
    %350 = vector.shape_cast %349 : vector<1x1x8x8xf32> to vector<8x8xf32>
    %351 = vector.shape_cast %348 : vector<8x8xf32> to vector<1x1x8x8xf32>
    tpu.vector_store %arg25[%c0_155, %c2_156, %c0_157, %c0_158], %351 {strides = array<i32>} : memref<1x4x8x8xf32, #tpu.memory_space<vmem>>, vector<1x1x8x8xf32>,
    %352 = arith.addf %327, %348 : vector<8x8xf32>
    %353 = vector.extract_strided_slice %276 {offsets = [0, 16], sizes = [8, 8], strides = [1, 1]} : vector<8x32xf32> to vector<8x8xf32>
    %cst_159 = arith.constant dense<0.000000e+00> : vector<8x8xf32>
    %354 = tpu.matmul %348, %353, %cst_159 {dimension_numbers = #tpu.dot_dimension_numbers<[1], [0], [0], [1], [0, 0, 1, 1], [], []>} : vector<8x8xf32>, vector<8x8xf32>, vector<8x8xf32> -> vector<8x8xf32>
    %355 = vector.extract_strided_slice %280 {offsets = [16, 0], sizes = [8, 32], strides = [1, 1]} : vector<32x32xf32> to vector<8x32xf32>
    %cst_160 = arith.constant dense<0.000000e+00> : vector<8x32xf32>
    %356 = tpu.matmul %354, %355, %cst_160 {dimension_numbers = #tpu.dot_dimension_numbers<[1], [0], [0], [1], [0, 0, 1, 1], [], []>} : vector<8x8xf32>, vector<8x32xf32>, vector<8x32xf32> -> vector<8x32xf32>
    %357 = arith.addf %332, %356 : vector<8x32xf32>
    %358 = vector.extract_strided_slice %274 {offsets = [0, 24], sizes = [8, 8], strides = [1, 1]} : vector<8x32xf32> to vector<8x8xf32>
    %359 = vector.extract_strided_slice %275 {offsets = [0, 24], sizes = [8, 8], strides = [1, 1]} : vector<8x32xf32> to vector<8x8xf32>
    %cst_161 = arith.constant dense<0.000000e+00> : vector<8x8xf32>
    %360 = tpu.matmul %358, %359, %cst_161 {dimension_numbers = #tpu.dot_dimension_numbers<[1], [1], [0], [0], [0, 0, 1, 0], [], []>} : vector<8x8xf32>, vector<8x8xf32>, vector<8x8xf32> -> vector<8x8xf32>
    %cst_162 = arith.constant 0.353553385 : f32
    %361 = vector.broadcast %cst_162 : f32 to vector<8x8xf32>
    %362 = arith.mulf %360, %361 : vector<8x8xf32>
    %363 = vector.broadcast %9 : vector<1x8xf32> to vector<8x8xf32>
    %364 = arith.addf %362, %363 : vector<8x8xf32>
    %cst_163 = arith.constant dense<0xFF800000> : vector<8xf32>
    %365 = vector.multi_reduction <maximumf>, %364, %cst_163 [1] : vector<8x8xf32> to vector<8xf32>
    %366 = vector.shape_cast %365 : vector<8xf32> to vector<8x1xf32>
    %367 = vector.broadcast %366 : vector<8x1xf32> to vector<8x8xf32>
    %368 = arith.subf %364, %367 : vector<8x8xf32>
    %369 = math.exp %368 : vector<8x8xf32>
    %cst_164 = arith.constant dense<0.000000e+00> : vector<8xf32>
    %370 = vector.multi_reduction <add>, %369, %cst_164 [1] : vector<8x8xf32> to vector<8xf32>
    %371 = vector.shape_cast %370 : vector<8xf32> to vector<8x1xf32>
    %372 = vector.broadcast %371 : vector<8x1xf32> to vector<8x8xf32>
    %373 = arith.divf %369, %372 : vector<8x8xf32>
    %c0_165 = arith.constant 0 : index
    %c3_166 = arith.constant 3 : index
    %c0_167 = arith.constant 0 : index
    %c0_168 = arith.constant 0 : index
    %374 = vector.load %arg25[%c0_165, %c3_166, %c0_167, %c0_168] : memref<1x4x8x8xf32, #tpu.memory_space<vmem>>, vector<1x1x8x8xf32>
    %375 = vector.shape_cast %374 : vector<1x1x8x8xf32> to vector<8x8xf32>
    %376 = vector.shape_cast %373 : vector<8x8xf32> to vector<1x1x8x8xf32>
    tpu.vector_store %arg25[%c0_165, %c3_166, %c0_167, %c0_168], %376 {strides = array<i32>} : memref<1x4x8x8xf32, #tpu.memory_space<vmem>>, vector<1x1x8x8xf32>,
    %377 = arith.addf %352, %373 : vector<8x8xf32>
    %378 = vector.extract_strided_slice %276 {offsets = [0, 24], sizes = [8, 8], strides = [1, 1]} : vector<8x32xf32> to vector<8x8xf32>
    %cst_169 = arith.constant dense<0.000000e+00> : vector<8x8xf32>
    %379 = tpu.matmul %373, %378, %cst_169 {dimension_numbers = #tpu.dot_dimension_numbers<[1], [0], [0], [1], [0, 0, 1, 1], [], []>} : vector<8x8xf32>, vector<8x8xf32>, vector<8x8xf32> -> vector<8x8xf32>
    %380 = vector.extract_strided_slice %280 {offsets = [24, 0], sizes = [8, 32], strides = [1, 1]} : vector<32x32xf32> to vector<8x32xf32>
    %cst_170 = arith.constant dense<0.000000e+00> : vector<8x32xf32>
    %381 = tpu.matmul %379, %380, %cst_170 {dimension_numbers = #tpu.dot_dimension_numbers<[1], [0], [0], [1], [0, 0, 1, 1], [], []>} : vector<8x8xf32>, vector<8x32xf32>, vector<8x32xf32> -> vector<8x32xf32>
    %382 = arith.addf %357, %381 : vector<8x32xf32>
    %383 = tpu.transpose %377, [1, 0] : vector<8x8xf32> -> vector<8x8xf32>
    %cst_171 = arith.constant dense<0.000000e+00> : vector<8xf32>
    %384 = vector.multi_reduction <add>, %383, %cst_171 [1] : vector<8x8xf32> to vector<8xf32>
    %385 = vector.shape_cast %384 : vector<8xf32> to vector<8x1xf32>
    %c0_172 = arith.constant 0 : index
    %c0_173 = arith.constant 0 : index
    %386 = vector.load %arg14[%c0_172, %c0_173] : memref<32x32xf32, #tpu.memory_space<vmem>>, vector<32x32xf32>
    %cst_174 = arith.constant 0.000000e+00 : f32
    %387 = vector.broadcast %cst_174 : f32 to vector<8x32xf32>
    %cst_175 = arith.constant 0.000000e+00 : f32
    %388 = vector.broadcast %cst_175 : f32 to vector<8x8xf32>
    %389 = vector.extract_strided_slice %277 {offsets = [0, 0], sizes = [8, 8], strides = [1, 1]} : vector<8x32xf32> to vector<8x8xf32>
    %390 = vector.extract_strided_slice %278 {offsets = [0, 0], sizes = [8, 8], strides = [1, 1]} : vector<8x32xf32> to vector<8x8xf32>
    %cst_176 = arith.constant dense<0.000000e+00> : vector<8x8xf32>
    %391 = tpu.matmul %389, %390, %cst_176 {dimension_numbers = #tpu.dot_dimension_numbers<[1], [1], [0], [0], [0, 0, 1, 0], [], []>} : vector<8x8xf32>, vector<8x8xf32>, vector<8x8xf32> -> vector<8x8xf32>
    %cst_177 = arith.constant 0.353553385 : f32
    %392 = vector.broadcast %cst_177 : f32 to vector<8x8xf32>
    %393 = arith.mulf %391, %392 : vector<8x8xf32>
    %394 = vector.broadcast %15 : vector<1x8xf32> to vector<8x8xf32>
    %395 = arith.addf %393, %394 : vector<8x8xf32>
    %cst_178 = arith.constant dense<0xFF800000> : vector<8xf32>
    %396 = vector.multi_reduction <maximumf>, %395, %cst_178 [1] : vector<8x8xf32> to vector<8xf32>
    %397 = vector.shape_cast %396 : vector<8xf32> to vector<8x1xf32>
    %398 = vector.broadcast %397 : vector<8x1xf32> to vector<8x8xf32>
    %399 = arith.subf %395, %398 : vector<8x8xf32>
    %400 = math.exp %399 : vector<8x8xf32>
    %cst_179 = arith.constant dense<0.000000e+00> : vector<8xf32>
    %401 = vector.multi_reduction <add>, %400, %cst_179 [1] : vector<8x8xf32> to vector<8xf32>
    %402 = vector.shape_cast %401 : vector<8xf32> to vector<8x1xf32>
    %403 = vector.broadcast %402 : vector<8x1xf32> to vector<8x8xf32>
    %404 = arith.divf %400, %403 : vector<8x8xf32>
    %c0_180 = arith.constant 0 : index
    %c0_181 = arith.constant 0 : index
    %c0_182 = arith.constant 0 : index
    %c0_183 = arith.constant 0 : index
    %405 = vector.load %arg26[%c0_180, %c0_181, %c0_182, %c0_183] : memref<1x4x8x8xf32, #tpu.memory_space<vmem>>, vector<1x1x8x8xf32>
    %406 = vector.shape_cast %405 : vector<1x1x8x8xf32> to vector<8x8xf32>
    %407 = vector.shape_cast %404 : vector<8x8xf32> to vector<1x1x8x8xf32>
    tpu.vector_store %arg26[%c0_180, %c0_181, %c0_182, %c0_183], %407 {strides = array<i32>} : memref<1x4x8x8xf32, #tpu.memory_space<vmem>>, vector<1x1x8x8xf32>,
    %408 = arith.addf %388, %404 : vector<8x8xf32>
    %409 = vector.extract_strided_slice %279 {offsets = [0, 0], sizes = [8, 8], strides = [1, 1]} : vector<8x32xf32> to vector<8x8xf32>
    %cst_184 = arith.constant dense<0.000000e+00> : vector<8x8xf32>
    %410 = tpu.matmul %404, %409, %cst_184 {dimension_numbers = #tpu.dot_dimension_numbers<[1], [0], [0], [1], [0, 0, 1, 1], [], []>} : vector<8x8xf32>, vector<8x8xf32>, vector<8x8xf32> -> vector<8x8xf32>
    %411 = vector.extract_strided_slice %386 {offsets = [0, 0], sizes = [8, 32], strides = [1, 1]} : vector<32x32xf32> to vector<8x32xf32>
    %cst_185 = arith.constant dense<0.000000e+00> : vector<8x32xf32>
    %412 = tpu.matmul %410, %411, %cst_185 {dimension_numbers = #tpu.dot_dimension_numbers<[1], [0], [0], [1], [0, 0, 1, 1], [], []>} : vector<8x8xf32>, vector<8x32xf32>, vector<8x32xf32> -> vector<8x32xf32>
    %413 = arith.addf %387, %412 : vector<8x32xf32>
    %414 = vector.extract_strided_slice %277 {offsets = [0, 8], sizes = [8, 8], strides = [1, 1]} : vector<8x32xf32> to vector<8x8xf32>
    %415 = vector.extract_strided_slice %278 {offsets = [0, 8], sizes = [8, 8], strides = [1, 1]} : vector<8x32xf32> to vector<8x8xf32>
    %cst_186 = arith.constant dense<0.000000e+00> : vector<8x8xf32>
    %416 = tpu.matmul %414, %415, %cst_186 {dimension_numbers = #tpu.dot_dimension_numbers<[1], [1], [0], [0], [0, 0, 1, 0], [], []>} : vector<8x8xf32>, vector<8x8xf32>, vector<8x8xf32> -> vector<8x8xf32>
    %cst_187 = arith.constant 0.353553385 : f32
    %417 = vector.broadcast %cst_187 : f32 to vector<8x8xf32>
    %418 = arith.mulf %416, %417 : vector<8x8xf32>
    %419 = vector.broadcast %15 : vector<1x8xf32> to vector<8x8xf32>
    %420 = arith.addf %418, %419 : vector<8x8xf32>
    %cst_188 = arith.constant dense<0xFF800000> : vector<8xf32>
    %421 = vector.multi_reduction <maximumf>, %420, %cst_188 [1] : vector<8x8xf32> to vector<8xf32>
    %422 = vector.shape_cast %421 : vector<8xf32> to vector<8x1xf32>
    %423 = vector.broadcast %422 : vector<8x1xf32> to vector<8x8xf32>
    %424 = arith.subf %420, %423 : vector<8x8xf32>
    %425 = math.exp %424 : vector<8x8xf32>
    %cst_189 = arith.constant dense<0.000000e+00> : vector<8xf32>
    %426 = vector.multi_reduction <add>, %425, %cst_189 [1] : vector<8x8xf32> to vector<8xf32>
    %427 = vector.shape_cast %426 : vector<8xf32> to vector<8x1xf32>
    %428 = vector.broadcast %427 : vector<8x1xf32> to vector<8x8xf32>
    %429 = arith.divf %425, %428 : vector<8x8xf32>
    %c0_190 = arith.constant 0 : index
    %c1_191 = arith.constant 1 : index
    %c0_192 = arith.constant 0 : index
    %c0_193 = arith.constant 0 : index
    %430 = vector.load %arg26[%c0_190, %c1_191, %c0_192, %c0_193] : memref<1x4x8x8xf32, #tpu.memory_space<vmem>>, vector<1x1x8x8xf32>
    %431 = vector.shape_cast %430 : vector<1x1x8x8xf32> to vector<8x8xf32>
    %432 = vector.shape_cast %429 : vector<8x8xf32> to vector<1x1x8x8xf32>
    tpu.vector_store %arg26[%c0_190, %c1_191, %c0_192, %c0_193], %432 {strides = array<i32>} : memref<1x4x8x8xf32, #tpu.memory_space<vmem>>, vector<1x1x8x8xf32>,
    %433 = arith.addf %408, %429 : vector<8x8xf32>
    %434 = vector.extract_strided_slice %279 {offsets = [0, 8], sizes = [8, 8], strides = [1, 1]} : vector<8x32xf32> to vector<8x8xf32>
    %cst_194 = arith.constant dense<0.000000e+00> : vector<8x8xf32>
    %435 = tpu.matmul %429, %434, %cst_194 {dimension_numbers = #tpu.dot_dimension_numbers<[1], [0], [0], [1], [0, 0, 1, 1], [], []>} : vector<8x8xf32>, vector<8x8xf32>, vector<8x8xf32> -> vector<8x8xf32>
    %436 = vector.extract_strided_slice %386 {offsets = [8, 0], sizes = [8, 32], strides = [1, 1]} : vector<32x32xf32> to vector<8x32xf32>
    %cst_195 = arith.constant dense<0.000000e+00> : vector<8x32xf32>
    %437 = tpu.matmul %435, %436, %cst_195 {dimension_numbers = #tpu.dot_dimension_numbers<[1], [0], [0], [1], [0, 0, 1, 1], [], []>} : vector<8x8xf32>, vector<8x32xf32>, vector<8x32xf32> -> vector<8x32xf32>
    %438 = arith.addf %413, %437 : vector<8x32xf32>
    %439 = vector.extract_strided_slice %277 {offsets = [0, 16], sizes = [8, 8], strides = [1, 1]} : vector<8x32xf32> to vector<8x8xf32>
    %440 = vector.extract_strided_slice %278 {offsets = [0, 16], sizes = [8, 8], strides = [1, 1]} : vector<8x32xf32> to vector<8x8xf32>
    %cst_196 = arith.constant dense<0.000000e+00> : vector<8x8xf32>
    %441 = tpu.matmul %439, %440, %cst_196 {dimension_numbers = #tpu.dot_dimension_numbers<[1], [1], [0], [0], [0, 0, 1, 0], [], []>} : vector<8x8xf32>, vector<8x8xf32>, vector<8x8xf32> -> vector<8x8xf32>
    %cst_197 = arith.constant 0.353553385 : f32
    %442 = vector.broadcast %cst_197 : f32 to vector<8x8xf32>
    %443 = arith.mulf %441, %442 : vector<8x8xf32>
    %444 = vector.broadcast %15 : vector<1x8xf32> to vector<8x8xf32>
    %445 = arith.addf %443, %444 : vector<8x8xf32>
    %cst_198 = arith.constant dense<0xFF800000> : vector<8xf32>
    %446 = vector.multi_reduction <maximumf>, %445, %cst_198 [1] : vector<8x8xf32> to vector<8xf32>
    %447 = vector.shape_cast %446 : vector<8xf32> to vector<8x1xf32>
    %448 = vector.broadcast %447 : vector<8x1xf32> to vector<8x8xf32>
    %449 = arith.subf %445, %448 : vector<8x8xf32>
    %450 = math.exp %449 : vector<8x8xf32>
    %cst_199 = arith.constant dense<0.000000e+00> : vector<8xf32>
    %451 = vector.multi_reduction <add>, %450, %cst_199 [1] : vector<8x8xf32> to vector<8xf32>
    %452 = vector.shape_cast %451 : vector<8xf32> to vector<8x1xf32>
    %453 = vector.broadcast %452 : vector<8x1xf32> to vector<8x8xf32>
    %454 = arith.divf %450, %453 : vector<8x8xf32>
    %c0_200 = arith.constant 0 : index
    %c2_201 = arith.constant 2 : index
    %c0_202 = arith.constant 0 : index
    %c0_203 = arith.constant 0 : index
    %455 = vector.load %arg26[%c0_200, %c2_201, %c0_202, %c0_203] : memref<1x4x8x8xf32, #tpu.memory_space<vmem>>, vector<1x1x8x8xf32>
    %456 = vector.shape_cast %455 : vector<1x1x8x8xf32> to vector<8x8xf32>
    %457 = vector.shape_cast %454 : vector<8x8xf32> to vector<1x1x8x8xf32>
    tpu.vector_store %arg26[%c0_200, %c2_201, %c0_202, %c0_203], %457 {strides = array<i32>} : memref<1x4x8x8xf32, #tpu.memory_space<vmem>>, vector<1x1x8x8xf32>,
    %458 = arith.addf %433, %454 : vector<8x8xf32>
    %459 = vector.extract_strided_slice %279 {offsets = [0, 16], sizes = [8, 8], strides = [1, 1]} : vector<8x32xf32> to vector<8x8xf32>
    %cst_204 = arith.constant dense<0.000000e+00> : vector<8x8xf32>
    %460 = tpu.matmul %454, %459, %cst_204 {dimension_numbers = #tpu.dot_dimension_numbers<[1], [0], [0], [1], [0, 0, 1, 1], [], []>} : vector<8x8xf32>, vector<8x8xf32>, vector<8x8xf32> -> vector<8x8xf32>
    %461 = vector.extract_strided_slice %386 {offsets = [16, 0], sizes = [8, 32], strides = [1, 1]} : vector<32x32xf32> to vector<8x32xf32>
    %cst_205 = arith.constant dense<0.000000e+00> : vector<8x32xf32>
    %462 = tpu.matmul %460, %461, %cst_205 {dimension_numbers = #tpu.dot_dimension_numbers<[1], [0], [0], [1], [0, 0, 1, 1], [], []>} : vector<8x8xf32>, vector<8x32xf32>, vector<8x32xf32> -> vector<8x32xf32>
    %463 = arith.addf %438, %462 : vector<8x32xf32>
    %464 = vector.extract_strided_slice %277 {offsets = [0, 24], sizes = [8, 8], strides = [1, 1]} : vector<8x32xf32> to vector<8x8xf32>
    %465 = vector.extract_strided_slice %278 {offsets = [0, 24], sizes = [8, 8], strides = [1, 1]} : vector<8x32xf32> to vector<8x8xf32>
    %cst_206 = arith.constant dense<0.000000e+00> : vector<8x8xf32>
    %466 = tpu.matmul %464, %465, %cst_206 {dimension_numbers = #tpu.dot_dimension_numbers<[1], [1], [0], [0], [0, 0, 1, 0], [], []>} : vector<8x8xf32>, vector<8x8xf32>, vector<8x8xf32> -> vector<8x8xf32>
    %cst_207 = arith.constant 0.353553385 : f32
    %467 = vector.broadcast %cst_207 : f32 to vector<8x8xf32>
    %468 = arith.mulf %466, %467 : vector<8x8xf32>
    %469 = vector.broadcast %15 : vector<1x8xf32> to vector<8x8xf32>
    %470 = arith.addf %468, %469 : vector<8x8xf32>
    %cst_208 = arith.constant dense<0xFF800000> : vector<8xf32>
    %471 = vector.multi_reduction <maximumf>, %470, %cst_208 [1] : vector<8x8xf32> to vector<8xf32>
    %472 = vector.shape_cast %471 : vector<8xf32> to vector<8x1xf32>
    %473 = vector.broadcast %472 : vector<8x1xf32> to vector<8x8xf32>
    %474 = arith.subf %470, %473 : vector<8x8xf32>
    %475 = math.exp %474 : vector<8x8xf32>
    %cst_209 = arith.constant dense<0.000000e+00> : vector<8xf32>
    %476 = vector.multi_reduction <add>, %475, %cst_209 [1] : vector<8x8xf32> to vector<8xf32>
    %477 = vector.shape_cast %476 : vector<8xf32> to vector<8x1xf32>
    %478 = vector.broadcast %477 : vector<8x1xf32> to vector<8x8xf32>
    %479 = arith.divf %475, %478 : vector<8x8xf32>
    %c0_210 = arith.constant 0 : index
    %c3_211 = arith.constant 3 : index
    %c0_212 = arith.constant 0 : index
    %c0_213 = arith.constant 0 : index
    %480 = vector.load %arg26[%c0_210, %c3_211, %c0_212, %c0_213] : memref<1x4x8x8xf32, #tpu.memory_space<vmem>>, vector<1x1x8x8xf32>
    %481 = vector.shape_cast %480 : vector<1x1x8x8xf32> to vector<8x8xf32>
    %482 = vector.shape_cast %479 : vector<8x8xf32> to vector<1x1x8x8xf32>
    tpu.vector_store %arg26[%c0_210, %c3_211, %c0_212, %c0_213], %482 {strides = array<i32>} : memref<1x4x8x8xf32, #tpu.memory_space<vmem>>, vector<1x1x8x8xf32>,
    %483 = arith.addf %458, %479 : vector<8x8xf32>
    %484 = vector.extract_strided_slice %279 {offsets = [0, 24], sizes = [8, 8], strides = [1, 1]} : vector<8x32xf32> to vector<8x8xf32>
    %cst_214 = arith.constant dense<0.000000e+00> : vector<8x8xf32>
    %485 = tpu.matmul %479, %484, %cst_214 {dimension_numbers = #tpu.dot_dimension_numbers<[1], [0], [0], [1], [0, 0, 1, 1], [], []>} : vector<8x8xf32>, vector<8x8xf32>, vector<8x8xf32> -> vector<8x8xf32>
    %486 = vector.extract_strided_slice %386 {offsets = [24, 0], sizes = [8, 32], strides = [1, 1]} : vector<32x32xf32> to vector<8x32xf32>
    %cst_215 = arith.constant dense<0.000000e+00> : vector<8x32xf32>
    %487 = tpu.matmul %485, %486, %cst_215 {dimension_numbers = #tpu.dot_dimension_numbers<[1], [0], [0], [1], [0, 0, 1, 1], [], []>} : vector<8x8xf32>, vector<8x32xf32>, vector<8x32xf32> -> vector<8x32xf32>
    %488 = arith.addf %463, %487 : vector<8x32xf32>
    %489 = tpu.transpose %483, [1, 0] : vector<8x8xf32> -> vector<8x8xf32>
    %cst_216 = arith.constant dense<0.000000e+00> : vector<8xf32>
    %490 = vector.multi_reduction <add>, %489, %cst_216 [1] : vector<8x8xf32> to vector<8xf32>
    %491 = vector.shape_cast %490 : vector<8xf32> to vector<8x1xf32>
    %492 = arith.addf %267, %382 : vector<8x32xf32>
    %493 = arith.addf %269, %488 : vector<8x32xf32>
    %cst_217 = arith.constant 5.000000e-02 : f32
    %494 = vector.broadcast %cst_217 : f32 to vector<8x1xf32>
    %495 = arith.mulf %494, %255 : vector<8x1xf32>
    %cst_218 = arith.constant 0.949999988 : f32
    %496 = vector.broadcast %cst_218 : f32 to vector<8x1xf32>
    %497 = arith.mulf %496, %385 : vector<8x1xf32>
    %498 = arith.addf %495, %497 : vector<8x1xf32>
    %499 = arith.negf %498 : vector<8x1xf32>
    %500 = math.exp %499 : vector<8x1xf32>
    %cst_219 = arith.constant 1.000000e+00 : f32
    %501 = vector.broadcast %cst_219 : f32 to vector<8x1xf32>
    %502 = arith.addf %501, %500 : vector<8x1xf32>
    %503 = arith.divf %501, %502 : vector<8x1xf32>
    %cst_220 = arith.constant 5.000000e-02 : f32
    %504 = vector.broadcast %cst_220 : f32 to vector<8x1xf32>
    %505 = arith.mulf %504, %265 : vector<8x1xf32>
    %cst_221 = arith.constant 0.949999988 : f32
    %506 = vector.broadcast %cst_221 : f32 to vector<8x1xf32>
    %507 = arith.mulf %506, %491 : vector<8x1xf32>
    %508 = arith.addf %505, %507 : vector<8x1xf32>
    %509 = arith.negf %508 : vector<8x1xf32>
    %510 = math.exp %509 : vector<8x1xf32>
    %cst_222 = arith.constant 1.000000e+00 : f32
    %511 = vector.broadcast %cst_222 : f32 to vector<8x1xf32>
    %512 = arith.addf %511, %510 : vector<8x1xf32>
    %513 = arith.divf %511, %512 : vector<8x1xf32>
    %514 = vector.broadcast %503 : vector<8x1xf32> to vector<8x32xf32>
    %515 = arith.mulf %492, %514 : vector<8x32xf32>
    %516 = vector.broadcast %513 : vector<8x1xf32> to vector<8x32xf32>
    %517 = arith.mulf %493, %516 : vector<8x32xf32>
    %cst_223 = arith.constant dense<0.000000e+00> : vector<8x8xf32>
    %518 = tpu.matmul %136, %243, %cst_223 {dimension_numbers = #tpu.dot_dimension_numbers<[1], [0], [0], [1], [0, 0, 1, 1], [], []>} : vector<8x8xf32>, vector<8x8xf32>, vector<8x8xf32> -> vector<8x8xf32>
    %cst_224 = arith.constant dense<0.000000e+00> : vector<8x8xf32>
    %519 = tpu.matmul %243, %136, %cst_224 {dimension_numbers = #tpu.dot_dimension_numbers<[1], [0], [0], [1], [0, 0, 1, 1], [], []>} : vector<8x8xf32>, vector<8x8xf32>, vector<8x8xf32> -> vector<8x8xf32>
    %c0_225 = arith.constant 0 : index
    %c0_226 = arith.constant 0 : index
    %520 = vector.load %arg15[%c0_225, %c0_226] : memref<32x32xf32, #tpu.memory_space<vmem>>, vector<32x32xf32>
    %cst_227 = arith.constant dense<0.000000e+00> : vector<8x32xf32>
    %521 = tpu.matmul %515, %520, %cst_227 {dimension_numbers = #tpu.dot_dimension_numbers<[1], [0], [0], [1], [0, 0, 1, 1], [], []>} : vector<8x32xf32>, vector<32x32xf32>, vector<8x32xf32> -> vector<8x32xf32>
    %cst_228 = arith.constant dense<0.000000e+00> : vector<8x32xf32>
    %522 = tpu.matmul %518, %521, %cst_228 {dimension_numbers = #tpu.dot_dimension_numbers<[1], [0], [0], [1], [0, 0, 1, 1], [], []>} : vector<8x8xf32>, vector<8x32xf32>, vector<8x32xf32> -> vector<8x32xf32>
    %523 = arith.addf %515, %522 : vector<8x32xf32>
    %c0_229 = arith.constant 0 : index
    %c0_230 = arith.constant 0 : index
    %524 = vector.load %arg16[%c0_229, %c0_230] : memref<32x32xf32, #tpu.memory_space<vmem>>, vector<32x32xf32>
    %cst_231 = arith.constant dense<0.000000e+00> : vector<8x32xf32>
    %525 = tpu.matmul %517, %524, %cst_231 {dimension_numbers = #tpu.dot_dimension_numbers<[1], [0], [0], [1], [0, 0, 1, 1], [], []>} : vector<8x32xf32>, vector<32x32xf32>, vector<8x32xf32> -> vector<8x32xf32>
    %cst_232 = arith.constant dense<0.000000e+00> : vector<8x32xf32>
    %526 = tpu.matmul %519, %525, %cst_232 {dimension_numbers = #tpu.dot_dimension_numbers<[1], [0], [0], [1], [0, 0, 1, 1], [], []>} : vector<8x8xf32>, vector<8x32xf32>, vector<8x32xf32> -> vector<8x32xf32>
    %527 = arith.addf %517, %526 : vector<8x32xf32>
    %c0_233 = arith.constant 0 : index
    %c0_234 = arith.constant 0 : index
    %528 = vector.load %arg17[%c0_233, %c0_234] : memref<1x32xf32, #tpu.memory_space<vmem>>, vector<1x32xf32>
    %c0_235 = arith.constant 0 : index
    %c0_236 = arith.constant 0 : index
    %529 = vector.load %arg18[%c0_235, %c0_236] : memref<1x32xf32, #tpu.memory_space<vmem>>, vector<1x32xf32>
    %cst_237 = arith.constant dense<0.000000e+00> : vector<8xf32>
    %530 = vector.multi_reduction <add>, %523, %cst_237 [1] : vector<8x32xf32> to vector<8xf32>
    %531 = vector.shape_cast %530 : vector<8xf32> to vector<8x1xf32>
    %cst_238 = arith.constant 3.200000e+01 : f32
    %532 = vector.broadcast %cst_238 : f32 to vector<8x1xf32>
    %533 = arith.divf %531, %532 : vector<8x1xf32>
    %534 = vector.broadcast %533 : vector<8x1xf32> to vector<8x32xf32>
    %535 = arith.subf %523, %534 : vector<8x32xf32>
    %536 = arith.mulf %535, %535 : vector<8x32xf32>
    %cst_239 = arith.constant dense<0.000000e+00> : vector<8xf32>
    %537 = vector.multi_reduction <add>, %536, %cst_239 [1] : vector<8x32xf32> to vector<8xf32>
    %538 = vector.shape_cast %537 : vector<8xf32> to vector<8x1xf32>
    %cst_240 = arith.constant 3.200000e+01 : f32
    %539 = vector.broadcast %cst_240 : f32 to vector<8x1xf32>
    %540 = arith.divf %538, %539 : vector<8x1xf32>
    %541 = vector.broadcast %533 : vector<8x1xf32> to vector<8x32xf32>
    %542 = arith.subf %523, %541 : vector<8x32xf32>
    %cst_241 = arith.constant 9.99999974E-6 : f32
    %543 = vector.broadcast %cst_241 : f32 to vector<8x1xf32>
    %544 = arith.addf %540, %543 : vector<8x1xf32>
    %545 = math.rsqrt %544 : vector<8x1xf32>
    %546 = vector.broadcast %545 : vector<8x1xf32> to vector<8x32xf32>
    %547 = arith.mulf %542, %546 : vector<8x32xf32>
    %548 = vector.broadcast %528 : vector<1x32xf32> to vector<8x32xf32>
    %549 = arith.mulf %547, %548 : vector<8x32xf32>
    %550 = vector.broadcast %529 : vector<1x32xf32> to vector<8x32xf32>
    %551 = arith.addf %549, %550 : vector<8x32xf32>
    %c0_242 = arith.constant 0 : index
    %c0_243 = arith.constant 0 : index
    %c0_244 = arith.constant 0 : index
    %552 = vector.load %arg21[%c0_242, %c0_243, %c0_244] : memref<1x8x32xf32, #tpu.memory_space<vmem>>, vector<1x8x32xf32>
    %553 = vector.shape_cast %552 : vector<1x8x32xf32> to vector<8x32xf32>
    %554 = vector.shape_cast %551 : vector<8x32xf32> to vector<1x8x32xf32>
    tpu.vector_store %arg21[%c0_242, %c0_243, %c0_244], %554 {strides = array<i32>} : memref<1x8x32xf32, #tpu.memory_space<vmem>>, vector<1x8x32xf32>,
    %c0_245 = arith.constant 0 : index
    %c0_246 = arith.constant 0 : index
    %555 = vector.load %arg19[%c0_245, %c0_246] : memref<1x32xf32, #tpu.memory_space<vmem>>, vector<1x32xf32>
    %c0_247 = arith.constant 0 : index
    %c0_248 = arith.constant 0 : index
    %556 = vector.load %arg20[%c0_247, %c0_248] : memref<1x32xf32, #tpu.memory_space<vmem>>, vector<1x32xf32>
    %cst_249 = arith.constant dense<0.000000e+00> : vector<8xf32>
    %557 = vector.multi_reduction <add>, %527, %cst_249 [1] : vector<8x32xf32> to vector<8xf32>
    %558 = vector.shape_cast %557 : vector<8xf32> to vector<8x1xf32>
    %cst_250 = arith.constant 3.200000e+01 : f32
    %559 = vector.broadcast %cst_250 : f32 to vector<8x1xf32>
    %560 = arith.divf %558, %559 : vector<8x1xf32>
    %561 = vector.broadcast %560 : vector<8x1xf32> to vector<8x32xf32>
    %562 = arith.subf %527, %561 : vector<8x32xf32>
    %563 = arith.mulf %562, %562 : vector<8x32xf32>
    %cst_251 = arith.constant dense<0.000000e+00> : vector<8xf32>
    %564 = vector.multi_reduction <add>, %563, %cst_251 [1] : vector<8x32xf32> to vector<8xf32>
    %565 = vector.shape_cast %564 : vector<8xf32> to vector<8x1xf32>
    %cst_252 = arith.constant 3.200000e+01 : f32
    %566 = vector.broadcast %cst_252 : f32 to vector<8x1xf32>
    %567 = arith.divf %565, %566 : vector<8x1xf32>
    %568 = vector.broadcast %560 : vector<8x1xf32> to vector<8x32xf32>
    %569 = arith.subf %527, %568 : vector<8x32xf32>
    %cst_253 = arith.constant 9.99999974E-6 : f32
    %570 = vector.broadcast %cst_253 : f32 to vector<8x1xf32>
    %571 = arith.addf %567, %570 : vector<8x1xf32>
    %572 = math.rsqrt %571 : vector<8x1xf32>
    %573 = vector.broadcast %572 : vector<8x1xf32> to vector<8x32xf32>
    %574 = arith.mulf %569, %573 : vector<8x32xf32>
    %575 = vector.broadcast %555 : vector<1x32xf32> to vector<8x32xf32>
    %576 = arith.mulf %574, %575 : vector<8x32xf32>
    %577 = vector.broadcast %556 : vector<1x32xf32> to vector<8x32xf32>
    %578 = arith.addf %576, %577 : vector<8x32xf32>
    %c0_254 = arith.constant 0 : index
    %c0_255 = arith.constant 0 : index
    %c0_256 = arith.constant 0 : index
    %579 = vector.load %arg22[%c0_254, %c0_255, %c0_256] : memref<1x8x32xf32, #tpu.memory_space<vmem>>, vector<1x8x32xf32>
    %580 = vector.shape_cast %579 : vector<1x8x32xf32> to vector<8x32xf32>
    %581 = vector.shape_cast %578 : vector<8x32xf32> to vector<1x8x32xf32>
    tpu.vector_store %arg22[%c0_254, %c0_255, %c0_256], %581 {strides = array<i32>} : memref<1x8x32xf32, #tpu.memory_space<vmem>>, vector<1x8x32xf32>,
    %c0_257 = arith.constant 0 : index
    %c0_258 = arith.constant 0 : index
    %c0_259 = arith.constant 0 : index
    %582 = vector.load %arg27[%c0_257, %c0_258, %c0_259] : memref<1x8x1xf32, #tpu.memory_space<vmem>>, vector<1x8x1xf32>
    %583 = vector.shape_cast %582 : vector<1x8x1xf32> to vector<8x1xf32>
    %584 = vector.shape_cast %503 : vector<8x1xf32> to vector<1x8x1xf32>
    tpu.vector_store %arg27[%c0_257, %c0_258, %c0_259], %584 {strides = array<i32>} : memref<1x8x1xf32, #tpu.memory_space<vmem>>, vector<1x8x1xf32>,
    %c0_260 = arith.constant 0 : index
    %c0_261 = arith.constant 0 : index
    %c0_262 = arith.constant 0 : index
    %585 = vector.load %arg28[%c0_260, %c0_261, %c0_262] : memref<1x8x1xf32, #tpu.memory_space<vmem>>, vector<1x8x1xf32>
    %586 = vector.shape_cast %585 : vector<1x8x1xf32> to vector<8x1xf32>
    %587 = vector.shape_cast %513 : vector<8x1xf32> to vector<1x8x1xf32>
    tpu.vector_store %arg28[%c0_260, %c0_261, %c0_262], %587 {strides = array<i32>} : memref<1x8x1xf32, #tpu.memory_space<vmem>>, vector<1x8x1xf32>,
    return
  }
  func.func @transform_0(%arg0: i32) -> (i32, i32, i32) {
    %c0_i32 = arith.constant 0 : i32
    %c0_i32_0 = arith.constant 0 : i32
    %c0_i32_1 = arith.constant 0 : i32
    return %arg0, %c0_i32, %c0_i32_0 : i32, i32, i32
  }
  func.func @transform_1(%arg0: i32) -> (i32, i32, i32) {
    %c0_i32 = arith.constant 0 : i32
    %c0_i32_0 = arith.constant 0 : i32
    %c0_i32_1 = arith.constant 0 : i32
    return %arg0, %c0_i32, %c0_i32_0 : i32, i32, i32
  }
  func.func @transform_2(%arg0: i32) -> (i32, i32, i32) {
    %c0_i32 = arith.constant 0 : i32
    %c0_i32_0 = arith.constant 0 : i32
    %c0_i32_1 = arith.constant 0 : i32
    return %arg0, %c0_i32, %c0_i32_0 : i32, i32, i32
  }
  func.func @transform_3(%arg0: i32) -> (i32, i32, i32) {
    %c0_i32 = arith.constant 0 : i32
    %c0_i32_0 = arith.constant 0 : i32
    %c0_i32_1 = arith.constant 0 : i32
    return %arg0, %c0_i32, %c0_i32_0 : i32, i32, i32
  }
  func.func @transform_4(%arg0: i32) -> (i32, i32, i32) {
    %c0_i32 = arith.constant 0 : i32
    %c0_i32_0 = arith.constant 0 : i32
    %c0_i32_1 = arith.constant 0 : i32
    return %arg0, %c0_i32, %c0_i32_0 : i32, i32, i32
  }
  func.func @transform_5(%arg0: i32) -> (i32, i32, i32) {
    %c0_i32 = arith.constant 0 : i32
    %c0_i32_0 = arith.constant 0 : i32
    %c0_i32_1 = arith.constant 0 : i32
    return %arg0, %c0_i32, %c0_i32_0 : i32, i32, i32
  }
  func.func @transform_6(%arg0: i32) -> (i32, i32) {
    %c0_i32 = arith.constant 0 : i32
    %c0_i32_0 = arith.constant 0 : i32
    %c0_i32_1 = arith.constant 0 : i32
    return %c0_i32, %c0_i32_0 : i32, i32
  }
  func.func @transform_7(%arg0: i32) -> (i32, i32) {
    %c0_i32 = arith.constant 0 : i32
    %c0_i32_0 = arith.constant 0 : i32
    %c0_i32_1 = arith.constant 0 : i32
    return %c0_i32, %c0_i32_0 : i32, i32
  }
  func.func @transform_8(%arg0: i32) -> (i32, i32) {
    %c0_i32 = arith.constant 0 : i32
    %c0_i32_0 = arith.constant 0 : i32
    %c0_i32_1 = arith.constant 0 : i32
    return %c0_i32, %c0_i32_0 : i32, i32
  }
  func.func @transform_9(%arg0: i32) -> (i32, i32) {
    %c0_i32 = arith.constant 0 : i32
    %c0_i32_0 = arith.constant 0 : i32
    %c0_i32_1 = arith.constant 0 : i32
    return %c0_i32, %c0_i32_0 : i32, i32
  }
  func.func @transform_10(%arg0: i32) -> (i32, i32) {
    %c0_i32 = arith.constant 0 : i32
    %c0_i32_0 = arith.constant 0 : i32
    %c0_i32_1 = arith.constant 0 : i32
    return %c0_i32, %c0_i32_0 : i32, i32
  }
  func.func @transform_11(%arg0: i32) -> (i32, i32) {
    %c0_i32 = arith.constant 0 : i32
    %c0_i32_0 = arith.constant 0 : i32
    %c0_i32_1 = arith.constant 0 : i32
    return %c0_i32, %c0_i32_0 : i32, i32
  }
  func.func @transform_12(%arg0: i32) -> (i32, i32) {
    %c0_i32 = arith.constant 0 : i32
    %c0_i32_0 = arith.constant 0 : i32
    %c0_i32_1 = arith.constant 0 : i32
    return %c0_i32, %c0_i32_0 : i32, i32
  }
  func.func @transform_13(%arg0: i32) -> (i32, i32) {
    %c0_i32 = arith.constant 0 : i32
    %c0_i32_0 = arith.constant 0 : i32
    %c0_i32_1 = arith.constant 0 : i32
    return %c0_i32, %c0_i32_0 : i32, i32
  }
  func.func @transform_14(%arg0: i32) -> (i32, i32) {
    %c0_i32 = arith.constant 0 : i32
    %c0_i32_0 = arith.constant 0 : i32
    %c0_i32_1 = arith.constant 0 : i32
    return %c0_i32, %c0_i32_0 : i32, i32
  }
  func.func @transform_15(%arg0: i32) -> (i32, i32) {
    %c0_i32 = arith.constant 0 : i32
    %c0_i32_0 = arith.constant 0 : i32
    %c0_i32_1 = arith.constant 0 : i32
    return %c0_i32, %c0_i32_0 : i32, i32
  }
  func.func @transform_16(%arg0: i32) -> (i32, i32) {
    %c0_i32 = arith.constant 0 : i32
    %c0_i32_0 = arith.constant 0 : i32
    %c0_i32_1 = arith.constant 0 : i32
    return %c0_i32, %c0_i32_0 : i32, i32
  }
  func.func @transform_17(%arg0: i32) -> (i32, i32) {
    %c0_i32 = arith.constant 0 : i32
    %c0_i32_0 = arith.constant 0 : i32
    %c0_i32_1 = arith.constant 0 : i32
    return %c0_i32, %c0_i32_0 : i32, i32
  }
  func.func @transform_18(%arg0: i32) -> (i32, i32) {
    %c0_i32 = arith.constant 0 : i32
    %c0_i32_0 = arith.constant 0 : i32
    %c0_i32_1 = arith.constant 0 : i32
    return %c0_i32, %c0_i32_0 : i32, i32
  }
  func.func @transform_19(%arg0: i32) -> (i32, i32) {
    %c0_i32 = arith.constant 0 : i32
    %c0_i32_0 = arith.constant 0 : i32
    %c0_i32_1 = arith.constant 0 : i32
    return %c0_i32, %c0_i32_0 : i32, i32
  }
  func.func @transform_20(%arg0: i32) -> (i32, i32, i32) {
    %c0_i32 = arith.constant 0 : i32
    %c0_i32_0 = arith.constant 0 : i32
    %c0_i32_1 = arith.constant 0 : i32
    return %arg0, %c0_i32, %c0_i32_0 : i32, i32, i32
  }
  func.func @transform_21(%arg0: i32) -> (i32, i32, i32) {
    %c0_i32 = arith.constant 0 : i32
    %c0_i32_0 = arith.constant 0 : i32
    %c0_i32_1 = arith.constant 0 : i32
    return %arg0, %c0_i32, %c0_i32_0 : i32, i32, i32
  }
  func.func @transform_22(%arg0: i32) -> (i32, i32, i32, i32) {
    %c0_i32 = arith.constant 0 : i32
    %c0_i32_0 = arith.constant 0 : i32
    %c0_i32_1 = arith.constant 0 : i32
    %c0_i32_2 = arith.constant 0 : i32
    return %arg0, %c0_i32, %c0_i32_0, %c0_i32_1 : i32, i32, i32, i32
  }
  func.func @transform_23(%arg0: i32) -> (i32, i32, i32, i32) {
    %c0_i32 = arith.constant 0 : i32
    %c0_i32_0 = arith.constant 0 : i32
    %c0_i32_1 = arith.constant 0 : i32
    %c0_i32_2 = arith.constant 0 : i32
    return %arg0, %c0_i32, %c0_i32_0, %c0_i32_1 : i32, i32, i32, i32
  }
  func.func @transform_24(%arg0: i32) -> (i32, i32, i32, i32) {
    %c0_i32 = arith.constant 0 : i32
    %c0_i32_0 = arith.constant 0 : i32
    %c0_i32_1 = arith.constant 0 : i32
    %c0_i32_2 = arith.constant 0 : i32
    return %arg0, %c0_i32, %c0_i32_0, %c0_i32_1 : i32, i32, i32, i32
  }
  func.func @transform_25(%arg0: i32) -> (i32, i32, i32, i32) {
    %c0_i32 = arith.constant 0 : i32
    %c0_i32_0 = arith.constant 0 : i32
    %c0_i32_1 = arith.constant 0 : i32
    %c0_i32_2 = arith.constant 0 : i32
    return %arg0, %c0_i32, %c0_i32_0, %c0_i32_1 : i32, i32, i32, i32
  }
  func.func @transform_26(%arg0: i32) -> (i32, i32, i32) {
    %c0_i32 = arith.constant 0 : i32
    %c0_i32_0 = arith.constant 0 : i32
    %c0_i32_1 = arith.constant 0 : i32
    return %arg0, %c0_i32, %c0_i32_0 : i32, i32, i32
  }
  func.func @transform_27(%arg0: i32) -> (i32, i32, i32) {
    %c0_i32 = arith.constant 0 : i32
    %c0_i32_0 = arith.constant 0 : i32
    %c0_i32_1 = arith.constant 0 : i32
    return %arg0, %c0_i32, %c0_i32_0 : i32, i32, i32
  }
}

</mosaic_0001>

<llo_original>
// kernel: self_cross_graph_layer.1
$region0: #{self_cross_graph_layer.1}
  #allocation0 [shape = 'u32[]', space=smem, size = 0x4, offset = 0x4, fixed_abs, tag = 'smem constant byte address 0x4 - core index']
  #allocation1 [shape = 'u32[144,128]{1,0:T(1,128)}', space=vmem, size = 0x12000, scoped, tag = 'internal scratch']
  %s0 = inlined_call_operand.hbm [shape: f32[2,8,32], index: 0, kind: input, shape index: {}]
  %s1 = inlined_call_operand.hbm [shape: f32[2,8,32], index: 1, kind: input, shape index: {}]
  %s2 = inlined_call_operand.vmem [shape: f32[2,1,8], index: 2, kind: input, shape index: {}]
  %s3 = inlined_call_operand.vmem [shape: f32[2,1,8], index: 3, kind: input, shape index: {}]
  %s4 = inlined_call_operand.vmem [shape: f32[2,8,1], index: 4, kind: input, shape index: {}]
  %s5 = inlined_call_operand.vmem [shape: f32[2,8,1], index: 5, kind: input, shape index: {}]
  %s6 = inlined_call_operand.vmem [shape: f32[32,96], index: 6, kind: input, shape index: {}]
  %s7 = inlined_call_operand.hbm [shape: f32[32,96], index: 7, kind: input, shape index: {}]
  %s8 = inlined_call_operand.hbm [shape: f32[32,32], index: 8, kind: input, shape index: {}]
  %s9 = inlined_call_operand.hbm [shape: f32[32,32], index: 9, kind: input, shape index: {}]
  %s10 = inlined_call_operand.vmem [shape: f32[32,96], index: 10, kind: input, shape index: {}]
  %s11 = inlined_call_operand.hbm [shape: f32[32,32], index: 11, kind: input, shape index: {}]
  %s12 = inlined_call_operand.hbm [shape: f32[32,96], index: 12, kind: input, shape index: {}]
  %s13 = inlined_call_operand.hbm [shape: f32[32,32], index: 13, kind: input, shape index: {}]
  %s14 = inlined_call_operand.hbm [shape: f32[32,32], index: 14, kind: input, shape index: {}]
  %s15 = inlined_call_operand.hbm [shape: f32[32,32], index: 15, kind: input, shape index: {}]
  %s16 = inlined_call_operand.hbm [shape: f32[1,32], index: 16, kind: input, shape index: {}]
  %s17 = inlined_call_operand.hbm [shape: f32[1,32], index: 17, kind: input, shape index: {}]
  %s18 = inlined_call_operand.hbm [shape: f32[1,32], index: 18, kind: input, shape index: {}]
  %s19 = inlined_call_operand.hbm [shape: f32[1,32], index: 19, kind: input, shape index: {}]
  %s20 = inlined_call_operand.hbm [shape: f32[2,8,32], index: 20, kind: output, shape index: {0}]
  %s21 = inlined_call_operand.hbm [shape: f32[2,8,32], index: 21, kind: output, shape index: {1}]
  %s22 = inlined_call_operand.hbm [shape: f32[2,4,8,8], index: 22, kind: output, shape index: {2}]
  %s23 = inlined_call_operand.hbm [shape: f32[2,4,8,8], index: 23, kind: output, shape index: {3}]
  %s24 = inlined_call_operand.hbm [shape: f32[2,4,8,8], index: 24, kind: output, shape index: {4}]
  %s25 = inlined_call_operand.hbm [shape: f32[2,4,8,8], index: 25, kind: output, shape index: {5}]
  %s26 = inlined_call_operand.vmem [shape: f32[2,8,1], index: 26, kind: output, shape index: {6}]
  %s27 = inlined_call_operand.vmem [shape: f32[2,8,1], index: 27, kind: output, shape index: {7}]
  %28 = xla_tuple %s20, %s21, %s22, %s23, %s24, %s25, %s26, %s27
  %s29 = sld [smem:[#allocation0]]
  $region225: #{self_cross_graph_layer.1} parent=0
    _
  %s31 = ssub.s32 1, %s29
  %s32 = scalar_select 0, %s31, %s29
  $region1: #{self_cross_graph_layer.1} parent=0
    #allocation2 [shape = 'u8[8192]{0}', space=vmem, size = 0x2000, scoped, tag = 'input window, operand 0']
    #allocation3 [shape = 's32[2]{0}', space=sflag, size = 0x8, scoped, tag = 'scoped memory for self_cross_graph_layer.1']
    #allocation4 [shape = 's32[2]{0}', space=sflag, size = 0x8, scoped, tag = 'scoped memory for self_cross_graph_layer.1']
    #allocation5 [shape = 'u8[8192]{0}', space=vmem, size = 0x2000, scoped, tag = 'input window, operand 1']
    #allocation6 [shape = 's32[2]{0}', space=sflag, size = 0x8, scoped, tag = 'scoped memory for self_cross_graph_layer.1']
    #allocation7 [shape = 'u8[16384]{0}', space=vmem, size = 0x4000, scoped, tag = 'input window, operand 7, single buffered']
    #allocation8 [shape = 'u8[16384]{0}', space=vmem, size = 0x4000, scoped, tag = 'input window, operand 8, single buffered']
    #allocation9 [shape = 's32[1]{0}', space=sflag, size = 0x4, scoped, tag = 'scoped memory for self_cross_graph_layer.1']
    #allocation10 [shape = 'u8[16384]{0}', space=vmem, size = 0x4000, scoped, tag = 'input window, operand 9, single buffered']
    #allocation11 [shape = 'u8[16384]{0}', space=vmem, size = 0x4000, scoped, tag = 'input window, operand 11, single buffered']
    #allocation12 [shape = 's32[1]{0}', space=sflag, size = 0x4, scoped, tag = 'scoped memory for self_cross_graph_layer.1']
    #allocation13 [shape = 'u8[16384]{0}', space=vmem, size = 0x4000, scoped, tag = 'input window, operand 12, single buffered']
    #allocation14 [shape = 'u8[16384]{0}', space=vmem, size = 0x4000, scoped, tag = 'input window, operand 13, single buffered']
    #allocation15 [shape = 's32[1]{0}', space=sflag, size = 0x4, scoped, tag = 'scoped memory for self_cross_graph_layer.1']
    #allocation16 [shape = 'u8[16384]{0}', space=vmem, size = 0x4000, scoped, tag = 'input window, operand 14, single buffered']
    #allocation17 [shape = 'u8[16384]{0}', space=vmem, size = 0x4000, scoped, tag = 'input window, operand 15, single buffered']
    #allocation18 [shape = 's32[1]{0}', space=sflag, size = 0x4, scoped, tag = 'scoped memory for self_cross_graph_layer.1']
    #allocation19 [shape = 'u8[512]{0}', space=vmem, size = 0x400, scoped, tag = 'input window, operand 16, single buffered']
    #allocation20 [shape = 'u8[512]{0}', space=vmem, size = 0x400, scoped, tag = 'input window, operand 17, single buffered']
    #allocation21 [shape = 's32[1]{0}', space=sflag, size = 0x4, scoped, tag = 'scoped memory for self_cross_graph_layer.1']
    #allocation22 [shape = 'u8[512]{0}', space=vmem, size = 0x400, scoped, tag = 'input window, operand 18, single buffered']
    #allocation23 [shape = 'u8[512]{0}', space=vmem, size = 0x400, scoped, tag = 'input window, operand 19, single buffered']
    #allocation24 [shape = 's32[1]{0}', space=sflag, size = 0x4, scoped, tag = 'scoped memory for self_cross_graph_layer.1']
    #allocation25 [shape = 'u8[8192]{0}', space=vmem, size = 0x2000, scoped, tag = 'output window, operand 0']
    #allocation26 [shape = 'u8[8192]{0}', space=vmem, size = 0x2000, scoped, tag = 'output window, operand 1']
    #allocation27 [shape = 's32[2]{0}', space=sflag, size = 0x8, scoped, tag = 'scoped memory for self_cross_graph_layer.1']
    #allocation28 [shape = 'u8[32768]{0}', space=vmem, size = 0x8000, scoped, tag = 'output window, operand 2']
    #allocation29 [shape = 'u8[32768]{0}', space=vmem, size = 0x8000, scoped, tag = 'output window, operand 3']
    #allocation30 [shape = 's32[2]{0}', space=sflag, size = 0x8, scoped, tag = 'scoped memory for self_cross_graph_layer.1']
    #allocation31 [shape = 'u8[32768]{0}', space=vmem, size = 0x8000, scoped, tag = 'output window, operand 4']
    #allocation32 [shape = 'u8[32768]{0}', space=vmem, size = 0x8000, scoped, tag = 'output window, operand 5']
    #allocation33 [shape = 's32[2]{0}', space=sflag, size = 0x8, scoped, tag = 'scoped memory for self_cross_graph_layer.1']
    %33 = vsyncpa [#allocation3], 0
    %s34 = scalar_lea.sflag [#allocation3], 1
    %35 = vsyncpa %s34, 0
    %36 = vsyncpa [#allocation6], 0
    %s37 = scalar_lea.sflag [#allocation6], 1
    %38 = vsyncpa %s37, 0
    %39 = vsyncpa [#allocation9], 0
    %40 = vsyncpa [#allocation12], 0
    %41 = vsyncpa [#allocation15], 0
    %42 = vsyncpa [#allocation18], 0
    %43 = vsyncpa [#allocation21], 0
    %44 = vsyncpa [#allocation24], 0
    %45 = vsyncpa [#allocation4], 0
    %s46 = scalar_lea.sflag [#allocation4], 1
    %47 = vsyncpa %s46, 0
    %48 = vsyncpa [#allocation27], 0
    %s49 = scalar_lea.sflag [#allocation27], 1
    %50 = vsyncpa %s49, 0
    %51 = vsyncpa [#allocation30], 0
    %s52 = scalar_lea.sflag [#allocation30], 1
    %53 = vsyncpa %s52, 0
    %54 = vsyncpa [#allocation33], 0
    %s55 = scalar_lea.sflag [#allocation33], 1
    %56 = vsyncpa %s55, 0
    loop: start=0, step=1, limit=4
    $region2: #{self_cross_graph_layer.1} parent=1 // loop_pre_header
      _
    $region3: #{self_cross_graph_layer.1} parent=1 // loop_header
      %s58 = sphi 0, %s62
      %p59 = scmp.ge.s32.totalorder %s58, 4
      %s68 = sphi 0, %s70
      %s71 = sphi 0, %s68
      %s72 = sphi 0, %s71
      %s88 = sphi 0, %s72
      %s94 = sphi 0, %s96
      %s97 = sphi 0, %s94
      %s98 = sphi 0, %s97
      %s114 = sphi 0, %s98
      %s120 = sphi 0, %s122
      %s123 = sphi 0, %s120
      %s124 = sphi 0, %s123
      %s140 = sphi 0, %s124
      %s146 = sphi 0, %s148
      %s149 = sphi 0, %s146
      %s150 = sphi 0, %s149
      %s166 = sphi 0, %s150
      %s172 = sphi 0, %s174
      %s175 = sphi 0, %s172
      %s176 = sphi 0, %s175
      %s192 = sphi 0, %s176
      %s198 = sphi 0, %s200
      %s201 = sphi 0, %s198
      %s202 = sphi 0, %s201
      %s218 = sphi 0, %s202
      %s222 = sphi 0, %s222
      %s224 = sphi 0, %s222
      %s225 = sphi 0, %s224
      %s239 = sphi 0, %s225
      %s243 = sphi 0, %s243
      %s245 = sphi 0, %s243
      %s246 = sphi 0, %s245
      %s260 = sphi 0, %s246
      %s264 = sphi 0, %s264
      %s266 = sphi 0, %s264
      %s267 = sphi 0, %s266
      %s281 = sphi 0, %s267
      %s285 = sphi 0, %s285
      %s287 = sphi 0, %s285
      %s288 = sphi 0, %s287
      %s302 = sphi 0, %s288
      %s306 = sphi 0, %s306
      %s308 = sphi 0, %s306
      %s309 = sphi 0, %s308
      %s323 = sphi 0, %s309
      %s327 = sphi 0, %s327
      %s329 = sphi 0, %s327
      %s330 = sphi 0, %s329
      %s344 = sphi 0, %s330
      %s348 = sphi 0, %s348
      %s350 = sphi 0, %s348
      %s351 = sphi 0, %s350
      %s365 = sphi 0, %s351
      %s369 = sphi 0, %s369
      %s371 = sphi 0, %s369
      %s372 = sphi 0, %s371
      %s386 = sphi 0, %s372
      %s390 = sphi 0, %s390
      %s392 = sphi 0, %s390
      %s393 = sphi 0, %s392
      %s407 = sphi 0, %s393
      %s411 = sphi 0, %s411
      %s413 = sphi 0, %s411
      %s414 = sphi 0, %s413
      %s428 = sphi 0, %s414
      %s432 = sphi 0, %s432
      %s434 = sphi 0, %s432
      %s435 = sphi 0, %s434
      %s449 = sphi 0, %s435
      %s453 = sphi 0, %s453
      %s455 = sphi 0, %s453
      %s456 = sphi 0, %s455
      %s470 = sphi 0, %s456
      %s474 = sphi 0, %s474
      %s476 = sphi 0, %s474
      %s477 = sphi 0, %s476
      %s491 = sphi 0, %s477
      %s495 = sphi 0, %s495
      %s497 = sphi 0, %s495
      %s498 = sphi 0, %s497
      %s512 = sphi 0, %s498
      %s518 = sphi 0, %s520
      %s521 = sphi 0, %s518
      %s522 = sphi 0, %s521
      %s538 = sphi 0, %s522
      %s544 = sphi 0, %s546
      %s547 = sphi 0, %s544
      %s548 = sphi 0, %s547
      %s564 = sphi 0, %s548
      %s570 = sphi 0, %s572
      %s573 = sphi 0, %s570
      %s574 = sphi 0, %s573
      %s590 = sphi 0, %s574
      %s596 = sphi 0, %s598
      %s599 = sphi 0, %s596
      %s600 = sphi 0, %s599
      %s616 = sphi 0, %s600
      %s622 = sphi 0, %s624
      %s625 = sphi 0, %s622
      %s626 = sphi 0, %s625
      %s642 = sphi 0, %s626
      %s648 = sphi 0, %s650
      %s651 = sphi 0, %s648
      %s652 = sphi 0, %s651
      %s668 = sphi 0, %s652
      %s674 = sphi 0, %s676
      %s677 = sphi 0, %s674
      %s678 = sphi 0, %s677
      %s694 = sphi 0, %s678
      %s700 = sphi 0, %s702
      %s703 = sphi 0, %s700
      %s704 = sphi 0, %s703
      %s720 = sphi 0, %s704
    $region4: #{self_cross_graph_layer.1} parent=1 // loop_header_branch
      %61 = sbr.rel (%p59) target = $region8
    $region5: #{self_cross_graph_layer.1} parent=1 // loop_body
      %s63 = ssub.s32 %s58, 1
      %s64 = ssub.s32 %s58, 2
      %s65 = sadd.s32 %s58, 1
      %s66 = ssub.s32 %s58, %s65
      %p67 = scmp.eq.s32.totalorder %s66, 0
      %s69 = sadd.s32 %s68, 1
      %s70 = scalar_select %p67, %s68, %s69
      %p73 = pneg %p67
      %p74 = scmp.eq.s32.totalorder %s58, 1
      %p75 = por %p73, %p74
      %p76 = scmp.ne.s32.totalorder %s68, %s71
      %p77 = scmp.eq.s32.totalorder %s58, 0
      %p78 = por %p76, %p77
      %p79 = scmp.ne.s32.totalorder %s68, %s71
      %p80 = scmp.eq.s32.totalorder %s63, 1
      %p81 = por %p79, %p80
      %p82 = scmp.ne.s32.totalorder %s71, %s72
      %p83 = scmp.eq.s32.totalorder %s63, 0
      %p84 = por %p82, %p83
      %p85 = scmp.ne.s32.totalorder %s71, %s72
      %p86 = scmp.eq.s32.totalorder %s64, 1
      %p87 = por %p85, %p86
      %p89 = scmp.ne.s32.totalorder %s72, %s88
      %p90 = scmp.eq.s32.totalorder %s64, 0
      %p91 = por %p89, %p90
      %s92 = ssub.s32 %s58, %s65
      %p93 = scmp.eq.s32.totalorder %s92, 0
      %s95 = sadd.s32 %s94, 1
      %s96 = scalar_select %p93, %s94, %s95
      %p99 = pneg %p93
      %p100 = scmp.eq.s32.totalorder %s58, 1
      %p101 = por %p99, %p100
      %p102 = scmp.ne.s32.totalorder %s94, %s97
      %p103 = scmp.eq.s32.totalorder %s58, 0
      %p104 = por %p102, %p103
      %p105 = scmp.ne.s32.totalorder %s94, %s97
      %p106 = scmp.eq.s32.totalorder %s63, 1
      %p107 = por %p105, %p106
      %p108 = scmp.ne.s32.totalorder %s97, %s98
      %p109 = scmp.eq.s32.totalorder %s63, 0
      %p110 = por %p108, %p109
      %p111 = scmp.ne.s32.totalorder %s97, %s98
      %p112 = scmp.eq.s32.totalorder %s64, 1
      %p113 = por %p111, %p112
      %p115 = scmp.ne.s32.totalorder %s98, %s114
      %p116 = scmp.eq.s32.totalorder %s64, 0
      %p117 = por %p115, %p116
      %s118 = ssub.s32 %s58, %s65
      %p119 = scmp.eq.s32.totalorder %s118, 0
      %s121 = sadd.s32 %s120, 1
      %s122 = scalar_select %p119, %s120, %s121
      %p125 = pneg %p119
      %p126 = scmp.eq.s32.totalorder %s58, 1
      %p127 = por %p125, %p126
      %p128 = scmp.ne.s32.totalorder %s120, %s123
      %p129 = scmp.eq.s32.totalorder %s58, 0
      %p130 = por %p128, %p129
      %p131 = scmp.ne.s32.totalorder %s120, %s123
      %p132 = scmp.eq.s32.totalorder %s63, 1
      %p133 = por %p131, %p132
      %p134 = scmp.ne.s32.totalorder %s123, %s124
      %p135 = scmp.eq.s32.totalorder %s63, 0
      %p136 = por %p134, %p135
      %p137 = scmp.ne.s32.totalorder %s123, %s124
      %p138 = scmp.eq.s32.totalorder %s64, 1
      %p139 = por %p137, %p138
      %p141 = scmp.ne.s32.totalorder %s124, %s140
      %p142 = scmp.eq.s32.totalorder %s64, 0
      %p143 = por %p141, %p142
      %s144 = ssub.s32 %s58, %s65
      %p145 = scmp.eq.s32.totalorder %s144, 0
      %s147 = sadd.s32 %s146, 1
      %s148 = scalar_select %p145, %s146, %s147
      %p151 = pneg %p145
      %p152 = scmp.eq.s32.totalorder %s58, 1
      %p153 = por %p151, %p152
      %p154 = scmp.ne.s32.totalorder %s146, %s149
      %p155 = scmp.eq.s32.totalorder %s58, 0
      %p156 = por %p154, %p155
      %p157 = scmp.ne.s32.totalorder %s146, %s149
      %p158 = scmp.eq.s32.totalorder %s63, 1
      %p159 = por %p157, %p158
      %p160 = scmp.ne.s32.totalorder %s149, %s150
      %p161 = scmp.eq.s32.totalorder %s63, 0
      %p162 = por %p160, %p161
      %p163 = scmp.ne.s32.totalorder %s149, %s150
      %p164 = scmp.eq.s32.totalorder %s64, 1
      %p165 = por %p163, %p164
      %p167 = scmp.ne.s32.totalorder %s150, %s166
      %p168 = scmp.eq.s32.totalorder %s64, 0
      %p169 = por %p167, %p168
      %s170 = ssub.s32 %s58, %s65
      %p171 = scmp.eq.s32.totalorder %s170, 0
      %s173 = sadd.s32 %s172, 1
      %s174 = scalar_select %p171, %s172, %s173
      %p177 = pneg %p171
      %p178 = scmp.eq.s32.totalorder %s58, 1
      %p179 = por %p177, %p178
      %p180 = scmp.ne.s32.totalorder %s172, %s175
      %p181 = scmp.eq.s32.totalorder %s58, 0
      %p182 = por %p180, %p181
      %p183 = scmp.ne.s32.totalorder %s172, %s175
      %p184 = scmp.eq.s32.totalorder %s63, 1
      %p185 = por %p183, %p184
      %p186 = scmp.ne.s32.totalorder %s175, %s176
      %p187 = scmp.eq.s32.totalorder %s63, 0
      %p188 = por %p186, %p187
      %p189 = scmp.ne.s32.totalorder %s175, %s176
      %p190 = scmp.eq.s32.totalorder %s64, 1
      %p191 = por %p189, %p190
      %p193 = scmp.ne.s32.totalorder %s176, %s192
      %p194 = scmp.eq.s32.totalorder %s64, 0
      %p195 = por %p193, %p194
      %s196 = ssub.s32 %s58, %s65
      %p197 = scmp.eq.s32.totalorder %s196, 0
      %s199 = sadd.s32 %s198, 1
      %s200 = scalar_select %p197, %s198, %s199
      %p203 = pneg %p197
      %p204 = scmp.eq.s32.totalorder %s58, 1
      %p205 = por %p203, %p204
      %p206 = scmp.ne.s32.totalorder %s198, %s201
      %p207 = scmp.eq.s32.totalorder %s58, 0
      %p208 = por %p206, %p207
      %p209 = scmp.ne.s32.totalorder %s198, %s201
      %p210 = scmp.eq.s32.totalorder %s63, 1
      %p211 = por %p209, %p210
      %p212 = scmp.ne.s32.totalorder %s201, %s202
      %p213 = scmp.eq.s32.totalorder %s63, 0
      %p214 = por %p212, %p213
      %p215 = scmp.ne.s32.totalorder %s201, %s202
      %p216 = scmp.eq.s32.totalorder %s64, 1
      %p217 = por %p215, %p216
      %p219 = scmp.ne.s32.totalorder %s202, %s218
      %p220 = scmp.eq.s32.totalorder %s64, 0
      %p221 = por %p219, %p220
      %s223 = sadd.s32 %s222, 1
      %p226 = scmp.eq.s32.totalorder %s58, 1
      %p227 = scmp.ne.s32.totalorder %s222, %s224
      %p228 = scmp.eq.s32.totalorder %s58, 0
      %p229 = por %p227, %p228
      %p230 = scmp.ne.s32.totalorder %s222, %s224
      %p231 = scmp.eq.s32.totalorder %s63, 1
      %p232 = por %p230, %p231
      %p233 = scmp.ne.s32.totalorder %s224, %s225
      %p234 = scmp.eq.s32.totalorder %s63, 0
      %p235 = por %p233, %p234
      %p236 = scmp.ne.s32.totalorder %s224, %s225
      %p237 = scmp.eq.s32.totalorder %s64, 1
      %p238 = por %p236, %p237
      %p240 = scmp.ne.s32.totalorder %s225, %s239
      %p241 = scmp.eq.s32.totalorder %s64, 0
      %p242 = por %p240, %p241
      %s244 = sadd.s32 %s243, 1
      %p247 = scmp.eq.s32.totalorder %s58, 1
      %p248 = scmp.ne.s32.totalorder %s243, %s245
      %p249 = scmp.eq.s32.totalorder %s58, 0
      %p250 = por %p248, %p249
      %p251 = scmp.ne.s32.totalorder %s243, %s245
      %p252 = scmp.eq.s32.totalorder %s63, 1
      %p253 = por %p251, %p252
      %p254 = scmp.ne.s32.totalorder %s245, %s246
      %p255 = scmp.eq.s32.totalorder %s63, 0
      %p256 = por %p254, %p255
      %p257 = scmp.ne.s32.totalorder %s245, %s246
      %p258 = scmp.eq.s32.totalorder %s64, 1
      %p259 = por %p257, %p258
      %p261 = scmp.ne.s32.totalorder %s246, %s260
      %p262 = scmp.eq.s32.totalorder %s64, 0
      %p263 = por %p261, %p262
      %s265 = sadd.s32 %s264, 1
      %p268 = scmp.eq.s32.totalorder %s58, 1
      %p269 = scmp.ne.s32.totalorder %s264, %s266
      %p270 = scmp.eq.s32.totalorder %s58, 0
      %p271 = por %p269, %p270
      %p272 = scmp.ne.s32.totalorder %s264, %s266
      %p273 = scmp.eq.s32.totalorder %s63, 1
      %p274 = por %p272, %p273
      %p275 = scmp.ne.s32.totalorder %s266, %s267
      %p276 = scmp.eq.s32.totalorder %s63, 0
      %p277 = por %p275, %p276
      %p278 = scmp.ne.s32.totalorder %s266, %s267
      %p279 = scmp.eq.s32.totalorder %s64, 1
      %p280 = por %p278, %p279
      %p282 = scmp.ne.s32.totalorder %s267, %s281
      %p283 = scmp.eq.s32.totalorder %s64, 0
      %p284 = por %p282, %p283
      %s286 = sadd.s32 %s285, 1
      %p289 = scmp.eq.s32.totalorder %s58, 1
      %p290 = scmp.ne.s32.totalorder %s285, %s287
      %p291 = scmp.eq.s32.totalorder %s58, 0
      %p292 = por %p290, %p291
      %p293 = scmp.ne.s32.totalorder %s285, %s287
      %p294 = scmp.eq.s32.totalorder %s63, 1
      %p295 = por %p293, %p294
      %p296 = scmp.ne.s32.totalorder %s287, %s288
      %p297 = scmp.eq.s32.totalorder %s63, 0
      %p298 = por %p296, %p297
      %p299 = scmp.ne.s32.totalorder %s287, %s288
      %p300 = scmp.eq.s32.totalorder %s64, 1
      %p301 = por %p299, %p300
      %p303 = scmp.ne.s32.totalorder %s288, %s302
      %p304 = scmp.eq.s32.totalorder %s64, 0
      %p305 = por %p303, %p304
      %s307 = sadd.s32 %s306, 1
      %p310 = scmp.eq.s32.totalorder %s58, 1
      %p311 = scmp.ne.s32.totalorder %s306, %s308
      %p312 = scmp.eq.s32.totalorder %s58, 0
      %p313 = por %p311, %p312
      %p314 = scmp.ne.s32.totalorder %s306, %s308
      %p315 = scmp.eq.s32.totalorder %s63, 1
      %p316 = por %p314, %p315
      %p317 = scmp.ne.s32.totalorder %s308, %s309
      %p318 = scmp.eq.s32.totalorder %s63, 0
      %p319 = por %p317, %p318
      %p320 = scmp.ne.s32.totalorder %s308, %s309
      %p321 = scmp.eq.s32.totalorder %s64, 1
      %p322 = por %p320, %p321
      %p324 = scmp.ne.s32.totalorder %s309, %s323
      %p325 = scmp.eq.s32.totalorder %s64, 0
      %p326 = por %p324, %p325
      %s328 = sadd.s32 %s327, 1
      %p331 = scmp.eq.s32.totalorder %s58, 1
      %p332 = scmp.ne.s32.totalorder %s327, %s329
      %p333 = scmp.eq.s32.totalorder %s58, 0
      %p334 = por %p332, %p333
      %p335 = scmp.ne.s32.totalorder %s327, %s329
      %p336 = scmp.eq.s32.totalorder %s63, 1
      %p337 = por %p335, %p336
      %p338 = scmp.ne.s32.totalorder %s329, %s330
      %p339 = scmp.eq.s32.totalorder %s63, 0
      %p340 = por %p338, %p339
      %p341 = scmp.ne.s32.totalorder %s329, %s330
      %p342 = scmp.eq.s32.totalorder %s64, 1
      %p343 = por %p341, %p342
      %p345 = scmp.ne.s32.totalorder %s330, %s344
      %p346 = scmp.eq.s32.totalorder %s64, 0
      %p347 = por %p345, %p346
      %s349 = sadd.s32 %s348, 1
      %p352 = scmp.eq.s32.totalorder %s58, 1
      %p353 = scmp.ne.s32.totalorder %s348, %s350
      %p354 = scmp.eq.s32.totalorder %s58, 0
      %p355 = por %p353, %p354
      %p356 = scmp.ne.s32.totalorder %s348, %s350
      %p357 = scmp.eq.s32.totalorder %s63, 1
      %p358 = por %p356, %p357
      %p359 = scmp.ne.s32.totalorder %s350, %s351
      %p360 = scmp.eq.s32.totalorder %s63, 0
      %p361 = por %p359, %p360
      %p362 = scmp.ne.s32.totalorder %s350, %s351
      %p363 = scmp.eq.s32.totalorder %s64, 1
      %p364 = por %p362, %p363
      %p366 = scmp.ne.s32.totalorder %s351, %s365
      %p367 = scmp.eq.s32.totalorder %s64, 0
      %p368 = por %p366, %p367
      %s370 = sadd.s32 %s369, 1
      %p373 = scmp.eq.s32.totalorder %s58, 1
      %p374 = scmp.ne.s32.totalorder %s369, %s371
      %p375 = scmp.eq.s32.totalorder %s58, 0
      %p376 = por %p374, %p375
      %p377 = scmp.ne.s32.totalorder %s369, %s371
      %p378 = scmp.eq.s32.totalorder %s63, 1
      %p379 = por %p377, %p378
      %p380 = scmp.ne.s32.totalorder %s371, %s372
      %p381 = scmp.eq.s32.totalorder %s63, 0
      %p382 = por %p380, %p381
      %p383 = scmp.ne.s32.totalorder %s371, %s372
      %p384 = scmp.eq.s32.totalorder %s64, 1
      %p385 = por %p383, %p384
      %p387 = scmp.ne.s32.totalorder %s372, %s386
      %p388 = scmp.eq.s32.totalorder %s64, 0
      %p389 = por %p387, %p388
      %s391 = sadd.s32 %s390, 1
      %p394 = scmp.eq.s32.totalorder %s58, 1
      %p395 = scmp.ne.s32.totalorder %s390, %s392
      %p396 = scmp.eq.s32.totalorder %s58, 0
      %p397 = por %p395, %p396
      %p398 = scmp.ne.s32.totalorder %s390, %s392
      %p399 = scmp.eq.s32.totalorder %s63, 1
      %p400 = por %p398, %p399
      %p401 = scmp.ne.s32.totalorder %s392, %s393
      %p402 = scmp.eq.s32.totalorder %s63, 0
      %p403 = por %p401, %p402
      %p404 = scmp.ne.s32.totalorder %s392, %s393
      %p405 = scmp.eq.s32.totalorder %s64, 1
      %p406 = por %p404, %p405
      %p408 = scmp.ne.s32.totalorder %s393, %s407
      %p409 = scmp.eq.s32.totalorder %s64, 0
      %p410 = por %p408, %p409
      %s412 = sadd.s32 %s411, 1
      %p415 = scmp.eq.s32.totalorder %s58, 1
      %p416 = scmp.ne.s32.totalorder %s411, %s413
      %p417 = scmp.eq.s32.totalorder %s58, 0
      %p418 = por %p416, %p417
      %p419 = scmp.ne.s32.totalorder %s411, %s413
      %p420 = scmp.eq.s32.totalorder %s63, 1
      %p421 = por %p419, %p420
      %p422 = scmp.ne.s32.totalorder %s413, %s414
      %p423 = scmp.eq.s32.totalorder %s63, 0
      %p424 = por %p422, %p423
      %p425 = scmp.ne.s32.totalorder %s413, %s414
      %p426 = scmp.eq.s32.totalorder %s64, 1
      %p427 = por %p425, %p426
      %p429 = scmp.ne.s32.totalorder %s414, %s428
      %p430 = scmp.eq.s32.totalorder %s64, 0
      %p431 = por %p429, %p430
      %s433 = sadd.s32 %s432, 1
      %p436 = scmp.eq.s32.totalorder %s58, 1
      %p437 = scmp.ne.s32.totalorder %s432, %s434
      %p438 = scmp.eq.s32.totalorder %s58, 0
      %p439 = por %p437, %p438
      %p440 = scmp.ne.s32.totalorder %s432, %s434
      %p441 = scmp.eq.s32.totalorder %s63, 1
      %p442 = por %p440, %p441
      %p443 = scmp.ne.s32.totalorder %s434, %s435
      %p444 = scmp.eq.s32.totalorder %s63, 0
      %p445 = por %p443, %p444
      %p446 = scmp.ne.s32.totalorder %s434, %s435
      %p447 = scmp.eq.s32.totalorder %s64, 1
      %p448 = por %p446, %p447
      %p450 = scmp.ne.s32.totalorder %s435, %s449
      %p451 = scmp.eq.s32.totalorder %s64, 0
      %p452 = por %p450, %p451
      %s454 = sadd.s32 %s453, 1
      %p457 = scmp.eq.s32.totalorder %s58, 1
      %p458 = scmp.ne.s32.totalorder %s453, %s455
      %p459 = scmp.eq.s32.totalorder %s58, 0
      %p460 = por %p458, %p459
      %p461 = scmp.ne.s32.totalorder %s453, %s455
      %p462 = scmp.eq.s32.totalorder %s63, 1
      %p463 = por %p461, %p462
      %p464 = scmp.ne.s32.totalorder %s455, %s456
      %p465 = scmp.eq.s32.totalorder %s63, 0
      %p466 = por %p464, %p465
      %p467 = scmp.ne.s32.totalorder %s455, %s456
      %p468 = scmp.eq.s32.totalorder %s64, 1
      %p469 = por %p467, %p468
      %p471 = scmp.ne.s32.totalorder %s456, %s470
      %p472 = scmp.eq.s32.totalorder %s64, 0
      %p473 = por %p471, %p472
      %s475 = sadd.s32 %s474, 1
      %p478 = scmp.eq.s32.totalorder %s58, 1
      %p479 = scmp.ne.s32.totalorder %s474, %s476
      %p480 = scmp.eq.s32.totalorder %s58, 0
      %p481 = por %p479, %p480
      %p482 = scmp.ne.s32.totalorder %s474, %s476
      %p483 = scmp.eq.s32.totalorder %s63, 1
      %p484 = por %p482, %p483
      %p485 = scmp.ne.s32.totalorder %s476, %s477
      %p486 = scmp.eq.s32.totalorder %s63, 0
      %p487 = por %p485, %p486
      %p488 = scmp.ne.s32.totalorder %s476, %s477
      %p489 = scmp.eq.s32.totalorder %s64, 1
      %p490 = por %p488, %p489
      %p492 = scmp.ne.s32.totalorder %s477, %s491
      %p493 = scmp.eq.s32.totalorder %s64, 0
      %p494 = por %p492, %p493
      %s496 = sadd.s32 %s495, 1
      %p499 = scmp.eq.s32.totalorder %s58, 1
      %p500 = scmp.ne.s32.totalorder %s495, %s497
      %p501 = scmp.eq.s32.totalorder %s58, 0
      %p502 = por %p500, %p501
      %p503 = scmp.ne.s32.totalorder %s495, %s497
      %p504 = scmp.eq.s32.totalorder %s63, 1
      %p505 = por %p503, %p504
      %p506 = scmp.ne.s32.totalorder %s497, %s498
      %p507 = scmp.eq.s32.totalorder %s63, 0
      %p508 = por %p506, %p507
      %p509 = scmp.ne.s32.totalorder %s497, %s498
      %p510 = scmp.eq.s32.totalorder %s64, 1
      %p511 = por %p509, %p510
      %p513 = scmp.ne.s32.totalorder %s498, %s512
      %p514 = scmp.eq.s32.totalorder %s64, 0
      %p515 = por %p513, %p514
      %s516 = ssub.s32 %s58, %s65
      %p517 = scmp.eq.s32.totalorder %s516, 0
      %s519 = sadd.s32 %s518, 1
      %s520 = scalar_select %p517, %s518, %s519
      %p523 = pneg %p517
      %p524 = scmp.eq.s32.totalorder %s58, 1
      %p525 = por %p523, %p524
      %p526 = scmp.ne.s32.totalorder %s518, %s521
      %p527 = scmp.eq.s32.totalorder %s58, 0
      %p528 = por %p526, %p527
      %p529 = scmp.ne.s32.totalorder %s518, %s521
      %p530 = scmp.eq.s32.totalorder %s63, 1
      %p531 = por %p529, %p530
      %p532 = scmp.ne.s32.totalorder %s521, %s522
      %p533 = scmp.eq.s32.totalorder %s63, 0
      %p534 = por %p532, %p533
      %p535 = scmp.ne.s32.totalorder %s521, %s522
      %p536 = scmp.eq.s32.totalorder %s64, 1
      %p537 = por %p535, %p536
      %p539 = scmp.ne.s32.totalorder %s522, %s538
      %p540 = scmp.eq.s32.totalorder %s64, 0
      %p541 = por %p539, %p540
      %s542 = ssub.s32 %s58, %s65
      %p543 = scmp.eq.s32.totalorder %s542, 0
      %s545 = sadd.s32 %s544, 1
      %s546 = scalar_select %p543, %s544, %s545
      %p549 = pneg %p543
      %p550 = scmp.eq.s32.totalorder %s58, 1
      %p551 = por %p549, %p550
      %p552 = scmp.ne.s32.totalorder %s544, %s547
      %p553 = scmp.eq.s32.totalorder %s58, 0
      %p554 = por %p552, %p553
      %p555 = scmp.ne.s32.totalorder %s544, %s547
      %p556 = scmp.eq.s32.totalorder %s63, 1
      %p557 = por %p555, %p556
      %p558 = scmp.ne.s32.totalorder %s547, %s548
      %p559 = scmp.eq.s32.totalorder %s63, 0
      %p560 = por %p558, %p559
      %p561 = scmp.ne.s32.totalorder %s547, %s548
      %p562 = scmp.eq.s32.totalorder %s64, 1
      %p563 = por %p561, %p562
      %p565 = scmp.ne.s32.totalorder %s548, %s564
      %p566 = scmp.eq.s32.totalorder %s64, 0
      %p567 = por %p565, %p566
      %s568 = ssub.s32 %s58, %s65
      %p569 = scmp.eq.s32.totalorder %s568, 0
      %s571 = sadd.s32 %s570, 1
      %s572 = scalar_select %p569, %s570, %s571
      %p575 = pneg %p569
      %p576 = scmp.eq.s32.totalorder %s58, 1
      %p577 = por %p575, %p576
      %p578 = scmp.ne.s32.totalorder %s570, %s573
      %p579 = scmp.eq.s32.totalorder %s58, 0
      %p580 = por %p578, %p579
      %p581 = scmp.ne.s32.totalorder %s570, %s573
      %p582 = scmp.eq.s32.totalorder %s63, 1
      %p583 = por %p581, %p582
      %p584 = scmp.ne.s32.totalorder %s573, %s574
      %p585 = scmp.eq.s32.totalorder %s63, 0
      %p586 = por %p584, %p585
      %p587 = scmp.ne.s32.totalorder %s573, %s574
      %p588 = scmp.eq.s32.totalorder %s64, 1
      %p589 = por %p587, %p588
      %p591 = scmp.ne.s32.totalorder %s574, %s590
      %p592 = scmp.eq.s32.totalorder %s64, 0
      %p593 = por %p591, %p592
      %s594 = ssub.s32 %s58, %s65
      %p595 = scmp.eq.s32.totalorder %s594, 0
      %s597 = sadd.s32 %s596, 1
      %s598 = scalar_select %p595, %s596, %s597
      %p601 = pneg %p595
      %p602 = scmp.eq.s32.totalorder %s58, 1
      %p603 = por %p601, %p602
      %p604 = scmp.ne.s32.totalorder %s596, %s599
      %p605 = scmp.eq.s32.totalorder %s58, 0
      %p606 = por %p604, %p605
      %p607 = scmp.ne.s32.totalorder %s596, %s599
      %p608 = scmp.eq.s32.totalorder %s63, 1
      %p609 = por %p607, %p608
      %p610 = scmp.ne.s32.totalorder %s599, %s600
      %p611 = scmp.eq.s32.totalorder %s63, 0
      %p612 = por %p610, %p611
      %p613 = scmp.ne.s32.totalorder %s599, %s600
      %p614 = scmp.eq.s32.totalorder %s64, 1
      %p615 = por %p613, %p614
      %p617 = scmp.ne.s32.totalorder %s600, %s616
      %p618 = scmp.eq.s32.totalorder %s64, 0
      %p619 = por %p617, %p618
      %s620 = ssub.s32 %s58, %s65
      %p621 = scmp.eq.s32.totalorder %s620, 0
      %s623 = sadd.s32 %s622, 1
      %s624 = scalar_select %p621, %s622, %s623
      %p627 = pneg %p621
      %p628 = scmp.eq.s32.totalorder %s58, 1
      %p629 = por %p627, %p628
      %p630 = scmp.ne.s32.totalorder %s622, %s625
      %p631 = scmp.eq.s32.totalorder %s58, 0
      %p632 = por %p630, %p631
      %p633 = scmp.ne.s32.totalorder %s622, %s625
      %p634 = scmp.eq.s32.totalorder %s63, 1
      %p635 = por %p633, %p634
      %p636 = scmp.ne.s32.totalorder %s625, %s626
      %p637 = scmp.eq.s32.totalorder %s63, 0
      %p638 = por %p636, %p637
      %p639 = scmp.ne.s32.totalorder %s625, %s626
      %p640 = scmp.eq.s32.totalorder %s64, 1
      %p641 = por %p639, %p640
      %p643 = scmp.ne.s32.totalorder %s626, %s642
      %p644 = scmp.eq.s32.totalorder %s64, 0
      %p645 = por %p643, %p644
      %s646 = ssub.s32 %s58, %s65
      %p647 = scmp.eq.s32.totalorder %s646, 0
      %s649 = sadd.s32 %s648, 1
      %s650 = scalar_select %p647, %s648, %s649
      %p653 = pneg %p647
      %p654 = scmp.eq.s32.totalorder %s58, 1
      %p655 = por %p653, %p654
      %p656 = scmp.ne.s32.totalorder %s648, %s651
      %p657 = scmp.eq.s32.totalorder %s58, 0
      %p658 = por %p656, %p657
      %p659 = scmp.ne.s32.totalorder %s648, %s651
      %p660 = scmp.eq.s32.totalorder %s63, 1
      %p661 = por %p659, %p660
      %p662 = scmp.ne.s32.totalorder %s651, %s652
      %p663 = scmp.eq.s32.totalorder %s63, 0
      %p664 = por %p662, %p663
      %p665 = scmp.ne.s32.totalorder %s651, %s652
      %p666 = scmp.eq.s32.totalorder %s64, 1
      %p667 = por %p665, %p666
      %p669 = scmp.ne.s32.totalorder %s652, %s668
      %p670 = scmp.eq.s32.totalorder %s64, 0
      %p671 = por %p669, %p670
      %s672 = ssub.s32 %s58, %s65
      %p673 = scmp.eq.s32.totalorder %s672, 0
      %s675 = sadd.s32 %s674, 1
      %s676 = scalar_select %p673, %s674, %s675
      %p679 = pneg %p673
      %p680 = scmp.eq.s32.totalorder %s58, 1
      %p681 = por %p679, %p680
      %p682 = scmp.ne.s32.totalorder %s674, %s677
      %p683 = scmp.eq.s32.totalorder %s58, 0
      %p684 = por %p682, %p683
      %p685 = scmp.ne.s32.totalorder %s674, %s677
      %p686 = scmp.eq.s32.totalorder %s63, 1
      %p687 = por %p685, %p686
      %p688 = scmp.ne.s32.totalorder %s677, %s678
      %p689 = scmp.eq.s32.totalorder %s63, 0
      %p690 = por %p688, %p689
      %p691 = scmp.ne.s32.totalorder %s677, %s678
      %p692 = scmp.eq.s32.totalorder %s64, 1
      %p693 = por %p691, %p692
      %p695 = scmp.ne.s32.totalorder %s678, %s694
      %p696 = scmp.eq.s32.totalorder %s64, 0
      %p697 = por %p695, %p696
      %s698 = ssub.s32 %s58, %s65
      %p699 = scmp.eq.s32.totalorder %s698, 0
      %s701 = sadd.s32 %s700, 1
      %s702 = scalar_select %p699, %s700, %s701
      %p705 = pneg %p699
      %p706 = scmp.eq.s32.totalorder %s58, 1
      %p707 = por %p705, %p706
      %p708 = scmp.ne.s32.totalorder %s700, %s703
      %p709 = scmp.eq.s32.totalorder %s58, 0
      %p710 = por %p708, %p709
      %p711 = scmp.ne.s32.totalorder %s700, %s703
      %p712 = scmp.eq.s32.totalorder %s63, 1
      %p713 = por %p711, %p712
      %p714 = scmp.ne.s32.totalorder %s703, %s704
      %p715 = scmp.eq.s32.totalorder %s63, 0
      %p716 = por %p714, %p715
      %p717 = scmp.ne.s32.totalorder %s703, %s704
      %p718 = scmp.eq.s32.totalorder %s64, 1
      %p719 = por %p717, %p718
      %p721 = scmp.ne.s32.totalorder %s704, %s720
      %p722 = scmp.eq.s32.totalorder %s64, 0
      %p723 = por %p721, %p722
      %p724 = scmp.le.s32.totalorder 1, %s58
      %p725 = scmp.lt.s32.totalorder %s58, 3
      %p726 = pnand %p724, %p725
      %p727 = pneg %p726
      // Predicated region
      $region9: #{self_cross_graph_layer.1} parent=5 // pred_check
        _
      $region10: #{self_cross_graph_layer.1} parent=5 // pred_check_branch
        %729 = sbr.rel (%p726) target = $region12
      $region11: #{self_cross_graph_layer.1} parent=5 // pred_region
        %s730 = ssub.s32 %s58, 1
        // Predicated region
        $region13: #{self_cross_graph_layer.1} parent=11 // pred_check
          %p731 = pneg %p235
        $region14: #{self_cross_graph_layer.1} parent=11 // pred_check_branch
          %733 = sbr.rel (%p731) target = $region16
        $region15: #{self_cross_graph_layer.1} parent=11 // pred_region
          _
        $region16: #{self_cross_graph_layer.1} parent=11 // pred_fallthru
          _
        // Predicated region
        $region17: #{self_cross_graph_layer.1} parent=11 // pred_check
          %p734 = pneg %p256
        $region18: #{self_cross_graph_layer.1} parent=11 // pred_check_branch
          %736 = sbr.rel (%p734) target = $region20
        $region19: #{self_cross_graph_layer.1} parent=11 // pred_region
          %s738 = ssub.s32 512, 512
          %739 = vsyncadd [#allocation6], %s738
          %s740 = sshll.u32 [#allocation7], 4
          %s741 = int_to_ptr.vmem [resolvable:$true] %s740
          %746 = dma.hbm_to_vmem [thread:$0]  %s7, 512, %s741, [#allocation6], 128, 128, 8
        $region20: #{self_cross_graph_layer.1} parent=11 // pred_fallthru
          _
        // Predicated region
        $region21: #{self_cross_graph_layer.1} parent=11 // pred_check
          %p747 = pneg %p277
        $region22: #{self_cross_graph_layer.1} parent=11 // pred_check_branch
          %749 = sbr.rel (%p747) target = $region24
        $region23: #{self_cross_graph_layer.1} parent=11 // pred_region
          %s751 = ssub.s32 512, 512
          %752 = vsyncadd [#allocation9], %s751
          %s753 = sshll.u32 [#allocation8], 4
          %s754 = int_to_ptr.vmem [resolvable:$true] %s753
          %759 = dma.hbm_to_vmem [thread:$0]  %s8, 512, %s754, [#allocation9], 128, 128, 8
        $region24: #{self_cross_graph_layer.1} parent=11 // pred_fallthru
          _
        // Predicated region
        $region25: #{self_cross_graph_layer.1} parent=11 // pred_check
          %p760 = pneg %p298
        $region26: #{self_cross_graph_layer.1} parent=11 // pred_check_branch
          %762 = sbr.rel (%p760) target = $region28
        $region27: #{self_cross_graph_layer.1} parent=11 // pred_region
          %s764 = ssub.s32 512, 512
          %765 = vsyncadd [#allocation9], %s764
          %s766 = sshll.u32 [#allocation10], 4
          %s767 = int_to_ptr.vmem [resolvable:$true] %s766
          %772 = dma.hbm_to_vmem [thread:$0]  %s9, 512, %s767, [#allocation9], 128, 128, 8
        $region28: #{self_cross_graph_layer.1} parent=11 // pred_fallthru
          _
        // Predicated region
        $region29: #{self_cross_graph_layer.1} parent=11 // pred_check
          %p773 = pneg %p319
        $region30: #{self_cross_graph_layer.1} parent=11 // pred_check_branch
          %775 = sbr.rel (%p773) target = $region32
        $region31: #{self_cross_graph_layer.1} parent=11 // pred_region
          _
        $region32: #{self_cross_graph_layer.1} parent=11 // pred_fallthru
          _
        // Predicated region
        $region33: #{self_cross_graph_layer.1} parent=11 // pred_check
          %p776 = pneg %p340
        $region34: #{self_cross_graph_layer.1} parent=11 // pred_check_branch
          %778 = sbr.rel (%p776) target = $region36
        $region35: #{self_cross_graph_layer.1} parent=11 // pred_region
          %s780 = ssub.s32 512, 512
          %781 = vsyncadd [#allocation12], %s780
          %s782 = sshll.u32 [#allocation11], 4
          %s783 = int_to_ptr.vmem [resolvable:$true] %s782
          %788 = dma.hbm_to_vmem [thread:$0]  %s11, 512, %s783, [#allocation12], 128, 128, 8
        $region36: #{self_cross_graph_layer.1} parent=11 // pred_fallthru
          _
        // Predicated region
        $region37: #{self_cross_graph_layer.1} parent=11 // pred_check
          %p789 = pneg %p361
        $region38: #{self_cross_graph_layer.1} parent=11 // pred_check_branch
          %791 = sbr.rel (%p789) target = $region40
        $region39: #{self_cross_graph_layer.1} parent=11 // pred_region
          %s793 = ssub.s32 512, 512
          %794 = vsyncadd [#allocation12], %s793
          %s795 = sshll.u32 [#allocation13], 4
          %s796 = int_to_ptr.vmem [resolvable:$true] %s795
          %801 = dma.hbm_to_vmem [thread:$0]  %s12, 512, %s796, [#allocation12], 128, 128, 8
        $region40: #{self_cross_graph_layer.1} parent=11 // pred_fallthru
          _
        // Predicated region
        $region41: #{self_cross_graph_layer.1} parent=11 // pred_check
          %p802 = pneg %p382
        $region42: #{self_cross_graph_layer.1} parent=11 // pred_check_branch
          %804 = sbr.rel (%p802) target = $region44
        $region43: #{self_cross_graph_layer.1} parent=11 // pred_region
          %s806 = ssub.s32 512, 512
          %807 = vsyncadd [#allocation15], %s806
          %s808 = sshll.u32 [#allocation14], 4
          %s809 = int_to_ptr.vmem [resolvable:$true] %s808
          %814 = dma.hbm_to_vmem [thread:$0]  %s13, 512, %s809, [#allocation15], 128, 128, 8
        $region44: #{self_cross_graph_layer.1} parent=11 // pred_fallthru
          _
        // Predicated region
        $region45: #{self_cross_graph_layer.1} parent=11 // pred_check
          %p815 = pneg %p403
        $region46: #{self_cross_graph_layer.1} parent=11 // pred_check_branch
          %817 = sbr.rel (%p815) target = $region48
        $region47: #{self_cross_graph_layer.1} parent=11 // pred_region
          %s819 = ssub.s32 512, 512
          %820 = vsyncadd [#allocation15], %s819
          %s821 = sshll.u32 [#allocation16], 4
          %s822 = int_to_ptr.vmem [resolvable:$true] %s821
          %827 = dma.hbm_to_vmem [thread:$0]  %s14, 512, %s822, [#allocation15], 128, 128, 8
        $region48: #{self_cross_graph_layer.1} parent=11 // pred_fallthru
          _
        // Predicated region
        $region49: #{self_cross_graph_layer.1} parent=11 // pred_check
          %p828 = pneg %p424
        $region50: #{self_cross_graph_layer.1} parent=11 // pred_check_branch
          %830 = sbr.rel (%p828) target = $region52
        $region51: #{self_cross_graph_layer.1} parent=11 // pred_region
          %s832 = ssub.s32 512, 512
          %833 = vsyncadd [#allocation18], %s832
          %s834 = sshll.u32 [#allocation17], 4
          %s835 = int_to_ptr.vmem [resolvable:$true] %s834
          %840 = dma.hbm_to_vmem [thread:$0]  %s15, 512, %s835, [#allocation18], 128, 128, 8
        $region52: #{self_cross_graph_layer.1} parent=11 // pred_fallthru
          _
        // Predicated region
        $region53: #{self_cross_graph_layer.1} parent=11 // pred_check
          %p841 = pneg %p445
        $region54: #{self_cross_graph_layer.1} parent=11 // pred_check_branch
          %843 = sbr.rel (%p841) target = $region56
        $region55: #{self_cross_graph_layer.1} parent=11 // pred_region
          %s845 = ssub.s32 16, 16
          %846 = vsyncadd [#allocation18], %s845
          %s848 = sshll.u32 [#allocation19], 4
          %s849 = int_to_ptr.vmem [resolvable:$true] %s848
          %851 = dma.hbm_to_vmem [thread:$0]  %s16, 16, %s849, [#allocation18]
        $region56: #{self_cross_graph_layer.1} parent=11 // pred_fallthru
          _
        // Predicated region
        $region57: #{self_cross_graph_layer.1} parent=11 // pred_check
          %p852 = pneg %p466
        $region58: #{self_cross_graph_layer.1} parent=11 // pred_check_branch
          %854 = sbr.rel (%p852) target = $region60
        $region59: #{self_cross_graph_layer.1} parent=11 // pred_region
          %s856 = ssub.s32 16, 16
          %857 = vsyncadd [#allocation21], %s856
          %s859 = sshll.u32 [#allocation20], 4
          %s860 = int_to_ptr.vmem [resolvable:$true] %s859
          %862 = dma.hbm_to_vmem [thread:$0]  %s17, 16, %s860, [#allocation21]
        $region60: #{self_cross_graph_layer.1} parent=11 // pred_fallthru
          _
        // Predicated region
        $region61: #{self_cross_graph_layer.1} parent=11 // pred_check
          %p863 = pneg %p487
        $region62: #{self_cross_graph_layer.1} parent=11 // pred_check_branch
          %865 = sbr.rel (%p863) target = $region64
        $region63: #{self_cross_graph_layer.1} parent=11 // pred_region
          %s867 = ssub.s32 16, 16
          %868 = vsyncadd [#allocation21], %s867
          %s870 = sshll.u32 [#allocation22], 4
          %s871 = int_to_ptr.vmem [resolvable:$true] %s870
          %873 = dma.hbm_to_vmem [thread:$0]  %s18, 16, %s871, [#allocation21]
        $region64: #{self_cross_graph_layer.1} parent=11 // pred_fallthru
          _
        // Predicated region
        $region65: #{self_cross_graph_layer.1} parent=11 // pred_check
          %p874 = pneg %p508
        $region66: #{self_cross_graph_layer.1} parent=11 // pred_check_branch
          %876 = sbr.rel (%p874) target = $region68
        $region67: #{self_cross_graph_layer.1} parent=11 // pred_region
          %s878 = ssub.s32 16, 16
          %879 = vsyncadd [#allocation24], %s878
          %s881 = sshll.u32 [#allocation23], 4
          %s882 = int_to_ptr.vmem [resolvable:$true] %s881
          %884 = dma.hbm_to_vmem [thread:$0]  %s19, 16, %s882, [#allocation24]
        $region68: #{self_cross_graph_layer.1} parent=11 // pred_fallthru
          _
      $region12: #{self_cross_graph_layer.1} parent=5 // pred_fallthru
        _
      %p885 = scmp.lt.s32.totalorder %s58, 2
      // Predicated region
      $region69: #{self_cross_graph_layer.1} parent=5 // pred_check
        %p886 = pneg %p885
      $region70: #{self_cross_graph_layer.1} parent=5 // pred_check_branch
        %888 = sbr.rel (%p886) target = $region72
      $region71: #{self_cross_graph_layer.1} parent=5 // pred_region
        // Predicated region
        $region73: #{self_cross_graph_layer.1} parent=71 // pred_check
          %p889 = pneg %p78
        $region74: #{self_cross_graph_layer.1} parent=71 // pred_check_branch
          %891 = sbr.rel (%p889) target = $region76
        $region75: #{self_cross_graph_layer.1} parent=71 // pred_region
          %s892 = sand.u32 %s68, 1
          %s893 = scalar_lea.sflag [#allocation3], %s892
          %s894 = sand.u32 %s68, 1
          %s895 = smul.addr %s894, 8
          %s896 = scalar_lea.vmem [#allocation2], %s895
          %s898 = ssub.s32 128, 128
          %899 = vsyncadd %s893, %s898
          %s900 = smul.addr %s58, 128
          %s901 = scalar_lea.hbm %s0, %s900
          %s903 = sshll.u32 %s896, 4
          %s904 = int_to_ptr.vmem [resolvable:$true] %s903
          %906 = dma.hbm_to_vmem [thread:$0]  %s901, 128, %s904, %s893
        $region76: #{self_cross_graph_layer.1} parent=71 // pred_fallthru
          _
        // Predicated region
        $region77: #{self_cross_graph_layer.1} parent=71 // pred_check
          %p907 = pneg %p104
        $region78: #{self_cross_graph_layer.1} parent=71 // pred_check_branch
          %909 = sbr.rel (%p907) target = $region80
        $region79: #{self_cross_graph_layer.1} parent=71 // pred_region
          %s910 = sand.u32 %s58, 1
          %s911 = scalar_lea.sflag [#allocation6], %s910
          %s912 = sand.u32 %s94, 1
          %s913 = smul.addr %s912, 8
          %s914 = scalar_lea.vmem [#allocation5], %s913
          %s916 = ssub.s32 128, 128
          %917 = vsyncadd %s911, %s916
          %s918 = smul.addr %s58, 128
          %s919 = scalar_lea.hbm %s1, %s918
          %s921 = sshll.u32 %s914, 4
          %s922 = int_to_ptr.vmem [resolvable:$true] %s921
          %924 = dma.hbm_to_vmem [thread:$0]  %s919, 128, %s922, %s911
        $region80: #{self_cross_graph_layer.1} parent=71 // pred_fallthru
          _
        // Predicated region
        $region81: #{self_cross_graph_layer.1} parent=71 // pred_check
          %p925 = pneg %p130
        $region82: #{self_cross_graph_layer.1} parent=71 // pred_check_branch
          %927 = sbr.rel (%p925) target = $region84
        $region83: #{self_cross_graph_layer.1} parent=71 // pred_region
          %p928 = scmp.lt.s32.totalorder %s58, 1
          %s929 = scalar_select %p928, %s58, 1
          %s930 = scalar_lea.vmem %s2, %s929
        $region84: #{self_cross_graph_layer.1} parent=71 // pred_fallthru
          _
        // Predicated region
        $region85: #{self_cross_graph_layer.1} parent=71 // pred_check
          %p931 = pneg %p156
        $region86: #{self_cross_graph_layer.1} parent=71 // pred_check_branch
          %933 = sbr.rel (%p931) target = $region88
        $region87: #{self_cross_graph_layer.1} parent=71 // pred_region
          %p934 = scmp.lt.s32.totalorder %s58, 1
          %s935 = scalar_select %p934, %s58, 1
          %s936 = scalar_lea.vmem %s3, %s935
        $region88: #{self_cross_graph_layer.1} parent=71 // pred_fallthru
          _
        // Predicated region
        $region89: #{self_cross_graph_layer.1} parent=71 // pred_check
          %p937 = pneg %p182
        $region90: #{self_cross_graph_layer.1} parent=71 // pred_check_branch
          %939 = sbr.rel (%p937) target = $region92
        $region91: #{self_cross_graph_layer.1} parent=71 // pred_region
          %p940 = scmp.lt.s32.totalorder %s58, 1
          %s941 = scalar_select %p940, %s58, 1
          %s942 = smul.addr %s941, 8
          %s943 = scalar_lea.vmem %s4, %s942
        $region92: #{self_cross_graph_layer.1} parent=71 // pred_fallthru
          _
        // Predicated region
        $region93: #{self_cross_graph_layer.1} parent=71 // pred_check
          %p944 = pneg %p208
        $region94: #{self_cross_graph_layer.1} parent=71 // pred_check_branch
          %946 = sbr.rel (%p944) target = $region96
        $region95: #{self_cross_graph_layer.1} parent=71 // pred_region
          %p947 = scmp.lt.s32.totalorder %s58, 1
          %s948 = scalar_select %p947, %s58, 1
          %s949 = smul.addr %s948, 8
          %s950 = scalar_lea.vmem %s5, %s949
        $region96: #{self_cross_graph_layer.1} parent=71 // pred_fallthru
          _
      $region72: #{self_cross_graph_layer.1} parent=5 // pred_fallthru
        _
      %p951 = scmp.le.s32.totalorder 1, %s58
      %p952 = scmp.lt.s32.totalorder %s58, 3
      %p953 = pnand %p951, %p952
      %p954 = pneg %p953
      // Predicated region
      $region97: #{self_cross_graph_layer.1} parent=5 // pred_check
        _
      $region98: #{self_cross_graph_layer.1} parent=5 // pred_check_branch
        %956 = sbr.rel (%p953) target = $region100
      $region99: #{self_cross_graph_layer.1} parent=5 // pred_region
        %s957 = ssub.s32 %s58, 1
        %s958 = sand.u32 %s71, 1
        %s959 = scalar_lea.sflag [#allocation3], %s958
        %s960 = sand.u32 %s71, 1
        %s961 = smul.addr %s960, 8
        %s962 = scalar_lea.vmem [#allocation2], %s961
        // Predicated region
        $region101: #{self_cross_graph_layer.1} parent=99 // pred_check
          %p963 = pneg %p84
        $region102: #{self_cross_graph_layer.1} parent=99 // pred_check_branch
          %965 = sbr.rel (%p963) target = $region104
        $region103: #{self_cross_graph_layer.1} parent=99 // pred_region
          %966 = dma.done %s959, 128
        $region104: #{self_cross_graph_layer.1} parent=99 // pred_fallthru
          _
        %s967 = sand.u32 %s63, 1
        %s968 = scalar_lea.sflag [#allocation6], %s967
        %s969 = sand.u32 %s97, 1
        %s970 = smul.addr %s969, 8
        %s971 = scalar_lea.vmem [#allocation5], %s970
        // Predicated region
        $region105: #{self_cross_graph_layer.1} parent=99 // pred_check
          %p972 = pneg %p110
        $region106: #{self_cross_graph_layer.1} parent=99 // pred_check_branch
          %974 = sbr.rel (%p972) target = $region108
        $region107: #{self_cross_graph_layer.1} parent=99 // pred_region
          %975 = dma.done %s968, 128
        $region108: #{self_cross_graph_layer.1} parent=99 // pred_fallthru
          _
        // Predicated region
        $region109: #{self_cross_graph_layer.1} parent=99 // pred_check
          %p976 = pneg %p256
        $region110: #{self_cross_graph_layer.1} parent=99 // pred_check_branch
          %978 = sbr.rel (%p976) target = $region112
        $region111: #{self_cross_graph_layer.1} parent=99 // pred_region
          %979 = dma.done [#allocation6], 512
        $region112: #{self_cross_graph_layer.1} parent=99 // pred_fallthru
          _
        // Predicated region
        $region113: #{self_cross_graph_layer.1} parent=99 // pred_check
          %p980 = pneg %p277
        $region114: #{self_cross_graph_layer.1} parent=99 // pred_check_branch
          %982 = sbr.rel (%p980) target = $region116
        $region115: #{self_cross_graph_layer.1} parent=99 // pred_region
          %983 = dma.done [#allocation9], 512
        $region116: #{self_cross_graph_layer.1} parent=99 // pred_fallthru
          _
        // Predicated region
        $region117: #{self_cross_graph_layer.1} parent=99 // pred_check
          %p984 = pneg %p298
        $region118: #{self_cross_graph_layer.1} parent=99 // pred_check_branch
          %986 = sbr.rel (%p984) target = $region120
        $region119: #{self_cross_graph_layer.1} parent=99 // pred_region
          %987 = dma.done [#allocation9], 512
        $region120: #{self_cross_graph_layer.1} parent=99 // pred_fallthru
          _
        // Predicated region
        $region121: #{self_cross_graph_layer.1} parent=99 // pred_check
          %p988 = pneg %p340
        $region122: #{self_cross_graph_layer.1} parent=99 // pred_check_branch
          %990 = sbr.rel (%p988) target = $region124
        $region123: #{self_cross_graph_layer.1} parent=99 // pred_region
          %991 = dma.done [#allocation12], 512
        $region124: #{self_cross_graph_layer.1} parent=99 // pred_fallthru
          _
        // Predicated region
        $region125: #{self_cross_graph_layer.1} parent=99 // pred_check
          %p992 = pneg %p361
        $region126: #{self_cross_graph_layer.1} parent=99 // pred_check_branch
          %994 = sbr.rel (%p992) target = $region128
        $region127: #{self_cross_graph_layer.1} parent=99 // pred_region
          %995 = dma.done [#allocation12], 512
        $region128: #{self_cross_graph_layer.1} parent=99 // pred_fallthru
          _
        // Predicated region
        $region129: #{self_cross_graph_layer.1} parent=99 // pred_check
          %p996 = pneg %p382
        $region130: #{self_cross_graph_layer.1} parent=99 // pred_check_branch
          %998 = sbr.rel (%p996) target = $region132
        $region131: #{self_cross_graph_layer.1} parent=99 // pred_region
          %999 = dma.done [#allocation15], 512
        $region132: #{self_cross_graph_layer.1} parent=99 // pred_fallthru
          _
        // Predicated region
        $region133: #{self_cross_graph_layer.1} parent=99 // pred_check
          %p1000 = pneg %p403
        $region134: #{self_cross_graph_layer.1} parent=99 // pred_check_branch
          %1002 = sbr.rel (%p1000) target = $region136
        $region135: #{self_cross_graph_layer.1} parent=99 // pred_region
          %1003 = dma.done [#allocation15], 512
        $region136: #{self_cross_graph_layer.1} parent=99 // pred_fallthru
          _
        // Predicated region
        $region137: #{self_cross_graph_layer.1} parent=99 // pred_check
          %p1004 = pneg %p424
        $region138: #{self_cross_graph_layer.1} parent=99 // pred_check_branch
          %1006 = sbr.rel (%p1004) target = $region140
        $region139: #{self_cross_graph_layer.1} parent=99 // pred_region
          %1007 = dma.done [#allocation18], 512
        $region140: #{self_cross_graph_layer.1} parent=99 // pred_fallthru
          _
        // Predicated region
        $region141: #{self_cross_graph_layer.1} parent=99 // pred_check
          %p1008 = pneg %p445
        $region142: #{self_cross_graph_layer.1} parent=99 // pred_check_branch
          %1010 = sbr.rel (%p1008) target = $region144
        $region143: #{self_cross_graph_layer.1} parent=99 // pred_region
          %1011 = dma.done [#allocation18], 16
        $region144: #{self_cross_graph_layer.1} parent=99 // pred_fallthru
          _
        // Predicated region
        $region145: #{self_cross_graph_layer.1} parent=99 // pred_check
          %p1012 = pneg %p466
        $region146: #{self_cross_graph_layer.1} parent=99 // pred_check_branch
          %1014 = sbr.rel (%p1012) target = $region148
        $region147: #{self_cross_graph_layer.1} parent=99 // pred_region
          %1015 = dma.done [#allocation21], 16
        $region148: #{self_cross_graph_layer.1} parent=99 // pred_fallthru
          _
        // Predicated region
        $region149: #{self_cross_graph_layer.1} parent=99 // pred_check
          %p1016 = pneg %p487
        $region150: #{self_cross_graph_layer.1} parent=99 // pred_check_branch
          %1018 = sbr.rel (%p1016) target = $region152
        $region151: #{self_cross_graph_layer.1} parent=99 // pred_region
          %1019 = dma.done [#allocation21], 16
        $region152: #{self_cross_graph_layer.1} parent=99 // pred_fallthru
          _
        // Predicated region
        $region153: #{self_cross_graph_layer.1} parent=99 // pred_check
          %p1020 = pneg %p508
        $region154: #{self_cross_graph_layer.1} parent=99 // pred_check_branch
          %1022 = sbr.rel (%p1020) target = $region156
        $region155: #{self_cross_graph_layer.1} parent=99 // pred_region
          %1023 = dma.done [#allocation24], 16
        $region156: #{self_cross_graph_layer.1} parent=99 // pred_fallthru
          _
        %s1024 = sand.u32 %s71, 1
        %s1025 = scalar_lea.sflag [#allocation3], %s1024
        %s1026 = sand.u32 %s71, 1
        %s1027 = smul.addr %s1026, 8
        %s1028 = scalar_lea.vmem [#allocation2], %s1027
        %p1029 = pneg %p84
        %p1030 = pneg %p81
        %s1031 = sand.u32 %s63, 1
        %s1032 = scalar_lea.sflag [#allocation6], %s1031
        %s1033 = sand.u32 %s97, 1
        %s1034 = smul.addr %s1033, 8
        %s1035 = scalar_lea.vmem [#allocation5], %s1034
        %p1036 = pneg %p110
        %p1037 = pneg %p107
        %p1038 = scmp.lt.s32.totalorder %s63, 1
        %s1039 = scalar_select %p1038, %s63, 1
        %s1040 = scalar_lea.vmem %s2, %s1039
        %p1041 = pneg %p136
        %p1042 = pneg %p133
        %p1043 = scmp.lt.s32.totalorder %s63, 1
        %s1044 = scalar_select %p1043, %s63, 1
        %s1045 = scalar_lea.vmem %s3, %s1044
        %p1046 = pneg %p162
        %p1047 = pneg %p159
        %p1048 = scmp.lt.s32.totalorder %s63, 1
        %s1049 = scalar_select %p1048, %s63, 1
        %s1050 = smul.addr %s1049, 8
        %s1051 = scalar_lea.vmem %s4, %s1050
        %p1052 = pneg %p188
        %p1053 = pneg %p185
        %p1054 = scmp.lt.s32.totalorder %s63, 1
        %s1055 = scalar_select %p1054, %s63, 1
        %s1056 = smul.addr %s1055, 8
        %s1057 = scalar_lea.vmem %s5, %s1056
        %p1058 = pneg %p214
        %p1059 = pneg %p211
        %p1060 = pneg %p235
        %p1061 = pneg %p232
        %p1062 = pneg %p256
        %p1063 = pneg %p253
        %p1064 = pneg %p277
        %p1065 = pneg %p274
        %p1066 = pneg %p298
        %p1067 = pneg %p295
        %p1068 = pneg %p319
        %p1069 = pneg %p316
        %p1070 = pneg %p340
        %p1071 = pneg %p337
        %p1072 = pneg %p361
        %p1073 = pneg %p358
        %p1074 = pneg %p382
        %p1075 = pneg %p379
        %p1076 = pneg %p403
        %p1077 = pneg %p400
        %p1078 = pneg %p424
        %p1079 = pneg %p421
        %p1080 = pneg %p445
        %p1081 = pneg %p442
        %p1082 = pneg %p466
        %p1083 = pneg %p463
        %p1084 = pneg %p487
        %p1085 = pneg %p484
        %p1086 = pneg %p508
        %p1087 = pneg %p505
        %p1088 = pneg %p534
        %p1089 = pneg %p531
        %s1090 = sand.u32 %s521, 1
        %s1091 = scalar_lea.sflag [#allocation4], %s1090
        %s1092 = sand.u32 %s521, 1
        %s1093 = smul.addr %s1092, 8
        %s1094 = scalar_lea.vmem [#allocation25], %s1093
        %p1095 = pneg %p560
        %p1096 = pneg %p557
        %s1097 = sand.u32 %s63, 1
        %s1098 = scalar_lea.sflag [#allocation27], %s1097
        %s1099 = sand.u32 %s547, 1
        %s1100 = smul.addr %s1099, 8
        %s1101 = scalar_lea.vmem [#allocation26], %s1100
        %p1102 = pneg %p586
        %p1103 = pneg %p583
        %s1104 = sand.u32 %s63, 1
        %s1105 = scalar_lea.sflag [#allocation27], %s1104
        %s1106 = sand.u32 %s573, 1
        %s1107 = smul.addr %s1106, 32
        %s1108 = scalar_lea.vmem [#allocation28], %s1107
        %p1109 = pneg %p612
        %p1110 = pneg %p609
        %s1111 = sand.u32 %s63, 1
        %s1112 = scalar_lea.sflag [#allocation30], %s1111
        %s1113 = sand.u32 %s599, 1
        %s1114 = smul.addr %s1113, 32
        %s1115 = scalar_lea.vmem [#allocation29], %s1114
        %p1116 = pneg %p638
        %p1117 = pneg %p635
        %s1118 = sand.u32 %s63, 1
        %s1119 = scalar_lea.sflag [#allocation30], %s1118
        %s1120 = sand.u32 %s625, 1
        %s1121 = smul.addr %s1120, 32
        %s1122 = scalar_lea.vmem [#allocation31], %s1121
        %p1123 = pneg %p664
        %p1124 = pneg %p661
        %s1125 = sand.u32 %s651, 1
        %s1126 = scalar_lea.sflag [#allocation33], %s1125
        %s1127 = sand.u32 %s651, 1
        %s1128 = smul.addr %s1127, 32
        %s1129 = scalar_lea.vmem [#allocation32], %s1128
        %p1130 = pneg %p690
        %p1131 = pneg %p687
        %p1132 = scmp.lt.s32.totalorder %s63, 1
        %s1133 = scalar_select %p1132, %s63, 1
        %s1134 = smul.addr %s1133, 8
        %s1135 = scalar_lea.vmem %s26, %s1134
        %p1136 = pneg %p716
        %p1137 = pneg %p713
        %p1138 = scmp.lt.s32.totalorder %s63, 1
        %s1139 = scalar_select %p1138, %s63, 1
        %s1140 = smul.addr %s1139, 8
        %s1141 = scalar_lea.vmem %s27, %s1140
        %p1142 = scmp.lt.s32.totalorder %s63, 1
        %s1143 = scalar_select %p1142, %s63, 1
        %s1144 = scalar_lea.vmem %s2, %s1143
        %p1145 = scmp.lt.s32.totalorder %s63, 1
        %s1146 = scalar_select %p1145, %s63, 1
        %s1147 = scalar_lea.vmem %s3, %s1146
        %p1148 = scmp.lt.s32.totalorder %s63, 1
        %s1149 = scalar_select %p1148, %s63, 1
        %s1150 = smul.addr %s1149, 8
        %s1151 = scalar_lea.vmem %s4, %s1150
        %p1152 = scmp.lt.s32.totalorder %s63, 1
        %s1153 = scalar_select %p1152, %s63, 1
        %s1154 = smul.addr %s1153, 8
        %s1155 = scalar_lea.vmem %s5, %s1154
        %p1156 = scmp.lt.s32.totalorder %s63, 1
        %s1157 = scalar_select %p1156, %s63, 1
        %s1158 = smul.addr %s1157, 8
        %s1159 = scalar_lea.vmem %s26, %s1158
        %p1160 = scmp.lt.s32.totalorder %s63, 1
        %s1161 = scalar_select %p1160, %s63, 1
        %s1162 = smul.addr %s1161, 8
        %s1163 = scalar_lea.vmem %s27, %s1162
        %v1164 = vld [vmem:[%s962] sm:$0xff]
        %v1165 = vld [vmem:[%s971] sm:$0xff]
        %v1166 = vld [vmem:[%s1144] sm:$0x1]
        %v1167 = vsub.f32 1.0, %v1166
        %v1168 = vmul.f32 %v1167, -1e+09
        %v1169 = vld [vmem:[%s1147] sm:$0x1]
        %v1170 = vsub.f32 1.0, %v1169
        %v1171 = vmul.f32 %v1170, -1e+09
        %v1172 = vld [vmem:[%s1151] sm:$0xff]
        %v1173 = vld [vmem:[%s1155] sm:$0xff]
        %v1174 = vld [vmem:[%s6] sm:$0xff]
        %v1175 = vld [vmem:[%s6 + $0x8] sm:$0xff]
        %v1176 = vld [vmem:[%s6 + $0x10] sm:$0xff]
        %v1177 = vld [vmem:[%s6 + $0x18] sm:$0xff]
        %vm1178 = vcmask 261120
        %v1180 = vsel %vm1178, %v1164, 0
        %1182 = vmatprep.subr.mxu0 0.0
        %1183 = vmatpush1.msra.mxu0 0.0
        %1184 = vmatprep.subr.mxu0 0.0
        %1185 = vmatpush1.msra.mxu0 0.0
        %1186 = vmatprep.subr.mxu0 0.0
        %1187 = vmatpush1.msra.mxu0 0.0
        %1188 = vmatprep.subr.mxu0 0.0
        %1189 = vmatpush1.msra.mxu0 0.0
        %1190 = vmatprep.subr.mxu0 0.0
        %1191 = vmatpush1.msra.mxu0 0.0
        %1192 = vmatprep.subr.mxu0 0.0
        %1193 = vmatpush1.msra.mxu0 0.0
        %1194 = vmatprep.subr.mxu0 0.0
        %1195 = vmatpush1.msra.mxu0 0.0
        %1196 = vmatprep.subr.mxu0 0.0
        %1197 = vmatpush1.msra.mxu0 0.0
        %1198 = vmatprep.subr.mxu0 0.0
        %1199 = vmatpush1.msra.mxu0 0.0
        %1200 = vmatprep.subr.mxu0 0.0
        %1201 = vmatpush1.msra.mxu0 0.0
        %1202 = vmatprep.subr.mxu0 0.0
        %1203 = vmatpush1.msra.mxu0 0.0
        %1204 = vmatprep.subr.mxu0 0.0
        %1205 = vmatpush1.msra.mxu0 0.0
        %1206 = vmatprep.subr.mxu0 0.0
        %1207 = vmatpush1.msra.mxu0 %v1177
        %1208 = vmatprep.subr.mxu0 0.0
        %1209 = vmatpush1.msra.mxu0 %v1176
        %1210 = vmatprep.subr.mxu0 0.0
        %1211 = vmatpush1.msra.mxu0 %v1175
        %1212 = vmatprep.subr.mxu0 0.0
        %1213 = vmatpush1.msra.mxu0 %v1174
        %1214 = vmatprep.subr.mxu0 0.0
        %1215 = vmatpush2.msra.mxu0 0.0
        %1216 = vmatprep.subr.mxu0 0.0
        %1217 = vmatpush2.msra.mxu0 0.0
        %1218 = vmatprep.subr.mxu0 0.0
        %1219 = vmatpush2.msra.mxu0 0.0
        %1220 = vmatprep.subr.mxu0 0.0
        %1221 = vmatpush2.msra.mxu0 0.0
        %1222 = vmatprep.subr.mxu0 0.0
        %1223 = vmatpush2.msra.mxu0 0.0
        %1224 = vmatprep.subr.mxu0 0.0
        %1225 = vmatpush2.msra.mxu0 0.0
        %1226 = vmatprep.subr.mxu0 0.0
        %1227 = vmatpush2.msra.mxu0 0.0
        %1228 = vmatprep.subr.mxu0 0.0
        %1229 = vmatpush2.msra.mxu0 0.0
        %1230 = vmatprep.subr.mxu0 0.0
        %1231 = vmatpush2.msra.mxu0 0.0
        %1232 = vmatprep.subr.mxu0 0.0
        %1233 = vmatpush2.msra.mxu0 0.0
        %1234 = vmatprep.subr.mxu0 0.0
        %1235 = vmatpush2.msra.mxu0 0.0
        %1236 = vmatprep.subr.mxu0 0.0
        %1237 = vmatpush2.msra.mxu0 0.0
        %1238 = vmatprep.subr.mxu0 0.0
        %1239 = vmatpush2.msra.mxu0 0.0
        %1240 = vmatprep.subr.mxu0 0.0
        %1241 = vmatpush2.msra.mxu0 0.0
        %1242 = vmatprep.subr.mxu0 0.0
        %1243 = vmatpush2.msra.mxu0 0.0
        %1244 = vmatprep.subr.mxu0 0.0
        %1245 = vmatpush2.msra.mxu0 0.0
        %1246 = vmatprep.mubr.f32.mxu0 0.0
        %1247 = vmatmul.mubr.f32.gmra.mxu0 %v1180
        %v1248 = vpop.f32.mrf.mxu0
        %v1249 = vadd.f32 0.0, %v1248
        %v1250 = vpop.f32.mrf.mxu0
        %1251 = vdwg.mxu0
        %v1252 = vld [vmem:[#allocation7] sm:$0xff]
        %v1253 = vld [vmem:[#allocation7 + $0x8] sm:$0xff]
        %v1254 = vld [vmem:[#allocation7 + $0x10] sm:$0xff]
        %v1255 = vld [vmem:[#allocation7 + $0x18] sm:$0xff]
        %v1257 = vsel %vm1178, %v1165, 0
        %1259 = vmatprep.subr.mxu0 0.0
        %1260 = vmatpush1.msra.mxu0 0.0
        %1261 = vmatprep.subr.mxu0 0.0
        %1262 = vmatpush1.msra.mxu0 0.0
        %1263 = vmatprep.subr.mxu0 0.0
        %1264 = vmatpush1.msra.mxu0 0.0
        %1265 = vmatprep.subr.mxu0 0.0
        %1266 = vmatpush1.msra.mxu0 0.0
        %1267 = vmatprep.subr.mxu0 0.0
        %1268 = vmatpush1.msra.mxu0 0.0
        %1269 = vmatprep.subr.mxu0 0.0
        %1270 = vmatpush1.msra.mxu0 0.0
        %1271 = vmatprep.subr.mxu0 0.0
        %1272 = vmatpush1.msra.mxu0 0.0
        %1273 = vmatprep.subr.mxu0 0.0
        %1274 = vmatpush1.msra.mxu0 0.0
        %1275 = vmatprep.subr.mxu0 0.0
        %1276 = vmatpush1.msra.mxu0 0.0
        %1277 = vmatprep.subr.mxu0 0.0
        %1278 = vmatpush1.msra.mxu0 0.0
        %1279 = vmatprep.subr.mxu0 0.0
        %1280 = vmatpush1.msra.mxu0 0.0
        %1281 = vmatprep.subr.mxu0 0.0
        %1282 = vmatpush1.msra.mxu0 0.0
        %1283 = vmatprep.subr.mxu0 0.0
        %1284 = vmatpush1.msra.mxu0 %v1255
        %1285 = vmatprep.subr.mxu0 0.0
        %1286 = vmatpush1.msra.mxu0 %v1254
        %1287 = vmatprep.subr.mxu0 0.0
        %1288 = vmatpush1.msra.mxu0 %v1253
        %1289 = vmatprep.subr.mxu0 0.0
        %1290 = vmatpush1.msra.mxu0 %v1252
        %1291 = vmatprep.subr.mxu0 0.0
        %1292 = vmatpush2.msra.mxu0 0.0
        %1293 = vmatprep.subr.mxu0 0.0
        %1294 = vmatpush2.msra.mxu0 0.0
        %1295 = vmatprep.subr.mxu0 0.0
        %1296 = vmatpush2.msra.mxu0 0.0
        %1297 = vmatprep.subr.mxu0 0.0
        %1298 = vmatpush2.msra.mxu0 0.0
        %1299 = vmatprep.subr.mxu0 0.0
        %1300 = vmatpush2.msra.mxu0 0.0
        %1301 = vmatprep.subr.mxu0 0.0
        %1302 = vmatpush2.msra.mxu0 0.0
        %1303 = vmatprep.subr.mxu0 0.0
        %1304 = vmatpush2.msra.mxu0 0.0
        %1305 = vmatprep.subr.mxu0 0.0
        %1306 = vmatpush2.msra.mxu0 0.0
        %1307 = vmatprep.subr.mxu0 0.0
        %1308 = vmatpush2.msra.mxu0 0.0
        %1309 = vmatprep.subr.mxu0 0.0
        %1310 = vmatpush2.msra.mxu0 0.0
        %1311 = vmatprep.subr.mxu0 0.0
        %1312 = vmatpush2.msra.mxu0 0.0
        %1313 = vmatprep.subr.mxu0 0.0
        %1314 = vmatpush2.msra.mxu0 0.0
        %1315 = vmatprep.subr.mxu0 0.0
        %1316 = vmatpush2.msra.mxu0 0.0
        %1317 = vmatprep.subr.mxu0 0.0
        %1318 = vmatpush2.msra.mxu0 0.0
        %1319 = vmatprep.subr.mxu0 0.0
        %1320 = vmatpush2.msra.mxu0 0.0
        %1321 = vmatprep.subr.mxu0 0.0
        %1322 = vmatpush2.msra.mxu0 0.0
        %1323 = vmatprep.mubr.f32.mxu0 0.0
        %1324 = vmatmul.mubr.f32.gmra.mxu0 %v1257
        %v1325 = vpop.f32.mrf.mxu0
        %v1326 = vadd.f32 0.0, %v1325
        %v1327 = vpop.f32.mrf.mxu0
        %1328 = vdwg.mxu0
        %v1329 = vld [vmem:[#allocation8] sm:$0xff]
        %v1330 = vld [vmem:[#allocation8 + $0x8] sm:$0xff]
        %v1331 = vld [vmem:[#allocation8 + $0x10] sm:$0xff]
        %v1332 = vld [vmem:[#allocation8 + $0x18] sm:$0xff]
        %1334 = vrot.lane.b32.xlu0 %v1326, 96
        %v1335 = vpop.permute.xlu0 %1334
        %vm1336 = vcmask 64512
        %v1338 = vsel %vm1336, %v1249, 0
        %v1340 = vsel %vm1336, %v1335, 0
        %1342 = vmatprep.subr.mxu0 0.0
        %1343 = vmatpush1.xpose.msra.mxu0 0.0
        %1344 = vmatprep.subr.mxu0 0.0
        %1345 = vmatpush1.xpose.msra.mxu0 0.0
        %1346 = vmatprep.subr.mxu0 0.0
        %1347 = vmatpush1.xpose.msra.mxu0 0.0
        %1348 = vmatprep.subr.mxu0 0.0
        %1349 = vmatpush1.xpose.msra.mxu0 0.0
        %1350 = vmatprep.subr.mxu0 0.0
        %1351 = vmatpush1.xpose.msra.mxu0 0.0
        %1352 = vmatprep.subr.mxu0 0.0
        %1353 = vmatpush1.xpose.msra.mxu0 0.0
        %1354 = vmatprep.subr.mxu0 0.0
        %1355 = vmatpush1.xpose.msra.mxu0 0.0
        %1356 = vmatprep.subr.mxu0 0.0
        %1357 = vmatpush1.xpose.msra.mxu0 0.0
        %1358 = vmatprep.subr.mxu0 0.0
        %1359 = vmatpush1.xpose.msra.mxu0 0.0
        %1360 = vmatprep.subr.mxu0 0.0
        %1361 = vmatpush1.xpose.msra.mxu0 0.0
        %1362 = vmatprep.subr.mxu0 0.0
        %1363 = vmatpush1.xpose.msra.mxu0 0.0
        %1364 = vmatprep.subr.mxu0 0.0
        %1365 = vmatpush1.xpose.msra.mxu0 0.0
        %1366 = vmatprep.subr.mxu0 0.0
        %1367 = vmatpush1.xpose.msra.mxu0 0.0
        %1368 = vmatprep.subr.mxu0 0.0
        %1369 = vmatpush1.xpose.msra.mxu0 0.0
        %1370 = vmatprep.subr.mxu0 0.0
        %1371 = vmatpush1.xpose.msra.mxu0 0.0
        %1372 = vmatprep.subr.mxu0 0.0
        %1373 = vmatpush1.xpose.msra.mxu0 %v1340
        %1374 = vmatprep.subr.mxu0 0.0
        %1375 = vmatpush2.xpose.msra.mxu0 0.0
        %1376 = vmatprep.subr.mxu0 0.0
        %1377 = vmatpush2.xpose.msra.mxu0 0.0
        %1378 = vmatprep.subr.mxu0 0.0
        %1379 = vmatpush2.xpose.msra.mxu0 0.0
        %1380 = vmatprep.subr.mxu0 0.0
        %1381 = vmatpush2.xpose.msra.mxu0 0.0
        %1382 = vmatprep.subr.mxu0 0.0
        %1383 = vmatpush2.xpose.msra.mxu0 0.0
        %1384 = vmatprep.subr.mxu0 0.0
        %1385 = vmatpush2.xpose.msra.mxu0 0.0
        %1386 = vmatprep.subr.mxu0 0.0
        %1387 = vmatpush2.xpose.msra.mxu0 0.0
        %1388 = vmatprep.subr.mxu0 0.0
        %1389 = vmatpush2.xpose.msra.mxu0 0.0
        %1390 = vmatprep.subr.mxu0 0.0
        %1391 = vmatpush2.xpose.msra.mxu0 0.0
        %1392 = vmatprep.subr.mxu0 0.0
        %1393 = vmatpush2.xpose.msra.mxu0 0.0
        %1394 = vmatprep.subr.mxu0 0.0
        %1395 = vmatpush2.xpose.msra.mxu0 0.0
        %1396 = vmatprep.subr.mxu0 0.0
        %1397 = vmatpush2.xpose.msra.mxu0 0.0
        %1398 = vmatprep.subr.mxu0 0.0
        %1399 = vmatpush2.xpose.msra.mxu0 0.0
        %1400 = vmatprep.subr.mxu0 0.0
        %1401 = vmatpush2.xpose.msra.mxu0 0.0
        %1402 = vmatprep.subr.mxu0 0.0
        %1403 = vmatpush2.xpose.msra.mxu0 0.0
        %1404 = vmatprep.subr.mxu0 0.0
        %1405 = vmatpush2.xpose.msra.mxu0 0.0
        %1406 = vmatprep.mubr.f32.mxu0 0.0
        %1407 = vmatmul.mubr.f32.gmra.mxu0 %v1338
        %v1408 = vpop.f32.mrf.mxu0
        %v1409 = vadd.f32 0.0, %v1408
        %v1410 = vpop.f32.mrf.mxu0
        %1411 = vdwg.mxu0
        %v1412 = vmul.f32 %v1409, 0.35355338
        %v1414 = vlaneseq
        %v1415 = vshrl.u32 %v1414, 7
        %v1416 = vsub.s32 0, %v1415
        %v1417 = vrot.slane %v1171, %v1416
        %v1419 = vadd.f32 %v1412, %v1417
        %v1420 = vsel %vm1336, %v1419, -inf
        %1421 = vmax.xlane.f32.xlu0 %v1420
        %v1422 = vpop.xlane.xlu0 %1421
        %v1423 = vsub.f32 %v1419, %v1422
        %v1424 = vmul.f32 %v1423, 1.442695
        %v1425 = vpow.pop %v1424
        %v1426 = vsel %vm1336, %v1425, 0.0
        %1427 = vadd.xlane.f32.xlu0 %v1426
        %v1428 = vpop.xlane.xlu0 %1427
        %v1429 = vrcp.pop %v1428
        %v1430 = vmul.f32 %v1425, %v1429
        %1431 = vst.msk [vmem:[%s1115] sm:$0xff] %vm1336, %v1430
        %v1432 = vadd.f32 %v1430, 0.0
        %1433 = vrot.lane.b32.xlu0 %v1326, 64
        %v1434 = vpop.permute.xlu0 %1433
        %v1437 = vsel %vm1336, %v1430, 0
        %1439 = vmatprep.subr.mxu0 0.0
        %1440 = vmatpush1.msra.mxu0 0.0
        %1441 = vmatprep.subr.mxu0 0.0
        %1442 = vmatpush1.msra.mxu0 0.0
        %1443 = vmatprep.subr.mxu0 0.0
        %1444 = vmatpush1.msra.mxu0 0.0
        %1445 = vmatprep.subr.mxu0 0.0
        %1446 = vmatpush1.msra.mxu0 0.0
        %1447 = vmatprep.subr.mxu0 0.0
        %1448 = vmatpush1.msra.mxu0 0.0
        %1449 = vmatprep.subr.mxu0 0.0
        %1450 = vmatpush1.msra.mxu0 0.0
        %1451 = vmatprep.subr.mxu0 0.0
        %1452 = vmatpush1.msra.mxu0 0.0
        %1453 = vmatprep.subr.mxu0 0.0
        %1454 = vmatpush1.msra.mxu0 0.0
        %1455 = vmatprep.subr.mxu0 0.0
        %1456 = vmatpush1.msra.mxu0 0.0
        %1457 = vmatprep.subr.mxu0 0.0
        %1458 = vmatpush1.msra.mxu0 0.0
        %1459 = vmatprep.subr.mxu0 0.0
        %1460 = vmatpush1.msra.mxu0 0.0
        %1461 = vmatprep.subr.mxu0 0.0
        %1462 = vmatpush1.msra.mxu0 0.0
        %1463 = vmatprep.subr.mxu0 0.0
        %1464 = vmatpush1.msra.mxu0 0.0
        %1465 = vmatprep.subr.mxu0 0.0
        %1466 = vmatpush1.msra.mxu0 0.0
        %1467 = vmatprep.subr.mxu0 0.0
        %1468 = vmatpush1.msra.mxu0 0.0
        %1469 = vmatprep.subr.mxu0 0.0
        %1470 = vmatpush1.msra.mxu0 %v1434
        %1471 = vmatprep.subr.mxu0 0.0
        %1472 = vmatpush2.msra.mxu0 0.0
        %1473 = vmatprep.subr.mxu0 0.0
        %1474 = vmatpush2.msra.mxu0 0.0
        %1475 = vmatprep.subr.mxu0 0.0
        %1476 = vmatpush2.msra.mxu0 0.0
        %1477 = vmatprep.subr.mxu0 0.0
        %1478 = vmatpush2.msra.mxu0 0.0
        %1479 = vmatprep.subr.mxu0 0.0
        %1480 = vmatpush2.msra.mxu0 0.0
        %1481 = vmatprep.subr.mxu0 0.0
        %1482 = vmatpush2.msra.mxu0 0.0
        %1483 = vmatprep.subr.mxu0 0.0
        %1484 = vmatpush2.msra.mxu0 0.0
        %1485 = vmatprep.subr.mxu0 0.0
        %1486 = vmatpush2.msra.mxu0 0.0
        %1487 = vmatprep.subr.mxu0 0.0
        %1488 = vmatpush2.msra.mxu0 0.0
        %1489 = vmatprep.subr.mxu0 0.0
        %1490 = vmatpush2.msra.mxu0 0.0
        %1491 = vmatprep.subr.mxu0 0.0
        %1492 = vmatpush2.msra.mxu0 0.0
        %1493 = vmatprep.subr.mxu0 0.0
        %1494 = vmatpush2.msra.mxu0 0.0
        %1495 = vmatprep.subr.mxu0 0.0
        %1496 = vmatpush2.msra.mxu0 0.0
        %1497 = vmatprep.subr.mxu0 0.0
        %1498 = vmatpush2.msra.mxu0 0.0
        %1499 = vmatprep.subr.mxu0 0.0
        %1500 = vmatpush2.msra.mxu0 0.0
        %1501 = vmatprep.subr.mxu0 0.0
        %1502 = vmatpush2.msra.mxu0 0.0
        %1503 = vmatprep.mubr.f32.mxu0 0.0
        %1504 = vmatmul.mubr.f32.gmra.mxu0 %v1437
        %v1505 = vpop.f32.mrf.mxu0
        %v1506 = vadd.f32 0.0, %v1505
        %v1507 = vpop.f32.mrf.mxu0
        %1508 = vdwg.mxu0
        %1509 = vrot.lane.b32.xlu0 %v1249, 120
        %v1510 = vpop.permute.xlu0 %1509
        %1511 = vrot.lane.b32.xlu0 %v1326, 88
        %v1512 = vpop.permute.xlu0 %1511
        %v1513 = vsel %vm1336, %v1510, 0
        %v1515 = vsel %vm1336, %v1512, 0
        %1517 = vmatprep.subr.mxu0 0.0
        %1518 = vmatpush1.xpose.msra.mxu0 0.0
        %1519 = vmatprep.subr.mxu0 0.0
        %1520 = vmatpush1.xpose.msra.mxu0 0.0
        %1521 = vmatprep.subr.mxu0 0.0
        %1522 = vmatpush1.xpose.msra.mxu0 0.0
        %1523 = vmatprep.subr.mxu0 0.0
        %1524 = vmatpush1.xpose.msra.mxu0 0.0
        %1525 = vmatprep.subr.mxu0 0.0
        %1526 = vmatpush1.xpose.msra.mxu0 0.0
        %1527 = vmatprep.subr.mxu0 0.0
        %1528 = vmatpush1.xpose.msra.mxu0 0.0
        %1529 = vmatprep.subr.mxu0 0.0
        %1530 = vmatpush1.xpose.msra.mxu0 0.0
        %1531 = vmatprep.subr.mxu0 0.0
        %1532 = vmatpush1.xpose.msra.mxu0 0.0
        %1533 = vmatprep.subr.mxu0 0.0
        %1534 = vmatpush1.xpose.msra.mxu0 0.0
        %1535 = vmatprep.subr.mxu0 0.0
        %1536 = vmatpush1.xpose.msra.mxu0 0.0
        %1537 = vmatprep.subr.mxu0 0.0
        %1538 = vmatpush1.xpose.msra.mxu0 0.0
        %1539 = vmatprep.subr.mxu0 0.0
        %1540 = vmatpush1.xpose.msra.mxu0 0.0
        %1541 = vmatprep.subr.mxu0 0.0
        %1542 = vmatpush1.xpose.msra.mxu0 0.0
        %1543 = vmatprep.subr.mxu0 0.0
        %1544 = vmatpush1.xpose.msra.mxu0 0.0
        %1545 = vmatprep.subr.mxu0 0.0
        %1546 = vmatpush1.xpose.msra.mxu0 0.0
        %1547 = vmatprep.subr.mxu0 0.0
        %1548 = vmatpush1.xpose.msra.mxu0 %v1515
        %1549 = vmatprep.subr.mxu0 0.0
        %1550 = vmatpush2.xpose.msra.mxu0 0.0
        %1551 = vmatprep.subr.mxu0 0.0
        %1552 = vmatpush2.xpose.msra.mxu0 0.0
        %1553 = vmatprep.subr.mxu0 0.0
        %1554 = vmatpush2.xpose.msra.mxu0 0.0
        %1555 = vmatprep.subr.mxu0 0.0
        %1556 = vmatpush2.xpose.msra.mxu0 0.0
        %1557 = vmatprep.subr.mxu0 0.0
        %1558 = vmatpush2.xpose.msra.mxu0 0.0
        %1559 = vmatprep.subr.mxu0 0.0
        %1560 = vmatpush2.xpose.msra.mxu0 0.0
        %1561 = vmatprep.subr.mxu0 0.0
        %1562 = vmatpush2.xpose.msra.mxu0 0.0
        %1563 = vmatprep.subr.mxu0 0.0
        %1564 = vmatpush2.xpose.msra.mxu0 0.0
        %1565 = vmatprep.subr.mxu0 0.0
        %1566 = vmatpush2.xpose.msra.mxu0 0.0
        %1567 = vmatprep.subr.mxu0 0.0
        %1568 = vmatpush2.xpose.msra.mxu0 0.0
        %1569 = vmatprep.subr.mxu0 0.0
        %1570 = vmatpush2.xpose.msra.mxu0 0.0
        %1571 = vmatprep.subr.mxu0 0.0
        %1572 = vmatpush2.xpose.msra.mxu0 0.0
        %1573 = vmatprep.subr.mxu0 0.0
        %1574 = vmatpush2.xpose.msra.mxu0 0.0
        %1575 = vmatprep.subr.mxu0 0.0
        %1576 = vmatpush2.xpose.msra.mxu0 0.0
        %1577 = vmatprep.subr.mxu0 0.0
        %1578 = vmatpush2.xpose.msra.mxu0 0.0
        %1579 = vmatprep.subr.mxu0 0.0
        %1580 = vmatpush2.xpose.msra.mxu0 0.0
        %1581 = vmatprep.mubr.f32.mxu0 0.0
        %1582 = vmatmul.mubr.f32.gmra.mxu0 %v1513
        %v1583 = vpop.f32.mrf.mxu0
        %v1584 = vadd.f32 0.0, %v1583
        %v1585 = vpop.f32.mrf.mxu0
        %1586 = vdwg.mxu0
        %v1587 = vmul.f32 %v1584, 0.35355338
        %v1588 = vadd.f32 %v1587, %v1417
        %v1589 = vsel %vm1336, %v1588, -inf
        %1590 = vmax.xlane.f32.xlu0 %v1589
        %v1591 = vpop.xlane.xlu0 %1590
        %v1592 = vsub.f32 %v1588, %v1591
        %v1593 = vmul.f32 %v1592, 1.442695
        %v1594 = vpow.pop %v1593
        %v1595 = vsel %vm1336, %v1594, 0.0
        %1596 = vadd.xlane.f32.xlu0 %v1595
        %v1597 = vpop.xlane.xlu0 %1596
        %v1598 = vrcp.pop %v1597
        %v1599 = vmul.f32 %v1594, %v1598
        %s1600 = scalar_lea.vmem %s1115, 8 [#allocation29]
        %1601 = vst.msk [vmem:[%s1600] sm:$0xff] %vm1336, %v1599
        %v1602 = vadd.f32 %v1432, %v1599
        %1603 = vrot.lane.b32.xlu0 %v1326, 56
        %v1604 = vpop.permute.xlu0 %1603
        %v1607 = vsel %vm1336, %v1599, 0
        %1609 = vmatprep.subr.mxu0 0.0
        %1610 = vmatpush1.msra.mxu0 0.0
        %1611 = vmatprep.subr.mxu0 0.0
        %1612 = vmatpush1.msra.mxu0 0.0
        %1613 = vmatprep.subr.mxu0 0.0
        %1614 = vmatpush1.msra.mxu0 0.0
        %1615 = vmatprep.subr.mxu0 0.0
        %1616 = vmatpush1.msra.mxu0 0.0
        %1617 = vmatprep.subr.mxu0 0.0
        %1618 = vmatpush1.msra.mxu0 0.0
        %1619 = vmatprep.subr.mxu0 0.0
        %1620 = vmatpush1.msra.mxu0 0.0
        %1621 = vmatprep.subr.mxu0 0.0
        %1622 = vmatpush1.msra.mxu0 0.0
        %1623 = vmatprep.subr.mxu0 0.0
        %1624 = vmatpush1.msra.mxu0 0.0
        %1625 = vmatprep.subr.mxu0 0.0
        %1626 = vmatpush1.msra.mxu0 0.0
        %1627 = vmatprep.subr.mxu0 0.0
        %1628 = vmatpush1.msra.mxu0 0.0
        %1629 = vmatprep.subr.mxu0 0.0
        %1630 = vmatpush1.msra.mxu0 0.0
        %1631 = vmatprep.subr.mxu0 0.0
        %1632 = vmatpush1.msra.mxu0 0.0
        %1633 = vmatprep.subr.mxu0 0.0
        %1634 = vmatpush1.msra.mxu0 0.0
        %1635 = vmatprep.subr.mxu0 0.0
        %1636 = vmatpush1.msra.mxu0 0.0
        %1637 = vmatprep.subr.mxu0 0.0
        %1638 = vmatpush1.msra.mxu0 0.0
        %1639 = vmatprep.subr.mxu0 0.0
        %1640 = vmatpush1.msra.mxu0 %v1604
        %1641 = vmatprep.subr.mxu0 0.0
        %1642 = vmatpush2.msra.mxu0 0.0
        %1643 = vmatprep.subr.mxu0 0.0
        %1644 = vmatpush2.msra.mxu0 0.0
        %1645 = vmatprep.subr.mxu0 0.0
        %1646 = vmatpush2.msra.mxu0 0.0
        %1647 = vmatprep.subr.mxu0 0.0
        %1648 = vmatpush2.msra.mxu0 0.0
        %1649 = vmatprep.subr.mxu0 0.0
        %1650 = vmatpush2.msra.mxu0 0.0
        %1651 = vmatprep.subr.mxu0 0.0
        %1652 = vmatpush2.msra.mxu0 0.0
        %1653 = vmatprep.subr.mxu0 0.0
        %1654 = vmatpush2.msra.mxu0 0.0
        %1655 = vmatprep.subr.mxu0 0.0
        %1656 = vmatpush2.msra.mxu0 0.0
        %1657 = vmatprep.subr.mxu0 0.0
        %1658 = vmatpush2.msra.mxu0 0.0
        %1659 = vmatprep.subr.mxu0 0.0
        %1660 = vmatpush2.msra.mxu0 0.0
        %1661 = vmatprep.subr.mxu0 0.0
        %1662 = vmatpush2.msra.mxu0 0.0
        %1663 = vmatprep.subr.mxu0 0.0
        %1664 = vmatpush2.msra.mxu0 0.0
        %1665 = vmatprep.subr.mxu0 0.0
        %1666 = vmatpush2.msra.mxu0 0.0
        %1667 = vmatprep.subr.mxu0 0.0
        %1668 = vmatpush2.msra.mxu0 0.0
        %1669 = vmatprep.subr.mxu0 0.0
        %1670 = vmatpush2.msra.mxu0 0.0
        %1671 = vmatprep.subr.mxu0 0.0
        %1672 = vmatpush2.msra.mxu0 0.0
        %1673 = vmatprep.mubr.f32.mxu0 0.0
        %1674 = vmatmul.mubr.f32.gmra.mxu0 %v1607
        %v1675 = vpop.f32.mrf.mxu0
        %v1676 = vadd.f32 0.0, %v1675
        %v1677 = vpop.f32.mrf.mxu0
        %1678 = vdwg.mxu0
        %v1680 = vsel %vm1336, %v1676, 0
        %1682 = vmatprep.subr.mxu0 0.0
        %1683 = vmatpush1.msra.mxu0 0.0
        %1684 = vmatprep.subr.mxu0 0.0
        %1685 = vmatpush1.msra.mxu0 0.0
        %1686 = vmatprep.subr.mxu0 0.0
        %1687 = vmatpush1.msra.mxu0 0.0
        %1688 = vmatprep.subr.mxu0 0.0
        %1689 = vmatpush1.msra.mxu0 0.0
        %1690 = vmatprep.subr.mxu0 0.0
        %1691 = vmatpush1.msra.mxu0 0.0
        %1692 = vmatprep.subr.mxu0 0.0
        %1693 = vmatpush1.msra.mxu0 0.0
        %1694 = vmatprep.subr.mxu0 0.0
        %1695 = vmatpush1.msra.mxu0 0.0
        %1696 = vmatprep.subr.mxu0 0.0
        %1697 = vmatpush1.msra.mxu0 0.0
        %1698 = vmatprep.subr.mxu0 0.0
        %1699 = vmatpush1.msra.mxu0 0.0
        %1700 = vmatprep.subr.mxu0 0.0
        %1701 = vmatpush1.msra.mxu0 0.0
        %1702 = vmatprep.subr.mxu0 0.0
        %1703 = vmatpush1.msra.mxu0 0.0
        %1704 = vmatprep.subr.mxu0 0.0
        %1705 = vmatpush1.msra.mxu0 0.0
        %1706 = vmatprep.subr.mxu0 0.0
        %1707 = vmatpush1.msra.mxu0 0.0
        %1708 = vmatprep.subr.mxu0 0.0
        %1709 = vmatpush1.msra.mxu0 0.0
        %1710 = vmatprep.subr.mxu0 0.0
        %1711 = vmatpush1.msra.mxu0 0.0
        %1712 = vmatprep.subr.mxu0 0.0
        %1713 = vmatpush1.msra.mxu0 %v1330
        %1714 = vmatprep.subr.mxu0 0.0
        %1715 = vmatpush2.msra.mxu0 0.0
        %1716 = vmatprep.subr.mxu0 0.0
        %1717 = vmatpush2.msra.mxu0 0.0
        %1718 = vmatprep.subr.mxu0 0.0
        %1719 = vmatpush2.msra.mxu0 0.0
        %1720 = vmatprep.subr.mxu0 0.0
        %1721 = vmatpush2.msra.mxu0 0.0
        %1722 = vmatprep.subr.mxu0 0.0
        %1723 = vmatpush2.msra.mxu0 0.0
        %1724 = vmatprep.subr.mxu0 0.0
        %1725 = vmatpush2.msra.mxu0 0.0
        %1726 = vmatprep.subr.mxu0 0.0
        %1727 = vmatpush2.msra.mxu0 0.0
        %1728 = vmatprep.subr.mxu0 0.0
        %1729 = vmatpush2.msra.mxu0 0.0
        %1730 = vmatprep.subr.mxu0 0.0
        %1731 = vmatpush2.msra.mxu0 0.0
        %1732 = vmatprep.subr.mxu0 0.0
        %1733 = vmatpush2.msra.mxu0 0.0
        %1734 = vmatprep.subr.mxu0 0.0
        %1735 = vmatpush2.msra.mxu0 0.0
        %1736 = vmatprep.subr.mxu0 0.0
        %1737 = vmatpush2.msra.mxu0 0.0
        %1738 = vmatprep.subr.mxu0 0.0
        %1739 = vmatpush2.msra.mxu0 0.0
        %1740 = vmatprep.subr.mxu0 0.0
        %1741 = vmatpush2.msra.mxu0 0.0
        %1742 = vmatprep.subr.mxu0 0.0
        %1743 = vmatpush2.msra.mxu0 0.0
        %1744 = vmatprep.subr.mxu0 0.0
        %1745 = vmatpush2.msra.mxu0 0.0
        %1746 = vmatprep.mubr.f32.mxu0 0.0
        %1747 = vmatmul.mubr.f32.gmra.mxu0 %v1680
        %v1748 = vpop.f32.mrf.mxu0
        %v1749 = vadd.f32 0.0, %v1748
        %v1750 = vpop.f32.mrf.mxu0
        %1751 = vdwg.mxu0
        %v1753 = vsel %vm1336, %v1506, 0
        %1755 = vmatprep.subr.mxu0 0.0
        %1756 = vmatpush1.msra.mxu0 0.0
        %1757 = vmatprep.subr.mxu0 0.0
        %1758 = vmatpush1.msra.mxu0 0.0
        %1759 = vmatprep.subr.mxu0 0.0
        %1760 = vmatpush1.msra.mxu0 0.0
        %1761 = vmatprep.subr.mxu0 0.0
        %1762 = vmatpush1.msra.mxu0 0.0
        %1763 = vmatprep.subr.mxu0 0.0
        %1764 = vmatpush1.msra.mxu0 0.0
        %1765 = vmatprep.subr.mxu0 0.0
        %1766 = vmatpush1.msra.mxu0 0.0
        %1767 = vmatprep.subr.mxu0 0.0
        %1768 = vmatpush1.msra.mxu0 0.0
        %1769 = vmatprep.subr.mxu0 0.0
        %1770 = vmatpush1.msra.mxu0 0.0
        %1771 = vmatprep.subr.mxu0 0.0
        %1772 = vmatpush1.msra.mxu0 0.0
        %1773 = vmatprep.subr.mxu0 0.0
        %1774 = vmatpush1.msra.mxu0 0.0
        %1775 = vmatprep.subr.mxu0 0.0
        %1776 = vmatpush1.msra.mxu0 0.0
        %1777 = vmatprep.subr.mxu0 0.0
        %1778 = vmatpush1.msra.mxu0 0.0
        %1779 = vmatprep.subr.mxu0 0.0
        %1780 = vmatpush1.msra.mxu0 0.0
        %1781 = vmatprep.subr.mxu0 0.0
        %1782 = vmatpush1.msra.mxu0 0.0
        %1783 = vmatprep.subr.mxu0 0.0
        %1784 = vmatpush1.msra.mxu0 0.0
        %1785 = vmatprep.subr.mxu0 0.0
        %1786 = vmatpush1.msra.mxu0 %v1329
        %1787 = vmatprep.subr.mxu0 0.0
        %1788 = vmatpush2.msra.mxu0 0.0
        %1789 = vmatprep.subr.mxu0 0.0
        %1790 = vmatpush2.msra.mxu0 0.0
        %1791 = vmatprep.subr.mxu0 0.0
        %1792 = vmatpush2.msra.mxu0 0.0
        %1793 = vmatprep.subr.mxu0 0.0
        %1794 = vmatpush2.msra.mxu0 0.0
        %1795 = vmatprep.subr.mxu0 0.0
        %1796 = vmatpush2.msra.mxu0 0.0
        %1797 = vmatprep.subr.mxu0 0.0
        %1798 = vmatpush2.msra.mxu0 0.0
        %1799 = vmatprep.subr.mxu0 0.0
        %1800 = vmatpush2.msra.mxu0 0.0
        %1801 = vmatprep.subr.mxu0 0.0
        %1802 = vmatpush2.msra.mxu0 0.0
        %1803 = vmatprep.subr.mxu0 0.0
        %1804 = vmatpush2.msra.mxu0 0.0
        %1805 = vmatprep.subr.mxu0 0.0
        %1806 = vmatpush2.msra.mxu0 0.0
        %1807 = vmatprep.subr.mxu0 0.0
        %1808 = vmatpush2.msra.mxu0 0.0
        %1809 = vmatprep.subr.mxu0 0.0
        %1810 = vmatpush2.msra.mxu0 0.0
        %1811 = vmatprep.subr.mxu0 0.0
        %1812 = vmatpush2.msra.mxu0 0.0
        %1813 = vmatprep.subr.mxu0 0.0
        %1814 = vmatpush2.msra.mxu0 0.0
        %1815 = vmatprep.subr.mxu0 0.0
        %1816 = vmatpush2.msra.mxu0 0.0
        %1817 = vmatprep.subr.mxu0 0.0
        %1818 = vmatpush2.msra.mxu0 0.0
        %1819 = vmatprep.mubr.f32.mxu0 0.0
        %1820 = vmatmul.mubr.f32.gmra.mxu0 %v1753
        %v1821 = vpop.f32.mrf.mxu0
        %v1822 = vadd.f32 %v1749, %v1821
        %v1823 = vpop.f32.mrf.mxu0
        %1824 = vdwg.mxu0
        %1825 = vrot.lane.b32.xlu0 %v1249, 112
        %v1826 = vpop.permute.xlu0 %1825
        %1827 = vrot.lane.b32.xlu0 %v1326, 80
        %v1828 = vpop.permute.xlu0 %1827
        %v1829 = vsel %vm1336, %v1826, 0
        %v1831 = vsel %vm1336, %v1828, 0
        %1833 = vmatprep.subr.mxu0 0.0
        %1834 = vmatpush1.xpose.msra.mxu0 0.0
        %1835 = vmatprep.subr.mxu0 0.0
        %1836 = vmatpush1.xpose.msra.mxu0 0.0
        %1837 = vmatprep.subr.mxu0 0.0
        %1838 = vmatpush1.xpose.msra.mxu0 0.0
        %1839 = vmatprep.subr.mxu0 0.0
        %1840 = vmatpush1.xpose.msra.mxu0 0.0
        %1841 = vmatprep.subr.mxu0 0.0
        %1842 = vmatpush1.xpose.msra.mxu0 0.0
        %1843 = vmatprep.subr.mxu0 0.0
        %1844 = vmatpush1.xpose.msra.mxu0 0.0
        %1845 = vmatprep.subr.mxu0 0.0
        %1846 = vmatpush1.xpose.msra.mxu0 0.0
        %1847 = vmatprep.subr.mxu0 0.0
        %1848 = vmatpush1.xpose.msra.mxu0 0.0
        %1849 = vmatprep.subr.mxu0 0.0
        %1850 = vmatpush1.xpose.msra.mxu0 0.0
        %1851 = vmatprep.subr.mxu0 0.0
        %1852 = vmatpush1.xpose.msra.mxu0 0.0
        %1853 = vmatprep.subr.mxu0 0.0
        %1854 = vmatpush1.xpose.msra.mxu0 0.0
        %1855 = vmatprep.subr.mxu0 0.0
        %1856 = vmatpush1.xpose.msra.mxu0 0.0
        %1857 = vmatprep.subr.mxu0 0.0
        %1858 = vmatpush1.xpose.msra.mxu0 0.0
        %1859 = vmatprep.subr.mxu0 0.0
        %1860 = vmatpush1.xpose.msra.mxu0 0.0
        %1861 = vmatprep.subr.mxu0 0.0
        %1862 = vmatpush1.xpose.msra.mxu0 0.0
        %1863 = vmatprep.subr.mxu0 0.0
        %1864 = vmatpush1.xpose.msra.mxu0 %v1831
        %1865 = vmatprep.subr.mxu0 0.0
        %1866 = vmatpush2.xpose.msra.mxu0 0.0
        %1867 = vmatprep.subr.mxu0 0.0
        %1868 = vmatpush2.xpose.msra.mxu0 0.0
        %1869 = vmatprep.subr.mxu0 0.0
        %1870 = vmatpush2.xpose.msra.mxu0 0.0
        %1871 = vmatprep.subr.mxu0 0.0
        %1872 = vmatpush2.xpose.msra.mxu0 0.0
        %1873 = vmatprep.subr.mxu0 0.0
        %1874 = vmatpush2.xpose.msra.mxu0 0.0
        %1875 = vmatprep.subr.mxu0 0.0
        %1876 = vmatpush2.xpose.msra.mxu0 0.0
        %1877 = vmatprep.subr.mxu0 0.0
        %1878 = vmatpush2.xpose.msra.mxu0 0.0
        %1879 = vmatprep.subr.mxu0 0.0
        %1880 = vmatpush2.xpose.msra.mxu0 0.0
        %1881 = vmatprep.subr.mxu0 0.0
        %1882 = vmatpush2.xpose.msra.mxu0 0.0
        %1883 = vmatprep.subr.mxu0 0.0
        %1884 = vmatpush2.xpose.msra.mxu0 0.0
        %1885 = vmatprep.subr.mxu0 0.0
        %1886 = vmatpush2.xpose.msra.mxu0 0.0
        %1887 = vmatprep.subr.mxu0 0.0
        %1888 = vmatpush2.xpose.msra.mxu0 0.0
        %1889 = vmatprep.subr.mxu0 0.0
        %1890 = vmatpush2.xpose.msra.mxu0 0.0
        %1891 = vmatprep.subr.mxu0 0.0
        %1892 = vmatpush2.xpose.msra.mxu0 0.0
        %1893 = vmatprep.subr.mxu0 0.0
        %1894 = vmatpush2.xpose.msra.mxu0 0.0
        %1895 = vmatprep.subr.mxu0 0.0
        %1896 = vmatpush2.xpose.msra.mxu0 0.0
        %1897 = vmatprep.mubr.f32.mxu0 0.0
        %1898 = vmatmul.mubr.f32.gmra.mxu0 %v1829
        %v1899 = vpop.f32.mrf.mxu0
        %v1900 = vadd.f32 0.0, %v1899
        %v1901 = vpop.f32.mrf.mxu0
        %1902 = vdwg.mxu0
        %v1903 = vmul.f32 %v1900, 0.35355338
        %v1904 = vadd.f32 %v1903, %v1417
        %v1905 = vsel %vm1336, %v1904, -inf
        %1906 = vmax.xlane.f32.xlu0 %v1905
        %v1907 = vpop.xlane.xlu0 %1906
        %v1908 = vsub.f32 %v1904, %v1907
        %v1909 = vmul.f32 %v1908, 1.442695
        %v1910 = vpow.pop %v1909
        %v1911 = vsel %vm1336, %v1910, 0.0
        %1912 = vadd.xlane.f32.xlu0 %v1911
        %v1913 = vpop.xlane.xlu0 %1912
        %v1914 = vrcp.pop %v1913
        %v1915 = vmul.f32 %v1910, %v1914
        %s1916 = scalar_lea.vmem %s1115, 16 [#allocation29]
        %1917 = vst.msk [vmem:[%s1916] sm:$0xff] %vm1336, %v1915
        %v1918 = vadd.f32 %v1602, %v1915
        %1919 = vrot.lane.b32.xlu0 %v1326, 48
        %v1920 = vpop.permute.xlu0 %1919
        %v1923 = vsel %vm1336, %v1915, 0
        %1925 = vmatprep.subr.mxu0 0.0
        %1926 = vmatpush1.msra.mxu0 0.0
        %1927 = vmatprep.subr.mxu0 0.0
        %1928 = vmatpush1.msra.mxu0 0.0
        %1929 = vmatprep.subr.mxu0 0.0
        %1930 = vmatpush1.msra.mxu0 0.0
        %1931 = vmatprep.subr.mxu0 0.0
        %1932 = vmatpush1.msra.mxu0 0.0
        %1933 = vmatprep.subr.mxu0 0.0
        %1934 = vmatpush1.msra.mxu0 0.0
        %1935 = vmatprep.subr.mxu0 0.0
        %1936 = vmatpush1.msra.mxu0 0.0
        %1937 = vmatprep.subr.mxu0 0.0
        %1938 = vmatpush1.msra.mxu0 0.0
        %1939 = vmatprep.subr.mxu0 0.0
        %1940 = vmatpush1.msra.mxu0 0.0
        %1941 = vmatprep.subr.mxu0 0.0
        %1942 = vmatpush1.msra.mxu0 0.0
        %1943 = vmatprep.subr.mxu0 0.0
        %1944 = vmatpush1.msra.mxu0 0.0
        %1945 = vmatprep.subr.mxu0 0.0
        %1946 = vmatpush1.msra.mxu0 0.0
        %1947 = vmatprep.subr.mxu0 0.0
        %1948 = vmatpush1.msra.mxu0 0.0
        %1949 = vmatprep.subr.mxu0 0.0
        %1950 = vmatpush1.msra.mxu0 0.0
        %1951 = vmatprep.subr.mxu0 0.0
        %1952 = vmatpush1.msra.mxu0 0.0
        %1953 = vmatprep.subr.mxu0 0.0
        %1954 = vmatpush1.msra.mxu0 0.0
        %1955 = vmatprep.subr.mxu0 0.0
        %1956 = vmatpush1.msra.mxu0 %v1920
        %1957 = vmatprep.subr.mxu0 0.0
        %1958 = vmatpush2.msra.mxu0 0.0
        %1959 = vmatprep.subr.mxu0 0.0
        %1960 = vmatpush2.msra.mxu0 0.0
        %1961 = vmatprep.subr.mxu0 0.0
        %1962 = vmatpush2.msra.mxu0 0.0
        %1963 = vmatprep.subr.mxu0 0.0
        %1964 = vmatpush2.msra.mxu0 0.0
        %1965 = vmatprep.subr.mxu0 0.0
        %1966 = vmatpush2.msra.mxu0 0.0
        %1967 = vmatprep.subr.mxu0 0.0
        %1968 = vmatpush2.msra.mxu0 0.0
        %1969 = vmatprep.subr.mxu0 0.0
        %1970 = vmatpush2.msra.mxu0 0.0
        %1971 = vmatprep.subr.mxu0 0.0
        %1972 = vmatpush2.msra.mxu0 0.0
        %1973 = vmatprep.subr.mxu0 0.0
        %1974 = vmatpush2.msra.mxu0 0.0
        %1975 = vmatprep.subr.mxu0 0.0
        %1976 = vmatpush2.msra.mxu0 0.0
        %1977 = vmatprep.subr.mxu0 0.0
        %1978 = vmatpush2.msra.mxu0 0.0
        %1979 = vmatprep.subr.mxu0 0.0
        %1980 = vmatpush2.msra.mxu0 0.0
        %1981 = vmatprep.subr.mxu0 0.0
        %1982 = vmatpush2.msra.mxu0 0.0
        %1983 = vmatprep.subr.mxu0 0.0
        %1984 = vmatpush2.msra.mxu0 0.0
        %1985 = vmatprep.subr.mxu0 0.0
        %1986 = vmatpush2.msra.mxu0 0.0
        %1987 = vmatprep.subr.mxu0 0.0
        %1988 = vmatpush2.msra.mxu0 0.0
        %1989 = vmatprep.mubr.f32.mxu0 0.0
        %1990 = vmatmul.mubr.f32.gmra.mxu0 %v1923
        %v1991 = vpop.f32.mrf.mxu0
        %v1992 = vadd.f32 0.0, %v1991
        %v1993 = vpop.f32.mrf.mxu0
        %1994 = vdwg.mxu0
        %v1996 = vsel %vm1336, %v1992, 0
        %1998 = vmatprep.subr.mxu0 0.0
        %1999 = vmatpush1.msra.mxu0 0.0
        %2000 = vmatprep.subr.mxu0 0.0
        %2001 = vmatpush1.msra.mxu0 0.0
        %2002 = vmatprep.subr.mxu0 0.0
        %2003 = vmatpush1.msra.mxu0 0.0
        %2004 = vmatprep.subr.mxu0 0.0
        %2005 = vmatpush1.msra.mxu0 0.0
        %2006 = vmatprep.subr.mxu0 0.0
        %2007 = vmatpush1.msra.mxu0 0.0
        %2008 = vmatprep.subr.mxu0 0.0
        %2009 = vmatpush1.msra.mxu0 0.0
        %2010 = vmatprep.subr.mxu0 0.0
        %2011 = vmatpush1.msra.mxu0 0.0
        %2012 = vmatprep.subr.mxu0 0.0
        %2013 = vmatpush1.msra.mxu0 0.0
        %2014 = vmatprep.subr.mxu0 0.0
        %2015 = vmatpush1.msra.mxu0 0.0
        %2016 = vmatprep.subr.mxu0 0.0
        %2017 = vmatpush1.msra.mxu0 0.0
        %2018 = vmatprep.subr.mxu0 0.0
        %2019 = vmatpush1.msra.mxu0 0.0
        %2020 = vmatprep.subr.mxu0 0.0
        %2021 = vmatpush1.msra.mxu0 0.0
        %2022 = vmatprep.subr.mxu0 0.0
        %2023 = vmatpush1.msra.mxu0 0.0
        %2024 = vmatprep.subr.mxu0 0.0
        %2025 = vmatpush1.msra.mxu0 0.0
        %2026 = vmatprep.subr.mxu0 0.0
        %2027 = vmatpush1.msra.mxu0 0.0
        %2028 = vmatprep.subr.mxu0 0.0
        %2029 = vmatpush1.msra.mxu0 %v1331
        %2030 = vmatprep.subr.mxu0 0.0
        %2031 = vmatpush2.msra.mxu0 0.0
        %2032 = vmatprep.subr.mxu0 0.0
        %2033 = vmatpush2.msra.mxu0 0.0
        %2034 = vmatprep.subr.mxu0 0.0
        %2035 = vmatpush2.msra.mxu0 0.0
        %2036 = vmatprep.subr.mxu0 0.0
        %2037 = vmatpush2.msra.mxu0 0.0
        %2038 = vmatprep.subr.mxu0 0.0
        %2039 = vmatpush2.msra.mxu0 0.0
        %2040 = vmatprep.subr.mxu0 0.0
        %2041 = vmatpush2.msra.mxu0 0.0
        %2042 = vmatprep.subr.mxu0 0.0
        %2043 = vmatpush2.msra.mxu0 0.0
        %2044 = vmatprep.subr.mxu0 0.0
        %2045 = vmatpush2.msra.mxu0 0.0
        %2046 = vmatprep.subr.mxu0 0.0
        %2047 = vmatpush2.msra.mxu0 0.0
        %2048 = vmatprep.subr.mxu0 0.0
        %2049 = vmatpush2.msra.mxu0 0.0
        %2050 = vmatprep.subr.mxu0 0.0
        %2051 = vmatpush2.msra.mxu0 0.0
        %2052 = vmatprep.subr.mxu0 0.0
        %2053 = vmatpush2.msra.mxu0 0.0
        %2054 = vmatprep.subr.mxu0 0.0
        %2055 = vmatpush2.msra.mxu0 0.0
        %2056 = vmatprep.subr.mxu0 0.0
        %2057 = vmatpush2.msra.mxu0 0.0
        %2058 = vmatprep.subr.mxu0 0.0
        %2059 = vmatpush2.msra.mxu0 0.0
        %2060 = vmatprep.subr.mxu0 0.0
        %2061 = vmatpush2.msra.mxu0 0.0
        %2062 = vmatprep.mubr.f32.mxu0 0.0
        %2063 = vmatmul.mubr.f32.gmra.mxu0 %v1996
        %v2064 = vpop.f32.mrf.mxu0
        %v2065 = vadd.f32 0.0, %v2064
        %v2066 = vpop.f32.mrf.mxu0
        %2067 = vdwg.mxu0
        %v2068 = vadd.f32 %v1822, %v2065
        %2069 = vrot.lane.b32.xlu0 %v1249, 104
        %v2070 = vpop.permute.xlu0 %2069
        %2071 = vrot.lane.b32.xlu0 %v1326, 72
        %v2072 = vpop.permute.xlu0 %2071
        %v2073 = vsel %vm1336, %v2070, 0
        %v2075 = vsel %vm1336, %v2072, 0
        %2077 = vmatprep.subr.mxu0 0.0
        %2078 = vmatpush1.xpose.msra.mxu0 0.0
        %2079 = vmatprep.subr.mxu0 0.0
        %2080 = vmatpush1.xpose.msra.mxu0 0.0
        %2081 = vmatprep.subr.mxu0 0.0
        %2082 = vmatpush1.xpose.msra.mxu0 0.0
        %2083 = vmatprep.subr.mxu0 0.0
        %2084 = vmatpush1.xpose.msra.mxu0 0.0
        %2085 = vmatprep.subr.mxu0 0.0
        %2086 = vmatpush1.xpose.msra.mxu0 0.0
        %2087 = vmatprep.subr.mxu0 0.0
        %2088 = vmatpush1.xpose.msra.mxu0 0.0
        %2089 = vmatprep.subr.mxu0 0.0
        %2090 = vmatpush1.xpose.msra.mxu0 0.0
        %2091 = vmatprep.subr.mxu0 0.0
        %2092 = vmatpush1.xpose.msra.mxu0 0.0
        %2093 = vmatprep.subr.mxu0 0.0
        %2094 = vmatpush1.xpose.msra.mxu0 0.0
        %2095 = vmatprep.subr.mxu0 0.0
        %2096 = vmatpush1.xpose.msra.mxu0 0.0
        %2097 = vmatprep.subr.mxu0 0.0
        %2098 = vmatpush1.xpose.msra.mxu0 0.0
        %2099 = vmatprep.subr.mxu0 0.0
        %2100 = vmatpush1.xpose.msra.mxu0 0.0
        %2101 = vmatprep.subr.mxu0 0.0
        %2102 = vmatpush1.xpose.msra.mxu0 0.0
        %2103 = vmatprep.subr.mxu0 0.0
        %2104 = vmatpush1.xpose.msra.mxu0 0.0
        %2105 = vmatprep.subr.mxu0 0.0
        %2106 = vmatpush1.xpose.msra.mxu0 0.0
        %2107 = vmatprep.subr.mxu0 0.0
        %2108 = vmatpush1.xpose.msra.mxu0 %v2075
        %2109 = vmatprep.subr.mxu0 0.0
        %2110 = vmatpush2.xpose.msra.mxu0 0.0
        %2111 = vmatprep.subr.mxu0 0.0
        %2112 = vmatpush2.xpose.msra.mxu0 0.0
        %2113 = vmatprep.subr.mxu0 0.0
        %2114 = vmatpush2.xpose.msra.mxu0 0.0
        %2115 = vmatprep.subr.mxu0 0.0
        %2116 = vmatpush2.xpose.msra.mxu0 0.0
        %2117 = vmatprep.subr.mxu0 0.0
        %2118 = vmatpush2.xpose.msra.mxu0 0.0
        %2119 = vmatprep.subr.mxu0 0.0
        %2120 = vmatpush2.xpose.msra.mxu0 0.0
        %2121 = vmatprep.subr.mxu0 0.0
        %2122 = vmatpush2.xpose.msra.mxu0 0.0
        %2123 = vmatprep.subr.mxu0 0.0
        %2124 = vmatpush2.xpose.msra.mxu0 0.0
        %2125 = vmatprep.subr.mxu0 0.0
        %2126 = vmatpush2.xpose.msra.mxu0 0.0
        %2127 = vmatprep.subr.mxu0 0.0
        %2128 = vmatpush2.xpose.msra.mxu0 0.0
        %2129 = vmatprep.subr.mxu0 0.0
        %2130 = vmatpush2.xpose.msra.mxu0 0.0
        %2131 = vmatprep.subr.mxu0 0.0
        %2132 = vmatpush2.xpose.msra.mxu0 0.0
        %2133 = vmatprep.subr.mxu0 0.0
        %2134 = vmatpush2.xpose.msra.mxu0 0.0
        %2135 = vmatprep.subr.mxu0 0.0
        %2136 = vmatpush2.xpose.msra.mxu0 0.0
        %2137 = vmatprep.subr.mxu0 0.0
        %2138 = vmatpush2.xpose.msra.mxu0 0.0
        %2139 = vmatprep.subr.mxu0 0.0
        %2140 = vmatpush2.xpose.msra.mxu0 0.0
        %2141 = vmatprep.mubr.f32.mxu0 0.0
        %2142 = vmatmul.mubr.f32.gmra.mxu0 %v2073
        %v2143 = vpop.f32.mrf.mxu0
        %v2144 = vadd.f32 0.0, %v2143
        %v2145 = vpop.f32.mrf.mxu0
        %2146 = vdwg.mxu0
        %v2147 = vmul.f32 %v2144, 0.35355338
        %v2148 = vadd.f32 %v2147, %v1417
        %v2149 = vsel %vm1336, %v2148, -inf
        %2150 = vmax.xlane.f32.xlu0 %v2149
        %v2151 = vpop.xlane.xlu0 %2150
        %v2152 = vsub.f32 %v2148, %v2151
        %v2153 = vmul.f32 %v2152, 1.442695
        %v2154 = vpow.pop %v2153
        %v2155 = vsel %vm1336, %v2154, 0.0
        %2156 = vadd.xlane.f32.xlu0 %v2155
        %v2157 = vpop.xlane.xlu0 %2156
        %v2158 = vrcp.pop %v2157
        %v2159 = vmul.f32 %v2154, %v2158
        %s2160 = scalar_lea.vmem %s1115, 24 [#allocation29]
        %2161 = vst.msk [vmem:[%s2160] sm:$0xff] %vm1336, %v2159
        %v2162 = vadd.f32 %v1918, %v2159
        %2163 = vrot.lane.b32.xlu0 %v1326, 40
        %v2164 = vpop.permute.xlu0 %2163
        %v2167 = vsel %vm1336, %v2159, 0
        %2169 = vmatprep.subr.mxu0 0.0
        %2170 = vmatpush1.msra.mxu0 0.0
        %2171 = vmatprep.subr.mxu0 0.0
        %2172 = vmatpush1.msra.mxu0 0.0
        %2173 = vmatprep.subr.mxu0 0.0
        %2174 = vmatpush1.msra.mxu0 0.0
        %2175 = vmatprep.subr.mxu0 0.0
        %2176 = vmatpush1.msra.mxu0 0.0
        %2177 = vmatprep.subr.mxu0 0.0
        %2178 = vmatpush1.msra.mxu0 0.0
        %2179 = vmatprep.subr.mxu0 0.0
        %2180 = vmatpush1.msra.mxu0 0.0
        %2181 = vmatprep.subr.mxu0 0.0
        %2182 = vmatpush1.msra.mxu0 0.0
        %2183 = vmatprep.subr.mxu0 0.0
        %2184 = vmatpush1.msra.mxu0 0.0
        %2185 = vmatprep.subr.mxu0 0.0
        %2186 = vmatpush1.msra.mxu0 0.0
        %2187 = vmatprep.subr.mxu0 0.0
        %2188 = vmatpush1.msra.mxu0 0.0
        %2189 = vmatprep.subr.mxu0 0.0
        %2190 = vmatpush1.msra.mxu0 0.0
        %2191 = vmatprep.subr.mxu0 0.0
        %2192 = vmatpush1.msra.mxu0 0.0
        %2193 = vmatprep.subr.mxu0 0.0
        %2194 = vmatpush1.msra.mxu0 0.0
        %2195 = vmatprep.subr.mxu0 0.0
        %2196 = vmatpush1.msra.mxu0 0.0
        %2197 = vmatprep.subr.mxu0 0.0
        %2198 = vmatpush1.msra.mxu0 0.0
        %2199 = vmatprep.subr.mxu0 0.0
        %2200 = vmatpush1.msra.mxu0 %v2164
        %2201 = vmatprep.subr.mxu0 0.0
        %2202 = vmatpush2.msra.mxu0 0.0
        %2203 = vmatprep.subr.mxu0 0.0
        %2204 = vmatpush2.msra.mxu0 0.0
        %2205 = vmatprep.subr.mxu0 0.0
        %2206 = vmatpush2.msra.mxu0 0.0
        %2207 = vmatprep.subr.mxu0 0.0
        %2208 = vmatpush2.msra.mxu0 0.0
        %2209 = vmatprep.subr.mxu0 0.0
        %2210 = vmatpush2.msra.mxu0 0.0
        %2211 = vmatprep.subr.mxu0 0.0
        %2212 = vmatpush2.msra.mxu0 0.0
        %2213 = vmatprep.subr.mxu0 0.0
        %2214 = vmatpush2.msra.mxu0 0.0
        %2215 = vmatprep.subr.mxu0 0.0
        %2216 = vmatpush2.msra.mxu0 0.0
        %2217 = vmatprep.subr.mxu0 0.0
        %2218 = vmatpush2.msra.mxu0 0.0
        %2219 = vmatprep.subr.mxu0 0.0
        %2220 = vmatpush2.msra.mxu0 0.0
        %2221 = vmatprep.subr.mxu0 0.0
        %2222 = vmatpush2.msra.mxu0 0.0
        %2223 = vmatprep.subr.mxu0 0.0
        %2224 = vmatpush2.msra.mxu0 0.0
        %2225 = vmatprep.subr.mxu0 0.0
        %2226 = vmatpush2.msra.mxu0 0.0
        %2227 = vmatprep.subr.mxu0 0.0
        %2228 = vmatpush2.msra.mxu0 0.0
        %2229 = vmatprep.subr.mxu0 0.0
        %2230 = vmatpush2.msra.mxu0 0.0
        %2231 = vmatprep.subr.mxu0 0.0
        %2232 = vmatpush2.msra.mxu0 0.0
        %2233 = vmatprep.mubr.f32.mxu0 0.0
        %2234 = vmatmul.mubr.f32.gmra.mxu0 %v2167
        %v2235 = vpop.f32.mrf.mxu0
        %v2236 = vadd.f32 0.0, %v2235
        %v2237 = vpop.f32.mrf.mxu0
        %2238 = vdwg.mxu0
        %v2240 = vsel %vm1336, %v2236, 0
        %2242 = vmatprep.subr.mxu0 0.0
        %2243 = vmatpush1.msra.mxu0 0.0
        %2244 = vmatprep.subr.mxu0 0.0
        %2245 = vmatpush1.msra.mxu0 0.0
        %2246 = vmatprep.subr.mxu0 0.0
        %2247 = vmatpush1.msra.mxu0 0.0
        %2248 = vmatprep.subr.mxu0 0.0
        %2249 = vmatpush1.msra.mxu0 0.0
        %2250 = vmatprep.subr.mxu0 0.0
        %2251 = vmatpush1.msra.mxu0 0.0
        %2252 = vmatprep.subr.mxu0 0.0
        %2253 = vmatpush1.msra.mxu0 0.0
        %2254 = vmatprep.subr.mxu0 0.0
        %2255 = vmatpush1.msra.mxu0 0.0
        %2256 = vmatprep.subr.mxu0 0.0
        %2257 = vmatpush1.msra.mxu0 0.0
        %2258 = vmatprep.subr.mxu0 0.0
        %2259 = vmatpush1.msra.mxu0 0.0
        %2260 = vmatprep.subr.mxu0 0.0
        %2261 = vmatpush1.msra.mxu0 0.0
        %2262 = vmatprep.subr.mxu0 0.0
        %2263 = vmatpush1.msra.mxu0 0.0
        %2264 = vmatprep.subr.mxu0 0.0
        %2265 = vmatpush1.msra.mxu0 0.0
        %2266 = vmatprep.subr.mxu0 0.0
        %2267 = vmatpush1.msra.mxu0 0.0
        %2268 = vmatprep.subr.mxu0 0.0
        %2269 = vmatpush1.msra.mxu0 0.0
        %2270 = vmatprep.subr.mxu0 0.0
        %2271 = vmatpush1.msra.mxu0 0.0
        %2272 = vmatprep.subr.mxu0 0.0
        %2273 = vmatpush1.msra.mxu0 %v1332
        %2274 = vmatprep.subr.mxu0 0.0
        %2275 = vmatpush2.msra.mxu0 0.0
        %2276 = vmatprep.subr.mxu0 0.0
        %2277 = vmatpush2.msra.mxu0 0.0
        %2278 = vmatprep.subr.mxu0 0.0
        %2279 = vmatpush2.msra.mxu0 0.0
        %2280 = vmatprep.subr.mxu0 0.0
        %2281 = vmatpush2.msra.mxu0 0.0
        %2282 = vmatprep.subr.mxu0 0.0
        %2283 = vmatpush2.msra.mxu0 0.0
        %2284 = vmatprep.subr.mxu0 0.0
        %2285 = vmatpush2.msra.mxu0 0.0
        %2286 = vmatprep.subr.mxu0 0.0
        %2287 = vmatpush2.msra.mxu0 0.0
        %2288 = vmatprep.subr.mxu0 0.0
        %2289 = vmatpush2.msra.mxu0 0.0
        %2290 = vmatprep.subr.mxu0 0.0
        %2291 = vmatpush2.msra.mxu0 0.0
        %2292 = vmatprep.subr.mxu0 0.0
        %2293 = vmatpush2.msra.mxu0 0.0
        %2294 = vmatprep.subr.mxu0 0.0
        %2295 = vmatpush2.msra.mxu0 0.0
        %2296 = vmatprep.subr.mxu0 0.0
        %2297 = vmatpush2.msra.mxu0 0.0
        %2298 = vmatprep.subr.mxu0 0.0
        %2299 = vmatpush2.msra.mxu0 0.0
        %2300 = vmatprep.subr.mxu0 0.0
        %2301 = vmatpush2.msra.mxu0 0.0
        %2302 = vmatprep.subr.mxu0 0.0
        %2303 = vmatpush2.msra.mxu0 0.0
        %2304 = vmatprep.subr.mxu0 0.0
        %2305 = vmatpush2.msra.mxu0 0.0
        %2306 = vmatprep.mubr.f32.mxu0 0.0
        %2307 = vmatmul.mubr.f32.gmra.mxu0 %v2240
        %v2308 = vpop.f32.mrf.mxu0
        %v2309 = vadd.f32 0.0, %v2308
        %v2310 = vpop.f32.mrf.mxu0
        %2311 = vdwg.mxu0
        %v2312 = vadd.f32 %v2068, %v2309
        %v2313 = vsel %vm1336, %v2162, 0.0
        %2314 = vadd.xlane.f32.xlu0 %v2313
        %v2315 = vpop.xlane.xlu0 %2314
        %v2316 = vmul.f32 %v2162, 0.25
        %v2317 = vld [vmem:[#allocation10] sm:$0xff]
        %v2318 = vld [vmem:[#allocation10 + $0x8] sm:$0xff]
        %v2319 = vld [vmem:[#allocation10 + $0x10] sm:$0xff]
        %v2320 = vld [vmem:[#allocation10 + $0x18] sm:$0xff]
        %2321 = vrot.lane.b32.xlu0 %v1249, 96
        %v2322 = vpop.permute.xlu0 %2321
        %v2323 = vsel %vm1336, %v1326, 0
        %v2325 = vsel %vm1336, %v2322, 0
        %2327 = vmatprep.subr.mxu0 0.0
        %2328 = vmatpush1.xpose.msra.mxu0 0.0
        %2329 = vmatprep.subr.mxu0 0.0
        %2330 = vmatpush1.xpose.msra.mxu0 0.0
        %2331 = vmatprep.subr.mxu0 0.0
        %2332 = vmatpush1.xpose.msra.mxu0 0.0
        %2333 = vmatprep.subr.mxu0 0.0
        %2334 = vmatpush1.xpose.msra.mxu0 0.0
        %2335 = vmatprep.subr.mxu0 0.0
        %2336 = vmatpush1.xpose.msra.mxu0 0.0
        %2337 = vmatprep.subr.mxu0 0.0
        %2338 = vmatpush1.xpose.msra.mxu0 0.0
        %2339 = vmatprep.subr.mxu0 0.0
        %2340 = vmatpush1.xpose.msra.mxu0 0.0
        %2341 = vmatprep.subr.mxu0 0.0
        %2342 = vmatpush1.xpose.msra.mxu0 0.0
        %2343 = vmatprep.subr.mxu0 0.0
        %2344 = vmatpush1.xpose.msra.mxu0 0.0
        %2345 = vmatprep.subr.mxu0 0.0
        %2346 = vmatpush1.xpose.msra.mxu0 0.0
        %2347 = vmatprep.subr.mxu0 0.0
        %2348 = vmatpush1.xpose.msra.mxu0 0.0
        %2349 = vmatprep.subr.mxu0 0.0
        %2350 = vmatpush1.xpose.msra.mxu0 0.0
        %2351 = vmatprep.subr.mxu0 0.0
        %2352 = vmatpush1.xpose.msra.mxu0 0.0
        %2353 = vmatprep.subr.mxu0 0.0
        %2354 = vmatpush1.xpose.msra.mxu0 0.0
        %2355 = vmatprep.subr.mxu0 0.0
        %2356 = vmatpush1.xpose.msra.mxu0 0.0
        %2357 = vmatprep.subr.mxu0 0.0
        %2358 = vmatpush1.xpose.msra.mxu0 %v2325
        %2359 = vmatprep.subr.mxu0 0.0
        %2360 = vmatpush2.xpose.msra.mxu0 0.0
        %2361 = vmatprep.subr.mxu0 0.0
        %2362 = vmatpush2.xpose.msra.mxu0 0.0
        %2363 = vmatprep.subr.mxu0 0.0
        %2364 = vmatpush2.xpose.msra.mxu0 0.0
        %2365 = vmatprep.subr.mxu0 0.0
        %2366 = vmatpush2.xpose.msra.mxu0 0.0
        %2367 = vmatprep.subr.mxu0 0.0
        %2368 = vmatpush2.xpose.msra.mxu0 0.0
        %2369 = vmatprep.subr.mxu0 0.0
        %2370 = vmatpush2.xpose.msra.mxu0 0.0
        %2371 = vmatprep.subr.mxu0 0.0
        %2372 = vmatpush2.xpose.msra.mxu0 0.0
        %2373 = vmatprep.subr.mxu0 0.0
        %2374 = vmatpush2.xpose.msra.mxu0 0.0
        %2375 = vmatprep.subr.mxu0 0.0
        %2376 = vmatpush2.xpose.msra.mxu0 0.0
        %2377 = vmatprep.subr.mxu0 0.0
        %2378 = vmatpush2.xpose.msra.mxu0 0.0
        %2379 = vmatprep.subr.mxu0 0.0
        %2380 = vmatpush2.xpose.msra.mxu0 0.0
        %2381 = vmatprep.subr.mxu0 0.0
        %2382 = vmatpush2.xpose.msra.mxu0 0.0
        %2383 = vmatprep.subr.mxu0 0.0
        %2384 = vmatpush2.xpose.msra.mxu0 0.0
        %2385 = vmatprep.subr.mxu0 0.0
        %2386 = vmatpush2.xpose.msra.mxu0 0.0
        %2387 = vmatprep.subr.mxu0 0.0
        %2388 = vmatpush2.xpose.msra.mxu0 0.0
        %2389 = vmatprep.subr.mxu0 0.0
        %2390 = vmatpush2.xpose.msra.mxu0 0.0
        %2391 = vmatprep.mubr.f32.mxu0 0.0
        %2392 = vmatmul.mubr.f32.gmra.mxu0 %v2323
        %v2393 = vpop.f32.mrf.mxu0
        %v2394 = vadd.f32 0.0, %v2393
        %v2395 = vpop.f32.mrf.mxu0
        %2396 = vdwg.mxu0
        %v2397 = vmul.f32 %v2394, 0.35355338
        %v2399 = vlaneseq
        %v2400 = vshrl.u32 %v2399, 7
        %v2401 = vsub.s32 0, %v2400
        %v2402 = vrot.slane %v1168, %v2401
        %v2404 = vadd.f32 %v2397, %v2402
        %v2405 = vsel %vm1336, %v2404, -inf
        %2406 = vmax.xlane.f32.xlu0 %v2405
        %v2407 = vpop.xlane.xlu0 %2406
        %v2408 = vsub.f32 %v2404, %v2407
        %v2409 = vmul.f32 %v2408, 1.442695
        %v2410 = vpow.pop %v2409
        %v2411 = vsel %vm1336, %v2410, 0.0
        %2412 = vadd.xlane.f32.xlu0 %v2411
        %v2413 = vpop.xlane.xlu0 %2412
        %v2414 = vrcp.pop %v2413
        %v2415 = vmul.f32 %v2410, %v2414
        %2416 = vst.msk [vmem:[%s1108] sm:$0xff] %vm1336, %v2415
        %v2417 = vadd.f32 %v2415, 0.0
        %2418 = vrot.lane.b32.xlu0 %v1249, 64
        %v2419 = vpop.permute.xlu0 %2418
        %v2422 = vsel %vm1336, %v2415, 0
        %2424 = vmatprep.subr.mxu0 0.0
        %2425 = vmatpush1.msra.mxu0 0.0
        %2426 = vmatprep.subr.mxu0 0.0
        %2427 = vmatpush1.msra.mxu0 0.0
        %2428 = vmatprep.subr.mxu0 0.0
        %2429 = vmatpush1.msra.mxu0 0.0
        %2430 = vmatprep.subr.mxu0 0.0
        %2431 = vmatpush1.msra.mxu0 0.0
        %2432 = vmatprep.subr.mxu0 0.0
        %2433 = vmatpush1.msra.mxu0 0.0
        %2434 = vmatprep.subr.mxu0 0.0
        %2435 = vmatpush1.msra.mxu0 0.0
        %2436 = vmatprep.subr.mxu0 0.0
        %2437 = vmatpush1.msra.mxu0 0.0
        %2438 = vmatprep.subr.mxu0 0.0
        %2439 = vmatpush1.msra.mxu0 0.0
        %2440 = vmatprep.subr.mxu0 0.0
        %2441 = vmatpush1.msra.mxu0 0.0
        %2442 = vmatprep.subr.mxu0 0.0
        %2443 = vmatpush1.msra.mxu0 0.0
        %2444 = vmatprep.subr.mxu0 0.0
        %2445 = vmatpush1.msra.mxu0 0.0
        %2446 = vmatprep.subr.mxu0 0.0
        %2447 = vmatpush1.msra.mxu0 0.0
        %2448 = vmatprep.subr.mxu0 0.0
        %2449 = vmatpush1.msra.mxu0 0.0
        %2450 = vmatprep.subr.mxu0 0.0
        %2451 = vmatpush1.msra.mxu0 0.0
        %2452 = vmatprep.subr.mxu0 0.0
        %2453 = vmatpush1.msra.mxu0 0.0
        %2454 = vmatprep.subr.mxu0 0.0
        %2455 = vmatpush1.msra.mxu0 %v2419
        %2456 = vmatprep.subr.mxu0 0.0
        %2457 = vmatpush2.msra.mxu0 0.0
        %2458 = vmatprep.subr.mxu0 0.0
        %2459 = vmatpush2.msra.mxu0 0.0
        %2460 = vmatprep.subr.mxu0 0.0
        %2461 = vmatpush2.msra.mxu0 0.0
        %2462 = vmatprep.subr.mxu0 0.0
        %2463 = vmatpush2.msra.mxu0 0.0
        %2464 = vmatprep.subr.mxu0 0.0
        %2465 = vmatpush2.msra.mxu0 0.0
        %2466 = vmatprep.subr.mxu0 0.0
        %2467 = vmatpush2.msra.mxu0 0.0
        %2468 = vmatprep.subr.mxu0 0.0
        %2469 = vmatpush2.msra.mxu0 0.0
        %2470 = vmatprep.subr.mxu0 0.0
        %2471 = vmatpush2.msra.mxu0 0.0
        %2472 = vmatprep.subr.mxu0 0.0
        %2473 = vmatpush2.msra.mxu0 0.0
        %2474 = vmatprep.subr.mxu0 0.0
        %2475 = vmatpush2.msra.mxu0 0.0
        %2476 = vmatprep.subr.mxu0 0.0
        %2477 = vmatpush2.msra.mxu0 0.0
        %2478 = vmatprep.subr.mxu0 0.0
        %2479 = vmatpush2.msra.mxu0 0.0
        %2480 = vmatprep.subr.mxu0 0.0
        %2481 = vmatpush2.msra.mxu0 0.0
        %2482 = vmatprep.subr.mxu0 0.0
        %2483 = vmatpush2.msra.mxu0 0.0
        %2484 = vmatprep.subr.mxu0 0.0
        %2485 = vmatpush2.msra.mxu0 0.0
        %2486 = vmatprep.subr.mxu0 0.0
        %2487 = vmatpush2.msra.mxu0 0.0
        %2488 = vmatprep.mubr.f32.mxu0 0.0
        %2489 = vmatmul.mubr.f32.gmra.mxu0 %v2422
        %v2490 = vpop.f32.mrf.mxu0
        %v2491 = vadd.f32 0.0, %v2490
        %v2492 = vpop.f32.mrf.mxu0
        %2493 = vdwg.mxu0
        %2494 = vrot.lane.b32.xlu0 %v1326, 120
        %v2495 = vpop.permute.xlu0 %2494
        %2496 = vrot.lane.b32.xlu0 %v1249, 88
        %v2497 = vpop.permute.xlu0 %2496
        %v2498 = vsel %vm1336, %v2495, 0
        %v2500 = vsel %vm1336, %v2497, 0
        %2502 = vmatprep.subr.mxu0 0.0
        %2503 = vmatpush1.xpose.msra.mxu0 0.0
        %2504 = vmatprep.subr.mxu0 0.0
        %2505 = vmatpush1.xpose.msra.mxu0 0.0
        %2506 = vmatprep.subr.mxu0 0.0
        %2507 = vmatpush1.xpose.msra.mxu0 0.0
        %2508 = vmatprep.subr.mxu0 0.0
        %2509 = vmatpush1.xpose.msra.mxu0 0.0
        %2510 = vmatprep.subr.mxu0 0.0
        %2511 = vmatpush1.xpose.msra.mxu0 0.0
        %2512 = vmatprep.subr.mxu0 0.0
        %2513 = vmatpush1.xpose.msra.mxu0 0.0
        %2514 = vmatprep.subr.mxu0 0.0
        %2515 = vmatpush1.xpose.msra.mxu0 0.0
        %2516 = vmatprep.subr.mxu0 0.0
        %2517 = vmatpush1.xpose.msra.mxu0 0.0
        %2518 = vmatprep.subr.mxu0 0.0
        %2519 = vmatpush1.xpose.msra.mxu0 0.0
        %2520 = vmatprep.subr.mxu0 0.0
        %2521 = vmatpush1.xpose.msra.mxu0 0.0
        %2522 = vmatprep.subr.mxu0 0.0
        %2523 = vmatpush1.xpose.msra.mxu0 0.0
        %2524 = vmatprep.subr.mxu0 0.0
        %2525 = vmatpush1.xpose.msra.mxu0 0.0
        %2526 = vmatprep.subr.mxu0 0.0
        %2527 = vmatpush1.xpose.msra.mxu0 0.0
        %2528 = vmatprep.subr.mxu0 0.0
        %2529 = vmatpush1.xpose.msra.mxu0 0.0
        %2530 = vmatprep.subr.mxu0 0.0
        %2531 = vmatpush1.xpose.msra.mxu0 0.0
        %2532 = vmatprep.subr.mxu0 0.0
        %2533 = vmatpush1.xpose.msra.mxu0 %v2500
        %2534 = vmatprep.subr.mxu0 0.0
        %2535 = vmatpush2.xpose.msra.mxu0 0.0
        %2536 = vmatprep.subr.mxu0 0.0
        %2537 = vmatpush2.xpose.msra.mxu0 0.0
        %2538 = vmatprep.subr.mxu0 0.0
        %2539 = vmatpush2.xpose.msra.mxu0 0.0
        %2540 = vmatprep.subr.mxu0 0.0
        %2541 = vmatpush2.xpose.msra.mxu0 0.0
        %2542 = vmatprep.subr.mxu0 0.0
        %2543 = vmatpush2.xpose.msra.mxu0 0.0
        %2544 = vmatprep.subr.mxu0 0.0
        %2545 = vmatpush2.xpose.msra.mxu0 0.0
        %2546 = vmatprep.subr.mxu0 0.0
        %2547 = vmatpush2.xpose.msra.mxu0 0.0
        %2548 = vmatprep.subr.mxu0 0.0
        %2549 = vmatpush2.xpose.msra.mxu0 0.0
        %2550 = vmatprep.subr.mxu0 0.0
        %2551 = vmatpush2.xpose.msra.mxu0 0.0
        %2552 = vmatprep.subr.mxu0 0.0
        %2553 = vmatpush2.xpose.msra.mxu0 0.0
        %2554 = vmatprep.subr.mxu0 0.0
        %2555 = vmatpush2.xpose.msra.mxu0 0.0
        %2556 = vmatprep.subr.mxu0 0.0
        %2557 = vmatpush2.xpose.msra.mxu0 0.0
        %2558 = vmatprep.subr.mxu0 0.0
        %2559 = vmatpush2.xpose.msra.mxu0 0.0
        %2560 = vmatprep.subr.mxu0 0.0
        %2561 = vmatpush2.xpose.msra.mxu0 0.0
        %2562 = vmatprep.subr.mxu0 0.0
        %2563 = vmatpush2.xpose.msra.mxu0 0.0
        %2564 = vmatprep.subr.mxu0 0.0
        %2565 = vmatpush2.xpose.msra.mxu0 0.0
        %2566 = vmatprep.mubr.f32.mxu0 0.0
        %2567 = vmatmul.mubr.f32.gmra.mxu0 %v2498
        %v2568 = vpop.f32.mrf.mxu0
        %v2569 = vadd.f32 0.0, %v2568
        %v2570 = vpop.f32.mrf.mxu0
        %2571 = vdwg.mxu0
        %v2572 = vmul.f32 %v2569, 0.35355338
        %v2573 = vadd.f32 %v2572, %v2402
        %v2574 = vsel %vm1336, %v2573, -inf
        %2575 = vmax.xlane.f32.xlu0 %v2574
        %v2576 = vpop.xlane.xlu0 %2575
        %v2577 = vsub.f32 %v2573, %v2576
        %v2578 = vmul.f32 %v2577, 1.442695
        %v2579 = vpow.pop %v2578
        %v2580 = vsel %vm1336, %v2579, 0.0
        %2581 = vadd.xlane.f32.xlu0 %v2580
        %v2582 = vpop.xlane.xlu0 %2581
        %v2583 = vrcp.pop %v2582
        %v2584 = vmul.f32 %v2579, %v2583
        %s2585 = scalar_lea.vmem %s1108, 8 [#allocation28]
        %2586 = vst.msk [vmem:[%s2585] sm:$0xff] %vm1336, %v2584
        %v2587 = vadd.f32 %v2417, %v2584
        %2588 = vrot.lane.b32.xlu0 %v1249, 56
        %v2589 = vpop.permute.xlu0 %2588
        %v2592 = vsel %vm1336, %v2584, 0
        %2594 = vmatprep.subr.mxu0 0.0
        %2595 = vmatpush1.msra.mxu0 0.0
        %2596 = vmatprep.subr.mxu0 0.0
        %2597 = vmatpush1.msra.mxu0 0.0
        %2598 = vmatprep.subr.mxu0 0.0
        %2599 = vmatpush1.msra.mxu0 0.0
        %2600 = vmatprep.subr.mxu0 0.0
        %2601 = vmatpush1.msra.mxu0 0.0
        %2602 = vmatprep.subr.mxu0 0.0
        %2603 = vmatpush1.msra.mxu0 0.0
        %2604 = vmatprep.subr.mxu0 0.0
        %2605 = vmatpush1.msra.mxu0 0.0
        %2606 = vmatprep.subr.mxu0 0.0
        %2607 = vmatpush1.msra.mxu0 0.0
        %2608 = vmatprep.subr.mxu0 0.0
        %2609 = vmatpush1.msra.mxu0 0.0
        %2610 = vmatprep.subr.mxu0 0.0
        %2611 = vmatpush1.msra.mxu0 0.0
        %2612 = vmatprep.subr.mxu0 0.0
        %2613 = vmatpush1.msra.mxu0 0.0
        %2614 = vmatprep.subr.mxu0 0.0
        %2615 = vmatpush1.msra.mxu0 0.0
        %2616 = vmatprep.subr.mxu0 0.0
        %2617 = vmatpush1.msra.mxu0 0.0
        %2618 = vmatprep.subr.mxu0 0.0
        %2619 = vmatpush1.msra.mxu0 0.0
        %2620 = vmatprep.subr.mxu0 0.0
        %2621 = vmatpush1.msra.mxu0 0.0
        %2622 = vmatprep.subr.mxu0 0.0
        %2623 = vmatpush1.msra.mxu0 0.0
        %2624 = vmatprep.subr.mxu0 0.0
        %2625 = vmatpush1.msra.mxu0 %v2589
        %2626 = vmatprep.subr.mxu0 0.0
        %2627 = vmatpush2.msra.mxu0 0.0
        %2628 = vmatprep.subr.mxu0 0.0
        %2629 = vmatpush2.msra.mxu0 0.0
        %2630 = vmatprep.subr.mxu0 0.0
        %2631 = vmatpush2.msra.mxu0 0.0
        %2632 = vmatprep.subr.mxu0 0.0
        %2633 = vmatpush2.msra.mxu0 0.0
        %2634 = vmatprep.subr.mxu0 0.0
        %2635 = vmatpush2.msra.mxu0 0.0
        %2636 = vmatprep.subr.mxu0 0.0
        %2637 = vmatpush2.msra.mxu0 0.0
        %2638 = vmatprep.subr.mxu0 0.0
        %2639 = vmatpush2.msra.mxu0 0.0
        %2640 = vmatprep.subr.mxu0 0.0
        %2641 = vmatpush2.msra.mxu0 0.0
        %2642 = vmatprep.subr.mxu0 0.0
        %2643 = vmatpush2.msra.mxu0 0.0
        %2644 = vmatprep.subr.mxu0 0.0
        %2645 = vmatpush2.msra.mxu0 0.0
        %2646 = vmatprep.subr.mxu0 0.0
        %2647 = vmatpush2.msra.mxu0 0.0
        %2648 = vmatprep.subr.mxu0 0.0
        %2649 = vmatpush2.msra.mxu0 0.0
        %2650 = vmatprep.subr.mxu0 0.0
        %2651 = vmatpush2.msra.mxu0 0.0
        %2652 = vmatprep.subr.mxu0 0.0
        %2653 = vmatpush2.msra.mxu0 0.0
        %2654 = vmatprep.subr.mxu0 0.0
        %2655 = vmatpush2.msra.mxu0 0.0
        %2656 = vmatprep.subr.mxu0 0.0
        %2657 = vmatpush2.msra.mxu0 0.0
        %2658 = vmatprep.mubr.f32.mxu0 0.0
        %2659 = vmatmul.mubr.f32.gmra.mxu0 %v2592
        %v2660 = vpop.f32.mrf.mxu0
        %v2661 = vadd.f32 0.0, %v2660
        %v2662 = vpop.f32.mrf.mxu0
        %2663 = vdwg.mxu0
        %v2665 = vsel %vm1336, %v2661, 0
        %2667 = vmatprep.subr.mxu0 0.0
        %2668 = vmatpush1.msra.mxu0 0.0
        %2669 = vmatprep.subr.mxu0 0.0
        %2670 = vmatpush1.msra.mxu0 0.0
        %2671 = vmatprep.subr.mxu0 0.0
        %2672 = vmatpush1.msra.mxu0 0.0
        %2673 = vmatprep.subr.mxu0 0.0
        %2674 = vmatpush1.msra.mxu0 0.0
        %2675 = vmatprep.subr.mxu0 0.0
        %2676 = vmatpush1.msra.mxu0 0.0
        %2677 = vmatprep.subr.mxu0 0.0
        %2678 = vmatpush1.msra.mxu0 0.0
        %2679 = vmatprep.subr.mxu0 0.0
        %2680 = vmatpush1.msra.mxu0 0.0
        %2681 = vmatprep.subr.mxu0 0.0
        %2682 = vmatpush1.msra.mxu0 0.0
        %2683 = vmatprep.subr.mxu0 0.0
        %2684 = vmatpush1.msra.mxu0 0.0
        %2685 = vmatprep.subr.mxu0 0.0
        %2686 = vmatpush1.msra.mxu0 0.0
        %2687 = vmatprep.subr.mxu0 0.0
        %2688 = vmatpush1.msra.mxu0 0.0
        %2689 = vmatprep.subr.mxu0 0.0
        %2690 = vmatpush1.msra.mxu0 0.0
        %2691 = vmatprep.subr.mxu0 0.0
        %2692 = vmatpush1.msra.mxu0 0.0
        %2693 = vmatprep.subr.mxu0 0.0
        %2694 = vmatpush1.msra.mxu0 0.0
        %2695 = vmatprep.subr.mxu0 0.0
        %2696 = vmatpush1.msra.mxu0 0.0
        %2697 = vmatprep.subr.mxu0 0.0
        %2698 = vmatpush1.msra.mxu0 %v2318
        %2699 = vmatprep.subr.mxu0 0.0
        %2700 = vmatpush2.msra.mxu0 0.0
        %2701 = vmatprep.subr.mxu0 0.0
        %2702 = vmatpush2.msra.mxu0 0.0
        %2703 = vmatprep.subr.mxu0 0.0
        %2704 = vmatpush2.msra.mxu0 0.0
        %2705 = vmatprep.subr.mxu0 0.0
        %2706 = vmatpush2.msra.mxu0 0.0
        %2707 = vmatprep.subr.mxu0 0.0
        %2708 = vmatpush2.msra.mxu0 0.0
        %2709 = vmatprep.subr.mxu0 0.0
        %2710 = vmatpush2.msra.mxu0 0.0
        %2711 = vmatprep.subr.mxu0 0.0
        %2712 = vmatpush2.msra.mxu0 0.0
        %2713 = vmatprep.subr.mxu0 0.0
        %2714 = vmatpush2.msra.mxu0 0.0
        %2715 = vmatprep.subr.mxu0 0.0
        %2716 = vmatpush2.msra.mxu0 0.0
        %2717 = vmatprep.subr.mxu0 0.0
        %2718 = vmatpush2.msra.mxu0 0.0
        %2719 = vmatprep.subr.mxu0 0.0
        %2720 = vmatpush2.msra.mxu0 0.0
        %2721 = vmatprep.subr.mxu0 0.0
        %2722 = vmatpush2.msra.mxu0 0.0
        %2723 = vmatprep.subr.mxu0 0.0
        %2724 = vmatpush2.msra.mxu0 0.0
        %2725 = vmatprep.subr.mxu0 0.0
        %2726 = vmatpush2.msra.mxu0 0.0
        %2727 = vmatprep.subr.mxu0 0.0
        %2728 = vmatpush2.msra.mxu0 0.0
        %2729 = vmatprep.subr.mxu0 0.0
        %2730 = vmatpush2.msra.mxu0 0.0
        %2731 = vmatprep.mubr.f32.mxu0 0.0
        %2732 = vmatmul.mubr.f32.gmra.mxu0 %v2665
        %v2733 = vpop.f32.mrf.mxu0
        %v2734 = vadd.f32 0.0, %v2733
        %v2735 = vpop.f32.mrf.mxu0
        %2736 = vdwg.mxu0
        %v2738 = vsel %vm1336, %v2491, 0
        %2740 = vmatprep.subr.mxu0 0.0
        %2741 = vmatpush1.msra.mxu0 0.0
        %2742 = vmatprep.subr.mxu0 0.0
        %2743 = vmatpush1.msra.mxu0 0.0
        %2744 = vmatprep.subr.mxu0 0.0
        %2745 = vmatpush1.msra.mxu0 0.0
        %2746 = vmatprep.subr.mxu0 0.0
        %2747 = vmatpush1.msra.mxu0 0.0
        %2748 = vmatprep.subr.mxu0 0.0
        %2749 = vmatpush1.msra.mxu0 0.0
        %2750 = vmatprep.subr.mxu0 0.0
        %2751 = vmatpush1.msra.mxu0 0.0
        %2752 = vmatprep.subr.mxu0 0.0
        %2753 = vmatpush1.msra.mxu0 0.0
        %2754 = vmatprep.subr.mxu0 0.0
        %2755 = vmatpush1.msra.mxu0 0.0
        %2756 = vmatprep.subr.mxu0 0.0
        %2757 = vmatpush1.msra.mxu0 0.0
        %2758 = vmatprep.subr.mxu0 0.0
        %2759 = vmatpush1.msra.mxu0 0.0
        %2760 = vmatprep.subr.mxu0 0.0
        %2761 = vmatpush1.msra.mxu0 0.0
        %2762 = vmatprep.subr.mxu0 0.0
        %2763 = vmatpush1.msra.mxu0 0.0
        %2764 = vmatprep.subr.mxu0 0.0
        %2765 = vmatpush1.msra.mxu0 0.0
        %2766 = vmatprep.subr.mxu0 0.0
        %2767 = vmatpush1.msra.mxu0 0.0
        %2768 = vmatprep.subr.mxu0 0.0
        %2769 = vmatpush1.msra.mxu0 0.0
        %2770 = vmatprep.subr.mxu0 0.0
        %2771 = vmatpush1.msra.mxu0 %v2317
        %2772 = vmatprep.subr.mxu0 0.0
        %2773 = vmatpush2.msra.mxu0 0.0
        %2774 = vmatprep.subr.mxu0 0.0
        %2775 = vmatpush2.msra.mxu0 0.0
        %2776 = vmatprep.subr.mxu0 0.0
        %2777 = vmatpush2.msra.mxu0 0.0
        %2778 = vmatprep.subr.mxu0 0.0
        %2779 = vmatpush2.msra.mxu0 0.0
        %2780 = vmatprep.subr.mxu0 0.0
        %2781 = vmatpush2.msra.mxu0 0.0
        %2782 = vmatprep.subr.mxu0 0.0
        %2783 = vmatpush2.msra.mxu0 0.0
        %2784 = vmatprep.subr.mxu0 0.0
        %2785 = vmatpush2.msra.mxu0 0.0
        %2786 = vmatprep.subr.mxu0 0.0
        %2787 = vmatpush2.msra.mxu0 0.0
        %2788 = vmatprep.subr.mxu0 0.0
        %2789 = vmatpush2.msra.mxu0 0.0
        %2790 = vmatprep.subr.mxu0 0.0
        %2791 = vmatpush2.msra.mxu0 0.0
        %2792 = vmatprep.subr.mxu0 0.0
        %2793 = vmatpush2.msra.mxu0 0.0
        %2794 = vmatprep.subr.mxu0 0.0
        %2795 = vmatpush2.msra.mxu0 0.0
        %2796 = vmatprep.subr.mxu0 0.0
        %2797 = vmatpush2.msra.mxu0 0.0
        %2798 = vmatprep.subr.mxu0 0.0
        %2799 = vmatpush2.msra.mxu0 0.0
        %2800 = vmatprep.subr.mxu0 0.0
        %2801 = vmatpush2.msra.mxu0 0.0
        %2802 = vmatprep.subr.mxu0 0.0
        %2803 = vmatpush2.msra.mxu0 0.0
        %2804 = vmatprep.mubr.f32.mxu0 0.0
        %2805 = vmatmul.mubr.f32.gmra.mxu0 %v2738
        %v2806 = vpop.f32.mrf.mxu0
        %v2807 = vadd.f32 %v2734, %v2806
        %v2808 = vpop.f32.mrf.mxu0
        %2809 = vdwg.mxu0
        %2810 = vrot.lane.b32.xlu0 %v1326, 112
        %v2811 = vpop.permute.xlu0 %2810
        %2812 = vrot.lane.b32.xlu0 %v1249, 80
        %v2813 = vpop.permute.xlu0 %2812
        %v2814 = vsel %vm1336, %v2811, 0
        %v2816 = vsel %vm1336, %v2813, 0
        %2818 = vmatprep.subr.mxu0 0.0
        %2819 = vmatpush1.xpose.msra.mxu0 0.0
        %2820 = vmatprep.subr.mxu0 0.0
        %2821 = vmatpush1.xpose.msra.mxu0 0.0
        %2822 = vmatprep.subr.mxu0 0.0
        %2823 = vmatpush1.xpose.msra.mxu0 0.0
        %2824 = vmatprep.subr.mxu0 0.0
        %2825 = vmatpush1.xpose.msra.mxu0 0.0
        %2826 = vmatprep.subr.mxu0 0.0
        %2827 = vmatpush1.xpose.msra.mxu0 0.0
        %2828 = vmatprep.subr.mxu0 0.0
        %2829 = vmatpush1.xpose.msra.mxu0 0.0
        %2830 = vmatprep.subr.mxu0 0.0
        %2831 = vmatpush1.xpose.msra.mxu0 0.0
        %2832 = vmatprep.subr.mxu0 0.0
        %2833 = vmatpush1.xpose.msra.mxu0 0.0
        %2834 = vmatprep.subr.mxu0 0.0
        %2835 = vmatpush1.xpose.msra.mxu0 0.0
        %2836 = vmatprep.subr.mxu0 0.0
        %2837 = vmatpush1.xpose.msra.mxu0 0.0
        %2838 = vmatprep.subr.mxu0 0.0
        %2839 = vmatpush1.xpose.msra.mxu0 0.0
        %2840 = vmatprep.subr.mxu0 0.0
        %2841 = vmatpush1.xpose.msra.mxu0 0.0
        %2842 = vmatprep.subr.mxu0 0.0
        %2843 = vmatpush1.xpose.msra.mxu0 0.0
        %2844 = vmatprep.subr.mxu0 0.0
        %2845 = vmatpush1.xpose.msra.mxu0 0.0
        %2846 = vmatprep.subr.mxu0 0.0
        %2847 = vmatpush1.xpose.msra.mxu0 0.0
        %2848 = vmatprep.subr.mxu0 0.0
        %2849 = vmatpush1.xpose.msra.mxu0 %v2816
        %2850 = vmatprep.subr.mxu0 0.0
        %2851 = vmatpush2.xpose.msra.mxu0 0.0
        %2852 = vmatprep.subr.mxu0 0.0
        %2853 = vmatpush2.xpose.msra.mxu0 0.0
        %2854 = vmatprep.subr.mxu0 0.0
        %2855 = vmatpush2.xpose.msra.mxu0 0.0
        %2856 = vmatprep.subr.mxu0 0.0
        %2857 = vmatpush2.xpose.msra.mxu0 0.0
        %2858 = vmatprep.subr.mxu0 0.0
        %2859 = vmatpush2.xpose.msra.mxu0 0.0
        %2860 = vmatprep.subr.mxu0 0.0
        %2861 = vmatpush2.xpose.msra.mxu0 0.0
        %2862 = vmatprep.subr.mxu0 0.0
        %2863 = vmatpush2.xpose.msra.mxu0 0.0
        %2864 = vmatprep.subr.mxu0 0.0
        %2865 = vmatpush2.xpose.msra.mxu0 0.0
        %2866 = vmatprep.subr.mxu0 0.0
        %2867 = vmatpush2.xpose.msra.mxu0 0.0
        %2868 = vmatprep.subr.mxu0 0.0
        %2869 = vmatpush2.xpose.msra.mxu0 0.0
        %2870 = vmatprep.subr.mxu0 0.0
        %2871 = vmatpush2.xpose.msra.mxu0 0.0
        %2872 = vmatprep.subr.mxu0 0.0
        %2873 = vmatpush2.xpose.msra.mxu0 0.0
        %2874 = vmatprep.subr.mxu0 0.0
        %2875 = vmatpush2.xpose.msra.mxu0 0.0
        %2876 = vmatprep.subr.mxu0 0.0
        %2877 = vmatpush2.xpose.msra.mxu0 0.0
        %2878 = vmatprep.subr.mxu0 0.0
        %2879 = vmatpush2.xpose.msra.mxu0 0.0
        %2880 = vmatprep.subr.mxu0 0.0
        %2881 = vmatpush2.xpose.msra.mxu0 0.0
        %2882 = vmatprep.mubr.f32.mxu0 0.0
        %2883 = vmatmul.mubr.f32.gmra.mxu0 %v2814
        %v2884 = vpop.f32.mrf.mxu0
        %v2885 = vadd.f32 0.0, %v2884
        %v2886 = vpop.f32.mrf.mxu0
        %2887 = vdwg.mxu0
        %v2888 = vmul.f32 %v2885, 0.35355338
        %v2889 = vadd.f32 %v2888, %v2402
        %v2890 = vsel %vm1336, %v2889, -inf
        %2891 = vmax.xlane.f32.xlu0 %v2890
        %v2892 = vpop.xlane.xlu0 %2891
        %v2893 = vsub.f32 %v2889, %v2892
        %v2894 = vmul.f32 %v2893, 1.442695
        %v2895 = vpow.pop %v2894
        %v2896 = vsel %vm1336, %v2895, 0.0
        %2897 = vadd.xlane.f32.xlu0 %v2896
        %v2898 = vpop.xlane.xlu0 %2897
        %v2899 = vrcp.pop %v2898
        %v2900 = vmul.f32 %v2895, %v2899
        %s2901 = scalar_lea.vmem %s1108, 16 [#allocation28]
        %2902 = vst.msk [vmem:[%s2901] sm:$0xff] %vm1336, %v2900
        %v2903 = vadd.f32 %v2587, %v2900
        %2904 = vrot.lane.b32.xlu0 %v1249, 48
        %v2905 = vpop.permute.xlu0 %2904
        %v2908 = vsel %vm1336, %v2900, 0
        %2910 = vmatprep.subr.mxu0 0.0
        %2911 = vmatpush1.msra.mxu0 0.0
        %2912 = vmatprep.subr.mxu0 0.0
        %2913 = vmatpush1.msra.mxu0 0.0
        %2914 = vmatprep.subr.mxu0 0.0
        %2915 = vmatpush1.msra.mxu0 0.0
        %2916 = vmatprep.subr.mxu0 0.0
        %2917 = vmatpush1.msra.mxu0 0.0
        %2918 = vmatprep.subr.mxu0 0.0
        %2919 = vmatpush1.msra.mxu0 0.0
        %2920 = vmatprep.subr.mxu0 0.0
        %2921 = vmatpush1.msra.mxu0 0.0
        %2922 = vmatprep.subr.mxu0 0.0
        %2923 = vmatpush1.msra.mxu0 0.0
        %2924 = vmatprep.subr.mxu0 0.0
        %2925 = vmatpush1.msra.mxu0 0.0
        %2926 = vmatprep.subr.mxu0 0.0
        %2927 = vmatpush1.msra.mxu0 0.0
        %2928 = vmatprep.subr.mxu0 0.0
        %2929 = vmatpush1.msra.mxu0 0.0
        %2930 = vmatprep.subr.mxu0 0.0
        %2931 = vmatpush1.msra.mxu0 0.0
        %2932 = vmatprep.subr.mxu0 0.0
        %2933 = vmatpush1.msra.mxu0 0.0
        %2934 = vmatprep.subr.mxu0 0.0
        %2935 = vmatpush1.msra.mxu0 0.0
        %2936 = vmatprep.subr.mxu0 0.0
        %2937 = vmatpush1.msra.mxu0 0.0
        %2938 = vmatprep.subr.mxu0 0.0
        %2939 = vmatpush1.msra.mxu0 0.0
        %2940 = vmatprep.subr.mxu0 0.0
        %2941 = vmatpush1.msra.mxu0 %v2905
        %2942 = vmatprep.subr.mxu0 0.0
        %2943 = vmatpush2.msra.mxu0 0.0
        %2944 = vmatprep.subr.mxu0 0.0
        %2945 = vmatpush2.msra.mxu0 0.0
        %2946 = vmatprep.subr.mxu0 0.0
        %2947 = vmatpush2.msra.mxu0 0.0
        %2948 = vmatprep.subr.mxu0 0.0
        %2949 = vmatpush2.msra.mxu0 0.0
        %2950 = vmatprep.subr.mxu0 0.0
        %2951 = vmatpush2.msra.mxu0 0.0
        %2952 = vmatprep.subr.mxu0 0.0
        %2953 = vmatpush2.msra.mxu0 0.0
        %2954 = vmatprep.subr.mxu0 0.0
        %2955 = vmatpush2.msra.mxu0 0.0
        %2956 = vmatprep.subr.mxu0 0.0
        %2957 = vmatpush2.msra.mxu0 0.0
        %2958 = vmatprep.subr.mxu0 0.0
        %2959 = vmatpush2.msra.mxu0 0.0
        %2960 = vmatprep.subr.mxu0 0.0
        %2961 = vmatpush2.msra.mxu0 0.0
        %2962 = vmatprep.subr.mxu0 0.0
        %2963 = vmatpush2.msra.mxu0 0.0
        %2964 = vmatprep.subr.mxu0 0.0
        %2965 = vmatpush2.msra.mxu0 0.0
        %2966 = vmatprep.subr.mxu0 0.0
        %2967 = vmatpush2.msra.mxu0 0.0
        %2968 = vmatprep.subr.mxu0 0.0
        %2969 = vmatpush2.msra.mxu0 0.0
        %2970 = vmatprep.subr.mxu0 0.0
        %2971 = vmatpush2.msra.mxu0 0.0
        %2972 = vmatprep.subr.mxu0 0.0
        %2973 = vmatpush2.msra.mxu0 0.0
        %2974 = vmatprep.mubr.f32.mxu0 0.0
        %2975 = vmatmul.mubr.f32.gmra.mxu0 %v2908
        %v2976 = vpop.f32.mrf.mxu0
        %v2977 = vadd.f32 0.0, %v2976
        %v2978 = vpop.f32.mrf.mxu0
        %2979 = vdwg.mxu0
        %v2981 = vsel %vm1336, %v2977, 0
        %2983 = vmatprep.subr.mxu0 0.0
        %2984 = vmatpush1.msra.mxu0 0.0
        %2985 = vmatprep.subr.mxu0 0.0
        %2986 = vmatpush1.msra.mxu0 0.0
        %2987 = vmatprep.subr.mxu0 0.0
        %2988 = vmatpush1.msra.mxu0 0.0
        %2989 = vmatprep.subr.mxu0 0.0
        %2990 = vmatpush1.msra.mxu0 0.0
        %2991 = vmatprep.subr.mxu0 0.0
        %2992 = vmatpush1.msra.mxu0 0.0
        %2993 = vmatprep.subr.mxu0 0.0
        %2994 = vmatpush1.msra.mxu0 0.0
        %2995 = vmatprep.subr.mxu0 0.0
        %2996 = vmatpush1.msra.mxu0 0.0
        %2997 = vmatprep.subr.mxu0 0.0
        %2998 = vmatpush1.msra.mxu0 0.0
        %2999 = vmatprep.subr.mxu0 0.0
        %3000 = vmatpush1.msra.mxu0 0.0
        %3001 = vmatprep.subr.mxu0 0.0
        %3002 = vmatpush1.msra.mxu0 0.0
        %3003 = vmatprep.subr.mxu0 0.0
        %3004 = vmatpush1.msra.mxu0 0.0
        %3005 = vmatprep.subr.mxu0 0.0
        %3006 = vmatpush1.msra.mxu0 0.0
        %3007 = vmatprep.subr.mxu0 0.0
        %3008 = vmatpush1.msra.mxu0 0.0
        %3009 = vmatprep.subr.mxu0 0.0
        %3010 = vmatpush1.msra.mxu0 0.0
        %3011 = vmatprep.subr.mxu0 0.0
        %3012 = vmatpush1.msra.mxu0 0.0
        %3013 = vmatprep.subr.mxu0 0.0
        %3014 = vmatpush1.msra.mxu0 %v2319
        %3015 = vmatprep.subr.mxu0 0.0
        %3016 = vmatpush2.msra.mxu0 0.0
        %3017 = vmatprep.subr.mxu0 0.0
        %3018 = vmatpush2.msra.mxu0 0.0
        %3019 = vmatprep.subr.mxu0 0.0
        %3020 = vmatpush2.msra.mxu0 0.0
        %3021 = vmatprep.subr.mxu0 0.0
        %3022 = vmatpush2.msra.mxu0 0.0
        %3023 = vmatprep.subr.mxu0 0.0
        %3024 = vmatpush2.msra.mxu0 0.0
        %3025 = vmatprep.subr.mxu0 0.0
        %3026 = vmatpush2.msra.mxu0 0.0
        %3027 = vmatprep.subr.mxu0 0.0
        %3028 = vmatpush2.msra.mxu0 0.0
        %3029 = vmatprep.subr.mxu0 0.0
        %3030 = vmatpush2.msra.mxu0 0.0
        %3031 = vmatprep.subr.mxu0 0.0
        %3032 = vmatpush2.msra.mxu0 0.0
        %3033 = vmatprep.subr.mxu0 0.0
        %3034 = vmatpush2.msra.mxu0 0.0
        %3035 = vmatprep.subr.mxu0 0.0
        %3036 = vmatpush2.msra.mxu0 0.0
        %3037 = vmatprep.subr.mxu0 0.0
        %3038 = vmatpush2.msra.mxu0 0.0
        %3039 = vmatprep.subr.mxu0 0.0
        %3040 = vmatpush2.msra.mxu0 0.0
        %3041 = vmatprep.subr.mxu0 0.0
        %3042 = vmatpush2.msra.mxu0 0.0
        %3043 = vmatprep.subr.mxu0 0.0
        %3044 = vmatpush2.msra.mxu0 0.0
        %3045 = vmatprep.subr.mxu0 0.0
        %3046 = vmatpush2.msra.mxu0 0.0
        %3047 = vmatprep.mubr.f32.mxu0 0.0
        %3048 = vmatmul.mubr.f32.gmra.mxu0 %v2981
        %v3049 = vpop.f32.mrf.mxu0
        %v3050 = vadd.f32 0.0, %v3049
        %v3051 = vpop.f32.mrf.mxu0
        %3052 = vdwg.mxu0
        %v3053 = vadd.f32 %v2807, %v3050
        %3054 = vrot.lane.b32.xlu0 %v1326, 104
        %v3055 = vpop.permute.xlu0 %3054
        %3056 = vrot.lane.b32.xlu0 %v1249, 72
        %v3057 = vpop.permute.xlu0 %3056
        %v3058 = vsel %vm1336, %v3055, 0
        %v3060 = vsel %vm1336, %v3057, 0
        %3062 = vmatprep.subr.mxu0 0.0
        %3063 = vmatpush1.xpose.msra.mxu0 0.0
        %3064 = vmatprep.subr.mxu0 0.0
        %3065 = vmatpush1.xpose.msra.mxu0 0.0
        %3066 = vmatprep.subr.mxu0 0.0
        %3067 = vmatpush1.xpose.msra.mxu0 0.0
        %3068 = vmatprep.subr.mxu0 0.0
        %3069 = vmatpush1.xpose.msra.mxu0 0.0
        %3070 = vmatprep.subr.mxu0 0.0
        %3071 = vmatpush1.xpose.msra.mxu0 0.0
        %3072 = vmatprep.subr.mxu0 0.0
        %3073 = vmatpush1.xpose.msra.mxu0 0.0
        %3074 = vmatprep.subr.mxu0 0.0
        %3075 = vmatpush1.xpose.msra.mxu0 0.0
        %3076 = vmatprep.subr.mxu0 0.0
        %3077 = vmatpush1.xpose.msra.mxu0 0.0
        %3078 = vmatprep.subr.mxu0 0.0
        %3079 = vmatpush1.xpose.msra.mxu0 0.0
        %3080 = vmatprep.subr.mxu0 0.0
        %3081 = vmatpush1.xpose.msra.mxu0 0.0
        %3082 = vmatprep.subr.mxu0 0.0
        %3083 = vmatpush1.xpose.msra.mxu0 0.0
        %3084 = vmatprep.subr.mxu0 0.0
        %3085 = vmatpush1.xpose.msra.mxu0 0.0
        %3086 = vmatprep.subr.mxu0 0.0
        %3087 = vmatpush1.xpose.msra.mxu0 0.0
        %3088 = vmatprep.subr.mxu0 0.0
        %3089 = vmatpush1.xpose.msra.mxu0 0.0
        %3090 = vmatprep.subr.mxu0 0.0
        %3091 = vmatpush1.xpose.msra.mxu0 0.0
        %3092 = vmatprep.subr.mxu0 0.0
        %3093 = vmatpush1.xpose.msra.mxu0 %v3060
        %3094 = vmatprep.subr.mxu0 0.0
        %3095 = vmatpush2.xpose.msra.mxu0 0.0
        %3096 = vmatprep.subr.mxu0 0.0
        %3097 = vmatpush2.xpose.msra.mxu0 0.0
        %3098 = vmatprep.subr.mxu0 0.0
        %3099 = vmatpush2.xpose.msra.mxu0 0.0
        %3100 = vmatprep.subr.mxu0 0.0
        %3101 = vmatpush2.xpose.msra.mxu0 0.0
        %3102 = vmatprep.subr.mxu0 0.0
        %3103 = vmatpush2.xpose.msra.mxu0 0.0
        %3104 = vmatprep.subr.mxu0 0.0
        %3105 = vmatpush2.xpose.msra.mxu0 0.0
        %3106 = vmatprep.subr.mxu0 0.0
        %3107 = vmatpush2.xpose.msra.mxu0 0.0
        %3108 = vmatprep.subr.mxu0 0.0
        %3109 = vmatpush2.xpose.msra.mxu0 0.0
        %3110 = vmatprep.subr.mxu0 0.0
        %3111 = vmatpush2.xpose.msra.mxu0 0.0
        %3112 = vmatprep.subr.mxu0 0.0
        %3113 = vmatpush2.xpose.msra.mxu0 0.0
        %3114 = vmatprep.subr.mxu0 0.0
        %3115 = vmatpush2.xpose.msra.mxu0 0.0
        %3116 = vmatprep.subr.mxu0 0.0
        %3117 = vmatpush2.xpose.msra.mxu0 0.0
        %3118 = vmatprep.subr.mxu0 0.0
        %3119 = vmatpush2.xpose.msra.mxu0 0.0
        %3120 = vmatprep.subr.mxu0 0.0
        %3121 = vmatpush2.xpose.msra.mxu0 0.0
        %3122 = vmatprep.subr.mxu0 0.0
        %3123 = vmatpush2.xpose.msra.mxu0 0.0
        %3124 = vmatprep.subr.mxu0 0.0
        %3125 = vmatpush2.xpose.msra.mxu0 0.0
        %3126 = vmatprep.mubr.f32.mxu0 0.0
        %3127 = vmatmul.mubr.f32.gmra.mxu0 %v3058
        %v3128 = vpop.f32.mrf.mxu0
        %v3129 = vadd.f32 0.0, %v3128
        %v3130 = vpop.f32.mrf.mxu0
        %3131 = vdwg.mxu0
        %v3132 = vmul.f32 %v3129, 0.35355338
        %v3133 = vadd.f32 %v3132, %v2402
        %v3134 = vsel %vm1336, %v3133, -inf
        %3135 = vmax.xlane.f32.xlu0 %v3134
        %v3136 = vpop.xlane.xlu0 %3135
        %v3137 = vsub.f32 %v3133, %v3136
        %v3138 = vmul.f32 %v3137, 1.442695
        %v3139 = vpow.pop %v3138
        %v3140 = vsel %vm1336, %v3139, 0.0
        %3141 = vadd.xlane.f32.xlu0 %v3140
        %v3142 = vpop.xlane.xlu0 %3141
        %v3143 = vrcp.pop %v3142
        %v3144 = vmul.f32 %v3139, %v3143
        %s3145 = scalar_lea.vmem %s1108, 24 [#allocation28]
        %3146 = vst.msk [vmem:[%s3145] sm:$0xff] %vm1336, %v3144
        %v3147 = vadd.f32 %v2903, %v3144
        %3148 = vrot.lane.b32.xlu0 %v1249, 40
        %v3149 = vpop.permute.xlu0 %3148
        %v3152 = vsel %vm1336, %v3144, 0
        %3154 = vmatprep.subr.mxu0 0.0
        %3155 = vmatpush1.msra.mxu0 0.0
        %3156 = vmatprep.subr.mxu0 0.0
        %3157 = vmatpush1.msra.mxu0 0.0
        %3158 = vmatprep.subr.mxu0 0.0
        %3159 = vmatpush1.msra.mxu0 0.0
        %3160 = vmatprep.subr.mxu0 0.0
        %3161 = vmatpush1.msra.mxu0 0.0
        %3162 = vmatprep.subr.mxu0 0.0
        %3163 = vmatpush1.msra.mxu0 0.0
        %3164 = vmatprep.subr.mxu0 0.0
        %3165 = vmatpush1.msra.mxu0 0.0
        %3166 = vmatprep.subr.mxu0 0.0
        %3167 = vmatpush1.msra.mxu0 0.0
        %3168 = vmatprep.subr.mxu0 0.0
        %3169 = vmatpush1.msra.mxu0 0.0
        %3170 = vmatprep.subr.mxu0 0.0
        %3171 = vmatpush1.msra.mxu0 0.0
        %3172 = vmatprep.subr.mxu0 0.0
        %3173 = vmatpush1.msra.mxu0 0.0
        %3174 = vmatprep.subr.mxu0 0.0
        %3175 = vmatpush1.msra.mxu0 0.0
        %3176 = vmatprep.subr.mxu0 0.0
        %3177 = vmatpush1.msra.mxu0 0.0
        %3178 = vmatprep.subr.mxu0 0.0
        %3179 = vmatpush1.msra.mxu0 0.0
        %3180 = vmatprep.subr.mxu0 0.0
        %3181 = vmatpush1.msra.mxu0 0.0
        %3182 = vmatprep.subr.mxu0 0.0
        %3183 = vmatpush1.msra.mxu0 0.0
        %3184 = vmatprep.subr.mxu0 0.0
        %3185 = vmatpush1.msra.mxu0 %v3149
        %3186 = vmatprep.subr.mxu0 0.0
        %3187 = vmatpush2.msra.mxu0 0.0
        %3188 = vmatprep.subr.mxu0 0.0
        %3189 = vmatpush2.msra.mxu0 0.0
        %3190 = vmatprep.subr.mxu0 0.0
        %3191 = vmatpush2.msra.mxu0 0.0
        %3192 = vmatprep.subr.mxu0 0.0
        %3193 = vmatpush2.msra.mxu0 0.0
        %3194 = vmatprep.subr.mxu0 0.0
        %3195 = vmatpush2.msra.mxu0 0.0
        %3196 = vmatprep.subr.mxu0 0.0
        %3197 = vmatpush2.msra.mxu0 0.0
        %3198 = vmatprep.subr.mxu0 0.0
        %3199 = vmatpush2.msra.mxu0 0.0
        %3200 = vmatprep.subr.mxu0 0.0
        %3201 = vmatpush2.msra.mxu0 0.0
        %3202 = vmatprep.subr.mxu0 0.0
        %3203 = vmatpush2.msra.mxu0 0.0
        %3204 = vmatprep.subr.mxu0 0.0
        %3205 = vmatpush2.msra.mxu0 0.0
        %3206 = vmatprep.subr.mxu0 0.0
        %3207 = vmatpush2.msra.mxu0 0.0
        %3208 = vmatprep.subr.mxu0 0.0
        %3209 = vmatpush2.msra.mxu0 0.0
        %3210 = vmatprep.subr.mxu0 0.0
        %3211 = vmatpush2.msra.mxu0 0.0
        %3212 = vmatprep.subr.mxu0 0.0
        %3213 = vmatpush2.msra.mxu0 0.0
        %3214 = vmatprep.subr.mxu0 0.0
        %3215 = vmatpush2.msra.mxu0 0.0
        %3216 = vmatprep.subr.mxu0 0.0
        %3217 = vmatpush2.msra.mxu0 0.0
        %3218 = vmatprep.mubr.f32.mxu0 0.0
        %3219 = vmatmul.mubr.f32.gmra.mxu0 %v3152
        %v3220 = vpop.f32.mrf.mxu0
        %v3221 = vadd.f32 0.0, %v3220
        %v3222 = vpop.f32.mrf.mxu0
        %3223 = vdwg.mxu0
        %v3225 = vsel %vm1336, %v3221, 0
        %3227 = vmatprep.subr.mxu0 0.0
        %3228 = vmatpush1.msra.mxu0 0.0
        %3229 = vmatprep.subr.mxu0 0.0
        %3230 = vmatpush1.msra.mxu0 0.0
        %3231 = vmatprep.subr.mxu0 0.0
        %3232 = vmatpush1.msra.mxu0 0.0
        %3233 = vmatprep.subr.mxu0 0.0
        %3234 = vmatpush1.msra.mxu0 0.0
        %3235 = vmatprep.subr.mxu0 0.0
        %3236 = vmatpush1.msra.mxu0 0.0
        %3237 = vmatprep.subr.mxu0 0.0
        %3238 = vmatpush1.msra.mxu0 0.0
        %3239 = vmatprep.subr.mxu0 0.0
        %3240 = vmatpush1.msra.mxu0 0.0
        %3241 = vmatprep.subr.mxu0 0.0
        %3242 = vmatpush1.msra.mxu0 0.0
        %3243 = vmatprep.subr.mxu0 0.0
        %3244 = vmatpush1.msra.mxu0 0.0
        %3245 = vmatprep.subr.mxu0 0.0
        %3246 = vmatpush1.msra.mxu0 0.0
        %3247 = vmatprep.subr.mxu0 0.0
        %3248 = vmatpush1.msra.mxu0 0.0
        %3249 = vmatprep.subr.mxu0 0.0
        %3250 = vmatpush1.msra.mxu0 0.0
        %3251 = vmatprep.subr.mxu0 0.0
        %3252 = vmatpush1.msra.mxu0 0.0
        %3253 = vmatprep.subr.mxu0 0.0
        %3254 = vmatpush1.msra.mxu0 0.0
        %3255 = vmatprep.subr.mxu0 0.0
        %3256 = vmatpush1.msra.mxu0 0.0
        %3257 = vmatprep.subr.mxu0 0.0
        %3258 = vmatpush1.msra.mxu0 %v2320
        %3259 = vmatprep.subr.mxu0 0.0
        %3260 = vmatpush2.msra.mxu0 0.0
        %3261 = vmatprep.subr.mxu0 0.0
        %3262 = vmatpush2.msra.mxu0 0.0
        %3263 = vmatprep.subr.mxu0 0.0
        %3264 = vmatpush2.msra.mxu0 0.0
        %3265 = vmatprep.subr.mxu0 0.0
        %3266 = vmatpush2.msra.mxu0 0.0
        %3267 = vmatprep.subr.mxu0 0.0
        %3268 = vmatpush2.msra.mxu0 0.0
        %3269 = vmatprep.subr.mxu0 0.0
        %3270 = vmatpush2.msra.mxu0 0.0
        %3271 = vmatprep.subr.mxu0 0.0
        %3272 = vmatpush2.msra.mxu0 0.0
        %3273 = vmatprep.subr.mxu0 0.0
        %3274 = vmatpush2.msra.mxu0 0.0
        %3275 = vmatprep.subr.mxu0 0.0
        %3276 = vmatpush2.msra.mxu0 0.0
        %3277 = vmatprep.subr.mxu0 0.0
        %3278 = vmatpush2.msra.mxu0 0.0
        %3279 = vmatprep.subr.mxu0 0.0
        %3280 = vmatpush2.msra.mxu0 0.0
        %3281 = vmatprep.subr.mxu0 0.0
        %3282 = vmatpush2.msra.mxu0 0.0
        %3283 = vmatprep.subr.mxu0 0.0
        %3284 = vmatpush2.msra.mxu0 0.0
        %3285 = vmatprep.subr.mxu0 0.0
        %3286 = vmatpush2.msra.mxu0 0.0
        %3287 = vmatprep.subr.mxu0 0.0
        %3288 = vmatpush2.msra.mxu0 0.0
        %3289 = vmatprep.subr.mxu0 0.0
        %3290 = vmatpush2.msra.mxu0 0.0
        %3291 = vmatprep.mubr.f32.mxu0 0.0
        %3292 = vmatmul.mubr.f32.gmra.mxu0 %v3225
        %v3293 = vpop.f32.mrf.mxu0
        %v3294 = vadd.f32 0.0, %v3293
        %v3295 = vpop.f32.mrf.mxu0
        %3296 = vdwg.mxu0
        %v3297 = vadd.f32 %v3053, %v3294
        %v3298 = vsel %vm1336, %v3147, 0.0
        %3299 = vadd.xlane.f32.xlu0 %v3298
        %v3300 = vpop.xlane.xlu0 %3299
        %v3301 = vmul.f32 %v3147, 0.25
        %v3302 = vadd.f32 %v1164, %v2312
        %v3303 = vadd.f32 %v1165, %v3297
        %v3304 = vmul.f32 %v1172, 0.05
        %v3305 = vmul.f32 %v2315, 0.95
        %v3306 = vadd.f32 %v3304, %v3305
        %v3307 = vxor.u32 %v3306, 2147483648
        %v3308 = vmul.f32 %v3307, 1.442695
        %v3309 = vpow.pop %v3308
        %v3310 = vadd.f32 %v3309, 1.0
        %v3311 = vrcp.pop %v3310
        %v3312 = vmul.f32 1.0, %v3311
        %v3313 = vmul.f32 %v1173, 0.05
        %v3314 = vmul.f32 %v3300, 0.95
        %v3315 = vadd.f32 %v3313, %v3314
        %v3316 = vxor.u32 %v3315, 2147483648
        %v3317 = vmul.f32 %v3316, 1.442695
        %v3318 = vpow.pop %v3317
        %v3319 = vadd.f32 %v3318, 1.0
        %v3320 = vrcp.pop %v3319
        %v3321 = vmul.f32 1.0, %v3320
        %3323 = vset.pattern.permute.xlu0 0
        %3324 = vperm.xlu0 %3323, %v3312
        %v3325 = vpop.permute.xlu0 %3324
        %v3327 = vmul.f32 %v3302, %v3325
        %3329 = vset.pattern.permute.xlu0 0
        %3330 = vperm.xlu0 %3329, %v3321
        %v3331 = vpop.permute.xlu0 %3330
        %v3333 = vmul.f32 %v3303, %v3331
        %v3334 = vld [vmem:[%s10] sm:$0xff]
        %v3335 = vld [vmem:[%s10 + $0x8] sm:$0xff]
        %v3336 = vld [vmem:[%s10 + $0x10] sm:$0xff]
        %v3337 = vld [vmem:[%s10 + $0x18] sm:$0xff]
        %v3339 = vsel %vm1178, %v3327, 0
        %3341 = vmatprep.subr.mxu0 0.0
        %3342 = vmatpush1.msra.mxu0 0.0
        %3343 = vmatprep.subr.mxu0 0.0
        %3344 = vmatpush1.msra.mxu0 0.0
        %3345 = vmatprep.subr.mxu0 0.0
        %3346 = vmatpush1.msra.mxu0 0.0
        %3347 = vmatprep.subr.mxu0 0.0
        %3348 = vmatpush1.msra.mxu0 0.0
        %3349 = vmatprep.subr.mxu0 0.0
        %3350 = vmatpush1.msra.mxu0 0.0
        %3351 = vmatprep.subr.mxu0 0.0
        %3352 = vmatpush1.msra.mxu0 0.0
        %3353 = vmatprep.subr.mxu0 0.0
        %3354 = vmatpush1.msra.mxu0 0.0
        %3355 = vmatprep.subr.mxu0 0.0
        %3356 = vmatpush1.msra.mxu0 0.0
        %3357 = vmatprep.subr.mxu0 0.0
        %3358 = vmatpush1.msra.mxu0 0.0
        %3359 = vmatprep.subr.mxu0 0.0
        %3360 = vmatpush1.msra.mxu0 0.0
        %3361 = vmatprep.subr.mxu0 0.0
        %3362 = vmatpush1.msra.mxu0 0.0
        %3363 = vmatprep.subr.mxu0 0.0
        %3364 = vmatpush1.msra.mxu0 0.0
        %3365 = vmatprep.subr.mxu0 0.0
        %3366 = vmatpush1.msra.mxu0 %v3337
        %3367 = vmatprep.subr.mxu0 0.0
        %3368 = vmatpush1.msra.mxu0 %v3336
        %3369 = vmatprep.subr.mxu0 0.0
        %3370 = vmatpush1.msra.mxu0 %v3335
        %3371 = vmatprep.subr.mxu0 0.0
        %3372 = vmatpush1.msra.mxu0 %v3334
        %3373 = vmatprep.subr.mxu0 0.0
        %3374 = vmatpush2.msra.mxu0 0.0
        %3375 = vmatprep.subr.mxu0 0.0
        %3376 = vmatpush2.msra.mxu0 0.0
        %3377 = vmatprep.subr.mxu0 0.0
        %3378 = vmatpush2.msra.mxu0 0.0
        %3379 = vmatprep.subr.mxu0 0.0
        %3380 = vmatpush2.msra.mxu0 0.0
        %3381 = vmatprep.subr.mxu0 0.0
        %3382 = vmatpush2.msra.mxu0 0.0
        %3383 = vmatprep.subr.mxu0 0.0
        %3384 = vmatpush2.msra.mxu0 0.0
        %3385 = vmatprep.subr.mxu0 0.0
        %3386 = vmatpush2.msra.mxu0 0.0
        %3387 = vmatprep.subr.mxu0 0.0
        %3388 = vmatpush2.msra.mxu0 0.0
        %3389 = vmatprep.subr.mxu0 0.0
        %3390 = vmatpush2.msra.mxu0 0.0
        %3391 = vmatprep.subr.mxu0 0.0
        %3392 = vmatpush2.msra.mxu0 0.0
        %3393 = vmatprep.subr.mxu0 0.0
        %3394 = vmatpush2.msra.mxu0 0.0
        %3395 = vmatprep.subr.mxu0 0.0
        %3396 = vmatpush2.msra.mxu0 0.0
        %3397 = vmatprep.subr.mxu0 0.0
        %3398 = vmatpush2.msra.mxu0 0.0
        %3399 = vmatprep.subr.mxu0 0.0
        %3400 = vmatpush2.msra.mxu0 0.0
        %3401 = vmatprep.subr.mxu0 0.0
        %3402 = vmatpush2.msra.mxu0 0.0
        %3403 = vmatprep.subr.mxu0 0.0
        %3404 = vmatpush2.msra.mxu0 0.0
        %3405 = vmatprep.mubr.f32.mxu0 0.0
        %3406 = vmatmul.mubr.f32.gmra.mxu0 %v3339
        %v3407 = vpop.f32.mrf.mxu0
        %v3408 = vadd.f32 0.0, %v3407
        %v3409 = vpop.f32.mrf.mxu0
        %3410 = vdwg.mxu0
        %v3411 = vld [vmem:[#allocation13] sm:$0xff]
        %v3412 = vld [vmem:[#allocation13 + $0x8] sm:$0xff]
        %v3413 = vld [vmem:[#allocation13 + $0x10] sm:$0xff]
        %v3414 = vld [vmem:[#allocation13 + $0x18] sm:$0xff]
        %v3416 = vsel %vm1178, %v3333, 0
        %3418 = vmatprep.subr.mxu0 0.0
        %3419 = vmatpush1.msra.mxu0 0.0
        %3420 = vmatprep.subr.mxu0 0.0
        %3421 = vmatpush1.msra.mxu0 0.0
        %3422 = vmatprep.subr.mxu0 0.0
        %3423 = vmatpush1.msra.mxu0 0.0
        %3424 = vmatprep.subr.mxu0 0.0
        %3425 = vmatpush1.msra.mxu0 0.0
        %3426 = vmatprep.subr.mxu0 0.0
        %3427 = vmatpush1.msra.mxu0 0.0
        %3428 = vmatprep.subr.mxu0 0.0
        %3429 = vmatpush1.msra.mxu0 0.0
        %3430 = vmatprep.subr.mxu0 0.0
        %3431 = vmatpush1.msra.mxu0 0.0
        %3432 = vmatprep.subr.mxu0 0.0
        %3433 = vmatpush1.msra.mxu0 0.0
        %3434 = vmatprep.subr.mxu0 0.0
        %3435 = vmatpush1.msra.mxu0 0.0
        %3436 = vmatprep.subr.mxu0 0.0
        %3437 = vmatpush1.msra.mxu0 0.0
        %3438 = vmatprep.subr.mxu0 0.0
        %3439 = vmatpush1.msra.mxu0 0.0
        %3440 = vmatprep.subr.mxu0 0.0
        %3441 = vmatpush1.msra.mxu0 0.0
        %3442 = vmatprep.subr.mxu0 0.0
        %3443 = vmatpush1.msra.mxu0 %v3414
        %3444 = vmatprep.subr.mxu0 0.0
        %3445 = vmatpush1.msra.mxu0 %v3413
        %3446 = vmatprep.subr.mxu0 0.0
        %3447 = vmatpush1.msra.mxu0 %v3412
        %3448 = vmatprep.subr.mxu0 0.0
        %3449 = vmatpush1.msra.mxu0 %v3411
        %3450 = vmatprep.subr.mxu0 0.0
        %3451 = vmatpush2.msra.mxu0 0.0
        %3452 = vmatprep.subr.mxu0 0.0
        %3453 = vmatpush2.msra.mxu0 0.0
        %3454 = vmatprep.subr.mxu0 0.0
        %3455 = vmatpush2.msra.mxu0 0.0
        %3456 = vmatprep.subr.mxu0 0.0
        %3457 = vmatpush2.msra.mxu0 0.0
        %3458 = vmatprep.subr.mxu0 0.0
        %3459 = vmatpush2.msra.mxu0 0.0
        %3460 = vmatprep.subr.mxu0 0.0
        %3461 = vmatpush2.msra.mxu0 0.0
        %3462 = vmatprep.subr.mxu0 0.0
        %3463 = vmatpush2.msra.mxu0 0.0
        %3464 = vmatprep.subr.mxu0 0.0
        %3465 = vmatpush2.msra.mxu0 0.0
        %3466 = vmatprep.subr.mxu0 0.0
        %3467 = vmatpush2.msra.mxu0 0.0
        %3468 = vmatprep.subr.mxu0 0.0
        %3469 = vmatpush2.msra.mxu0 0.0
        %3470 = vmatprep.subr.mxu0 0.0
        %3471 = vmatpush2.msra.mxu0 0.0
        %3472 = vmatprep.subr.mxu0 0.0
        %3473 = vmatpush2.msra.mxu0 0.0
        %3474 = vmatprep.subr.mxu0 0.0
        %3475 = vmatpush2.msra.mxu0 0.0
        %3476 = vmatprep.subr.mxu0 0.0
        %3477 = vmatpush2.msra.mxu0 0.0
        %3478 = vmatprep.subr.mxu0 0.0
        %3479 = vmatpush2.msra.mxu0 0.0
        %3480 = vmatprep.subr.mxu0 0.0
        %3481 = vmatpush2.msra.mxu0 0.0
        %3482 = vmatprep.mubr.f32.mxu0 0.0
        %3483 = vmatmul.mubr.f32.gmra.mxu0 %v3416
        %v3484 = vpop.f32.mrf.mxu0
        %v3485 = vadd.f32 0.0, %v3484
        %v3486 = vpop.f32.mrf.mxu0
        %3487 = vdwg.mxu0
        %v3488 = vld [vmem:[#allocation11] sm:$0xff]
        %v3489 = vld [vmem:[#allocation11 + $0x8] sm:$0xff]
        %v3490 = vld [vmem:[#allocation11 + $0x10] sm:$0xff]
        %v3491 = vld [vmem:[#allocation11 + $0x18] sm:$0xff]
        %3493 = vrot.lane.b32.xlu0 %v3408, 96
        %v3494 = vpop.permute.xlu0 %3493
        %v3495 = vsel %vm1336, %v3408, 0
        %v3497 = vsel %vm1336, %v3494, 0
        %3499 = vmatprep.subr.mxu0 0.0
        %3500 = vmatpush1.xpose.msra.mxu0 0.0
        %3501 = vmatprep.subr.mxu0 0.0
        %3502 = vmatpush1.xpose.msra.mxu0 0.0
        %3503 = vmatprep.subr.mxu0 0.0
        %3504 = vmatpush1.xpose.msra.mxu0 0.0
        %3505 = vmatprep.subr.mxu0 0.0
        %3506 = vmatpush1.xpose.msra.mxu0 0.0
        %3507 = vmatprep.subr.mxu0 0.0
        %3508 = vmatpush1.xpose.msra.mxu0 0.0
        %3509 = vmatprep.subr.mxu0 0.0
        %3510 = vmatpush1.xpose.msra.mxu0 0.0
        %3511 = vmatprep.subr.mxu0 0.0
        %3512 = vmatpush1.xpose.msra.mxu0 0.0
        %3513 = vmatprep.subr.mxu0 0.0
        %3514 = vmatpush1.xpose.msra.mxu0 0.0
        %3515 = vmatprep.subr.mxu0 0.0
        %3516 = vmatpush1.xpose.msra.mxu0 0.0
        %3517 = vmatprep.subr.mxu0 0.0
        %3518 = vmatpush1.xpose.msra.mxu0 0.0
        %3519 = vmatprep.subr.mxu0 0.0
        %3520 = vmatpush1.xpose.msra.mxu0 0.0
        %3521 = vmatprep.subr.mxu0 0.0
        %3522 = vmatpush1.xpose.msra.mxu0 0.0
        %3523 = vmatprep.subr.mxu0 0.0
        %3524 = vmatpush1.xpose.msra.mxu0 0.0
        %3525 = vmatprep.subr.mxu0 0.0
        %3526 = vmatpush1.xpose.msra.mxu0 0.0
        %3527 = vmatprep.subr.mxu0 0.0
        %3528 = vmatpush1.xpose.msra.mxu0 0.0
        %3529 = vmatprep.subr.mxu0 0.0
        %3530 = vmatpush1.xpose.msra.mxu0 %v3497
        %3531 = vmatprep.subr.mxu0 0.0
        %3532 = vmatpush2.xpose.msra.mxu0 0.0
        %3533 = vmatprep.subr.mxu0 0.0
        %3534 = vmatpush2.xpose.msra.mxu0 0.0
        %3535 = vmatprep.subr.mxu0 0.0
        %3536 = vmatpush2.xpose.msra.mxu0 0.0
        %3537 = vmatprep.subr.mxu0 0.0
        %3538 = vmatpush2.xpose.msra.mxu0 0.0
        %3539 = vmatprep.subr.mxu0 0.0
        %3540 = vmatpush2.xpose.msra.mxu0 0.0
        %3541 = vmatprep.subr.mxu0 0.0
        %3542 = vmatpush2.xpose.msra.mxu0 0.0
        %3543 = vmatprep.subr.mxu0 0.0
        %3544 = vmatpush2.xpose.msra.mxu0 0.0
        %3545 = vmatprep.subr.mxu0 0.0
        %3546 = vmatpush2.xpose.msra.mxu0 0.0
        %3547 = vmatprep.subr.mxu0 0.0
        %3548 = vmatpush2.xpose.msra.mxu0 0.0
        %3549 = vmatprep.subr.mxu0 0.0
        %3550 = vmatpush2.xpose.msra.mxu0 0.0
        %3551 = vmatprep.subr.mxu0 0.0
        %3552 = vmatpush2.xpose.msra.mxu0 0.0
        %3553 = vmatprep.subr.mxu0 0.0
        %3554 = vmatpush2.xpose.msra.mxu0 0.0
        %3555 = vmatprep.subr.mxu0 0.0
        %3556 = vmatpush2.xpose.msra.mxu0 0.0
        %3557 = vmatprep.subr.mxu0 0.0
        %3558 = vmatpush2.xpose.msra.mxu0 0.0
        %3559 = vmatprep.subr.mxu0 0.0
        %3560 = vmatpush2.xpose.msra.mxu0 0.0
        %3561 = vmatprep.subr.mxu0 0.0
        %3562 = vmatpush2.xpose.msra.mxu0 0.0
        %3563 = vmatprep.mubr.f32.mxu0 0.0
        %3564 = vmatmul.mubr.f32.gmra.mxu0 %v3495
        %v3565 = vpop.f32.mrf.mxu0
        %v3566 = vadd.f32 0.0, %v3565
        %v3567 = vpop.f32.mrf.mxu0
        %3568 = vdwg.mxu0
        %v3569 = vmul.f32 %v3566, 0.35355338
        %v3570 = vadd.f32 %v3569, %v2402
        %v3571 = vsel %vm1336, %v3570, -inf
        %3572 = vmax.xlane.f32.xlu0 %v3571
        %v3573 = vpop.xlane.xlu0 %3572
        %v3574 = vsub.f32 %v3570, %v3573
        %v3575 = vmul.f32 %v3574, 1.442695
        %v3576 = vpow.pop %v3575
        %v3577 = vsel %vm1336, %v3576, 0.0
        %3578 = vadd.xlane.f32.xlu0 %v3577
        %v3579 = vpop.xlane.xlu0 %3578
        %v3580 = vrcp.pop %v3579
        %v3581 = vmul.f32 %v3576, %v3580
        %3582 = vst.msk [vmem:[%s1122] sm:$0xff] %vm1336, %v3581
        %v3583 = vadd.f32 %v3581, 0.0
        %3584 = vrot.lane.b32.xlu0 %v3408, 64
        %v3585 = vpop.permute.xlu0 %3584
        %v3588 = vsel %vm1336, %v3581, 0
        %3590 = vmatprep.subr.mxu0 0.0
        %3591 = vmatpush1.msra.mxu0 0.0
        %3592 = vmatprep.subr.mxu0 0.0
        %3593 = vmatpush1.msra.mxu0 0.0
        %3594 = vmatprep.subr.mxu0 0.0
        %3595 = vmatpush1.msra.mxu0 0.0
        %3596 = vmatprep.subr.mxu0 0.0
        %3597 = vmatpush1.msra.mxu0 0.0
        %3598 = vmatprep.subr.mxu0 0.0
        %3599 = vmatpush1.msra.mxu0 0.0
        %3600 = vmatprep.subr.mxu0 0.0
        %3601 = vmatpush1.msra.mxu0 0.0
        %3602 = vmatprep.subr.mxu0 0.0
        %3603 = vmatpush1.msra.mxu0 0.0
        %3604 = vmatprep.subr.mxu0 0.0
        %3605 = vmatpush1.msra.mxu0 0.0
        %3606 = vmatprep.subr.mxu0 0.0
        %3607 = vmatpush1.msra.mxu0 0.0
        %3608 = vmatprep.subr.mxu0 0.0
        %3609 = vmatpush1.msra.mxu0 0.0
        %3610 = vmatprep.subr.mxu0 0.0
        %3611 = vmatpush1.msra.mxu0 0.0
        %3612 = vmatprep.subr.mxu0 0.0
        %3613 = vmatpush1.msra.mxu0 0.0
        %3614 = vmatprep.subr.mxu0 0.0
        %3615 = vmatpush1.msra.mxu0 0.0
        %3616 = vmatprep.subr.mxu0 0.0
        %3617 = vmatpush1.msra.mxu0 0.0
        %3618 = vmatprep.subr.mxu0 0.0
        %3619 = vmatpush1.msra.mxu0 0.0
        %3620 = vmatprep.subr.mxu0 0.0
        %3621 = vmatpush1.msra.mxu0 %v3585
        %3622 = vmatprep.subr.mxu0 0.0
        %3623 = vmatpush2.msra.mxu0 0.0
        %3624 = vmatprep.subr.mxu0 0.0
        %3625 = vmatpush2.msra.mxu0 0.0
        %3626 = vmatprep.subr.mxu0 0.0
        %3627 = vmatpush2.msra.mxu0 0.0
        %3628 = vmatprep.subr.mxu0 0.0
        %3629 = vmatpush2.msra.mxu0 0.0
        %3630 = vmatprep.subr.mxu0 0.0
        %3631 = vmatpush2.msra.mxu0 0.0
        %3632 = vmatprep.subr.mxu0 0.0
        %3633 = vmatpush2.msra.mxu0 0.0
        %3634 = vmatprep.subr.mxu0 0.0
        %3635 = vmatpush2.msra.mxu0 0.0
        %3636 = vmatprep.subr.mxu0 0.0
        %3637 = vmatpush2.msra.mxu0 0.0
        %3638 = vmatprep.subr.mxu0 0.0
        %3639 = vmatpush2.msra.mxu0 0.0
        %3640 = vmatprep.subr.mxu0 0.0
        %3641 = vmatpush2.msra.mxu0 0.0
        %3642 = vmatprep.subr.mxu0 0.0
        %3643 = vmatpush2.msra.mxu0 0.0
        %3644 = vmatprep.subr.mxu0 0.0
        %3645 = vmatpush2.msra.mxu0 0.0
        %3646 = vmatprep.subr.mxu0 0.0
        %3647 = vmatpush2.msra.mxu0 0.0
        %3648 = vmatprep.subr.mxu0 0.0
        %3649 = vmatpush2.msra.mxu0 0.0
        %3650 = vmatprep.subr.mxu0 0.0
        %3651 = vmatpush2.msra.mxu0 0.0
        %3652 = vmatprep.subr.mxu0 0.0
        %3653 = vmatpush2.msra.mxu0 0.0
        %3654 = vmatprep.mubr.f32.mxu0 0.0
        %3655 = vmatmul.mubr.f32.gmra.mxu0 %v3588
        %v3656 = vpop.f32.mrf.mxu0
        %v3657 = vadd.f32 0.0, %v3656
        %v3658 = vpop.f32.mrf.mxu0
        %3659 = vdwg.mxu0
        %3660 = vrot.lane.b32.xlu0 %v3408, 120
        %v3661 = vpop.permute.xlu0 %3660
        %3662 = vrot.lane.b32.xlu0 %v3408, 88
        %v3663 = vpop.permute.xlu0 %3662
        %v3664 = vsel %vm1336, %v3661, 0
        %v3666 = vsel %vm1336, %v3663, 0
        %3668 = vmatprep.subr.mxu0 0.0
        %3669 = vmatpush1.xpose.msra.mxu0 0.0
        %3670 = vmatprep.subr.mxu0 0.0
        %3671 = vmatpush1.xpose.msra.mxu0 0.0
        %3672 = vmatprep.subr.mxu0 0.0
        %3673 = vmatpush1.xpose.msra.mxu0 0.0
        %3674 = vmatprep.subr.mxu0 0.0
        %3675 = vmatpush1.xpose.msra.mxu0 0.0
        %3676 = vmatprep.subr.mxu0 0.0
        %3677 = vmatpush1.xpose.msra.mxu0 0.0
        %3678 = vmatprep.subr.mxu0 0.0
        %3679 = vmatpush1.xpose.msra.mxu0 0.0
        %3680 = vmatprep.subr.mxu0 0.0
        %3681 = vmatpush1.xpose.msra.mxu0 0.0
        %3682 = vmatprep.subr.mxu0 0.0
        %3683 = vmatpush1.xpose.msra.mxu0 0.0
        %3684 = vmatprep.subr.mxu0 0.0
        %3685 = vmatpush1.xpose.msra.mxu0 0.0
        %3686 = vmatprep.subr.mxu0 0.0
        %3687 = vmatpush1.xpose.msra.mxu0 0.0
        %3688 = vmatprep.subr.mxu0 0.0
        %3689 = vmatpush1.xpose.msra.mxu0 0.0
        %3690 = vmatprep.subr.mxu0 0.0
        %3691 = vmatpush1.xpose.msra.mxu0 0.0
        %3692 = vmatprep.subr.mxu0 0.0
        %3693 = vmatpush1.xpose.msra.mxu0 0.0
        %3694 = vmatprep.subr.mxu0 0.0
        %3695 = vmatpush1.xpose.msra.mxu0 0.0
        %3696 = vmatprep.subr.mxu0 0.0
        %3697 = vmatpush1.xpose.msra.mxu0 0.0
        %3698 = vmatprep.subr.mxu0 0.0
        %3699 = vmatpush1.xpose.msra.mxu0 %v3666
        %3700 = vmatprep.subr.mxu0 0.0
        %3701 = vmatpush2.xpose.msra.mxu0 0.0
        %3702 = vmatprep.subr.mxu0 0.0
        %3703 = vmatpush2.xpose.msra.mxu0 0.0
        %3704 = vmatprep.subr.mxu0 0.0
        %3705 = vmatpush2.xpose.msra.mxu0 0.0
        %3706 = vmatprep.subr.mxu0 0.0
        %3707 = vmatpush2.xpose.msra.mxu0 0.0
        %3708 = vmatprep.subr.mxu0 0.0
        %3709 = vmatpush2.xpose.msra.mxu0 0.0
        %3710 = vmatprep.subr.mxu0 0.0
        %3711 = vmatpush2.xpose.msra.mxu0 0.0
        %3712 = vmatprep.subr.mxu0 0.0
        %3713 = vmatpush2.xpose.msra.mxu0 0.0
        %3714 = vmatprep.subr.mxu0 0.0
        %3715 = vmatpush2.xpose.msra.mxu0 0.0
        %3716 = vmatprep.subr.mxu0 0.0
        %3717 = vmatpush2.xpose.msra.mxu0 0.0
        %3718 = vmatprep.subr.mxu0 0.0
        %3719 = vmatpush2.xpose.msra.mxu0 0.0
        %3720 = vmatprep.subr.mxu0 0.0
        %3721 = vmatpush2.xpose.msra.mxu0 0.0
        %3722 = vmatprep.subr.mxu0 0.0
        %3723 = vmatpush2.xpose.msra.mxu0 0.0
        %3724 = vmatprep.subr.mxu0 0.0
        %3725 = vmatpush2.xpose.msra.mxu0 0.0
        %3726 = vmatprep.subr.mxu0 0.0
        %3727 = vmatpush2.xpose.msra.mxu0 0.0
        %3728 = vmatprep.subr.mxu0 0.0
        %3729 = vmatpush2.xpose.msra.mxu0 0.0
        %3730 = vmatprep.subr.mxu0 0.0
        %3731 = vmatpush2.xpose.msra.mxu0 0.0
        %3732 = vmatprep.mubr.f32.mxu0 0.0
        %3733 = vmatmul.mubr.f32.gmra.mxu0 %v3664
        %v3734 = vpop.f32.mrf.mxu0
        %v3735 = vadd.f32 0.0, %v3734
        %v3736 = vpop.f32.mrf.mxu0
        %3737 = vdwg.mxu0
        %v3738 = vmul.f32 %v3735, 0.35355338
        %v3739 = vadd.f32 %v3738, %v2402
        %v3740 = vsel %vm1336, %v3739, -inf
        %3741 = vmax.xlane.f32.xlu0 %v3740
        %v3742 = vpop.xlane.xlu0 %3741
        %v3743 = vsub.f32 %v3739, %v3742
        %v3744 = vmul.f32 %v3743, 1.442695
        %v3745 = vpow.pop %v3744
        %v3746 = vsel %vm1336, %v3745, 0.0
        %3747 = vadd.xlane.f32.xlu0 %v3746
        %v3748 = vpop.xlane.xlu0 %3747
        %v3749 = vrcp.pop %v3748
        %v3750 = vmul.f32 %v3745, %v3749
        %s3751 = scalar_lea.vmem %s1122, 8 [#allocation31]
        %3752 = vst.msk [vmem:[%s3751] sm:$0xff] %vm1336, %v3750
        %v3753 = vadd.f32 %v3583, %v3750
        %3754 = vrot.lane.b32.xlu0 %v3408, 56
        %v3755 = vpop.permute.xlu0 %3754
        %v3758 = vsel %vm1336, %v3750, 0
        %3760 = vmatprep.subr.mxu0 0.0
        %3761 = vmatpush1.msra.mxu0 0.0
        %3762 = vmatprep.subr.mxu0 0.0
        %3763 = vmatpush1.msra.mxu0 0.0
        %3764 = vmatprep.subr.mxu0 0.0
        %3765 = vmatpush1.msra.mxu0 0.0
        %3766 = vmatprep.subr.mxu0 0.0
        %3767 = vmatpush1.msra.mxu0 0.0
        %3768 = vmatprep.subr.mxu0 0.0
        %3769 = vmatpush1.msra.mxu0 0.0
        %3770 = vmatprep.subr.mxu0 0.0
        %3771 = vmatpush1.msra.mxu0 0.0
        %3772 = vmatprep.subr.mxu0 0.0
        %3773 = vmatpush1.msra.mxu0 0.0
        %3774 = vmatprep.subr.mxu0 0.0
        %3775 = vmatpush1.msra.mxu0 0.0
        %3776 = vmatprep.subr.mxu0 0.0
        %3777 = vmatpush1.msra.mxu0 0.0
        %3778 = vmatprep.subr.mxu0 0.0
        %3779 = vmatpush1.msra.mxu0 0.0
        %3780 = vmatprep.subr.mxu0 0.0
        %3781 = vmatpush1.msra.mxu0 0.0
        %3782 = vmatprep.subr.mxu0 0.0
        %3783 = vmatpush1.msra.mxu0 0.0
        %3784 = vmatprep.subr.mxu0 0.0
        %3785 = vmatpush1.msra.mxu0 0.0
        %3786 = vmatprep.subr.mxu0 0.0
        %3787 = vmatpush1.msra.mxu0 0.0
        %3788 = vmatprep.subr.mxu0 0.0
        %3789 = vmatpush1.msra.mxu0 0.0
        %3790 = vmatprep.subr.mxu0 0.0
        %3791 = vmatpush1.msra.mxu0 %v3755
        %3792 = vmatprep.subr.mxu0 0.0
        %3793 = vmatpush2.msra.mxu0 0.0
        %3794 = vmatprep.subr.mxu0 0.0
        %3795 = vmatpush2.msra.mxu0 0.0
        %3796 = vmatprep.subr.mxu0 0.0
        %3797 = vmatpush2.msra.mxu0 0.0
        %3798 = vmatprep.subr.mxu0 0.0
        %3799 = vmatpush2.msra.mxu0 0.0
        %3800 = vmatprep.subr.mxu0 0.0
        %3801 = vmatpush2.msra.mxu0 0.0
        %3802 = vmatprep.subr.mxu0 0.0
        %3803 = vmatpush2.msra.mxu0 0.0
        %3804 = vmatprep.subr.mxu0 0.0
        %3805 = vmatpush2.msra.mxu0 0.0
        %3806 = vmatprep.subr.mxu0 0.0
        %3807 = vmatpush2.msra.mxu0 0.0
        %3808 = vmatprep.subr.mxu0 0.0
        %3809 = vmatpush2.msra.mxu0 0.0
        %3810 = vmatprep.subr.mxu0 0.0
        %3811 = vmatpush2.msra.mxu0 0.0
        %3812 = vmatprep.subr.mxu0 0.0
        %3813 = vmatpush2.msra.mxu0 0.0
        %3814 = vmatprep.subr.mxu0 0.0
        %3815 = vmatpush2.msra.mxu0 0.0
        %3816 = vmatprep.subr.mxu0 0.0
        %3817 = vmatpush2.msra.mxu0 0.0
        %3818 = vmatprep.subr.mxu0 0.0
        %3819 = vmatpush2.msra.mxu0 0.0
        %3820 = vmatprep.subr.mxu0 0.0
        %3821 = vmatpush2.msra.mxu0 0.0
        %3822 = vmatprep.subr.mxu0 0.0
        %3823 = vmatpush2.msra.mxu0 0.0
        %3824 = vmatprep.mubr.f32.mxu0 0.0
        %3825 = vmatmul.mubr.f32.gmra.mxu0 %v3758
        %v3826 = vpop.f32.mrf.mxu0
        %v3827 = vadd.f32 0.0, %v3826
        %v3828 = vpop.f32.mrf.mxu0
        %3829 = vdwg.mxu0
        %v3831 = vsel %vm1336, %v3827, 0
        %3833 = vmatprep.subr.mxu0 0.0
        %3834 = vmatpush1.msra.mxu0 0.0
        %3835 = vmatprep.subr.mxu0 0.0
        %3836 = vmatpush1.msra.mxu0 0.0
        %3837 = vmatprep.subr.mxu0 0.0
        %3838 = vmatpush1.msra.mxu0 0.0
        %3839 = vmatprep.subr.mxu0 0.0
        %3840 = vmatpush1.msra.mxu0 0.0
        %3841 = vmatprep.subr.mxu0 0.0
        %3842 = vmatpush1.msra.mxu0 0.0
        %3843 = vmatprep.subr.mxu0 0.0
        %3844 = vmatpush1.msra.mxu0 0.0
        %3845 = vmatprep.subr.mxu0 0.0
        %3846 = vmatpush1.msra.mxu0 0.0
        %3847 = vmatprep.subr.mxu0 0.0
        %3848 = vmatpush1.msra.mxu0 0.0
        %3849 = vmatprep.subr.mxu0 0.0
        %3850 = vmatpush1.msra.mxu0 0.0
        %3851 = vmatprep.subr.mxu0 0.0
        %3852 = vmatpush1.msra.mxu0 0.0
        %3853 = vmatprep.subr.mxu0 0.0
        %3854 = vmatpush1.msra.mxu0 0.0
        %3855 = vmatprep.subr.mxu0 0.0
        %3856 = vmatpush1.msra.mxu0 0.0
        %3857 = vmatprep.subr.mxu0 0.0
        %3858 = vmatpush1.msra.mxu0 0.0
        %3859 = vmatprep.subr.mxu0 0.0
        %3860 = vmatpush1.msra.mxu0 0.0
        %3861 = vmatprep.subr.mxu0 0.0
        %3862 = vmatpush1.msra.mxu0 0.0
        %3863 = vmatprep.subr.mxu0 0.0
        %3864 = vmatpush1.msra.mxu0 %v3489
        %3865 = vmatprep.subr.mxu0 0.0
        %3866 = vmatpush2.msra.mxu0 0.0
        %3867 = vmatprep.subr.mxu0 0.0
        %3868 = vmatpush2.msra.mxu0 0.0
        %3869 = vmatprep.subr.mxu0 0.0
        %3870 = vmatpush2.msra.mxu0 0.0
        %3871 = vmatprep.subr.mxu0 0.0
        %3872 = vmatpush2.msra.mxu0 0.0
        %3873 = vmatprep.subr.mxu0 0.0
        %3874 = vmatpush2.msra.mxu0 0.0
        %3875 = vmatprep.subr.mxu0 0.0
        %3876 = vmatpush2.msra.mxu0 0.0
        %3877 = vmatprep.subr.mxu0 0.0
        %3878 = vmatpush2.msra.mxu0 0.0
        %3879 = vmatprep.subr.mxu0 0.0
        %3880 = vmatpush2.msra.mxu0 0.0
        %3881 = vmatprep.subr.mxu0 0.0
        %3882 = vmatpush2.msra.mxu0 0.0
        %3883 = vmatprep.subr.mxu0 0.0
        %3884 = vmatpush2.msra.mxu0 0.0
        %3885 = vmatprep.subr.mxu0 0.0
        %3886 = vmatpush2.msra.mxu0 0.0
        %3887 = vmatprep.subr.mxu0 0.0
        %3888 = vmatpush2.msra.mxu0 0.0
        %3889 = vmatprep.subr.mxu0 0.0
        %3890 = vmatpush2.msra.mxu0 0.0
        %3891 = vmatprep.subr.mxu0 0.0
        %3892 = vmatpush2.msra.mxu0 0.0
        %3893 = vmatprep.subr.mxu0 0.0
        %3894 = vmatpush2.msra.mxu0 0.0
        %3895 = vmatprep.subr.mxu0 0.0
        %3896 = vmatpush2.msra.mxu0 0.0
        %3897 = vmatprep.mubr.f32.mxu0 0.0
        %3898 = vmatmul.mubr.f32.gmra.mxu0 %v3831
        %v3899 = vpop.f32.mrf.mxu0
        %v3900 = vadd.f32 0.0, %v3899
        %v3901 = vpop.f32.mrf.mxu0
        %3902 = vdwg.mxu0
        %v3904 = vsel %vm1336, %v3657, 0
        %3906 = vmatprep.subr.mxu0 0.0
        %3907 = vmatpush1.msra.mxu0 0.0
        %3908 = vmatprep.subr.mxu0 0.0
        %3909 = vmatpush1.msra.mxu0 0.0
        %3910 = vmatprep.subr.mxu0 0.0
        %3911 = vmatpush1.msra.mxu0 0.0
        %3912 = vmatprep.subr.mxu0 0.0
        %3913 = vmatpush1.msra.mxu0 0.0
        %3914 = vmatprep.subr.mxu0 0.0
        %3915 = vmatpush1.msra.mxu0 0.0
        %3916 = vmatprep.subr.mxu0 0.0
        %3917 = vmatpush1.msra.mxu0 0.0
        %3918 = vmatprep.subr.mxu0 0.0
        %3919 = vmatpush1.msra.mxu0 0.0
        %3920 = vmatprep.subr.mxu0 0.0
        %3921 = vmatpush1.msra.mxu0 0.0
        %3922 = vmatprep.subr.mxu0 0.0
        %3923 = vmatpush1.msra.mxu0 0.0
        %3924 = vmatprep.subr.mxu0 0.0
        %3925 = vmatpush1.msra.mxu0 0.0
        %3926 = vmatprep.subr.mxu0 0.0
        %3927 = vmatpush1.msra.mxu0 0.0
        %3928 = vmatprep.subr.mxu0 0.0
        %3929 = vmatpush1.msra.mxu0 0.0
        %3930 = vmatprep.subr.mxu0 0.0
        %3931 = vmatpush1.msra.mxu0 0.0
        %3932 = vmatprep.subr.mxu0 0.0
        %3933 = vmatpush1.msra.mxu0 0.0
        %3934 = vmatprep.subr.mxu0 0.0
        %3935 = vmatpush1.msra.mxu0 0.0
        %3936 = vmatprep.subr.mxu0 0.0
        %3937 = vmatpush1.msra.mxu0 %v3488
        %3938 = vmatprep.subr.mxu0 0.0
        %3939 = vmatpush2.msra.mxu0 0.0
        %3940 = vmatprep.subr.mxu0 0.0
        %3941 = vmatpush2.msra.mxu0 0.0
        %3942 = vmatprep.subr.mxu0 0.0
        %3943 = vmatpush2.msra.mxu0 0.0
        %3944 = vmatprep.subr.mxu0 0.0
        %3945 = vmatpush2.msra.mxu0 0.0
        %3946 = vmatprep.subr.mxu0 0.0
        %3947 = vmatpush2.msra.mxu0 0.0
        %3948 = vmatprep.subr.mxu0 0.0
        %3949 = vmatpush2.msra.mxu0 0.0
        %3950 = vmatprep.subr.mxu0 0.0
        %3951 = vmatpush2.msra.mxu0 0.0
        %3952 = vmatprep.subr.mxu0 0.0
        %3953 = vmatpush2.msra.mxu0 0.0
        %3954 = vmatprep.subr.mxu0 0.0
        %3955 = vmatpush2.msra.mxu0 0.0
        %3956 = vmatprep.subr.mxu0 0.0
        %3957 = vmatpush2.msra.mxu0 0.0
        %3958 = vmatprep.subr.mxu0 0.0
        %3959 = vmatpush2.msra.mxu0 0.0
        %3960 = vmatprep.subr.mxu0 0.0
        %3961 = vmatpush2.msra.mxu0 0.0
        %3962 = vmatprep.subr.mxu0 0.0
        %3963 = vmatpush2.msra.mxu0 0.0
        %3964 = vmatprep.subr.mxu0 0.0
        %3965 = vmatpush2.msra.mxu0 0.0
        %3966 = vmatprep.subr.mxu0 0.0
        %3967 = vmatpush2.msra.mxu0 0.0
        %3968 = vmatprep.subr.mxu0 0.0
        %3969 = vmatpush2.msra.mxu0 0.0
        %3970 = vmatprep.mubr.f32.mxu0 0.0
        %3971 = vmatmul.mubr.f32.gmra.mxu0 %v3904
        %v3972 = vpop.f32.mrf.mxu0
        %v3973 = vadd.f32 %v3900, %v3972
        %v3974 = vpop.f32.mrf.mxu0
        %3975 = vdwg.mxu0
        %3976 = vrot.lane.b32.xlu0 %v3408, 112
        %v3977 = vpop.permute.xlu0 %3976
        %3978 = vrot.lane.b32.xlu0 %v3408, 80
        %v3979 = vpop.permute.xlu0 %3978
        %v3980 = vsel %vm1336, %v3977, 0
        %v3982 = vsel %vm1336, %v3979, 0
        %3984 = vmatprep.subr.mxu0 0.0
        %3985 = vmatpush1.xpose.msra.mxu0 0.0
        %3986 = vmatprep.subr.mxu0 0.0
        %3987 = vmatpush1.xpose.msra.mxu0 0.0
        %3988 = vmatprep.subr.mxu0 0.0
        %3989 = vmatpush1.xpose.msra.mxu0 0.0
        %3990 = vmatprep.subr.mxu0 0.0
        %3991 = vmatpush1.xpose.msra.mxu0 0.0
        %3992 = vmatprep.subr.mxu0 0.0
        %3993 = vmatpush1.xpose.msra.mxu0 0.0
        %3994 = vmatprep.subr.mxu0 0.0
        %3995 = vmatpush1.xpose.msra.mxu0 0.0
        %3996 = vmatprep.subr.mxu0 0.0
        %3997 = vmatpush1.xpose.msra.mxu0 0.0
        %3998 = vmatprep.subr.mxu0 0.0
        %3999 = vmatpush1.xpose.msra.mxu0 0.0
        %4000 = vmatprep.subr.mxu0 0.0
        %4001 = vmatpush1.xpose.msra.mxu0 0.0
        %4002 = vmatprep.subr.mxu0 0.0
        %4003 = vmatpush1.xpose.msra.mxu0 0.0
        %4004 = vmatprep.subr.mxu0 0.0
        %4005 = vmatpush1.xpose.msra.mxu0 0.0
        %4006 = vmatprep.subr.mxu0 0.0
        %4007 = vmatpush1.xpose.msra.mxu0 0.0
        %4008 = vmatprep.subr.mxu0 0.0
        %4009 = vmatpush1.xpose.msra.mxu0 0.0
        %4010 = vmatprep.subr.mxu0 0.0
        %4011 = vmatpush1.xpose.msra.mxu0 0.0
        %4012 = vmatprep.subr.mxu0 0.0
        %4013 = vmatpush1.xpose.msra.mxu0 0.0
        %4014 = vmatprep.subr.mxu0 0.0
        %4015 = vmatpush1.xpose.msra.mxu0 %v3982
        %4016 = vmatprep.subr.mxu0 0.0
        %4017 = vmatpush2.xpose.msra.mxu0 0.0
        %4018 = vmatprep.subr.mxu0 0.0
        %4019 = vmatpush2.xpose.msra.mxu0 0.0
        %4020 = vmatprep.subr.mxu0 0.0
        %4021 = vmatpush2.xpose.msra.mxu0 0.0
        %4022 = vmatprep.subr.mxu0 0.0
        %4023 = vmatpush2.xpose.msra.mxu0 0.0
        %4024 = vmatprep.subr.mxu0 0.0
        %4025 = vmatpush2.xpose.msra.mxu0 0.0
        %4026 = vmatprep.subr.mxu0 0.0
        %4027 = vmatpush2.xpose.msra.mxu0 0.0
        %4028 = vmatprep.subr.mxu0 0.0
        %4029 = vmatpush2.xpose.msra.mxu0 0.0
        %4030 = vmatprep.subr.mxu0 0.0
        %4031 = vmatpush2.xpose.msra.mxu0 0.0
        %4032 = vmatprep.subr.mxu0 0.0
        %4033 = vmatpush2.xpose.msra.mxu0 0.0
        %4034 = vmatprep.subr.mxu0 0.0
        %4035 = vmatpush2.xpose.msra.mxu0 0.0
        %4036 = vmatprep.subr.mxu0 0.0
        %4037 = vmatpush2.xpose.msra.mxu0 0.0
        %4038 = vmatprep.subr.mxu0 0.0
        %4039 = vmatpush2.xpose.msra.mxu0 0.0
        %4040 = vmatprep.subr.mxu0 0.0
        %4041 = vmatpush2.xpose.msra.mxu0 0.0
        %4042 = vmatprep.subr.mxu0 0.0
        %4043 = vmatpush2.xpose.msra.mxu0 0.0
        %4044 = vmatprep.subr.mxu0 0.0
        %4045 = vmatpush2.xpose.msra.mxu0 0.0
        %4046 = vmatprep.subr.mxu0 0.0
        %4047 = vmatpush2.xpose.msra.mxu0 0.0
        %4048 = vmatprep.mubr.f32.mxu0 0.0
        %4049 = vmatmul.mubr.f32.gmra.mxu0 %v3980
        %v4050 = vpop.f32.mrf.mxu0
        %v4051 = vadd.f32 0.0, %v4050
        %v4052 = vpop.f32.mrf.mxu0
        %4053 = vdwg.mxu0
        %v4054 = vmul.f32 %v4051, 0.35355338
        %v4055 = vadd.f32 %v4054, %v2402
        %v4056 = vsel %vm1336, %v4055, -inf
        %4057 = vmax.xlane.f32.xlu0 %v4056
        %v4058 = vpop.xlane.xlu0 %4057
        %v4059 = vsub.f32 %v4055, %v4058
        %v4060 = vmul.f32 %v4059, 1.442695
        %v4061 = vpow.pop %v4060
        %v4062 = vsel %vm1336, %v4061, 0.0
        %4063 = vadd.xlane.f32.xlu0 %v4062
        %v4064 = vpop.xlane.xlu0 %4063
        %v4065 = vrcp.pop %v4064
        %v4066 = vmul.f32 %v4061, %v4065
        %s4067 = scalar_lea.vmem %s1122, 16 [#allocation31]
        %4068 = vst.msk [vmem:[%s4067] sm:$0xff] %vm1336, %v4066
        %v4069 = vadd.f32 %v3753, %v4066
        %4070 = vrot.lane.b32.xlu0 %v3408, 48
        %v4071 = vpop.permute.xlu0 %4070
        %v4074 = vsel %vm1336, %v4066, 0
        %4076 = vmatprep.subr.mxu0 0.0
        %4077 = vmatpush1.msra.mxu0 0.0
        %4078 = vmatprep.subr.mxu0 0.0
        %4079 = vmatpush1.msra.mxu0 0.0
        %4080 = vmatprep.subr.mxu0 0.0
        %4081 = vmatpush1.msra.mxu0 0.0
        %4082 = vmatprep.subr.mxu0 0.0
        %4083 = vmatpush1.msra.mxu0 0.0
        %4084 = vmatprep.subr.mxu0 0.0
        %4085 = vmatpush1.msra.mxu0 0.0
        %4086 = vmatprep.subr.mxu0 0.0
        %4087 = vmatpush1.msra.mxu0 0.0
        %4088 = vmatprep.subr.mxu0 0.0
        %4089 = vmatpush1.msra.mxu0 0.0
        %4090 = vmatprep.subr.mxu0 0.0
        %4091 = vmatpush1.msra.mxu0 0.0
        %4092 = vmatprep.subr.mxu0 0.0
        %4093 = vmatpush1.msra.mxu0 0.0
        %4094 = vmatprep.subr.mxu0 0.0
        %4095 = vmatpush1.msra.mxu0 0.0
        %4096 = vmatprep.subr.mxu0 0.0
        %4097 = vmatpush1.msra.mxu0 0.0
        %4098 = vmatprep.subr.mxu0 0.0
        %4099 = vmatpush1.msra.mxu0 0.0
        %4100 = vmatprep.subr.mxu0 0.0
        %4101 = vmatpush1.msra.mxu0 0.0
        %4102 = vmatprep.subr.mxu0 0.0
        %4103 = vmatpush1.msra.mxu0 0.0
        %4104 = vmatprep.subr.mxu0 0.0
        %4105 = vmatpush1.msra.mxu0 0.0
        %4106 = vmatprep.subr.mxu0 0.0
        %4107 = vmatpush1.msra.mxu0 %v4071
        %4108 = vmatprep.subr.mxu0 0.0
        %4109 = vmatpush2.msra.mxu0 0.0
        %4110 = vmatprep.subr.mxu0 0.0
        %4111 = vmatpush2.msra.mxu0 0.0
        %4112 = vmatprep.subr.mxu0 0.0
        %4113 = vmatpush2.msra.mxu0 0.0
        %4114 = vmatprep.subr.mxu0 0.0
        %4115 = vmatpush2.msra.mxu0 0.0
        %4116 = vmatprep.subr.mxu0 0.0
        %4117 = vmatpush2.msra.mxu0 0.0
        %4118 = vmatprep.subr.mxu0 0.0
        %4119 = vmatpush2.msra.mxu0 0.0
        %4120 = vmatprep.subr.mxu0 0.0
        %4121 = vmatpush2.msra.mxu0 0.0
        %4122 = vmatprep.subr.mxu0 0.0
        %4123 = vmatpush2.msra.mxu0 0.0
        %4124 = vmatprep.subr.mxu0 0.0
        %4125 = vmatpush2.msra.mxu0 0.0
        %4126 = vmatprep.subr.mxu0 0.0
        %4127 = vmatpush2.msra.mxu0 0.0
        %4128 = vmatprep.subr.mxu0 0.0
        %4129 = vmatpush2.msra.mxu0 0.0
        %4130 = vmatprep.subr.mxu0 0.0
        %4131 = vmatpush2.msra.mxu0 0.0
        %4132 = vmatprep.subr.mxu0 0.0
        %4133 = vmatpush2.msra.mxu0 0.0
        %4134 = vmatprep.subr.mxu0 0.0
        %4135 = vmatpush2.msra.mxu0 0.0
        %4136 = vmatprep.subr.mxu0 0.0
        %4137 = vmatpush2.msra.mxu0 0.0
        %4138 = vmatprep.subr.mxu0 0.0
        %4139 = vmatpush2.msra.mxu0 0.0
        %4140 = vmatprep.mubr.f32.mxu0 0.0
        %4141 = vmatmul.mubr.f32.gmra.mxu0 %v4074
        %v4142 = vpop.f32.mrf.mxu0
        %v4143 = vadd.f32 0.0, %v4142
        %v4144 = vpop.f32.mrf.mxu0
        %4145 = vdwg.mxu0
        %v4147 = vsel %vm1336, %v4143, 0
        %4149 = vmatprep.subr.mxu0 0.0
        %4150 = vmatpush1.msra.mxu0 0.0
        %4151 = vmatprep.subr.mxu0 0.0
        %4152 = vmatpush1.msra.mxu0 0.0
        %4153 = vmatprep.subr.mxu0 0.0
        %4154 = vmatpush1.msra.mxu0 0.0
        %4155 = vmatprep.subr.mxu0 0.0
        %4156 = vmatpush1.msra.mxu0 0.0
        %4157 = vmatprep.subr.mxu0 0.0
        %4158 = vmatpush1.msra.mxu0 0.0
        %4159 = vmatprep.subr.mxu0 0.0
        %4160 = vmatpush1.msra.mxu0 0.0
        %4161 = vmatprep.subr.mxu0 0.0
        %4162 = vmatpush1.msra.mxu0 0.0
        %4163 = vmatprep.subr.mxu0 0.0
        %4164 = vmatpush1.msra.mxu0 0.0
        %4165 = vmatprep.subr.mxu0 0.0
        %4166 = vmatpush1.msra.mxu0 0.0
        %4167 = vmatprep.subr.mxu0 0.0
        %4168 = vmatpush1.msra.mxu0 0.0
        %4169 = vmatprep.subr.mxu0 0.0
        %4170 = vmatpush1.msra.mxu0 0.0
        %4171 = vmatprep.subr.mxu0 0.0
        %4172 = vmatpush1.msra.mxu0 0.0
        %4173 = vmatprep.subr.mxu0 0.0
        %4174 = vmatpush1.msra.mxu0 0.0
        %4175 = vmatprep.subr.mxu0 0.0
        %4176 = vmatpush1.msra.mxu0 0.0
        %4177 = vmatprep.subr.mxu0 0.0
        %4178 = vmatpush1.msra.mxu0 0.0
        %4179 = vmatprep.subr.mxu0 0.0
        %4180 = vmatpush1.msra.mxu0 %v3490
        %4181 = vmatprep.subr.mxu0 0.0
        %4182 = vmatpush2.msra.mxu0 0.0
        %4183 = vmatprep.subr.mxu0 0.0
        %4184 = vmatpush2.msra.mxu0 0.0
        %4185 = vmatprep.subr.mxu0 0.0
        %4186 = vmatpush2.msra.mxu0 0.0
        %4187 = vmatprep.subr.mxu0 0.0
        %4188 = vmatpush2.msra.mxu0 0.0
        %4189 = vmatprep.subr.mxu0 0.0
        %4190 = vmatpush2.msra.mxu0 0.0
        %4191 = vmatprep.subr.mxu0 0.0
        %4192 = vmatpush2.msra.mxu0 0.0
        %4193 = vmatprep.subr.mxu0 0.0
        %4194 = vmatpush2.msra.mxu0 0.0
        %4195 = vmatprep.subr.mxu0 0.0
        %4196 = vmatpush2.msra.mxu0 0.0
        %4197 = vmatprep.subr.mxu0 0.0
        %4198 = vmatpush2.msra.mxu0 0.0
        %4199 = vmatprep.subr.mxu0 0.0
        %4200 = vmatpush2.msra.mxu0 0.0
        %4201 = vmatprep.subr.mxu0 0.0
        %4202 = vmatpush2.msra.mxu0 0.0
        %4203 = vmatprep.subr.mxu0 0.0
        %4204 = vmatpush2.msra.mxu0 0.0
        %4205 = vmatprep.subr.mxu0 0.0
        %4206 = vmatpush2.msra.mxu0 0.0
        %4207 = vmatprep.subr.mxu0 0.0
        %4208 = vmatpush2.msra.mxu0 0.0
        %4209 = vmatprep.subr.mxu0 0.0
        %4210 = vmatpush2.msra.mxu0 0.0
        %4211 = vmatprep.subr.mxu0 0.0
        %4212 = vmatpush2.msra.mxu0 0.0
        %4213 = vmatprep.mubr.f32.mxu0 0.0
        %4214 = vmatmul.mubr.f32.gmra.mxu0 %v4147
        %v4215 = vpop.f32.mrf.mxu0
        %v4216 = vadd.f32 0.0, %v4215
        %v4217 = vpop.f32.mrf.mxu0
        %4218 = vdwg.mxu0
        %v4219 = vadd.f32 %v3973, %v4216
        %4220 = vrot.lane.b32.xlu0 %v3408, 104
        %v4221 = vpop.permute.xlu0 %4220
        %4222 = vrot.lane.b32.xlu0 %v3408, 72
        %v4223 = vpop.permute.xlu0 %4222
        %v4224 = vsel %vm1336, %v4221, 0
        %v4226 = vsel %vm1336, %v4223, 0
        %4228 = vmatprep.subr.mxu0 0.0
        %4229 = vmatpush1.xpose.msra.mxu0 0.0
        %4230 = vmatprep.subr.mxu0 0.0
        %4231 = vmatpush1.xpose.msra.mxu0 0.0
        %4232 = vmatprep.subr.mxu0 0.0
        %4233 = vmatpush1.xpose.msra.mxu0 0.0
        %4234 = vmatprep.subr.mxu0 0.0
        %4235 = vmatpush1.xpose.msra.mxu0 0.0
        %4236 = vmatprep.subr.mxu0 0.0
        %4237 = vmatpush1.xpose.msra.mxu0 0.0
        %4238 = vmatprep.subr.mxu0 0.0
        %4239 = vmatpush1.xpose.msra.mxu0 0.0
        %4240 = vmatprep.subr.mxu0 0.0
        %4241 = vmatpush1.xpose.msra.mxu0 0.0
        %4242 = vmatprep.subr.mxu0 0.0
        %4243 = vmatpush1.xpose.msra.mxu0 0.0
        %4244 = vmatprep.subr.mxu0 0.0
        %4245 = vmatpush1.xpose.msra.mxu0 0.0
        %4246 = vmatprep.subr.mxu0 0.0
        %4247 = vmatpush1.xpose.msra.mxu0 0.0
        %4248 = vmatprep.subr.mxu0 0.0
        %4249 = vmatpush1.xpose.msra.mxu0 0.0
        %4250 = vmatprep.subr.mxu0 0.0
        %4251 = vmatpush1.xpose.msra.mxu0 0.0
        %4252 = vmatprep.subr.mxu0 0.0
        %4253 = vmatpush1.xpose.msra.mxu0 0.0
        %4254 = vmatprep.subr.mxu0 0.0
        %4255 = vmatpush1.xpose.msra.mxu0 0.0
        %4256 = vmatprep.subr.mxu0 0.0
        %4257 = vmatpush1.xpose.msra.mxu0 0.0
        %4258 = vmatprep.subr.mxu0 0.0
        %4259 = vmatpush1.xpose.msra.mxu0 %v4226
        %4260 = vmatprep.subr.mxu0 0.0
        %4261 = vmatpush2.xpose.msra.mxu0 0.0
        %4262 = vmatprep.subr.mxu0 0.0
        %4263 = vmatpush2.xpose.msra.mxu0 0.0
        %4264 = vmatprep.subr.mxu0 0.0
        %4265 = vmatpush2.xpose.msra.mxu0 0.0
        %4266 = vmatprep.subr.mxu0 0.0
        %4267 = vmatpush2.xpose.msra.mxu0 0.0
        %4268 = vmatprep.subr.mxu0 0.0
        %4269 = vmatpush2.xpose.msra.mxu0 0.0
        %4270 = vmatprep.subr.mxu0 0.0
        %4271 = vmatpush2.xpose.msra.mxu0 0.0
        %4272 = vmatprep.subr.mxu0 0.0
        %4273 = vmatpush2.xpose.msra.mxu0 0.0
        %4274 = vmatprep.subr.mxu0 0.0
        %4275 = vmatpush2.xpose.msra.mxu0 0.0
        %4276 = vmatprep.subr.mxu0 0.0
        %4277 = vmatpush2.xpose.msra.mxu0 0.0
        %4278 = vmatprep.subr.mxu0 0.0
        %4279 = vmatpush2.xpose.msra.mxu0 0.0
        %4280 = vmatprep.subr.mxu0 0.0
        %4281 = vmatpush2.xpose.msra.mxu0 0.0
        %4282 = vmatprep.subr.mxu0 0.0
        %4283 = vmatpush2.xpose.msra.mxu0 0.0
        %4284 = vmatprep.subr.mxu0 0.0
        %4285 = vmatpush2.xpose.msra.mxu0 0.0
        %4286 = vmatprep.subr.mxu0 0.0
        %4287 = vmatpush2.xpose.msra.mxu0 0.0
        %4288 = vmatprep.subr.mxu0 0.0
        %4289 = vmatpush2.xpose.msra.mxu0 0.0
        %4290 = vmatprep.subr.mxu0 0.0
        %4291 = vmatpush2.xpose.msra.mxu0 0.0
        %4292 = vmatprep.mubr.f32.mxu0 0.0
        %4293 = vmatmul.mubr.f32.gmra.mxu0 %v4224
        %v4294 = vpop.f32.mrf.mxu0
        %v4295 = vadd.f32 0.0, %v4294
        %v4296 = vpop.f32.mrf.mxu0
        %4297 = vdwg.mxu0
        %v4298 = vmul.f32 %v4295, 0.35355338
        %v4299 = vadd.f32 %v4298, %v2402
        %v4300 = vsel %vm1336, %v4299, -inf
        %4301 = vmax.xlane.f32.xlu0 %v4300
        %v4302 = vpop.xlane.xlu0 %4301
        %v4303 = vsub.f32 %v4299, %v4302
        %v4304 = vmul.f32 %v4303, 1.442695
        %v4305 = vpow.pop %v4304
        %v4306 = vsel %vm1336, %v4305, 0.0
        %4307 = vadd.xlane.f32.xlu0 %v4306
        %v4308 = vpop.xlane.xlu0 %4307
        %v4309 = vrcp.pop %v4308
        %v4310 = vmul.f32 %v4305, %v4309
        %s4311 = scalar_lea.vmem %s1122, 24 [#allocation31]
        %4312 = vst.msk [vmem:[%s4311] sm:$0xff] %vm1336, %v4310
        %v4313 = vadd.f32 %v4069, %v4310
        %4314 = vrot.lane.b32.xlu0 %v3408, 40
        %v4315 = vpop.permute.xlu0 %4314
        %v4318 = vsel %vm1336, %v4310, 0
        %4320 = vmatprep.subr.mxu0 0.0
        %4321 = vmatpush1.msra.mxu0 0.0
        %4322 = vmatprep.subr.mxu0 0.0
        %4323 = vmatpush1.msra.mxu0 0.0
        %4324 = vmatprep.subr.mxu0 0.0
        %4325 = vmatpush1.msra.mxu0 0.0
        %4326 = vmatprep.subr.mxu0 0.0
        %4327 = vmatpush1.msra.mxu0 0.0
        %4328 = vmatprep.subr.mxu0 0.0
        %4329 = vmatpush1.msra.mxu0 0.0
        %4330 = vmatprep.subr.mxu0 0.0
        %4331 = vmatpush1.msra.mxu0 0.0
        %4332 = vmatprep.subr.mxu0 0.0
        %4333 = vmatpush1.msra.mxu0 0.0
        %4334 = vmatprep.subr.mxu0 0.0
        %4335 = vmatpush1.msra.mxu0 0.0
        %4336 = vmatprep.subr.mxu0 0.0
        %4337 = vmatpush1.msra.mxu0 0.0
        %4338 = vmatprep.subr.mxu0 0.0
        %4339 = vmatpush1.msra.mxu0 0.0
        %4340 = vmatprep.subr.mxu0 0.0
        %4341 = vmatpush1.msra.mxu0 0.0
        %4342 = vmatprep.subr.mxu0 0.0
        %4343 = vmatpush1.msra.mxu0 0.0
        %4344 = vmatprep.subr.mxu0 0.0
        %4345 = vmatpush1.msra.mxu0 0.0
        %4346 = vmatprep.subr.mxu0 0.0
        %4347 = vmatpush1.msra.mxu0 0.0
        %4348 = vmatprep.subr.mxu0 0.0
        %4349 = vmatpush1.msra.mxu0 0.0
        %4350 = vmatprep.subr.mxu0 0.0
        %4351 = vmatpush1.msra.mxu0 %v4315
        %4352 = vmatprep.subr.mxu0 0.0
        %4353 = vmatpush2.msra.mxu0 0.0
        %4354 = vmatprep.subr.mxu0 0.0
        %4355 = vmatpush2.msra.mxu0 0.0
        %4356 = vmatprep.subr.mxu0 0.0
        %4357 = vmatpush2.msra.mxu0 0.0
        %4358 = vmatprep.subr.mxu0 0.0
        %4359 = vmatpush2.msra.mxu0 0.0
        %4360 = vmatprep.subr.mxu0 0.0
        %4361 = vmatpush2.msra.mxu0 0.0
        %4362 = vmatprep.subr.mxu0 0.0
        %4363 = vmatpush2.msra.mxu0 0.0
        %4364 = vmatprep.subr.mxu0 0.0
        %4365 = vmatpush2.msra.mxu0 0.0
        %4366 = vmatprep.subr.mxu0 0.0
        %4367 = vmatpush2.msra.mxu0 0.0
        %4368 = vmatprep.subr.mxu0 0.0
        %4369 = vmatpush2.msra.mxu0 0.0
        %4370 = vmatprep.subr.mxu0 0.0
        %4371 = vmatpush2.msra.mxu0 0.0
        %4372 = vmatprep.subr.mxu0 0.0
        %4373 = vmatpush2.msra.mxu0 0.0
        %4374 = vmatprep.subr.mxu0 0.0
        %4375 = vmatpush2.msra.mxu0 0.0
        %4376 = vmatprep.subr.mxu0 0.0
        %4377 = vmatpush2.msra.mxu0 0.0
        %4378 = vmatprep.subr.mxu0 0.0
        %4379 = vmatpush2.msra.mxu0 0.0
        %4380 = vmatprep.subr.mxu0 0.0
        %4381 = vmatpush2.msra.mxu0 0.0
        %4382 = vmatprep.subr.mxu0 0.0
        %4383 = vmatpush2.msra.mxu0 0.0
        %4384 = vmatprep.mubr.f32.mxu0 0.0
        %4385 = vmatmul.mubr.f32.gmra.mxu0 %v4318
        %v4386 = vpop.f32.mrf.mxu0
        %v4387 = vadd.f32 0.0, %v4386
        %v4388 = vpop.f32.mrf.mxu0
        %4389 = vdwg.mxu0
        %v4391 = vsel %vm1336, %v4387, 0
        %4393 = vmatprep.subr.mxu0 0.0
        %4394 = vmatpush1.msra.mxu0 0.0
        %4395 = vmatprep.subr.mxu0 0.0
        %4396 = vmatpush1.msra.mxu0 0.0
        %4397 = vmatprep.subr.mxu0 0.0
        %4398 = vmatpush1.msra.mxu0 0.0
        %4399 = vmatprep.subr.mxu0 0.0
        %4400 = vmatpush1.msra.mxu0 0.0
        %4401 = vmatprep.subr.mxu0 0.0
        %4402 = vmatpush1.msra.mxu0 0.0
        %4403 = vmatprep.subr.mxu0 0.0
        %4404 = vmatpush1.msra.mxu0 0.0
        %4405 = vmatprep.subr.mxu0 0.0
        %4406 = vmatpush1.msra.mxu0 0.0
        %4407 = vmatprep.subr.mxu0 0.0
        %4408 = vmatpush1.msra.mxu0 0.0
        %4409 = vmatprep.subr.mxu0 0.0
        %4410 = vmatpush1.msra.mxu0 0.0
        %4411 = vmatprep.subr.mxu0 0.0
        %4412 = vmatpush1.msra.mxu0 0.0
        %4413 = vmatprep.subr.mxu0 0.0
        %4414 = vmatpush1.msra.mxu0 0.0
        %4415 = vmatprep.subr.mxu0 0.0
        %4416 = vmatpush1.msra.mxu0 0.0
        %4417 = vmatprep.subr.mxu0 0.0
        %4418 = vmatpush1.msra.mxu0 0.0
        %4419 = vmatprep.subr.mxu0 0.0
        %4420 = vmatpush1.msra.mxu0 0.0
        %4421 = vmatprep.subr.mxu0 0.0
        %4422 = vmatpush1.msra.mxu0 0.0
        %4423 = vmatprep.subr.mxu0 0.0
        %4424 = vmatpush1.msra.mxu0 %v3491
        %4425 = vmatprep.subr.mxu0 0.0
        %4426 = vmatpush2.msra.mxu0 0.0
        %4427 = vmatprep.subr.mxu0 0.0
        %4428 = vmatpush2.msra.mxu0 0.0
        %4429 = vmatprep.subr.mxu0 0.0
        %4430 = vmatpush2.msra.mxu0 0.0
        %4431 = vmatprep.subr.mxu0 0.0
        %4432 = vmatpush2.msra.mxu0 0.0
        %4433 = vmatprep.subr.mxu0 0.0
        %4434 = vmatpush2.msra.mxu0 0.0
        %4435 = vmatprep.subr.mxu0 0.0
        %4436 = vmatpush2.msra.mxu0 0.0
        %4437 = vmatprep.subr.mxu0 0.0
        %4438 = vmatpush2.msra.mxu0 0.0
        %4439 = vmatprep.subr.mxu0 0.0
        %4440 = vmatpush2.msra.mxu0 0.0
        %4441 = vmatprep.subr.mxu0 0.0
        %4442 = vmatpush2.msra.mxu0 0.0
        %4443 = vmatprep.subr.mxu0 0.0
        %4444 = vmatpush2.msra.mxu0 0.0
        %4445 = vmatprep.subr.mxu0 0.0
        %4446 = vmatpush2.msra.mxu0 0.0
        %4447 = vmatprep.subr.mxu0 0.0
        %4448 = vmatpush2.msra.mxu0 0.0
        %4449 = vmatprep.subr.mxu0 0.0
        %4450 = vmatpush2.msra.mxu0 0.0
        %4451 = vmatprep.subr.mxu0 0.0
        %4452 = vmatpush2.msra.mxu0 0.0
        %4453 = vmatprep.subr.mxu0 0.0
        %4454 = vmatpush2.msra.mxu0 0.0
        %4455 = vmatprep.subr.mxu0 0.0
        %4456 = vmatpush2.msra.mxu0 0.0
        %4457 = vmatprep.mubr.f32.mxu0 0.0
        %4458 = vmatmul.mubr.f32.gmra.mxu0 %v4391
        %v4459 = vpop.f32.mrf.mxu0
        %v4460 = vadd.f32 0.0, %v4459
        %v4461 = vpop.f32.mrf.mxu0
        %4462 = vdwg.mxu0
        %v4463 = vadd.f32 %v4219, %v4460
        %4464 = vxpose.xlu0.b32.start [1/16] %v4313, 128
        %4465 = vxpose.xlu0.b32.cont [2/16] 0.0, 128
        %4466 = vxpose.xlu0.b32.cont [3/16] 0.0, 128
        %4467 = vxpose.xlu0.b32.cont [4/16] 0.0, 128
        %4468 = vxpose.xlu0.b32.cont [5/16] 0.0, 128
        %4469 = vxpose.xlu0.b32.cont [6/16] 0.0, 128
        %4470 = vxpose.xlu0.b32.cont [7/16] 0.0, 128
        %4471 = vxpose.xlu0.b32.cont [8/16] 0.0, 128
        %4472 = vxpose.xlu0.b32.cont [9/16] 0.0, 128
        %4473 = vxpose.xlu0.b32.cont [10/16] 0.0, 128
        %4474 = vxpose.xlu0.b32.cont [11/16] 0.0, 128
        %4475 = vxpose.xlu0.b32.cont [12/16] 0.0, 128
        %4476 = vxpose.xlu0.b32.cont [13/16] 0.0, 128
        %4477 = vxpose.xlu0.b32.cont [14/16] 0.0, 128
        %4478 = vxpose.xlu0.b32.cont [15/16] 0.0, 128
        %4479 = vxpose.xlu0.b32.end [16/16] 0.0, 128
        %v4480 = vpop.trf.xlu0
        %v4481 = vpop.trf.xlu0
        %v4482 = vpop.trf.xlu0
        %v4483 = vpop.trf.xlu0
        %v4484 = vpop.trf.xlu0
        %v4485 = vpop.trf.xlu0
        %v4486 = vpop.trf.xlu0
        %v4487 = vpop.trf.xlu0
        %v4488 = vpop.trf.xlu0
        %v4489 = vpop.trf.xlu0
        %v4490 = vpop.trf.xlu0
        %v4491 = vpop.trf.xlu0
        %v4492 = vpop.trf.xlu0
        %v4493 = vpop.trf.xlu0
        %v4494 = vpop.trf.xlu0
        %v4495 = vpop.trf.xlu0
        %v4496 = vsel %vm1336, %v4480, 0.0
        %4497 = vadd.xlane.f32.xlu0 %v4496
        %v4498 = vpop.xlane.xlu0 %4497
        %v4499 = vld [vmem:[#allocation14] sm:$0xff]
        %v4500 = vld [vmem:[#allocation14 + $0x8] sm:$0xff]
        %v4501 = vld [vmem:[#allocation14 + $0x10] sm:$0xff]
        %v4502 = vld [vmem:[#allocation14 + $0x18] sm:$0xff]
        %4504 = vrot.lane.b32.xlu0 %v3485, 96
        %v4505 = vpop.permute.xlu0 %4504
        %v4506 = vsel %vm1336, %v3485, 0
        %v4508 = vsel %vm1336, %v4505, 0
        %4510 = vmatprep.subr.mxu0 0.0
        %4511 = vmatpush1.xpose.msra.mxu0 0.0
        %4512 = vmatprep.subr.mxu0 0.0
        %4513 = vmatpush1.xpose.msra.mxu0 0.0
        %4514 = vmatprep.subr.mxu0 0.0
        %4515 = vmatpush1.xpose.msra.mxu0 0.0
        %4516 = vmatprep.subr.mxu0 0.0
        %4517 = vmatpush1.xpose.msra.mxu0 0.0
        %4518 = vmatprep.subr.mxu0 0.0
        %4519 = vmatpush1.xpose.msra.mxu0 0.0
        %4520 = vmatprep.subr.mxu0 0.0
        %4521 = vmatpush1.xpose.msra.mxu0 0.0
        %4522 = vmatprep.subr.mxu0 0.0
        %4523 = vmatpush1.xpose.msra.mxu0 0.0
        %4524 = vmatprep.subr.mxu0 0.0
        %4525 = vmatpush1.xpose.msra.mxu0 0.0
        %4526 = vmatprep.subr.mxu0 0.0
        %4527 = vmatpush1.xpose.msra.mxu0 0.0
        %4528 = vmatprep.subr.mxu0 0.0
        %4529 = vmatpush1.xpose.msra.mxu0 0.0
        %4530 = vmatprep.subr.mxu0 0.0
        %4531 = vmatpush1.xpose.msra.mxu0 0.0
        %4532 = vmatprep.subr.mxu0 0.0
        %4533 = vmatpush1.xpose.msra.mxu0 0.0
        %4534 = vmatprep.subr.mxu0 0.0
        %4535 = vmatpush1.xpose.msra.mxu0 0.0
        %4536 = vmatprep.subr.mxu0 0.0
        %4537 = vmatpush1.xpose.msra.mxu0 0.0
        %4538 = vmatprep.subr.mxu0 0.0
        %4539 = vmatpush1.xpose.msra.mxu0 0.0
        %4540 = vmatprep.subr.mxu0 0.0
        %4541 = vmatpush1.xpose.msra.mxu0 %v4508
        %4542 = vmatprep.subr.mxu0 0.0
        %4543 = vmatpush2.xpose.msra.mxu0 0.0
        %4544 = vmatprep.subr.mxu0 0.0
        %4545 = vmatpush2.xpose.msra.mxu0 0.0
        %4546 = vmatprep.subr.mxu0 0.0
        %4547 = vmatpush2.xpose.msra.mxu0 0.0
        %4548 = vmatprep.subr.mxu0 0.0
        %4549 = vmatpush2.xpose.msra.mxu0 0.0
        %4550 = vmatprep.subr.mxu0 0.0
        %4551 = vmatpush2.xpose.msra.mxu0 0.0
        %4552 = vmatprep.subr.mxu0 0.0
        %4553 = vmatpush2.xpose.msra.mxu0 0.0
        %4554 = vmatprep.subr.mxu0 0.0
        %4555 = vmatpush2.xpose.msra.mxu0 0.0
        %4556 = vmatprep.subr.mxu0 0.0
        %4557 = vmatpush2.xpose.msra.mxu0 0.0
        %4558 = vmatprep.subr.mxu0 0.0
        %4559 = vmatpush2.xpose.msra.mxu0 0.0
        %4560 = vmatprep.subr.mxu0 0.0
        %4561 = vmatpush2.xpose.msra.mxu0 0.0
        %4562 = vmatprep.subr.mxu0 0.0
        %4563 = vmatpush2.xpose.msra.mxu0 0.0
        %4564 = vmatprep.subr.mxu0 0.0
        %4565 = vmatpush2.xpose.msra.mxu0 0.0
        %4566 = vmatprep.subr.mxu0 0.0
        %4567 = vmatpush2.xpose.msra.mxu0 0.0
        %4568 = vmatprep.subr.mxu0 0.0
        %4569 = vmatpush2.xpose.msra.mxu0 0.0
        %4570 = vmatprep.subr.mxu0 0.0
        %4571 = vmatpush2.xpose.msra.mxu0 0.0
        %4572 = vmatprep.subr.mxu0 0.0
        %4573 = vmatpush2.xpose.msra.mxu0 0.0
        %4574 = vmatprep.mubr.f32.mxu0 0.0
        %4575 = vmatmul.mubr.f32.gmra.mxu0 %v4506
        %v4576 = vpop.f32.mrf.mxu0
        %v4577 = vadd.f32 0.0, %v4576
        %v4578 = vpop.f32.mrf.mxu0
        %4579 = vdwg.mxu0
        %v4580 = vmul.f32 %v4577, 0.35355338
        %v4581 = vadd.f32 %v4580, %v1417
        %v4582 = vsel %vm1336, %v4581, -inf
        %4583 = vmax.xlane.f32.xlu0 %v4582
        %v4584 = vpop.xlane.xlu0 %4583
        %v4585 = vsub.f32 %v4581, %v4584
        %v4586 = vmul.f32 %v4585, 1.442695
        %v4587 = vpow.pop %v4586
        %v4588 = vsel %vm1336, %v4587, 0.0
        %4589 = vadd.xlane.f32.xlu0 %v4588
        %v4590 = vpop.xlane.xlu0 %4589
        %v4591 = vrcp.pop %v4590
        %v4592 = vmul.f32 %v4587, %v4591
        %4593 = vst.msk [vmem:[%s1129] sm:$0xff] %vm1336, %v4592
        %v4594 = vadd.f32 %v4592, 0.0
        %4595 = vrot.lane.b32.xlu0 %v3485, 64
        %v4596 = vpop.permute.xlu0 %4595
        %v4599 = vsel %vm1336, %v4592, 0
        %4601 = vmatprep.subr.mxu0 0.0
        %4602 = vmatpush1.msra.mxu0 0.0
        %4603 = vmatprep.subr.mxu0 0.0
        %4604 = vmatpush1.msra.mxu0 0.0
        %4605 = vmatprep.subr.mxu0 0.0
        %4606 = vmatpush1.msra.mxu0 0.0
        %4607 = vmatprep.subr.mxu0 0.0
        %4608 = vmatpush1.msra.mxu0 0.0
        %4609 = vmatprep.subr.mxu0 0.0
        %4610 = vmatpush1.msra.mxu0 0.0
        %4611 = vmatprep.subr.mxu0 0.0
        %4612 = vmatpush1.msra.mxu0 0.0
        %4613 = vmatprep.subr.mxu0 0.0
        %4614 = vmatpush1.msra.mxu0 0.0
        %4615 = vmatprep.subr.mxu0 0.0
        %4616 = vmatpush1.msra.mxu0 0.0
        %4617 = vmatprep.subr.mxu0 0.0
        %4618 = vmatpush1.msra.mxu0 0.0
        %4619 = vmatprep.subr.mxu0 0.0
        %4620 = vmatpush1.msra.mxu0 0.0
        %4621 = vmatprep.subr.mxu0 0.0
        %4622 = vmatpush1.msra.mxu0 0.0
        %4623 = vmatprep.subr.mxu0 0.0
        %4624 = vmatpush1.msra.mxu0 0.0
        %4625 = vmatprep.subr.mxu0 0.0
        %4626 = vmatpush1.msra.mxu0 0.0
        %4627 = vmatprep.subr.mxu0 0.0
        %4628 = vmatpush1.msra.mxu0 0.0
        %4629 = vmatprep.subr.mxu0 0.0
        %4630 = vmatpush1.msra.mxu0 0.0
        %4631 = vmatprep.subr.mxu0 0.0
        %4632 = vmatpush1.msra.mxu0 %v4596
        %4633 = vmatprep.subr.mxu0 0.0
        %4634 = vmatpush2.msra.mxu0 0.0
        %4635 = vmatprep.subr.mxu0 0.0
        %4636 = vmatpush2.msra.mxu0 0.0
        %4637 = vmatprep.subr.mxu0 0.0
        %4638 = vmatpush2.msra.mxu0 0.0
        %4639 = vmatprep.subr.mxu0 0.0
        %4640 = vmatpush2.msra.mxu0 0.0
        %4641 = vmatprep.subr.mxu0 0.0
        %4642 = vmatpush2.msra.mxu0 0.0
        %4643 = vmatprep.subr.mxu0 0.0
        %4644 = vmatpush2.msra.mxu0 0.0
        %4645 = vmatprep.subr.mxu0 0.0
        %4646 = vmatpush2.msra.mxu0 0.0
        %4647 = vmatprep.subr.mxu0 0.0
        %4648 = vmatpush2.msra.mxu0 0.0
        %4649 = vmatprep.subr.mxu0 0.0
        %4650 = vmatpush2.msra.mxu0 0.0
        %4651 = vmatprep.subr.mxu0 0.0
        %4652 = vmatpush2.msra.mxu0 0.0
        %4653 = vmatprep.subr.mxu0 0.0
        %4654 = vmatpush2.msra.mxu0 0.0
        %4655 = vmatprep.subr.mxu0 0.0
        %4656 = vmatpush2.msra.mxu0 0.0
        %4657 = vmatprep.subr.mxu0 0.0
        %4658 = vmatpush2.msra.mxu0 0.0
        %4659 = vmatprep.subr.mxu0 0.0
        %4660 = vmatpush2.msra.mxu0 0.0
        %4661 = vmatprep.subr.mxu0 0.0
        %4662 = vmatpush2.msra.mxu0 0.0
        %4663 = vmatprep.subr.mxu0 0.0
        %4664 = vmatpush2.msra.mxu0 0.0
        %4665 = vmatprep.mubr.f32.mxu0 0.0
        %4666 = vmatmul.mubr.f32.gmra.mxu0 %v4599
        %v4667 = vpop.f32.mrf.mxu0
        %v4668 = vadd.f32 0.0, %v4667
        %v4669 = vpop.f32.mrf.mxu0
        %4670 = vdwg.mxu0
        %4671 = vrot.lane.b32.xlu0 %v3485, 120
        %v4672 = vpop.permute.xlu0 %4671
        %4673 = vrot.lane.b32.xlu0 %v3485, 88
        %v4674 = vpop.permute.xlu0 %4673
        %v4675 = vsel %vm1336, %v4672, 0
        %v4677 = vsel %vm1336, %v4674, 0
        %4679 = vmatprep.subr.mxu0 0.0
        %4680 = vmatpush1.xpose.msra.mxu0 0.0
        %4681 = vmatprep.subr.mxu0 0.0
        %4682 = vmatpush1.xpose.msra.mxu0 0.0
        %4683 = vmatprep.subr.mxu0 0.0
        %4684 = vmatpush1.xpose.msra.mxu0 0.0
        %4685 = vmatprep.subr.mxu0 0.0
        %4686 = vmatpush1.xpose.msra.mxu0 0.0
        %4687 = vmatprep.subr.mxu0 0.0
        %4688 = vmatpush1.xpose.msra.mxu0 0.0
        %4689 = vmatprep.subr.mxu0 0.0
        %4690 = vmatpush1.xpose.msra.mxu0 0.0
        %4691 = vmatprep.subr.mxu0 0.0
        %4692 = vmatpush1.xpose.msra.mxu0 0.0
        %4693 = vmatprep.subr.mxu0 0.0
        %4694 = vmatpush1.xpose.msra.mxu0 0.0
        %4695 = vmatprep.subr.mxu0 0.0
        %4696 = vmatpush1.xpose.msra.mxu0 0.0
        %4697 = vmatprep.subr.mxu0 0.0
        %4698 = vmatpush1.xpose.msra.mxu0 0.0
        %4699 = vmatprep.subr.mxu0 0.0
        %4700 = vmatpush1.xpose.msra.mxu0 0.0
        %4701 = vmatprep.subr.mxu0 0.0
        %4702 = vmatpush1.xpose.msra.mxu0 0.0
        %4703 = vmatprep.subr.mxu0 0.0
        %4704 = vmatpush1.xpose.msra.mxu0 0.0
        %4705 = vmatprep.subr.mxu0 0.0
        %4706 = vmatpush1.xpose.msra.mxu0 0.0
        %4707 = vmatprep.subr.mxu0 0.0
        %4708 = vmatpush1.xpose.msra.mxu0 0.0
        %4709 = vmatprep.subr.mxu0 0.0
        %4710 = vmatpush1.xpose.msra.mxu0 %v4677
        %4711 = vmatprep.subr.mxu0 0.0
        %4712 = vmatpush2.xpose.msra.mxu0 0.0
        %4713 = vmatprep.subr.mxu0 0.0
        %4714 = vmatpush2.xpose.msra.mxu0 0.0
        %4715 = vmatprep.subr.mxu0 0.0
        %4716 = vmatpush2.xpose.msra.mxu0 0.0
        %4717 = vmatprep.subr.mxu0 0.0
        %4718 = vmatpush2.xpose.msra.mxu0 0.0
        %4719 = vmatprep.subr.mxu0 0.0
        %4720 = vmatpush2.xpose.msra.mxu0 0.0
        %4721 = vmatprep.subr.mxu0 0.0
        %4722 = vmatpush2.xpose.msra.mxu0 0.0
        %4723 = vmatprep.subr.mxu0 0.0
        %4724 = vmatpush2.xpose.msra.mxu0 0.0
        %4725 = vmatprep.subr.mxu0 0.0
        %4726 = vmatpush2.xpose.msra.mxu0 0.0
        %4727 = vmatprep.subr.mxu0 0.0
        %4728 = vmatpush2.xpose.msra.mxu0 0.0
        %4729 = vmatprep.subr.mxu0 0.0
        %4730 = vmatpush2.xpose.msra.mxu0 0.0
        %4731 = vmatprep.subr.mxu0 0.0
        %4732 = vmatpush2.xpose.msra.mxu0 0.0
        %4733 = vmatprep.subr.mxu0 0.0
        %4734 = vmatpush2.xpose.msra.mxu0 0.0
        %4735 = vmatprep.subr.mxu0 0.0
        %4736 = vmatpush2.xpose.msra.mxu0 0.0
        %4737 = vmatprep.subr.mxu0 0.0
        %4738 = vmatpush2.xpose.msra.mxu0 0.0
        %4739 = vmatprep.subr.mxu0 0.0
        %4740 = vmatpush2.xpose.msra.mxu0 0.0
        %4741 = vmatprep.subr.mxu0 0.0
        %4742 = vmatpush2.xpose.msra.mxu0 0.0
        %4743 = vmatprep.mubr.f32.mxu0 0.0
        %4744 = vmatmul.mubr.f32.gmra.mxu0 %v4675
        %v4745 = vpop.f32.mrf.mxu0
        %v4746 = vadd.f32 0.0, %v4745
        %v4747 = vpop.f32.mrf.mxu0
        %4748 = vdwg.mxu0
        %v4749 = vmul.f32 %v4746, 0.35355338
        %v4750 = vadd.f32 %v4749, %v1417
        %v4751 = vsel %vm1336, %v4750, -inf
        %4752 = vmax.xlane.f32.xlu0 %v4751
        %v4753 = vpop.xlane.xlu0 %4752
        %v4754 = vsub.f32 %v4750, %v4753
        %v4755 = vmul.f32 %v4754, 1.442695
        %v4756 = vpow.pop %v4755
        %v4757 = vsel %vm1336, %v4756, 0.0
        %4758 = vadd.xlane.f32.xlu0 %v4757
        %v4759 = vpop.xlane.xlu0 %4758
        %v4760 = vrcp.pop %v4759
        %v4761 = vmul.f32 %v4756, %v4760
        %s4762 = scalar_lea.vmem %s1129, 8 [#allocation32]
        %4763 = vst.msk [vmem:[%s4762] sm:$0xff] %vm1336, %v4761
        %v4764 = vadd.f32 %v4594, %v4761
        %4765 = vrot.lane.b32.xlu0 %v3485, 56
        %v4766 = vpop.permute.xlu0 %4765
        %v4769 = vsel %vm1336, %v4761, 0
        %4771 = vmatprep.subr.mxu0 0.0
        %4772 = vmatpush1.msra.mxu0 0.0
        %4773 = vmatprep.subr.mxu0 0.0
        %4774 = vmatpush1.msra.mxu0 0.0
        %4775 = vmatprep.subr.mxu0 0.0
        %4776 = vmatpush1.msra.mxu0 0.0
        %4777 = vmatprep.subr.mxu0 0.0
        %4778 = vmatpush1.msra.mxu0 0.0
        %4779 = vmatprep.subr.mxu0 0.0
        %4780 = vmatpush1.msra.mxu0 0.0
        %4781 = vmatprep.subr.mxu0 0.0
        %4782 = vmatpush1.msra.mxu0 0.0
        %4783 = vmatprep.subr.mxu0 0.0
        %4784 = vmatpush1.msra.mxu0 0.0
        %4785 = vmatprep.subr.mxu0 0.0
        %4786 = vmatpush1.msra.mxu0 0.0
        %4787 = vmatprep.subr.mxu0 0.0
        %4788 = vmatpush1.msra.mxu0 0.0
        %4789 = vmatprep.subr.mxu0 0.0
        %4790 = vmatpush1.msra.mxu0 0.0
        %4791 = vmatprep.subr.mxu0 0.0
        %4792 = vmatpush1.msra.mxu0 0.0
        %4793 = vmatprep.subr.mxu0 0.0
        %4794 = vmatpush1.msra.mxu0 0.0
        %4795 = vmatprep.subr.mxu0 0.0
        %4796 = vmatpush1.msra.mxu0 0.0
        %4797 = vmatprep.subr.mxu0 0.0
        %4798 = vmatpush1.msra.mxu0 0.0
        %4799 = vmatprep.subr.mxu0 0.0
        %4800 = vmatpush1.msra.mxu0 0.0
        %4801 = vmatprep.subr.mxu0 0.0
        %4802 = vmatpush1.msra.mxu0 %v4766
        %4803 = vmatprep.subr.mxu0 0.0
        %4804 = vmatpush2.msra.mxu0 0.0
        %4805 = vmatprep.subr.mxu0 0.0
        %4806 = vmatpush2.msra.mxu0 0.0
        %4807 = vmatprep.subr.mxu0 0.0
        %4808 = vmatpush2.msra.mxu0 0.0
        %4809 = vmatprep.subr.mxu0 0.0
        %4810 = vmatpush2.msra.mxu0 0.0
        %4811 = vmatprep.subr.mxu0 0.0
        %4812 = vmatpush2.msra.mxu0 0.0
        %4813 = vmatprep.subr.mxu0 0.0
        %4814 = vmatpush2.msra.mxu0 0.0
        %4815 = vmatprep.subr.mxu0 0.0
        %4816 = vmatpush2.msra.mxu0 0.0
        %4817 = vmatprep.subr.mxu0 0.0
        %4818 = vmatpush2.msra.mxu0 0.0
        %4819 = vmatprep.subr.mxu0 0.0
        %4820 = vmatpush2.msra.mxu0 0.0
        %4821 = vmatprep.subr.mxu0 0.0
        %4822 = vmatpush2.msra.mxu0 0.0
        %4823 = vmatprep.subr.mxu0 0.0
        %4824 = vmatpush2.msra.mxu0 0.0
        %4825 = vmatprep.subr.mxu0 0.0
        %4826 = vmatpush2.msra.mxu0 0.0
        %4827 = vmatprep.subr.mxu0 0.0
        %4828 = vmatpush2.msra.mxu0 0.0
        %4829 = vmatprep.subr.mxu0 0.0
        %4830 = vmatpush2.msra.mxu0 0.0
        %4831 = vmatprep.subr.mxu0 0.0
        %4832 = vmatpush2.msra.mxu0 0.0
        %4833 = vmatprep.subr.mxu0 0.0
        %4834 = vmatpush2.msra.mxu0 0.0
        %4835 = vmatprep.mubr.f32.mxu0 0.0
        %4836 = vmatmul.mubr.f32.gmra.mxu0 %v4769
        %v4837 = vpop.f32.mrf.mxu0
        %v4838 = vadd.f32 0.0, %v4837
        %v4839 = vpop.f32.mrf.mxu0
        %4840 = vdwg.mxu0
        %v4842 = vsel %vm1336, %v4838, 0
        %4844 = vmatprep.subr.mxu0 0.0
        %4845 = vmatpush1.msra.mxu0 0.0
        %4846 = vmatprep.subr.mxu0 0.0
        %4847 = vmatpush1.msra.mxu0 0.0
        %4848 = vmatprep.subr.mxu0 0.0
        %4849 = vmatpush1.msra.mxu0 0.0
        %4850 = vmatprep.subr.mxu0 0.0
        %4851 = vmatpush1.msra.mxu0 0.0
        %4852 = vmatprep.subr.mxu0 0.0
        %4853 = vmatpush1.msra.mxu0 0.0
        %4854 = vmatprep.subr.mxu0 0.0
        %4855 = vmatpush1.msra.mxu0 0.0
        %4856 = vmatprep.subr.mxu0 0.0
        %4857 = vmatpush1.msra.mxu0 0.0
        %4858 = vmatprep.subr.mxu0 0.0
        %4859 = vmatpush1.msra.mxu0 0.0
        %4860 = vmatprep.subr.mxu0 0.0
        %4861 = vmatpush1.msra.mxu0 0.0
        %4862 = vmatprep.subr.mxu0 0.0
        %4863 = vmatpush1.msra.mxu0 0.0
        %4864 = vmatprep.subr.mxu0 0.0
        %4865 = vmatpush1.msra.mxu0 0.0
        %4866 = vmatprep.subr.mxu0 0.0
        %4867 = vmatpush1.msra.mxu0 0.0
        %4868 = vmatprep.subr.mxu0 0.0
        %4869 = vmatpush1.msra.mxu0 0.0
        %4870 = vmatprep.subr.mxu0 0.0
        %4871 = vmatpush1.msra.mxu0 0.0
        %4872 = vmatprep.subr.mxu0 0.0
        %4873 = vmatpush1.msra.mxu0 0.0
        %4874 = vmatprep.subr.mxu0 0.0
        %4875 = vmatpush1.msra.mxu0 %v4500
        %4876 = vmatprep.subr.mxu0 0.0
        %4877 = vmatpush2.msra.mxu0 0.0
        %4878 = vmatprep.subr.mxu0 0.0
        %4879 = vmatpush2.msra.mxu0 0.0
        %4880 = vmatprep.subr.mxu0 0.0
        %4881 = vmatpush2.msra.mxu0 0.0
        %4882 = vmatprep.subr.mxu0 0.0
        %4883 = vmatpush2.msra.mxu0 0.0
        %4884 = vmatprep.subr.mxu0 0.0
        %4885 = vmatpush2.msra.mxu0 0.0
        %4886 = vmatprep.subr.mxu0 0.0
        %4887 = vmatpush2.msra.mxu0 0.0
        %4888 = vmatprep.subr.mxu0 0.0
        %4889 = vmatpush2.msra.mxu0 0.0
        %4890 = vmatprep.subr.mxu0 0.0
        %4891 = vmatpush2.msra.mxu0 0.0
        %4892 = vmatprep.subr.mxu0 0.0
        %4893 = vmatpush2.msra.mxu0 0.0
        %4894 = vmatprep.subr.mxu0 0.0
        %4895 = vmatpush2.msra.mxu0 0.0
        %4896 = vmatprep.subr.mxu0 0.0
        %4897 = vmatpush2.msra.mxu0 0.0
        %4898 = vmatprep.subr.mxu0 0.0
        %4899 = vmatpush2.msra.mxu0 0.0
        %4900 = vmatprep.subr.mxu0 0.0
        %4901 = vmatpush2.msra.mxu0 0.0
        %4902 = vmatprep.subr.mxu0 0.0
        %4903 = vmatpush2.msra.mxu0 0.0
        %4904 = vmatprep.subr.mxu0 0.0
        %4905 = vmatpush2.msra.mxu0 0.0
        %4906 = vmatprep.subr.mxu0 0.0
        %4907 = vmatpush2.msra.mxu0 0.0
        %4908 = vmatprep.mubr.f32.mxu0 0.0
        %4909 = vmatmul.mubr.f32.gmra.mxu0 %v4842
        %v4910 = vpop.f32.mrf.mxu0
        %v4911 = vadd.f32 0.0, %v4910
        %v4912 = vpop.f32.mrf.mxu0
        %4913 = vdwg.mxu0
        %v4915 = vsel %vm1336, %v4668, 0
        %4917 = vmatprep.subr.mxu0 0.0
        %4918 = vmatpush1.msra.mxu0 0.0
        %4919 = vmatprep.subr.mxu0 0.0
        %4920 = vmatpush1.msra.mxu0 0.0
        %4921 = vmatprep.subr.mxu0 0.0
        %4922 = vmatpush1.msra.mxu0 0.0
        %4923 = vmatprep.subr.mxu0 0.0
        %4924 = vmatpush1.msra.mxu0 0.0
        %4925 = vmatprep.subr.mxu0 0.0
        %4926 = vmatpush1.msra.mxu0 0.0
        %4927 = vmatprep.subr.mxu0 0.0
        %4928 = vmatpush1.msra.mxu0 0.0
        %4929 = vmatprep.subr.mxu0 0.0
        %4930 = vmatpush1.msra.mxu0 0.0
        %4931 = vmatprep.subr.mxu0 0.0
        %4932 = vmatpush1.msra.mxu0 0.0
        %4933 = vmatprep.subr.mxu0 0.0
        %4934 = vmatpush1.msra.mxu0 0.0
        %4935 = vmatprep.subr.mxu0 0.0
        %4936 = vmatpush1.msra.mxu0 0.0
        %4937 = vmatprep.subr.mxu0 0.0
        %4938 = vmatpush1.msra.mxu0 0.0
        %4939 = vmatprep.subr.mxu0 0.0
        %4940 = vmatpush1.msra.mxu0 0.0
        %4941 = vmatprep.subr.mxu0 0.0
        %4942 = vmatpush1.msra.mxu0 0.0
        %4943 = vmatprep.subr.mxu0 0.0
        %4944 = vmatpush1.msra.mxu0 0.0
        %4945 = vmatprep.subr.mxu0 0.0
        %4946 = vmatpush1.msra.mxu0 0.0
        %4947 = vmatprep.subr.mxu0 0.0
        %4948 = vmatpush1.msra.mxu0 %v4499
        %4949 = vmatprep.subr.mxu0 0.0
        %4950 = vmatpush2.msra.mxu0 0.0
        %4951 = vmatprep.subr.mxu0 0.0
        %4952 = vmatpush2.msra.mxu0 0.0
        %4953 = vmatprep.subr.mxu0 0.0
        %4954 = vmatpush2.msra.mxu0 0.0
        %4955 = vmatprep.subr.mxu0 0.0
        %4956 = vmatpush2.msra.mxu0 0.0
        %4957 = vmatprep.subr.mxu0 0.0
        %4958 = vmatpush2.msra.mxu0 0.0
        %4959 = vmatprep.subr.mxu0 0.0
        %4960 = vmatpush2.msra.mxu0 0.0
        %4961 = vmatprep.subr.mxu0 0.0
        %4962 = vmatpush2.msra.mxu0 0.0
        %4963 = vmatprep.subr.mxu0 0.0
        %4964 = vmatpush2.msra.mxu0 0.0
        %4965 = vmatprep.subr.mxu0 0.0
        %4966 = vmatpush2.msra.mxu0 0.0
        %4967 = vmatprep.subr.mxu0 0.0
        %4968 = vmatpush2.msra.mxu0 0.0
        %4969 = vmatprep.subr.mxu0 0.0
        %4970 = vmatpush2.msra.mxu0 0.0
        %4971 = vmatprep.subr.mxu0 0.0
        %4972 = vmatpush2.msra.mxu0 0.0
        %4973 = vmatprep.subr.mxu0 0.0
        %4974 = vmatpush2.msra.mxu0 0.0
        %4975 = vmatprep.subr.mxu0 0.0
        %4976 = vmatpush2.msra.mxu0 0.0
        %4977 = vmatprep.subr.mxu0 0.0
        %4978 = vmatpush2.msra.mxu0 0.0
        %4979 = vmatprep.subr.mxu0 0.0
        %4980 = vmatpush2.msra.mxu0 0.0
        %4981 = vmatprep.mubr.f32.mxu0 0.0
        %4982 = vmatmul.mubr.f32.gmra.mxu0 %v4915
        %v4983 = vpop.f32.mrf.mxu0
        %v4984 = vadd.f32 %v4911, %v4983
        %v4985 = vpop.f32.mrf.mxu0
        %4986 = vdwg.mxu0
        %4987 = vrot.lane.b32.xlu0 %v3485, 112
        %v4988 = vpop.permute.xlu0 %4987
        %4989 = vrot.lane.b32.xlu0 %v3485, 80
        %v4990 = vpop.permute.xlu0 %4989
        %v4991 = vsel %vm1336, %v4988, 0
        %v4993 = vsel %vm1336, %v4990, 0
        %4995 = vmatprep.subr.mxu0 0.0
        %4996 = vmatpush1.xpose.msra.mxu0 0.0
        %4997 = vmatprep.subr.mxu0 0.0
        %4998 = vmatpush1.xpose.msra.mxu0 0.0
        %4999 = vmatprep.subr.mxu0 0.0
        %5000 = vmatpush1.xpose.msra.mxu0 0.0
        %5001 = vmatprep.subr.mxu0 0.0
        %5002 = vmatpush1.xpose.msra.mxu0 0.0
        %5003 = vmatprep.subr.mxu0 0.0
        %5004 = vmatpush1.xpose.msra.mxu0 0.0
        %5005 = vmatprep.subr.mxu0 0.0
        %5006 = vmatpush1.xpose.msra.mxu0 0.0
        %5007 = vmatprep.subr.mxu0 0.0
        %5008 = vmatpush1.xpose.msra.mxu0 0.0
        %5009 = vmatprep.subr.mxu0 0.0
        %5010 = vmatpush1.xpose.msra.mxu0 0.0
        %5011 = vmatprep.subr.mxu0 0.0
        %5012 = vmatpush1.xpose.msra.mxu0 0.0
        %5013 = vmatprep.subr.mxu0 0.0
        %5014 = vmatpush1.xpose.msra.mxu0 0.0
        %5015 = vmatprep.subr.mxu0 0.0
        %5016 = vmatpush1.xpose.msra.mxu0 0.0
        %5017 = vmatprep.subr.mxu0 0.0
        %5018 = vmatpush1.xpose.msra.mxu0 0.0
        %5019 = vmatprep.subr.mxu0 0.0
        %5020 = vmatpush1.xpose.msra.mxu0 0.0
        %5021 = vmatprep.subr.mxu0 0.0
        %5022 = vmatpush1.xpose.msra.mxu0 0.0
        %5023 = vmatprep.subr.mxu0 0.0
        %5024 = vmatpush1.xpose.msra.mxu0 0.0
        %5025 = vmatprep.subr.mxu0 0.0
        %5026 = vmatpush1.xpose.msra.mxu0 %v4993
        %5027 = vmatprep.subr.mxu0 0.0
        %5028 = vmatpush2.xpose.msra.mxu0 0.0
        %5029 = vmatprep.subr.mxu0 0.0
        %5030 = vmatpush2.xpose.msra.mxu0 0.0
        %5031 = vmatprep.subr.mxu0 0.0
        %5032 = vmatpush2.xpose.msra.mxu0 0.0
        %5033 = vmatprep.subr.mxu0 0.0
        %5034 = vmatpush2.xpose.msra.mxu0 0.0
        %5035 = vmatprep.subr.mxu0 0.0
        %5036 = vmatpush2.xpose.msra.mxu0 0.0
        %5037 = vmatprep.subr.mxu0 0.0
        %5038 = vmatpush2.xpose.msra.mxu0 0.0
        %5039 = vmatprep.subr.mxu0 0.0
        %5040 = vmatpush2.xpose.msra.mxu0 0.0
        %5041 = vmatprep.subr.mxu0 0.0
        %5042 = vmatpush2.xpose.msra.mxu0 0.0
        %5043 = vmatprep.subr.mxu0 0.0
        %5044 = vmatpush2.xpose.msra.mxu0 0.0
        %5045 = vmatprep.subr.mxu0 0.0
        %5046 = vmatpush2.xpose.msra.mxu0 0.0
        %5047 = vmatprep.subr.mxu0 0.0
        %5048 = vmatpush2.xpose.msra.mxu0 0.0
        %5049 = vmatprep.subr.mxu0 0.0
        %5050 = vmatpush2.xpose.msra.mxu0 0.0
        %5051 = vmatprep.subr.mxu0 0.0
        %5052 = vmatpush2.xpose.msra.mxu0 0.0
        %5053 = vmatprep.subr.mxu0 0.0
        %5054 = vmatpush2.xpose.msra.mxu0 0.0
        %5055 = vmatprep.subr.mxu0 0.0
        %5056 = vmatpush2.xpose.msra.mxu0 0.0
        %5057 = vmatprep.subr.mxu0 0.0
        %5058 = vmatpush2.xpose.msra.mxu0 0.0
        %5059 = vmatprep.mubr.f32.mxu0 0.0
        %5060 = vmatmul.mubr.f32.gmra.mxu0 %v4991
        %v5061 = vpop.f32.mrf.mxu0
        %v5062 = vadd.f32 0.0, %v5061
        %v5063 = vpop.f32.mrf.mxu0
        %5064 = vdwg.mxu0
        %v5065 = vmul.f32 %v5062, 0.35355338
        %v5066 = vadd.f32 %v5065, %v1417
        %v5067 = vsel %vm1336, %v5066, -inf
        %5068 = vmax.xlane.f32.xlu0 %v5067
        %v5069 = vpop.xlane.xlu0 %5068
        %v5070 = vsub.f32 %v5066, %v5069
        %v5071 = vmul.f32 %v5070, 1.442695
        %v5072 = vpow.pop %v5071
        %v5073 = vsel %vm1336, %v5072, 0.0
        %5074 = vadd.xlane.f32.xlu0 %v5073
        %v5075 = vpop.xlane.xlu0 %5074
        %v5076 = vrcp.pop %v5075
        %v5077 = vmul.f32 %v5072, %v5076
        %s5078 = scalar_lea.vmem %s1129, 16 [#allocation32]
        %5079 = vst.msk [vmem:[%s5078] sm:$0xff] %vm1336, %v5077
        %v5080 = vadd.f32 %v4764, %v5077
        %5081 = vrot.lane.b32.xlu0 %v3485, 48
        %v5082 = vpop.permute.xlu0 %5081
        %v5085 = vsel %vm1336, %v5077, 0
        %5087 = vmatprep.subr.mxu0 0.0
        %5088 = vmatpush1.msra.mxu0 0.0
        %5089 = vmatprep.subr.mxu0 0.0
        %5090 = vmatpush1.msra.mxu0 0.0
        %5091 = vmatprep.subr.mxu0 0.0
        %5092 = vmatpush1.msra.mxu0 0.0
        %5093 = vmatprep.subr.mxu0 0.0
        %5094 = vmatpush1.msra.mxu0 0.0
        %5095 = vmatprep.subr.mxu0 0.0
        %5096 = vmatpush1.msra.mxu0 0.0
        %5097 = vmatprep.subr.mxu0 0.0
        %5098 = vmatpush1.msra.mxu0 0.0
        %5099 = vmatprep.subr.mxu0 0.0
        %5100 = vmatpush1.msra.mxu0 0.0
        %5101 = vmatprep.subr.mxu0 0.0
        %5102 = vmatpush1.msra.mxu0 0.0
        %5103 = vmatprep.subr.mxu0 0.0
        %5104 = vmatpush1.msra.mxu0 0.0
        %5105 = vmatprep.subr.mxu0 0.0
        %5106 = vmatpush1.msra.mxu0 0.0
        %5107 = vmatprep.subr.mxu0 0.0
        %5108 = vmatpush1.msra.mxu0 0.0
        %5109 = vmatprep.subr.mxu0 0.0
        %5110 = vmatpush1.msra.mxu0 0.0
        %5111 = vmatprep.subr.mxu0 0.0
        %5112 = vmatpush1.msra.mxu0 0.0
        %5113 = vmatprep.subr.mxu0 0.0
        %5114 = vmatpush1.msra.mxu0 0.0
        %5115 = vmatprep.subr.mxu0 0.0
        %5116 = vmatpush1.msra.mxu0 0.0
        %5117 = vmatprep.subr.mxu0 0.0
        %5118 = vmatpush1.msra.mxu0 %v5082
        %5119 = vmatprep.subr.mxu0 0.0
        %5120 = vmatpush2.msra.mxu0 0.0
        %5121 = vmatprep.subr.mxu0 0.0
        %5122 = vmatpush2.msra.mxu0 0.0
        %5123 = vmatprep.subr.mxu0 0.0
        %5124 = vmatpush2.msra.mxu0 0.0
        %5125 = vmatprep.subr.mxu0 0.0
        %5126 = vmatpush2.msra.mxu0 0.0
        %5127 = vmatprep.subr.mxu0 0.0
        %5128 = vmatpush2.msra.mxu0 0.0
        %5129 = vmatprep.subr.mxu0 0.0
        %5130 = vmatpush2.msra.mxu0 0.0
        %5131 = vmatprep.subr.mxu0 0.0
        %5132 = vmatpush2.msra.mxu0 0.0
        %5133 = vmatprep.subr.mxu0 0.0
        %5134 = vmatpush2.msra.mxu0 0.0
        %5135 = vmatprep.subr.mxu0 0.0
        %5136 = vmatpush2.msra.mxu0 0.0
        %5137 = vmatprep.subr.mxu0 0.0
        %5138 = vmatpush2.msra.mxu0 0.0
        %5139 = vmatprep.subr.mxu0 0.0
        %5140 = vmatpush2.msra.mxu0 0.0
        %5141 = vmatprep.subr.mxu0 0.0
        %5142 = vmatpush2.msra.mxu0 0.0
        %5143 = vmatprep.subr.mxu0 0.0
        %5144 = vmatpush2.msra.mxu0 0.0
        %5145 = vmatprep.subr.mxu0 0.0
        %5146 = vmatpush2.msra.mxu0 0.0
        %5147 = vmatprep.subr.mxu0 0.0
        %5148 = vmatpush2.msra.mxu0 0.0
        %5149 = vmatprep.subr.mxu0 0.0
        %5150 = vmatpush2.msra.mxu0 0.0
        %5151 = vmatprep.mubr.f32.mxu0 0.0
        %5152 = vmatmul.mubr.f32.gmra.mxu0 %v5085
        %v5153 = vpop.f32.mrf.mxu0
        %v5154 = vadd.f32 0.0, %v5153
        %v5155 = vpop.f32.mrf.mxu0
        %5156 = vdwg.mxu0
        %v5158 = vsel %vm1336, %v5154, 0
        %5160 = vmatprep.subr.mxu0 0.0
        %5161 = vmatpush1.msra.mxu0 0.0
        %5162 = vmatprep.subr.mxu0 0.0
        %5163 = vmatpush1.msra.mxu0 0.0
        %5164 = vmatprep.subr.mxu0 0.0
        %5165 = vmatpush1.msra.mxu0 0.0
        %5166 = vmatprep.subr.mxu0 0.0
        %5167 = vmatpush1.msra.mxu0 0.0
        %5168 = vmatprep.subr.mxu0 0.0
        %5169 = vmatpush1.msra.mxu0 0.0
        %5170 = vmatprep.subr.mxu0 0.0
        %5171 = vmatpush1.msra.mxu0 0.0
        %5172 = vmatprep.subr.mxu0 0.0
        %5173 = vmatpush1.msra.mxu0 0.0
        %5174 = vmatprep.subr.mxu0 0.0
        %5175 = vmatpush1.msra.mxu0 0.0
        %5176 = vmatprep.subr.mxu0 0.0
        %5177 = vmatpush1.msra.mxu0 0.0
        %5178 = vmatprep.subr.mxu0 0.0
        %5179 = vmatpush1.msra.mxu0 0.0
        %5180 = vmatprep.subr.mxu0 0.0
        %5181 = vmatpush1.msra.mxu0 0.0
        %5182 = vmatprep.subr.mxu0 0.0
        %5183 = vmatpush1.msra.mxu0 0.0
        %5184 = vmatprep.subr.mxu0 0.0
        %5185 = vmatpush1.msra.mxu0 0.0
        %5186 = vmatprep.subr.mxu0 0.0
        %5187 = vmatpush1.msra.mxu0 0.0
        %5188 = vmatprep.subr.mxu0 0.0
        %5189 = vmatpush1.msra.mxu0 0.0
        %5190 = vmatprep.subr.mxu0 0.0
        %5191 = vmatpush1.msra.mxu0 %v4501
        %5192 = vmatprep.subr.mxu0 0.0
        %5193 = vmatpush2.msra.mxu0 0.0
        %5194 = vmatprep.subr.mxu0 0.0
        %5195 = vmatpush2.msra.mxu0 0.0
        %5196 = vmatprep.subr.mxu0 0.0
        %5197 = vmatpush2.msra.mxu0 0.0
        %5198 = vmatprep.subr.mxu0 0.0
        %5199 = vmatpush2.msra.mxu0 0.0
        %5200 = vmatprep.subr.mxu0 0.0
        %5201 = vmatpush2.msra.mxu0 0.0
        %5202 = vmatprep.subr.mxu0 0.0
        %5203 = vmatpush2.msra.mxu0 0.0
        %5204 = vmatprep.subr.mxu0 0.0
        %5205 = vmatpush2.msra.mxu0 0.0
        %5206 = vmatprep.subr.mxu0 0.0
        %5207 = vmatpush2.msra.mxu0 0.0
        %5208 = vmatprep.subr.mxu0 0.0
        %5209 = vmatpush2.msra.mxu0 0.0
        %5210 = vmatprep.subr.mxu0 0.0
        %5211 = vmatpush2.msra.mxu0 0.0
        %5212 = vmatprep.subr.mxu0 0.0
        %5213 = vmatpush2.msra.mxu0 0.0
        %5214 = vmatprep.subr.mxu0 0.0
        %5215 = vmatpush2.msra.mxu0 0.0
        %5216 = vmatprep.subr.mxu0 0.0
        %5217 = vmatpush2.msra.mxu0 0.0
        %5218 = vmatprep.subr.mxu0 0.0
        %5219 = vmatpush2.msra.mxu0 0.0
        %5220 = vmatprep.subr.mxu0 0.0
        %5221 = vmatpush2.msra.mxu0 0.0
        %5222 = vmatprep.subr.mxu0 0.0
        %5223 = vmatpush2.msra.mxu0 0.0
        %5224 = vmatprep.mubr.f32.mxu0 0.0
        %5225 = vmatmul.mubr.f32.gmra.mxu0 %v5158
        %v5226 = vpop.f32.mrf.mxu0
        %v5227 = vadd.f32 0.0, %v5226
        %v5228 = vpop.f32.mrf.mxu0
        %5229 = vdwg.mxu0
        %v5230 = vadd.f32 %v4984, %v5227
        %5231 = vrot.lane.b32.xlu0 %v3485, 104
        %v5232 = vpop.permute.xlu0 %5231
        %5233 = vrot.lane.b32.xlu0 %v3485, 72
        %v5234 = vpop.permute.xlu0 %5233
        %v5235 = vsel %vm1336, %v5232, 0
        %v5237 = vsel %vm1336, %v5234, 0
        %5239 = vmatprep.subr.mxu0 0.0
        %5240 = vmatpush1.xpose.msra.mxu0 0.0
        %5241 = vmatprep.subr.mxu0 0.0
        %5242 = vmatpush1.xpose.msra.mxu0 0.0
        %5243 = vmatprep.subr.mxu0 0.0
        %5244 = vmatpush1.xpose.msra.mxu0 0.0
        %5245 = vmatprep.subr.mxu0 0.0
        %5246 = vmatpush1.xpose.msra.mxu0 0.0
        %5247 = vmatprep.subr.mxu0 0.0
        %5248 = vmatpush1.xpose.msra.mxu0 0.0
        %5249 = vmatprep.subr.mxu0 0.0
        %5250 = vmatpush1.xpose.msra.mxu0 0.0
        %5251 = vmatprep.subr.mxu0 0.0
        %5252 = vmatpush1.xpose.msra.mxu0 0.0
        %5253 = vmatprep.subr.mxu0 0.0
        %5254 = vmatpush1.xpose.msra.mxu0 0.0
        %5255 = vmatprep.subr.mxu0 0.0
        %5256 = vmatpush1.xpose.msra.mxu0 0.0
        %5257 = vmatprep.subr.mxu0 0.0
        %5258 = vmatpush1.xpose.msra.mxu0 0.0
        %5259 = vmatprep.subr.mxu0 0.0
        %5260 = vmatpush1.xpose.msra.mxu0 0.0
        %5261 = vmatprep.subr.mxu0 0.0
        %5262 = vmatpush1.xpose.msra.mxu0 0.0
        %5263 = vmatprep.subr.mxu0 0.0
        %5264 = vmatpush1.xpose.msra.mxu0 0.0
        %5265 = vmatprep.subr.mxu0 0.0
        %5266 = vmatpush1.xpose.msra.mxu0 0.0
        %5267 = vmatprep.subr.mxu0 0.0
        %5268 = vmatpush1.xpose.msra.mxu0 0.0
        %5269 = vmatprep.subr.mxu0 0.0
        %5270 = vmatpush1.xpose.msra.mxu0 %v5237
        %5271 = vmatprep.subr.mxu0 0.0
        %5272 = vmatpush2.xpose.msra.mxu0 0.0
        %5273 = vmatprep.subr.mxu0 0.0
        %5274 = vmatpush2.xpose.msra.mxu0 0.0
        %5275 = vmatprep.subr.mxu0 0.0
        %5276 = vmatpush2.xpose.msra.mxu0 0.0
        %5277 = vmatprep.subr.mxu0 0.0
        %5278 = vmatpush2.xpose.msra.mxu0 0.0
        %5279 = vmatprep.subr.mxu0 0.0
        %5280 = vmatpush2.xpose.msra.mxu0 0.0
        %5281 = vmatprep.subr.mxu0 0.0
        %5282 = vmatpush2.xpose.msra.mxu0 0.0
        %5283 = vmatprep.subr.mxu0 0.0
        %5284 = vmatpush2.xpose.msra.mxu0 0.0
        %5285 = vmatprep.subr.mxu0 0.0
        %5286 = vmatpush2.xpose.msra.mxu0 0.0
        %5287 = vmatprep.subr.mxu0 0.0
        %5288 = vmatpush2.xpose.msra.mxu0 0.0
        %5289 = vmatprep.subr.mxu0 0.0
        %5290 = vmatpush2.xpose.msra.mxu0 0.0
        %5291 = vmatprep.subr.mxu0 0.0
        %5292 = vmatpush2.xpose.msra.mxu0 0.0
        %5293 = vmatprep.subr.mxu0 0.0
        %5294 = vmatpush2.xpose.msra.mxu0 0.0
        %5295 = vmatprep.subr.mxu0 0.0
        %5296 = vmatpush2.xpose.msra.mxu0 0.0
        %5297 = vmatprep.subr.mxu0 0.0
        %5298 = vmatpush2.xpose.msra.mxu0 0.0
        %5299 = vmatprep.subr.mxu0 0.0
        %5300 = vmatpush2.xpose.msra.mxu0 0.0
        %5301 = vmatprep.subr.mxu0 0.0
        %5302 = vmatpush2.xpose.msra.mxu0 0.0
        %5303 = vmatprep.mubr.f32.mxu0 0.0
        %5304 = vmatmul.mubr.f32.gmra.mxu0 %v5235
        %v5305 = vpop.f32.mrf.mxu0
        %v5306 = vadd.f32 0.0, %v5305
        %v5307 = vpop.f32.mrf.mxu0
        %5308 = vdwg.mxu0
        %v5309 = vmul.f32 %v5306, 0.35355338
        %v5310 = vadd.f32 %v5309, %v1417
        %v5311 = vsel %vm1336, %v5310, -inf
        %5312 = vmax.xlane.f32.xlu0 %v5311
        %v5313 = vpop.xlane.xlu0 %5312
        %v5314 = vsub.f32 %v5310, %v5313
        %v5315 = vmul.f32 %v5314, 1.442695
        %v5316 = vpow.pop %v5315
        %v5317 = vsel %vm1336, %v5316, 0.0
        %5318 = vadd.xlane.f32.xlu0 %v5317
        %v5319 = vpop.xlane.xlu0 %5318
        %v5320 = vrcp.pop %v5319
        %v5321 = vmul.f32 %v5316, %v5320
        %s5322 = scalar_lea.vmem %s1129, 24 [#allocation32]
        %5323 = vst.msk [vmem:[%s5322] sm:$0xff] %vm1336, %v5321
        %v5324 = vadd.f32 %v5080, %v5321
        %5325 = vrot.lane.b32.xlu0 %v3485, 40
        %v5326 = vpop.permute.xlu0 %5325
        %v5329 = vsel %vm1336, %v5321, 0
        %5331 = vmatprep.subr.mxu0 0.0
        %5332 = vmatpush1.msra.mxu0 0.0
        %5333 = vmatprep.subr.mxu0 0.0
        %5334 = vmatpush1.msra.mxu0 0.0
        %5335 = vmatprep.subr.mxu0 0.0
        %5336 = vmatpush1.msra.mxu0 0.0
        %5337 = vmatprep.subr.mxu0 0.0
        %5338 = vmatpush1.msra.mxu0 0.0
        %5339 = vmatprep.subr.mxu0 0.0
        %5340 = vmatpush1.msra.mxu0 0.0
        %5341 = vmatprep.subr.mxu0 0.0
        %5342 = vmatpush1.msra.mxu0 0.0
        %5343 = vmatprep.subr.mxu0 0.0
        %5344 = vmatpush1.msra.mxu0 0.0
        %5345 = vmatprep.subr.mxu0 0.0
        %5346 = vmatpush1.msra.mxu0 0.0
        %5347 = vmatprep.subr.mxu0 0.0
        %5348 = vmatpush1.msra.mxu0 0.0
        %5349 = vmatprep.subr.mxu0 0.0
        %5350 = vmatpush1.msra.mxu0 0.0
        %5351 = vmatprep.subr.mxu0 0.0
        %5352 = vmatpush1.msra.mxu0 0.0
        %5353 = vmatprep.subr.mxu0 0.0
        %5354 = vmatpush1.msra.mxu0 0.0
        %5355 = vmatprep.subr.mxu0 0.0
        %5356 = vmatpush1.msra.mxu0 0.0
        %5357 = vmatprep.subr.mxu0 0.0
        %5358 = vmatpush1.msra.mxu0 0.0
        %5359 = vmatprep.subr.mxu0 0.0
        %5360 = vmatpush1.msra.mxu0 0.0
        %5361 = vmatprep.subr.mxu0 0.0
        %5362 = vmatpush1.msra.mxu0 %v5326
        %5363 = vmatprep.subr.mxu0 0.0
        %5364 = vmatpush2.msra.mxu0 0.0
        %5365 = vmatprep.subr.mxu0 0.0
        %5366 = vmatpush2.msra.mxu0 0.0
        %5367 = vmatprep.subr.mxu0 0.0
        %5368 = vmatpush2.msra.mxu0 0.0
        %5369 = vmatprep.subr.mxu0 0.0
        %5370 = vmatpush2.msra.mxu0 0.0
        %5371 = vmatprep.subr.mxu0 0.0
        %5372 = vmatpush2.msra.mxu0 0.0
        %5373 = vmatprep.subr.mxu0 0.0
        %5374 = vmatpush2.msra.mxu0 0.0
        %5375 = vmatprep.subr.mxu0 0.0
        %5376 = vmatpush2.msra.mxu0 0.0
        %5377 = vmatprep.subr.mxu0 0.0
        %5378 = vmatpush2.msra.mxu0 0.0
        %5379 = vmatprep.subr.mxu0 0.0
        %5380 = vmatpush2.msra.mxu0 0.0
        %5381 = vmatprep.subr.mxu0 0.0
        %5382 = vmatpush2.msra.mxu0 0.0
        %5383 = vmatprep.subr.mxu0 0.0
        %5384 = vmatpush2.msra.mxu0 0.0
        %5385 = vmatprep.subr.mxu0 0.0
        %5386 = vmatpush2.msra.mxu0 0.0
        %5387 = vmatprep.subr.mxu0 0.0
        %5388 = vmatpush2.msra.mxu0 0.0
        %5389 = vmatprep.subr.mxu0 0.0
        %5390 = vmatpush2.msra.mxu0 0.0
        %5391 = vmatprep.subr.mxu0 0.0
        %5392 = vmatpush2.msra.mxu0 0.0
        %5393 = vmatprep.subr.mxu0 0.0
        %5394 = vmatpush2.msra.mxu0 0.0
        %5395 = vmatprep.mubr.f32.mxu0 0.0
        %5396 = vmatmul.mubr.f32.gmra.mxu0 %v5329
        %v5397 = vpop.f32.mrf.mxu0
        %v5398 = vadd.f32 0.0, %v5397
        %v5399 = vpop.f32.mrf.mxu0
        %5400 = vdwg.mxu0
        %v5402 = vsel %vm1336, %v5398, 0
        %5404 = vmatprep.subr.mxu0 0.0
        %5405 = vmatpush1.msra.mxu0 0.0
        %5406 = vmatprep.subr.mxu0 0.0
        %5407 = vmatpush1.msra.mxu0 0.0
        %5408 = vmatprep.subr.mxu0 0.0
        %5409 = vmatpush1.msra.mxu0 0.0
        %5410 = vmatprep.subr.mxu0 0.0
        %5411 = vmatpush1.msra.mxu0 0.0
        %5412 = vmatprep.subr.mxu0 0.0
        %5413 = vmatpush1.msra.mxu0 0.0
        %5414 = vmatprep.subr.mxu0 0.0
        %5415 = vmatpush1.msra.mxu0 0.0
        %5416 = vmatprep.subr.mxu0 0.0
        %5417 = vmatpush1.msra.mxu0 0.0
        %5418 = vmatprep.subr.mxu0 0.0
        %5419 = vmatpush1.msra.mxu0 0.0
        %5420 = vmatprep.subr.mxu0 0.0
        %5421 = vmatpush1.msra.mxu0 0.0
        %5422 = vmatprep.subr.mxu0 0.0
        %5423 = vmatpush1.msra.mxu0 0.0
        %5424 = vmatprep.subr.mxu0 0.0
        %5425 = vmatpush1.msra.mxu0 0.0
        %5426 = vmatprep.subr.mxu0 0.0
        %5427 = vmatpush1.msra.mxu0 0.0
        %5428 = vmatprep.subr.mxu0 0.0
        %5429 = vmatpush1.msra.mxu0 0.0
        %5430 = vmatprep.subr.mxu0 0.0
        %5431 = vmatpush1.msra.mxu0 0.0
        %5432 = vmatprep.subr.mxu0 0.0
        %5433 = vmatpush1.msra.mxu0 0.0
        %5434 = vmatprep.subr.mxu0 0.0
        %5435 = vmatpush1.msra.mxu0 %v4502
        %5436 = vmatprep.subr.mxu0 0.0
        %5437 = vmatpush2.msra.mxu0 0.0
        %5438 = vmatprep.subr.mxu0 0.0
        %5439 = vmatpush2.msra.mxu0 0.0
        %5440 = vmatprep.subr.mxu0 0.0
        %5441 = vmatpush2.msra.mxu0 0.0
        %5442 = vmatprep.subr.mxu0 0.0
        %5443 = vmatpush2.msra.mxu0 0.0
        %5444 = vmatprep.subr.mxu0 0.0
        %5445 = vmatpush2.msra.mxu0 0.0
        %5446 = vmatprep.subr.mxu0 0.0
        %5447 = vmatpush2.msra.mxu0 0.0
        %5448 = vmatprep.subr.mxu0 0.0
        %5449 = vmatpush2.msra.mxu0 0.0
        %5450 = vmatprep.subr.mxu0 0.0
        %5451 = vmatpush2.msra.mxu0 0.0
        %5452 = vmatprep.subr.mxu0 0.0
        %5453 = vmatpush2.msra.mxu0 0.0
        %5454 = vmatprep.subr.mxu0 0.0
        %5455 = vmatpush2.msra.mxu0 0.0
        %5456 = vmatprep.subr.mxu0 0.0
        %5457 = vmatpush2.msra.mxu0 0.0
        %5458 = vmatprep.subr.mxu0 0.0
        %5459 = vmatpush2.msra.mxu0 0.0
        %5460 = vmatprep.subr.mxu0 0.0
        %5461 = vmatpush2.msra.mxu0 0.0
        %5462 = vmatprep.subr.mxu0 0.0
        %5463 = vmatpush2.msra.mxu0 0.0
        %5464 = vmatprep.subr.mxu0 0.0
        %5465 = vmatpush2.msra.mxu0 0.0
        %5466 = vmatprep.subr.mxu0 0.0
        %5467 = vmatpush2.msra.mxu0 0.0
        %5468 = vmatprep.mubr.f32.mxu0 0.0
        %5469 = vmatmul.mubr.f32.gmra.mxu0 %v5402
        %v5470 = vpop.f32.mrf.mxu0
        %v5471 = vadd.f32 0.0, %v5470
        %v5472 = vpop.f32.mrf.mxu0
        %5473 = vdwg.mxu0
        %v5474 = vadd.f32 %v5230, %v5471
        %5475 = vxpose.xlu0.b32.start [1/16] %v5324, 128
        %5476 = vxpose.xlu0.b32.cont [2/16] 0.0, 128
        %5477 = vxpose.xlu0.b32.cont [3/16] 0.0, 128
        %5478 = vxpose.xlu0.b32.cont [4/16] 0.0, 128
        %5479 = vxpose.xlu0.b32.cont [5/16] 0.0, 128
        %5480 = vxpose.xlu0.b32.cont [6/16] 0.0, 128
        %5481 = vxpose.xlu0.b32.cont [7/16] 0.0, 128
        %5482 = vxpose.xlu0.b32.cont [8/16] 0.0, 128
        %5483 = vxpose.xlu0.b32.cont [9/16] 0.0, 128
        %5484 = vxpose.xlu0.b32.cont [10/16] 0.0, 128
        %5485 = vxpose.xlu0.b32.cont [11/16] 0.0, 128
        %5486 = vxpose.xlu0.b32.cont [12/16] 0.0, 128
        %5487 = vxpose.xlu0.b32.cont [13/16] 0.0, 128
        %5488 = vxpose.xlu0.b32.cont [14/16] 0.0, 128
        %5489 = vxpose.xlu0.b32.cont [15/16] 0.0, 128
        %5490 = vxpose.xlu0.b32.end [16/16] 0.0, 128
        %v5491 = vpop.trf.xlu0
        %v5492 = vpop.trf.xlu0
        %v5493 = vpop.trf.xlu0
        %v5494 = vpop.trf.xlu0
        %v5495 = vpop.trf.xlu0
        %v5496 = vpop.trf.xlu0
        %v5497 = vpop.trf.xlu0
        %v5498 = vpop.trf.xlu0
        %v5499 = vpop.trf.xlu0
        %v5500 = vpop.trf.xlu0
        %v5501 = vpop.trf.xlu0
        %v5502 = vpop.trf.xlu0
        %v5503 = vpop.trf.xlu0
        %v5504 = vpop.trf.xlu0
        %v5505 = vpop.trf.xlu0
        %v5506 = vpop.trf.xlu0
        %v5507 = vsel %vm1336, %v5491, 0.0
        %5508 = vadd.xlane.f32.xlu0 %v5507
        %v5509 = vpop.xlane.xlu0 %5508
        %v5510 = vadd.f32 %v3327, %v4463
        %v5511 = vadd.f32 %v3333, %v5474
        %v5512 = vmul.f32 %v3312, 0.05
        %v5513 = vmul.f32 %v4498, 0.95
        %v5514 = vadd.f32 %v5512, %v5513
        %v5515 = vxor.u32 %v5514, 2147483648
        %v5516 = vmul.f32 %v5515, 1.442695
        %v5517 = vpow.pop %v5516
        %v5518 = vadd.f32 %v5517, 1.0
        %v5519 = vrcp.pop %v5518
        %v5520 = vmul.f32 1.0, %v5519
        %v5521 = vmul.f32 %v3321, 0.05
        %v5522 = vmul.f32 %v5509, 0.95
        %v5523 = vadd.f32 %v5521, %v5522
        %v5524 = vxor.u32 %v5523, 2147483648
        %v5525 = vmul.f32 %v5524, 1.442695
        %v5526 = vpow.pop %v5525
        %v5527 = vadd.f32 %v5526, 1.0
        %v5528 = vrcp.pop %v5527
        %v5529 = vmul.f32 1.0, %v5528
        %5531 = vset.pattern.permute.xlu0 0
        %5532 = vperm.xlu0 %5531, %v5520
        %v5533 = vpop.permute.xlu0 %5532
        %v5535 = vmul.f32 %v5510, %v5533
        %5537 = vset.pattern.permute.xlu0 0
        %5538 = vperm.xlu0 %5537, %v5529
        %v5539 = vpop.permute.xlu0 %5538
        %v5541 = vmul.f32 %v5511, %v5539
        %v5543 = vsel %vm1336, %v2316, 0
        %5545 = vmatprep.subr.mxu0 0.0
        %5546 = vmatpush1.msra.mxu0 0.0
        %5547 = vmatprep.subr.mxu0 0.0
        %5548 = vmatpush1.msra.mxu0 0.0
        %5549 = vmatprep.subr.mxu0 0.0
        %5550 = vmatpush1.msra.mxu0 0.0
        %5551 = vmatprep.subr.mxu0 0.0
        %5552 = vmatpush1.msra.mxu0 0.0
        %5553 = vmatprep.subr.mxu0 0.0
        %5554 = vmatpush1.msra.mxu0 0.0
        %5555 = vmatprep.subr.mxu0 0.0
        %5556 = vmatpush1.msra.mxu0 0.0
        %5557 = vmatprep.subr.mxu0 0.0
        %5558 = vmatpush1.msra.mxu0 0.0
        %5559 = vmatprep.subr.mxu0 0.0
        %5560 = vmatpush1.msra.mxu0 0.0
        %5561 = vmatprep.subr.mxu0 0.0
        %5562 = vmatpush1.msra.mxu0 0.0
        %5563 = vmatprep.subr.mxu0 0.0
        %5564 = vmatpush1.msra.mxu0 0.0
        %5565 = vmatprep.subr.mxu0 0.0
        %5566 = vmatpush1.msra.mxu0 0.0
        %5567 = vmatprep.subr.mxu0 0.0
        %5568 = vmatpush1.msra.mxu0 0.0
        %5569 = vmatprep.subr.mxu0 0.0
        %5570 = vmatpush1.msra.mxu0 0.0
        %5571 = vmatprep.subr.mxu0 0.0
        %5572 = vmatpush1.msra.mxu0 0.0
        %5573 = vmatprep.subr.mxu0 0.0
        %5574 = vmatpush1.msra.mxu0 0.0
        %5575 = vmatprep.subr.mxu0 0.0
        %5576 = vmatpush1.msra.mxu0 %v3301
        %5577 = vmatprep.subr.mxu0 0.0
        %5578 = vmatpush2.msra.mxu0 0.0
        %5579 = vmatprep.subr.mxu0 0.0
        %5580 = vmatpush2.msra.mxu0 0.0
        %5581 = vmatprep.subr.mxu0 0.0
        %5582 = vmatpush2.msra.mxu0 0.0
        %5583 = vmatprep.subr.mxu0 0.0
        %5584 = vmatpush2.msra.mxu0 0.0
        %5585 = vmatprep.subr.mxu0 0.0
        %5586 = vmatpush2.msra.mxu0 0.0
        %5587 = vmatprep.subr.mxu0 0.0
        %5588 = vmatpush2.msra.mxu0 0.0
        %5589 = vmatprep.subr.mxu0 0.0
        %5590 = vmatpush2.msra.mxu0 0.0
        %5591 = vmatprep.subr.mxu0 0.0
        %5592 = vmatpush2.msra.mxu0 0.0
        %5593 = vmatprep.subr.mxu0 0.0
        %5594 = vmatpush2.msra.mxu0 0.0
        %5595 = vmatprep.subr.mxu0 0.0
        %5596 = vmatpush2.msra.mxu0 0.0
        %5597 = vmatprep.subr.mxu0 0.0
        %5598 = vmatpush2.msra.mxu0 0.0
        %5599 = vmatprep.subr.mxu0 0.0
        %5600 = vmatpush2.msra.mxu0 0.0
        %5601 = vmatprep.subr.mxu0 0.0
        %5602 = vmatpush2.msra.mxu0 0.0
        %5603 = vmatprep.subr.mxu0 0.0
        %5604 = vmatpush2.msra.mxu0 0.0
        %5605 = vmatprep.subr.mxu0 0.0
        %5606 = vmatpush2.msra.mxu0 0.0
        %5607 = vmatprep.subr.mxu0 0.0
        %5608 = vmatpush2.msra.mxu0 0.0
        %5609 = vmatprep.mubr.f32.mxu0 0.0
        %5610 = vmatmul.mubr.f32.gmra.mxu0 %v5543
        %v5611 = vpop.f32.mrf.mxu0
        %v5612 = vadd.f32 0.0, %v5611
        %v5613 = vpop.f32.mrf.mxu0
        %5614 = vdwg.mxu0
        %v5616 = vsel %vm1336, %v3301, 0
        %5618 = vmatprep.subr.mxu0 0.0
        %5619 = vmatpush1.msra.mxu0 0.0
        %5620 = vmatprep.subr.mxu0 0.0
        %5621 = vmatpush1.msra.mxu0 0.0
        %5622 = vmatprep.subr.mxu0 0.0
        %5623 = vmatpush1.msra.mxu0 0.0
        %5624 = vmatprep.subr.mxu0 0.0
        %5625 = vmatpush1.msra.mxu0 0.0
        %5626 = vmatprep.subr.mxu0 0.0
        %5627 = vmatpush1.msra.mxu0 0.0
        %5628 = vmatprep.subr.mxu0 0.0
        %5629 = vmatpush1.msra.mxu0 0.0
        %5630 = vmatprep.subr.mxu0 0.0
        %5631 = vmatpush1.msra.mxu0 0.0
        %5632 = vmatprep.subr.mxu0 0.0
        %5633 = vmatpush1.msra.mxu0 0.0
        %5634 = vmatprep.subr.mxu0 0.0
        %5635 = vmatpush1.msra.mxu0 0.0
        %5636 = vmatprep.subr.mxu0 0.0
        %5637 = vmatpush1.msra.mxu0 0.0
        %5638 = vmatprep.subr.mxu0 0.0
        %5639 = vmatpush1.msra.mxu0 0.0
        %5640 = vmatprep.subr.mxu0 0.0
        %5641 = vmatpush1.msra.mxu0 0.0
        %5642 = vmatprep.subr.mxu0 0.0
        %5643 = vmatpush1.msra.mxu0 0.0
        %5644 = vmatprep.subr.mxu0 0.0
        %5645 = vmatpush1.msra.mxu0 0.0
        %5646 = vmatprep.subr.mxu0 0.0
        %5647 = vmatpush1.msra.mxu0 0.0
        %5648 = vmatprep.subr.mxu0 0.0
        %5649 = vmatpush1.msra.mxu0 %v2316
        %5650 = vmatprep.subr.mxu0 0.0
        %5651 = vmatpush2.msra.mxu0 0.0
        %5652 = vmatprep.subr.mxu0 0.0
        %5653 = vmatpush2.msra.mxu0 0.0
        %5654 = vmatprep.subr.mxu0 0.0
        %5655 = vmatpush2.msra.mxu0 0.0
        %5656 = vmatprep.subr.mxu0 0.0
        %5657 = vmatpush2.msra.mxu0 0.0
        %5658 = vmatprep.subr.mxu0 0.0
        %5659 = vmatpush2.msra.mxu0 0.0
        %5660 = vmatprep.subr.mxu0 0.0
        %5661 = vmatpush2.msra.mxu0 0.0
        %5662 = vmatprep.subr.mxu0 0.0
        %5663 = vmatpush2.msra.mxu0 0.0
        %5664 = vmatprep.subr.mxu0 0.0
        %5665 = vmatpush2.msra.mxu0 0.0
        %5666 = vmatprep.subr.mxu0 0.0
        %5667 = vmatpush2.msra.mxu0 0.0
        %5668 = vmatprep.subr.mxu0 0.0
        %5669 = vmatpush2.msra.mxu0 0.0
        %5670 = vmatprep.subr.mxu0 0.0
        %5671 = vmatpush2.msra.mxu0 0.0
        %5672 = vmatprep.subr.mxu0 0.0
        %5673 = vmatpush2.msra.mxu0 0.0
        %5674 = vmatprep.subr.mxu0 0.0
        %5675 = vmatpush2.msra.mxu0 0.0
        %5676 = vmatprep.subr.mxu0 0.0
        %5677 = vmatpush2.msra.mxu0 0.0
        %5678 = vmatprep.subr.mxu0 0.0
        %5679 = vmatpush2.msra.mxu0 0.0
        %5680 = vmatprep.subr.mxu0 0.0
        %5681 = vmatpush2.msra.mxu0 0.0
        %5682 = vmatprep.mubr.f32.mxu0 0.0
        %5683 = vmatmul.mubr.f32.gmra.mxu0 %v5616
        %v5684 = vpop.f32.mrf.mxu0
        %v5685 = vadd.f32 0.0, %v5684
        %v5686 = vpop.f32.mrf.mxu0
        %5687 = vdwg.mxu0
        %v5688 = vld [vmem:[#allocation16] sm:$0xff]
        %v5689 = vld [vmem:[#allocation16 + $0x8] sm:$0xff]
        %v5690 = vld [vmem:[#allocation16 + $0x10] sm:$0xff]
        %v5691 = vld [vmem:[#allocation16 + $0x18] sm:$0xff]
        %v5693 = vsel %vm1178, %v5535, 0
        %5695 = vmatprep.subr.mxu0 0.0
        %5696 = vmatpush1.msra.mxu0 0.0
        %5697 = vmatprep.subr.mxu0 0.0
        %5698 = vmatpush1.msra.mxu0 0.0
        %5699 = vmatprep.subr.mxu0 0.0
        %5700 = vmatpush1.msra.mxu0 0.0
        %5701 = vmatprep.subr.mxu0 0.0
        %5702 = vmatpush1.msra.mxu0 0.0
        %5703 = vmatprep.subr.mxu0 0.0
        %5704 = vmatpush1.msra.mxu0 0.0
        %5705 = vmatprep.subr.mxu0 0.0
        %5706 = vmatpush1.msra.mxu0 0.0
        %5707 = vmatprep.subr.mxu0 0.0
        %5708 = vmatpush1.msra.mxu0 0.0
        %5709 = vmatprep.subr.mxu0 0.0
        %5710 = vmatpush1.msra.mxu0 0.0
        %5711 = vmatprep.subr.mxu0 0.0
        %5712 = vmatpush1.msra.mxu0 0.0
        %5713 = vmatprep.subr.mxu0 0.0
        %5714 = vmatpush1.msra.mxu0 0.0
        %5715 = vmatprep.subr.mxu0 0.0
        %5716 = vmatpush1.msra.mxu0 0.0
        %5717 = vmatprep.subr.mxu0 0.0
        %5718 = vmatpush1.msra.mxu0 0.0
        %5719 = vmatprep.subr.mxu0 0.0
        %5720 = vmatpush1.msra.mxu0 %v5691
        %5721 = vmatprep.subr.mxu0 0.0
        %5722 = vmatpush1.msra.mxu0 %v5690
        %5723 = vmatprep.subr.mxu0 0.0
        %5724 = vmatpush1.msra.mxu0 %v5689
        %5725 = vmatprep.subr.mxu0 0.0
        %5726 = vmatpush1.msra.mxu0 %v5688
        %5727 = vmatprep.subr.mxu0 0.0
        %5728 = vmatpush2.msra.mxu0 0.0
        %5729 = vmatprep.subr.mxu0 0.0
        %5730 = vmatpush2.msra.mxu0 0.0
        %5731 = vmatprep.subr.mxu0 0.0
        %5732 = vmatpush2.msra.mxu0 0.0
        %5733 = vmatprep.subr.mxu0 0.0
        %5734 = vmatpush2.msra.mxu0 0.0
        %5735 = vmatprep.subr.mxu0 0.0
        %5736 = vmatpush2.msra.mxu0 0.0
        %5737 = vmatprep.subr.mxu0 0.0
        %5738 = vmatpush2.msra.mxu0 0.0
        %5739 = vmatprep.subr.mxu0 0.0
        %5740 = vmatpush2.msra.mxu0 0.0
        %5741 = vmatprep.subr.mxu0 0.0
        %5742 = vmatpush2.msra.mxu0 0.0
        %5743 = vmatprep.subr.mxu0 0.0
        %5744 = vmatpush2.msra.mxu0 0.0
        %5745 = vmatprep.subr.mxu0 0.0
        %5746 = vmatpush2.msra.mxu0 0.0
        %5747 = vmatprep.subr.mxu0 0.0
        %5748 = vmatpush2.msra.mxu0 0.0
        %5749 = vmatprep.subr.mxu0 0.0
        %5750 = vmatpush2.msra.mxu0 0.0
        %5751 = vmatprep.subr.mxu0 0.0
        %5752 = vmatpush2.msra.mxu0 0.0
        %5753 = vmatprep.subr.mxu0 0.0
        %5754 = vmatpush2.msra.mxu0 0.0
        %5755 = vmatprep.subr.mxu0 0.0
        %5756 = vmatpush2.msra.mxu0 0.0
        %5757 = vmatprep.subr.mxu0 0.0
        %5758 = vmatpush2.msra.mxu0 0.0
        %5759 = vmatprep.mubr.f32.mxu0 0.0
        %5760 = vmatmul.mubr.f32.gmra.mxu0 %v5693
        %v5761 = vpop.f32.mrf.mxu0
        %v5762 = vadd.f32 0.0, %v5761
        %v5763 = vpop.f32.mrf.mxu0
        %5764 = vdwg.mxu0
        %v5766 = vsel %vm1336, %v5612, 0
        %5768 = vmatprep.subr.mxu0 0.0
        %5769 = vmatpush1.msra.mxu0 0.0
        %5770 = vmatprep.subr.mxu0 0.0
        %5771 = vmatpush1.msra.mxu0 0.0
        %5772 = vmatprep.subr.mxu0 0.0
        %5773 = vmatpush1.msra.mxu0 0.0
        %5774 = vmatprep.subr.mxu0 0.0
        %5775 = vmatpush1.msra.mxu0 0.0
        %5776 = vmatprep.subr.mxu0 0.0
        %5777 = vmatpush1.msra.mxu0 0.0
        %5778 = vmatprep.subr.mxu0 0.0
        %5779 = vmatpush1.msra.mxu0 0.0
        %5780 = vmatprep.subr.mxu0 0.0
        %5781 = vmatpush1.msra.mxu0 0.0
        %5782 = vmatprep.subr.mxu0 0.0
        %5783 = vmatpush1.msra.mxu0 0.0
        %5784 = vmatprep.subr.mxu0 0.0
        %5785 = vmatpush1.msra.mxu0 0.0
        %5786 = vmatprep.subr.mxu0 0.0
        %5787 = vmatpush1.msra.mxu0 0.0
        %5788 = vmatprep.subr.mxu0 0.0
        %5789 = vmatpush1.msra.mxu0 0.0
        %5790 = vmatprep.subr.mxu0 0.0
        %5791 = vmatpush1.msra.mxu0 0.0
        %5792 = vmatprep.subr.mxu0 0.0
        %5793 = vmatpush1.msra.mxu0 0.0
        %5794 = vmatprep.subr.mxu0 0.0
        %5795 = vmatpush1.msra.mxu0 0.0
        %5796 = vmatprep.subr.mxu0 0.0
        %5797 = vmatpush1.msra.mxu0 0.0
        %5798 = vmatprep.subr.mxu0 0.0
        %5799 = vmatpush1.msra.mxu0 %v5762
        %5800 = vmatprep.subr.mxu0 0.0
        %5801 = vmatpush2.msra.mxu0 0.0
        %5802 = vmatprep.subr.mxu0 0.0
        %5803 = vmatpush2.msra.mxu0 0.0
        %5804 = vmatprep.subr.mxu0 0.0
        %5805 = vmatpush2.msra.mxu0 0.0
        %5806 = vmatprep.subr.mxu0 0.0
        %5807 = vmatpush2.msra.mxu0 0.0
        %5808 = vmatprep.subr.mxu0 0.0
        %5809 = vmatpush2.msra.mxu0 0.0
        %5810 = vmatprep.subr.mxu0 0.0
        %5811 = vmatpush2.msra.mxu0 0.0
        %5812 = vmatprep.subr.mxu0 0.0
        %5813 = vmatpush2.msra.mxu0 0.0
        %5814 = vmatprep.subr.mxu0 0.0
        %5815 = vmatpush2.msra.mxu0 0.0
        %5816 = vmatprep.subr.mxu0 0.0
        %5817 = vmatpush2.msra.mxu0 0.0
        %5818 = vmatprep.subr.mxu0 0.0
        %5819 = vmatpush2.msra.mxu0 0.0
        %5820 = vmatprep.subr.mxu0 0.0
        %5821 = vmatpush2.msra.mxu0 0.0
        %5822 = vmatprep.subr.mxu0 0.0
        %5823 = vmatpush2.msra.mxu0 0.0
        %5824 = vmatprep.subr.mxu0 0.0
        %5825 = vmatpush2.msra.mxu0 0.0
        %5826 = vmatprep.subr.mxu0 0.0
        %5827 = vmatpush2.msra.mxu0 0.0
        %5828 = vmatprep.subr.mxu0 0.0
        %5829 = vmatpush2.msra.mxu0 0.0
        %5830 = vmatprep.subr.mxu0 0.0
        %5831 = vmatpush2.msra.mxu0 0.0
        %5832 = vmatprep.mubr.f32.mxu0 0.0
        %5833 = vmatmul.mubr.f32.gmra.mxu0 %v5766
        %v5834 = vpop.f32.mrf.mxu0
        %v5835 = vadd.f32 0.0, %v5834
        %v5836 = vpop.f32.mrf.mxu0
        %5837 = vdwg.mxu0
        %v5838 = vadd.f32 %v5535, %v5835
        %v5839 = vld [vmem:[#allocation17] sm:$0xff]
        %v5840 = vld [vmem:[#allocation17 + $0x8] sm:$0xff]
        %v5841 = vld [vmem:[#allocation17 + $0x10] sm:$0xff]
        %v5842 = vld [vmem:[#allocation17 + $0x18] sm:$0xff]
        %v5844 = vsel %vm1178, %v5541, 0
        %5846 = vmatprep.subr.mxu0 0.0
        %5847 = vmatpush1.msra.mxu0 0.0
        %5848 = vmatprep.subr.mxu0 0.0
        %5849 = vmatpush1.msra.mxu0 0.0
        %5850 = vmatprep.subr.mxu0 0.0
        %5851 = vmatpush1.msra.mxu0 0.0
        %5852 = vmatprep.subr.mxu0 0.0
        %5853 = vmatpush1.msra.mxu0 0.0
        %5854 = vmatprep.subr.mxu0 0.0
        %5855 = vmatpush1.msra.mxu0 0.0
        %5856 = vmatprep.subr.mxu0 0.0
        %5857 = vmatpush1.msra.mxu0 0.0
        %5858 = vmatprep.subr.mxu0 0.0
        %5859 = vmatpush1.msra.mxu0 0.0
        %5860 = vmatprep.subr.mxu0 0.0
        %5861 = vmatpush1.msra.mxu0 0.0
        %5862 = vmatprep.subr.mxu0 0.0
        %5863 = vmatpush1.msra.mxu0 0.0
        %5864 = vmatprep.subr.mxu0 0.0
        %5865 = vmatpush1.msra.mxu0 0.0
        %5866 = vmatprep.subr.mxu0 0.0
        %5867 = vmatpush1.msra.mxu0 0.0
        %5868 = vmatprep.subr.mxu0 0.0
        %5869 = vmatpush1.msra.mxu0 0.0
        %5870 = vmatprep.subr.mxu0 0.0
        %5871 = vmatpush1.msra.mxu0 %v5842
        %5872 = vmatprep.subr.mxu0 0.0
        %5873 = vmatpush1.msra.mxu0 %v5841
        %5874 = vmatprep.subr.mxu0 0.0
        %5875 = vmatpush1.msra.mxu0 %v5840
        %5876 = vmatprep.subr.mxu0 0.0
        %5877 = vmatpush1.msra.mxu0 %v5839
        %5878 = vmatprep.subr.mxu0 0.0
        %5879 = vmatpush2.msra.mxu0 0.0
        %5880 = vmatprep.subr.mxu0 0.0
        %5881 = vmatpush2.msra.mxu0 0.0
        %5882 = vmatprep.subr.mxu0 0.0
        %5883 = vmatpush2.msra.mxu0 0.0
        %5884 = vmatprep.subr.mxu0 0.0
        %5885 = vmatpush2.msra.mxu0 0.0
        %5886 = vmatprep.subr.mxu0 0.0
        %5887 = vmatpush2.msra.mxu0 0.0
        %5888 = vmatprep.subr.mxu0 0.0
        %5889 = vmatpush2.msra.mxu0 0.0
        %5890 = vmatprep.subr.mxu0 0.0
        %5891 = vmatpush2.msra.mxu0 0.0
        %5892 = vmatprep.subr.mxu0 0.0
        %5893 = vmatpush2.msra.mxu0 0.0
        %5894 = vmatprep.subr.mxu0 0.0
        %5895 = vmatpush2.msra.mxu0 0.0
        %5896 = vmatprep.subr.mxu0 0.0
        %5897 = vmatpush2.msra.mxu0 0.0
        %5898 = vmatprep.subr.mxu0 0.0
        %5899 = vmatpush2.msra.mxu0 0.0
        %5900 = vmatprep.subr.mxu0 0.0
        %5901 = vmatpush2.msra.mxu0 0.0
        %5902 = vmatprep.subr.mxu0 0.0
        %5903 = vmatpush2.msra.mxu0 0.0
        %5904 = vmatprep.subr.mxu0 0.0
        %5905 = vmatpush2.msra.mxu0 0.0
        %5906 = vmatprep.subr.mxu0 0.0
        %5907 = vmatpush2.msra.mxu0 0.0
        %5908 = vmatprep.subr.mxu0 0.0
        %5909 = vmatpush2.msra.mxu0 0.0
        %5910 = vmatprep.mubr.f32.mxu0 0.0
        %5911 = vmatmul.mubr.f32.gmra.mxu0 %v5844
        %v5912 = vpop.f32.mrf.mxu0
        %v5913 = vadd.f32 0.0, %v5912
        %v5914 = vpop.f32.mrf.mxu0
        %5915 = vdwg.mxu0
        %v5917 = vsel %vm1336, %v5685, 0
        %5919 = vmatprep.subr.mxu0 0.0
        %5920 = vmatpush1.msra.mxu0 0.0
        %5921 = vmatprep.subr.mxu0 0.0
        %5922 = vmatpush1.msra.mxu0 0.0
        %5923 = vmatprep.subr.mxu0 0.0
        %5924 = vmatpush1.msra.mxu0 0.0
        %5925 = vmatprep.subr.mxu0 0.0
        %5926 = vmatpush1.msra.mxu0 0.0
        %5927 = vmatprep.subr.mxu0 0.0
        %5928 = vmatpush1.msra.mxu0 0.0
        %5929 = vmatprep.subr.mxu0 0.0
        %5930 = vmatpush1.msra.mxu0 0.0
        %5931 = vmatprep.subr.mxu0 0.0
        %5932 = vmatpush1.msra.mxu0 0.0
        %5933 = vmatprep.subr.mxu0 0.0
        %5934 = vmatpush1.msra.mxu0 0.0
        %5935 = vmatprep.subr.mxu0 0.0
        %5936 = vmatpush1.msra.mxu0 0.0
        %5937 = vmatprep.subr.mxu0 0.0
        %5938 = vmatpush1.msra.mxu0 0.0
        %5939 = vmatprep.subr.mxu0 0.0
        %5940 = vmatpush1.msra.mxu0 0.0
        %5941 = vmatprep.subr.mxu0 0.0
        %5942 = vmatpush1.msra.mxu0 0.0
        %5943 = vmatprep.subr.mxu0 0.0
        %5944 = vmatpush1.msra.mxu0 0.0
        %5945 = vmatprep.subr.mxu0 0.0
        %5946 = vmatpush1.msra.mxu0 0.0
        %5947 = vmatprep.subr.mxu0 0.0
        %5948 = vmatpush1.msra.mxu0 0.0
        %5949 = vmatprep.subr.mxu0 0.0
        %5950 = vmatpush1.msra.mxu0 %v5913
        %5951 = vmatprep.subr.mxu0 0.0
        %5952 = vmatpush2.msra.mxu0 0.0
        %5953 = vmatprep.subr.mxu0 0.0
        %5954 = vmatpush2.msra.mxu0 0.0
        %5955 = vmatprep.subr.mxu0 0.0
        %5956 = vmatpush2.msra.mxu0 0.0
        %5957 = vmatprep.subr.mxu0 0.0
        %5958 = vmatpush2.msra.mxu0 0.0
        %5959 = vmatprep.subr.mxu0 0.0
        %5960 = vmatpush2.msra.mxu0 0.0
        %5961 = vmatprep.subr.mxu0 0.0
        %5962 = vmatpush2.msra.mxu0 0.0
        %5963 = vmatprep.subr.mxu0 0.0
        %5964 = vmatpush2.msra.mxu0 0.0
        %5965 = vmatprep.subr.mxu0 0.0
        %5966 = vmatpush2.msra.mxu0 0.0
        %5967 = vmatprep.subr.mxu0 0.0
        %5968 = vmatpush2.msra.mxu0 0.0
        %5969 = vmatprep.subr.mxu0 0.0
        %5970 = vmatpush2.msra.mxu0 0.0
        %5971 = vmatprep.subr.mxu0 0.0
        %5972 = vmatpush2.msra.mxu0 0.0
        %5973 = vmatprep.subr.mxu0 0.0
        %5974 = vmatpush2.msra.mxu0 0.0
        %5975 = vmatprep.subr.mxu0 0.0
        %5976 = vmatpush2.msra.mxu0 0.0
        %5977 = vmatprep.subr.mxu0 0.0
        %5978 = vmatpush2.msra.mxu0 0.0
        %5979 = vmatprep.subr.mxu0 0.0
        %5980 = vmatpush2.msra.mxu0 0.0
        %5981 = vmatprep.subr.mxu0 0.0
        %5982 = vmatpush2.msra.mxu0 0.0
        %5983 = vmatprep.mubr.f32.mxu0 0.0
        %5984 = vmatmul.mubr.f32.gmra.mxu0 %v5917
        %v5985 = vpop.f32.mrf.mxu0
        %v5986 = vadd.f32 0.0, %v5985
        %v5987 = vpop.f32.mrf.mxu0
        %5988 = vdwg.mxu0
        %v5989 = vadd.f32 %v5541, %v5986
        %v5990 = vld [vmem:[#allocation19] sm:$0x1]
        %v5991 = vld [vmem:[#allocation20] sm:$0x1]
        %v5992 = vsel %vm1178, %v5838, 0.0
        %5993 = vadd.xlane.f32.xlu0 %v5992
        %v5994 = vpop.xlane.xlu0 %5993
        %v5995 = vrcp.pop 32.0
        %v5996 = vmul.f32 %v5994, %v5995
        %v5997 = vsub.f32 %v5838, %v5996
        %v5998 = vmul.f32 %v5997, %v5997
        %v5999 = vsel %vm1178, %v5998, 0.0
        %6000 = vadd.xlane.f32.xlu0 %v5999
        %v6001 = vpop.xlane.xlu0 %6000
        %v6002 = vmul.f32 %v6001, %v5995
        %v6003 = vadd.f32 %v6002, 1e-05
        %v6004 = vrsqrt.pop %v6003
        %v6005 = vmul.f32 %v5997, %v6004
        %v6007 = vlaneseq
        %v6008 = vshrl.u32 %v6007, 7
        %v6009 = vsub.s32 0, %v6008
        %v6010 = vrot.slane %v5990, %v6009
        %v6012 = vmul.f32 %v6005, %v6010
        %v6014 = vlaneseq
        %v6015 = vshrl.u32 %v6014, 7
        %v6016 = vsub.s32 0, %v6015
        %v6017 = vrot.slane %v5991, %v6016
        %v6019 = vadd.f32 %v6012, %v6017
        %6020 = vst.msk [vmem:[%s1094] sm:$0xff] %vm1178, %v6019
        %v6021 = vld [vmem:[#allocation22] sm:$0x1]
        %v6022 = vld [vmem:[#allocation23] sm:$0x1]
        %v6023 = vsel %vm1178, %v5989, 0.0
        %6024 = vadd.xlane.f32.xlu0 %v6023
        %v6025 = vpop.xlane.xlu0 %6024
        %v6026 = vmul.f32 %v6025, %v5995
        %v6027 = vsub.f32 %v5989, %v6026
        %v6028 = vmul.f32 %v6027, %v6027
        %v6029 = vsel %vm1178, %v6028, 0.0
        %6030 = vadd.xlane.f32.xlu0 %v6029
        %v6031 = vpop.xlane.xlu0 %6030
        %v6032 = vmul.f32 %v6031, %v5995
        %v6033 = vadd.f32 %v6032, 1e-05
        %v6034 = vrsqrt.pop %v6033
        %v6035 = vmul.f32 %v6027, %v6034
        %v6037 = vlaneseq
        %v6038 = vshrl.u32 %v6037, 7
        %v6039 = vsub.s32 0, %v6038
        %v6040 = vrot.slane %v6021, %v6039
        %v6042 = vmul.f32 %v6035, %v6040
        %v6044 = vlaneseq
        %v6045 = vshrl.u32 %v6044, 7
        %v6046 = vsub.s32 0, %v6045
        %v6047 = vrot.slane %v6022, %v6046
        %v6049 = vadd.f32 %v6042, %v6047
        %6050 = vst.msk [vmem:[%s1101] sm:$0xff] %vm1178, %v6049
        %vm6051 = vcmask 7168
        %6052 = vst.msk [vmem:[%s1159] sm:$0xff] %vm6051, %v5520
        %6053 = vst.msk [vmem:[%s1163] sm:$0xff] %vm6051, %v5529
        %s6054 = sand.u32 %s521, 1
        %s6055 = scalar_lea.sflag [#allocation4], %s6054
        %s6056 = sand.u32 %s521, 1
        %s6057 = smul.addr %s6056, 8
        %s6058 = scalar_lea.vmem [#allocation25], %s6057
        %s6059 = sand.u32 %s63, 1
        %s6060 = scalar_lea.sflag [#allocation27], %s6059
        %s6061 = sand.u32 %s547, 1
        %s6062 = smul.addr %s6061, 8
        %s6063 = scalar_lea.vmem [#allocation26], %s6062
        %s6064 = sand.u32 %s63, 1
        %s6065 = scalar_lea.sflag [#allocation27], %s6064
        %s6066 = sand.u32 %s573, 1
        %s6067 = smul.addr %s6066, 32
        %s6068 = scalar_lea.vmem [#allocation28], %s6067
        %s6069 = sand.u32 %s63, 1
        %s6070 = scalar_lea.sflag [#allocation30], %s6069
        %s6071 = sand.u32 %s599, 1
        %s6072 = smul.addr %s6071, 32
        %s6073 = scalar_lea.vmem [#allocation29], %s6072
        %s6074 = sand.u32 %s63, 1
        %s6075 = scalar_lea.sflag [#allocation30], %s6074
        %s6076 = sand.u32 %s625, 1
        %s6077 = smul.addr %s6076, 32
        %s6078 = scalar_lea.vmem [#allocation31], %s6077
        %s6079 = sand.u32 %s651, 1
        %s6080 = scalar_lea.sflag [#allocation33], %s6079
        %s6081 = sand.u32 %s651, 1
        %s6082 = smul.addr %s6081, 32
        %s6083 = scalar_lea.vmem [#allocation32], %s6082
        %p6084 = scmp.lt.s32.totalorder %s63, 1
        %s6085 = scalar_select %p6084, %s63, 1
        %s6086 = smul.addr %s6085, 8
        %s6087 = scalar_lea.vmem %s26, %s6086
        %p6088 = scmp.lt.s32.totalorder %s63, 1
        %s6089 = scalar_select %p6088, %s63, 1
        %s6090 = smul.addr %s6089, 8
        %s6091 = scalar_lea.vmem %s27, %s6090
        // Predicated region
        $region157: #{self_cross_graph_layer.1} parent=99 // pred_check
          %p6092 = pneg %p531
        $region158: #{self_cross_graph_layer.1} parent=99 // pred_check_branch
          %6094 = sbr.rel (%p6092) target = $region160
        $region159: #{self_cross_graph_layer.1} parent=99 // pred_region
          %s6096 = ssub.s32 128, 128
          %6097 = vsyncadd %s6055, %s6096
          %s6098 = smul.addr %s63, 128
          %s6099 = scalar_lea.hbm %s20, %s6098
          %s6101 = sshll.u32 %s6058, 4
          %s6102 = int_to_ptr.vmem [resolvable:$true] %s6101
          %6104 = dma.vmem_to_hbm [thread:$0]  %s6102, 128, %s6099, %s6055
        $region160: #{self_cross_graph_layer.1} parent=99 // pred_fallthru
          _
        // Predicated region
        $region161: #{self_cross_graph_layer.1} parent=99 // pred_check
          %p6105 = pneg %p557
        $region162: #{self_cross_graph_layer.1} parent=99 // pred_check_branch
          %6107 = sbr.rel (%p6105) target = $region164
        $region163: #{self_cross_graph_layer.1} parent=99 // pred_region
          %s6109 = ssub.s32 128, 128
          %6110 = vsyncadd %s6060, %s6109
          %s6111 = smul.addr %s63, 128
          %s6112 = scalar_lea.hbm %s21, %s6111
          %s6114 = sshll.u32 %s6063, 4
          %s6115 = int_to_ptr.vmem [resolvable:$true] %s6114
          %6117 = dma.vmem_to_hbm [thread:$0]  %s6115, 128, %s6112, %s6060
        $region164: #{self_cross_graph_layer.1} parent=99 // pred_fallthru
          _
        // Predicated region
        $region165: #{self_cross_graph_layer.1} parent=99 // pred_check
          %p6118 = pneg %p583
        $region166: #{self_cross_graph_layer.1} parent=99 // pred_check_branch
          %6120 = sbr.rel (%p6118) target = $region168
        $region167: #{self_cross_graph_layer.1} parent=99 // pred_region
          %s6122 = ssub.s32 512, 512
          %6123 = vsyncadd %s6065, %s6122
          %s6124 = smul.addr %s63, 4
          %s6125 = smul.addr %s6124, 128
          %s6126 = scalar_lea.hbm %s22, %s6125
          %s6127 = sshll.u32 %s6068, 4
          %s6128 = int_to_ptr.vmem [resolvable:$true] %s6127
          %6133 = dma.vmem_to_hbm [thread:$0]  %s6128, 512, %s6126, %s6065, 128, 128, 8
        $region168: #{self_cross_graph_layer.1} parent=99 // pred_fallthru
          _
        // Predicated region
        $region169: #{self_cross_graph_layer.1} parent=99 // pred_check
          %p6134 = pneg %p609
        $region170: #{self_cross_graph_layer.1} parent=99 // pred_check_branch
          %6136 = sbr.rel (%p6134) target = $region172
        $region171: #{self_cross_graph_layer.1} parent=99 // pred_region
          %s6138 = ssub.s32 512, 512
          %6139 = vsyncadd %s6070, %s6138
          %s6140 = smul.addr %s63, 4
          %s6141 = smul.addr %s6140, 128
          %s6142 = scalar_lea.hbm %s23, %s6141
          %s6143 = sshll.u32 %s6073, 4
          %s6144 = int_to_ptr.vmem [resolvable:$true] %s6143
          %6149 = dma.vmem_to_hbm [thread:$0]  %s6144, 512, %s6142, %s6070, 128, 128, 8
        $region172: #{self_cross_graph_layer.1} parent=99 // pred_fallthru
          _
        // Predicated region
        $region173: #{self_cross_graph_layer.1} parent=99 // pred_check
          %p6150 = pneg %p635
        $region174: #{self_cross_graph_layer.1} parent=99 // pred_check_branch
          %6152 = sbr.rel (%p6150) target = $region176
        $region175: #{self_cross_graph_layer.1} parent=99 // pred_region
          %s6154 = ssub.s32 512, 512
          %6155 = vsyncadd %s6075, %s6154
          %s6156 = smul.addr %s63, 4
          %s6157 = smul.addr %s6156, 128
          %s6158 = scalar_lea.hbm %s24, %s6157
          %s6159 = sshll.u32 %s6078, 4
          %s6160 = int_to_ptr.vmem [resolvable:$true] %s6159
          %6165 = dma.vmem_to_hbm [thread:$0]  %s6160, 512, %s6158, %s6075, 128, 128, 8
        $region176: #{self_cross_graph_layer.1} parent=99 // pred_fallthru
          _
        // Predicated region
        $region177: #{self_cross_graph_layer.1} parent=99 // pred_check
          %p6166 = pneg %p661
        $region178: #{self_cross_graph_layer.1} parent=99 // pred_check_branch
          %6168 = sbr.rel (%p6166) target = $region180
        $region179: #{self_cross_graph_layer.1} parent=99 // pred_region
          %s6170 = ssub.s32 512, 512
          %6171 = vsyncadd %s6080, %s6170
          %s6172 = smul.addr %s63, 4
          %s6173 = smul.addr %s6172, 128
          %s6174 = scalar_lea.hbm %s25, %s6173
          %s6175 = sshll.u32 %s6083, 4
          %s6176 = int_to_ptr.vmem [resolvable:$true] %s6175
          %6181 = dma.vmem_to_hbm [thread:$0]  %s6176, 512, %s6174, %s6080, 128, 128, 8
        $region180: #{self_cross_graph_layer.1} parent=99 // pred_fallthru
          _
        // Predicated region
        $region181: #{self_cross_graph_layer.1} parent=99 // pred_check
          %p6182 = pneg %p687
        $region182: #{self_cross_graph_layer.1} parent=99 // pred_check_branch
          %6184 = sbr.rel (%p6182) target = $region184
        $region183: #{self_cross_graph_layer.1} parent=99 // pred_region
          _
        $region184: #{self_cross_graph_layer.1} parent=99 // pred_fallthru
          _
        // Predicated region
        $region185: #{self_cross_graph_layer.1} parent=99 // pred_check
          %p6185 = pneg %p713
        $region186: #{self_cross_graph_layer.1} parent=99 // pred_check_branch
          %6187 = sbr.rel (%p6185) target = $region188
        $region187: #{self_cross_graph_layer.1} parent=99 // pred_region
          _
        $region188: #{self_cross_graph_layer.1} parent=99 // pred_fallthru
          _
      $region100: #{self_cross_graph_layer.1} parent=5 // pred_fallthru
        _
      %p6188 = scmp.le.s32.totalorder 2, %s58
      // Predicated region
      $region189: #{self_cross_graph_layer.1} parent=5 // pred_check
        %p6189 = pneg %p6188
      $region190: #{self_cross_graph_layer.1} parent=5 // pred_check_branch
        %6191 = sbr.rel (%p6189) target = $region192
      $region191: #{self_cross_graph_layer.1} parent=5 // pred_region
        %s6192 = ssub.s32 %s58, 2
        // Predicated region
        $region193: #{self_cross_graph_layer.1} parent=191 // pred_check
          %p6193 = pneg %p537
        $region194: #{self_cross_graph_layer.1} parent=191 // pred_check_branch
          %6195 = sbr.rel (%p6193) target = $region196
        $region195: #{self_cross_graph_layer.1} parent=191 // pred_region
          %s6196 = sand.u32 %s522, 1
          %s6197 = scalar_lea.sflag [#allocation4], %s6196
          %s6198 = sand.u32 %s522, 1
          %s6199 = smul.addr %s6198, 8
          %s6200 = scalar_lea.vmem [#allocation25], %s6199
          %6201 = dma.done %s6197, 128
        $region196: #{self_cross_graph_layer.1} parent=191 // pred_fallthru
          _
        // Predicated region
        $region197: #{self_cross_graph_layer.1} parent=191 // pred_check
          %p6202 = pneg %p563
        $region198: #{self_cross_graph_layer.1} parent=191 // pred_check_branch
          %6204 = sbr.rel (%p6202) target = $region200
        $region199: #{self_cross_graph_layer.1} parent=191 // pred_region
          %s6205 = sand.u32 %s64, 1
          %s6206 = scalar_lea.sflag [#allocation27], %s6205
          %s6207 = sand.u32 %s548, 1
          %s6208 = smul.addr %s6207, 8
          %s6209 = scalar_lea.vmem [#allocation26], %s6208
          %6210 = dma.done %s6206, 128
        $region200: #{self_cross_graph_layer.1} parent=191 // pred_fallthru
          _
        // Predicated region
        $region201: #{self_cross_graph_layer.1} parent=191 // pred_check
          %p6211 = pneg %p589
        $region202: #{self_cross_graph_layer.1} parent=191 // pred_check_branch
          %6213 = sbr.rel (%p6211) target = $region204
        $region203: #{self_cross_graph_layer.1} parent=191 // pred_region
          %s6214 = sand.u32 %s64, 1
          %s6215 = scalar_lea.sflag [#allocation27], %s6214
          %s6216 = sand.u32 %s574, 1
          %s6217 = smul.addr %s6216, 32
          %s6218 = scalar_lea.vmem [#allocation28], %s6217
          %6219 = dma.done %s6215, 512
        $region204: #{self_cross_graph_layer.1} parent=191 // pred_fallthru
          _
        // Predicated region
        $region205: #{self_cross_graph_layer.1} parent=191 // pred_check
          %p6220 = pneg %p615
        $region206: #{self_cross_graph_layer.1} parent=191 // pred_check_branch
          %6222 = sbr.rel (%p6220) target = $region208
        $region207: #{self_cross_graph_layer.1} parent=191 // pred_region
          %s6223 = sand.u32 %s64, 1
          %s6224 = scalar_lea.sflag [#allocation30], %s6223
          %s6225 = sand.u32 %s600, 1
          %s6226 = smul.addr %s6225, 32
          %s6227 = scalar_lea.vmem [#allocation29], %s6226
          %6228 = dma.done %s6224, 512
        $region208: #{self_cross_graph_layer.1} parent=191 // pred_fallthru
          _
        // Predicated region
        $region209: #{self_cross_graph_layer.1} parent=191 // pred_check
          %p6229 = pneg %p641
        $region210: #{self_cross_graph_layer.1} parent=191 // pred_check_branch
          %6231 = sbr.rel (%p6229) target = $region212
        $region211: #{self_cross_graph_layer.1} parent=191 // pred_region
          %s6232 = sand.u32 %s64, 1
          %s6233 = scalar_lea.sflag [#allocation30], %s6232
          %s6234 = sand.u32 %s626, 1
          %s6235 = smul.addr %s6234, 32
          %s6236 = scalar_lea.vmem [#allocation31], %s6235
          %6237 = dma.done %s6233, 512
        $region212: #{self_cross_graph_layer.1} parent=191 // pred_fallthru
          _
        // Predicated region
        $region213: #{self_cross_graph_layer.1} parent=191 // pred_check
          %p6238 = pneg %p667
        $region214: #{self_cross_graph_layer.1} parent=191 // pred_check_branch
          %6240 = sbr.rel (%p6238) target = $region216
        $region215: #{self_cross_graph_layer.1} parent=191 // pred_region
          %s6241 = sand.u32 %s652, 1
          %s6242 = scalar_lea.sflag [#allocation33], %s6241
          %s6243 = sand.u32 %s652, 1
          %s6244 = smul.addr %s6243, 32
          %s6245 = scalar_lea.vmem [#allocation32], %s6244
          %6246 = dma.done %s6242, 512
        $region216: #{self_cross_graph_layer.1} parent=191 // pred_fallthru
          _
        // Predicated region
        $region217: #{self_cross_graph_layer.1} parent=191 // pred_check
          %p6247 = pneg %p693
        $region218: #{self_cross_graph_layer.1} parent=191 // pred_check_branch
          %6249 = sbr.rel (%p6247) target = $region220
        $region219: #{self_cross_graph_layer.1} parent=191 // pred_region
          %p6250 = scmp.lt.s32.totalorder %s64, 1
          %s6251 = scalar_select %p6250, %s64, 1
          %s6252 = smul.addr %s6251, 8
          %s6253 = scalar_lea.vmem %s26, %s6252
        $region220: #{self_cross_graph_layer.1} parent=191 // pred_fallthru
          _
        // Predicated region
        $region221: #{self_cross_graph_layer.1} parent=191 // pred_check
          %p6254 = pneg %p719
        $region222: #{self_cross_graph_layer.1} parent=191 // pred_check_branch
          %6256 = sbr.rel (%p6254) target = $region224
        $region223: #{self_cross_graph_layer.1} parent=191 // pred_region
          %p6257 = scmp.lt.s32.totalorder %s64, 1
          %s6258 = scalar_select %p6257, %s64, 1
          %s6259 = smul.addr %s6258, 8
          %s6260 = scalar_lea.vmem %s27, %s6259
        $region224: #{self_cross_graph_layer.1} parent=191 // pred_fallthru
          _
      $region192: #{self_cross_graph_layer.1} parent=5 // pred_fallthru
        _
    $region6: #{self_cross_graph_layer.1} parent=1 // loop_footer
      %s62 = sadd.s32 1, %s58
    $region7: #{self_cross_graph_layer.1} parent=1 // loop_footer_branch
      %57 = sbr.rel target = $region3
    $region8: #{self_cross_graph_layer.1} parent=1 // loop_exit
      _
    %6261 = vsyncpa [#allocation3], 1
    %s6262 = scalar_lea.sflag [#allocation3], 1
    %6263 = vsyncpa %s6262, 1
    %6264 = vsyncpa [#allocation6], 1
    %s6265 = scalar_lea.sflag [#allocation6], 1
    %6266 = vsyncpa %s6265, 1
    %6267 = vsyncpa [#allocation9], 1
    %6268 = vsyncpa [#allocation12], 1
    %6269 = vsyncpa [#allocation15], 1
    %6270 = vsyncpa [#allocation18], 1
    %6271 = vsyncpa [#allocation21], 1
    %6272 = vsyncpa [#allocation24], 1
    %6273 = vsyncpa [#allocation4], 1
    %s6274 = scalar_lea.sflag [#allocation4], 1
    %6275 = vsyncpa %s6274, 1
    %6276 = vsyncpa [#allocation27], 1
    %s6277 = scalar_lea.sflag [#allocation27], 1
    %6278 = vsyncpa %s6277, 1
    %6279 = vsyncpa [#allocation30], 1
    %s6280 = scalar_lea.sflag [#allocation30], 1
    %6281 = vsyncpa %s6280, 1
    %6282 = vsyncpa [#allocation33], 1
    %s6283 = scalar_lea.sflag [#allocation33], 1
    %6284 = vsyncpa %s6283, 1

</llo_original>
